<compile_context>
chip_gen: v7x
topology: tpu7x:2x2x1
jax: 0.10.0
libtpu: 0.0.40
codegen_flags: <defaults>
</compile_context>

<pallas_src>
import functools

import jax
import jax.numpy as jnp
from jax import lax
from jax.experimental import pallas as pl
from jax.experimental.pallas import tpu as pltpu


# -----------------------------------------------------------------------------
# helpers: pick TPU-friendly tile sizes (multiples of 128 / 8, or the full dim)
# -----------------------------------------------------------------------------
def _tile(dim, target):
    if dim <= target:
        return dim
    t = (target // 128) * 128
    while t >= 128:
        if dim % t == 0:
            return t
        t -= 128
    return dim


def _chunk(dim, target=128):
    if dim <= target:
        return dim
    c = (target // 8) * 8
    while c >= 8:
        if dim % c == 0:
            return c
        c -= 8
    return dim


# -----------------------------------------------------------------------------
# Kernel 1: tiled matmul (linear projections), bf16 MXU inputs, f32 accumulator
# -----------------------------------------------------------------------------
def _matmul_kernel(x_ref, w_ref, o_ref, acc_ref):
    @pl.when(pl.program_id(2) == 0)
    def _():
        acc_ref[...] = jnp.zeros_like(acc_ref)

    acc_ref[...] += jnp.dot(x_ref[...], w_ref[...],
                            preferred_element_type=jnp.float32)

    @pl.when(pl.program_id(2) == pl.num_programs(2) - 1)
    def _():
        o_ref[...] = acc_ref[...].astype(o_ref.dtype)


def pallas_linear(x, w, out_dtype=jnp.bfloat16, tm=256, tn=256, tk=512):
    """x: (..., K) @ w: (K, N) -> (..., N); bf16 in, f32 accumulate."""
    lead = x.shape[:-1]
    K = x.shape[-1]
    N = w.shape[-1]
    xs = x.reshape(-1, K).astype(jnp.bfloat16)
    wb = w.astype(jnp.bfloat16)
    Mrows = xs.shape[0]
    bm, bn, bk = _tile(Mrows, tm), _tile(N, tn), _tile(K, tk)
    out = pl.pallas_call(
        _matmul_kernel,
        out_shape=jax.ShapeDtypeStruct((Mrows, N), out_dtype),
        grid=(Mrows // bm, N // bn, K // bk),
        in_specs=[
            pl.BlockSpec((bm, bk), lambda i, j, k: (i, k)),
            pl.BlockSpec((bk, bn), lambda i, j, k: (k, j)),
        ],
        out_specs=pl.BlockSpec((bm, bn), lambda i, j, k: (i, j)),
        scratch_shapes=[pltpu.VMEM((bm, bn), jnp.float32)],
        compiler_params=pltpu.CompilerParams(
            dimension_semantics=("parallel", "parallel", "arbitrary")),
    )(xs, wb)
    return out.reshape(*lead, N)


# -----------------------------------------------------------------------------
# Kernel 2: shared causal short conv (depthwise, kernel=conv_size) + SiLU
#           (no HBM padding: the causal left pad lives in a VMEM scratch)
# -----------------------------------------------------------------------------
def _shortconv_kernel(x_ref, w_ref, o_ref, xp_ref):
    T, D = o_ref.shape
    W = w_ref.shape[0]
    xp_ref[...] = jnp.zeros_like(xp_ref)
    xp_ref[W - 1:W - 1 + T, :] = x_ref[...].astype(jnp.float32)
    acc = jnp.zeros((T, D), jnp.float32)
    for i in range(W):                                     # static unroll
        acc = acc + xp_ref[i:i + T, :] * w_ref[i:i + 1, :].astype(jnp.float32)
    o_ref[...] = (acc * jax.nn.sigmoid(acc)).astype(o_ref.dtype)   # SiLU


def short_conv_silu(x, w):
    """x: (B, T, D); w: (W, D) depthwise taps. Causal conv over T, then SiLU."""
    B, T, D = x.shape
    W = w.shape[0]
    # TODO(synk): tile over T with a (conv_size-1)-row halo for long sequences.
    return pl.pallas_call(
        _shortconv_kernel,
        out_shape=jax.ShapeDtypeStruct((B, T, D), jnp.bfloat16),
        grid=(B,),
        in_specs=[
            pl.BlockSpec((None, T, D), lambda b: (b, 0, 0)),
            pl.BlockSpec((W, D), lambda b: (0, 0)),
        ],
        out_specs=pl.BlockSpec((None, T, D), lambda b: (b, 0, 0)),
        scratch_shapes=[pltpu.VMEM((T + W - 1, D), jnp.float32)],
        compiler_params=pltpu.CompilerParams(dimension_semantics=("parallel",)),
    )(x, w.astype(jnp.float32))


# -----------------------------------------------------------------------------
# Kernel 3: fused low-rank slot projection  s = (h @ W1) @ W2 + b
#           (rank-r intermediate stays in VMEM; no HBM round-trip)
# -----------------------------------------------------------------------------
def _lowrank_s_kernel(x_ref, w1_ref, w2_ref, b_ref, o_ref):
    t = jnp.dot(x_ref[...], w1_ref[...], preferred_element_type=jnp.float32)
    s = jnp.dot(t, w2_ref[...], preferred_element_type=jnp.float32) + b_ref[...]
    o_ref[...] = s.astype(o_ref.dtype)


def lowrank_s_proj(x, w1, w2, b):
    """x: (B, T, D), w1: (D, r), w2: (r, N), b: (N,) -> (B, T, N) f32."""
    B, T, D = x.shape
    R = B * T
    r = w1.shape[-1]
    N = w2.shape[-1]
    xs = x.reshape(R, D)
    br = _tile(R, 256)
    out = pl.pallas_call(
        _lowrank_s_kernel,
        out_shape=jax.ShapeDtypeStruct((R, N), jnp.float32),
        grid=(R // br,),
        in_specs=[
            pl.BlockSpec((br, D), lambda i: (i, 0)),
            pl.BlockSpec((D, r), lambda i: (0, 0)),
            pl.BlockSpec((r, N), lambda i: (0, 0)),
            pl.BlockSpec((1, N), lambda i: (0, 0)),
        ],
        out_specs=pl.BlockSpec((br, N), lambda i: (i, 0)),
        compiler_params=pltpu.CompilerParams(dimension_semantics=("parallel",)),
    )(xs, w1.astype(jnp.bfloat16), w2.astype(jnp.float32),
      b.reshape(1, N).astype(jnp.float32))
    return out.reshape(B, T, N)


# -----------------------------------------------------------------------------
# Kernel 4: chunked ABC attention core (rotary + clamp + chunk_abc)
#   grid = (batch, seq-chunk); per-(batch) recurrent slot state carried in VMEM:
#     zrun : (1, H*M)      running log-normalizer per (head, slot)
#     S1   : (H*Dk, M)     sum_j exp(s_j - zrun) * k_j   (stage-1 state, per head)
#     S2   : (H*Dv, M)     sum_j exp(s_j - zrun) * v_j   (stage-2 state, per head)
# -----------------------------------------------------------------------------
def _abc_kernel(qkvg_ref, s_ref, cq_ref, sq_ref, ck_ref, sk_ref, o_ref,
                zrun_ref, s1_ref, s2_ref, *,
                H, Dk, Dv, M, key_dim, clamp_min, clamp_max):
    Tc = o_ref.shape[0]
    half = Dk // 2

    # reset the carried recurrent state at the first chunk of every batch
    @pl.when(pl.program_id(1) == 0)
    def _():
        zrun_ref[...] = jnp.full_like(zrun_ref, -1e30)
        s1_ref[...] = jnp.zeros_like(s1_ref)
        s2_ref[...] = jnp.zeros_like(s2_ref)

    x = qkvg_ref[...]                                           # (Tc, 2K+2V) bf16
    s_all = jnp.clip(s_ref[...].astype(jnp.float32), clamp_min, clamp_max)

    cq = cq_ref[...]                                            # (Tc, Dk), scale folded
    sq = sq_ref[...]
    ck = ck_ref[...]
    sk = sk_ref[...]

    # slot normalizer: z_t = logsumexp(z_prev, logcumsumexp_{j<=t in chunk} s_j)
    zprev = zrun_ref[...]                                       # (1, H*M)
    mx = jnp.maximum(zprev, jnp.max(s_all, axis=0, keepdims=True))
    es = jnp.exp(s_all - mx)                                    # (Tc, H*M)
    pmass = jnp.exp(zprev - mx)                                 # exp(z_prev - mx)

    row = lax.broadcasted_iota(jnp.int32, (Tc, Tc), 0)
    col = lax.broadcasted_iota(jnp.int32, (Tc, Tc), 1)
    causal = row >= col
    L = causal.astype(jnp.float32)
    cums = jnp.dot(L, es, preferred_element_type=jnp.float32) + pmass   # (Tc, H*M)
    rz = 1.0 / cums                                             # exp(mx - z_t)

    outs = []
    for h in range(H):                                          # static unroll
        qh = x[:, h * Dk:(h + 1) * Dk].astype(jnp.float32)
        kh = x[:, key_dim + h * Dk:key_dim + (h + 1) * Dk].astype(jnp.float32)
        vh = x[:, 2 * key_dim + h * Dv:2 * key_dim + (h + 1) * Dv].astype(jnp.float32)

        # rotary (rotate-half form; q-scale folded into cq/sq in the wrapper)
        qh = qh * cq + jnp.concatenate([qh[:, half:], qh[:, :half]], axis=-1) * sq
        kh = kh * ck + jnp.concatenate([kh[:, half:], kh[:, :half]], axis=-1) * sk

        esh = es[:, h * M:(h + 1) * M]                          # (Tc, M)
        rzh = rz[:, h * M:(h + 1) * M]
        pmh = pmass[:, h * M:(h + 1) * M]                       # (1, M)
        S1h = s1_ref[h * Dk:(h + 1) * Dk, :]                    # (Dk, M)
        S2h = s2_ref[h * Dv:(h + 1) * Dv, :]                    # (Dv, M)

        # stage 1: slot scores (intra-chunk causal + inter-chunk state)
        A = jnp.dot(qh, kh.T, preferred_element_type=jnp.float32)        # (Tc, Tc)
        A = jnp.where(causal, A, 0.0)
        ok = (jnp.dot(A, esh, preferred_element_type=jnp.float32)
              + jnp.dot(qh, S1h, preferred_element_type=jnp.float32) * pmh) * rzh

        # softmax over memory slots
        p = jnp.exp(ok - jnp.max(ok, axis=-1, keepdims=True))
        p = p * pl.reciprocal(jnp.sum(p, axis=-1, keepdims=True), approx=True)

        # stage 2: read values through the slots
        U = p * rzh
        Wm = jnp.dot(U, esh.T, preferred_element_type=jnp.float32)       # (Tc, Tc)
        Wm = jnp.where(causal, Wm, 0.0)
        ov = (jnp.dot(Wm, vh, preferred_element_type=jnp.float32)
              + jnp.dot(p * pmh * rzh, S2h.T, preferred_element_type=jnp.float32))
        outs.append(ov)

        # carry the per-slot recurrent state to the next chunk
        clh = cums[Tc - 1:Tc, h * M:(h + 1) * M]                # (1, M)
        rclh = 1.0 / clh
        s1_ref[h * Dk:(h + 1) * Dk, :] = (
            S1h * pmh + jnp.dot(kh.T, esh, preferred_element_type=jnp.float32)) * rclh
        s2_ref[h * Dv:(h + 1) * Dv, :] = (
            S2h * pmh + jnp.dot(vh.T, esh, preferred_element_type=jnp.float32)) * rclh

    zrun_ref[...] = jnp.log(cums[Tc - 1:Tc, :]) + mx
    o_ref[...] = jnp.concatenate(outs, axis=-1).astype(o_ref.dtype)


def abc_attention_core(qkvg, s, cos_q, sin_q, cos_k, sin_k, *,
                       num_heads, key_dim, value_dim, num_slots,
                       clamp_min, clamp_max):
    """qkvg: (B,T,2*key_dim+2*value_dim) bf16 ; s: (B,T,H*M) f32 -> (B,T,value_dim)."""
    B, T, C = qkvg.shape
    H = num_heads
    Dk = key_dim // H
    Dv = value_dim // H
    M = num_slots
    HM = H * M
    Tc = _chunk(T, 128)
    NC = T // Tc
    kernel = functools.partial(
        _abc_kernel, H=H, Dk=Dk, Dv=Dv, M=M, key_dim=key_dim,
        clamp_min=clamp_min, clamp_max=clamp_max)
    return pl.pallas_call(
        kernel,
        out_shape=jax.ShapeDtypeStruct((B, T, value_dim), jnp.bfloat16),
        grid=(B, NC),
        in_specs=[
            pl.BlockSpec((None, Tc, C), lambda b, c: (b, c, 0)),
            pl.BlockSpec((None, Tc, HM), lambda b, c: (b, c, 0)),
            pl.BlockSpec((Tc, Dk), lambda b, c: (c, 0)),
            pl.BlockSpec((Tc, Dk), lambda b, c: (c, 0)),
            pl.BlockSpec((Tc, Dk), lambda b, c: (c, 0)),
            pl.BlockSpec((Tc, Dk), lambda b, c: (c, 0)),
        ],
        out_specs=pl.BlockSpec((None, Tc, value_dim), lambda b, c: (b, c, 0)),
        scratch_shapes=[
            pltpu.VMEM((1, HM), jnp.float32),       # running log-normalizer
            pltpu.VMEM((H * Dk, M), jnp.float32),   # stage-1 slot state
            pltpu.VMEM((H * Dv, M), jnp.float32),   # stage-2 slot state
        ],
        compiler_params=pltpu.CompilerParams(
            dimension_semantics=("parallel", "arbitrary")),
    )(qkvg, s, cos_q, sin_q, cos_k, sin_k)


# -----------------------------------------------------------------------------
# Kernel 5: FusedRMSNormSwishGate, row-tiled, per-head reduction as a matmul
#           against a block-diagonal averaging matrix (lane-dense H*Dv layout).
#           The gate g is sliced out of the fused qkvg tensor inside the kernel.
# -----------------------------------------------------------------------------
def _rmsnorm_swish_gate_kernel(o_ref, x_ref, hmat_ref, w_ref, out_ref, *, g_off, eps):
    xo = o_ref[...].astype(jnp.float32)                      # (br, H*Dv)
    g = x_ref[...][:, g_off:].astype(jnp.float32)            # gate slice of qkvg
    ms = jnp.dot(xo * xo, hmat_ref[...],
                 preferred_element_type=jnp.float32)         # per-head mean(x^2)
    y = xo * lax.rsqrt(ms + eps) * w_ref[...] * (g * jax.nn.sigmoid(g))
    out_ref[...] = y.astype(out_ref.dtype)


def rmsnorm_swish_gate(o2, x2, hmat, w_full, *, g_off, eps):
    """o2: (R, H*Dv); x2: (R, 2*key_dim+2*value_dim); hmat: block-diag 1/Dv."""
    R, DvT = o2.shape
    C = x2.shape[1]
    br = _tile(R, 256)
    kernel = functools.partial(_rmsnorm_swish_gate_kernel, g_off=g_off, eps=eps)
    return pl.pallas_call(
        kernel,
        out_shape=jax.ShapeDtypeStruct((R, DvT), jnp.bfloat16),
        grid=(R // br,),
        in_specs=[
            pl.BlockSpec((br, DvT), lambda i: (i, 0)),
            pl.BlockSpec((br, C), lambda i: (i, 0)),
            pl.BlockSpec((DvT, DvT), lambda i: (0, 0)),
            pl.BlockSpec((1, DvT), lambda i: (0, 0)),
        ],
        out_specs=pl.BlockSpec((br, DvT), lambda i: (i, 0)),
        compiler_params=pltpu.CompilerParams(dimension_semantics=("parallel",)),
    )(o2, x2, hmat, w_full)


# -----------------------------------------------------------------------------
# Full forward pass
# -----------------------------------------------------------------------------
def abc_attention_forward(params, hidden_states, *, num_heads, num_slots,
                          clamp_min, clamp_max, eps):
    B, T, D = hidden_states.shape
    H = num_heads
    key_dim = params["q_w"].shape[1]
    value_dim = params["v_w"].shape[1]
    Dk = key_dim // H
    Dv = value_dim // H
    M = num_slots

    # 1. shared causal short conv + SiLU (overwrites hidden_states, as in reference)
    h = short_conv_silu(hidden_states, params["conv_w"])           # (B,T,D) bf16

    # 2. fused q/k/v/g projection: one tiled matmul, h read from HBM once
    w_cat = jnp.concatenate(
        [params["q_w"], params["k_w"], params["v_w"], params["g_w"]],
        axis=1).astype(jnp.bfloat16)
    qkvg = pallas_linear(h, w_cat, out_dtype=jnp.bfloat16)         # (B,T,2K+2V)

    # 3. fused low-rank slot projection (both matmuls + bias in one kernel)
    s = lowrank_s_proj(h, params["s1_w"], params["s2_w"], params["s2_b"])

    # 4. rotary tables (base 10000, positions 0..T-1, seqlen_offset = 0);
    #    full-width rotate-half form, q scale (Dk**-0.5) folded into the tables.
    inv_freq = 1.0 / (10000.0 ** (jnp.arange(0, Dk, 2, dtype=jnp.float32) / Dk))
    pos = jnp.arange(T, dtype=jnp.float32)
    freqs = pos[:, None] * inv_freq[None, :]                       # (T, Dk//2)
    c, sn = jnp.cos(freqs), jnp.sin(freqs)
    cos_full = jnp.concatenate([c, c], axis=-1)                    # (T, Dk)
    sin_full = jnp.concatenate([-sn, sn], axis=-1)
    scale = Dk ** -0.5
    cos_q, sin_q = cos_full * scale, sin_full * scale
    cos_k, sin_k = cos_full, sin_full

    # 5. chunked ABC core (rotary + clamp + two-stage slot attention)
    o = abc_attention_core(qkvg, s, cos_q, sin_q, cos_k, sin_k,
                           num_heads=H, key_dim=key_dim, value_dim=value_dim,
                           num_slots=M, clamp_min=clamp_min, clamp_max=clamp_max)

    # 6. per-head gated RMSNorm (g sliced from the fused qkvg inside the kernel)
    hmat = jnp.kron(jnp.eye(H, dtype=jnp.float32),
                    jnp.full((Dv, Dv), 1.0 / Dv, dtype=jnp.float32))
    w_full = jnp.tile(params["gnorm_w"].reshape(1, Dv), (1, H))    # (1, H*Dv)
    g_off = 2 * key_dim + value_dim
    o_n = rmsnorm_swish_gate(o.reshape(B * T, value_dim),
                             qkvg.reshape(B * T, -1), hmat, w_full,
                             g_off=g_off, eps=eps)

    # 7. output projection (final output in f32)
    return pallas_linear(o_n.reshape(B, T, value_dim), params["o_w"],
                         out_dtype=jnp.float32)

    # TODO(synk): past_key_values caching / output_final_state (recurrent state
    # export for incremental decoding) is not modeled in this stateless forward.


# -----------------------------------------------------------------------------
# Deterministic parameter init (xavier_uniform, gain = 2**-2.5, like _initialize_weights)
# -----------------------------------------------------------------------------
def _xavier(key, in_dim, out_dim, gain):
    a = gain * (6.0 / (in_dim + out_dim)) ** 0.5
    return jax.random.uniform(key, (in_dim, out_dim), jnp.float32, -a, a)


def init_params(key, hidden_size, num_heads, num_slots, head_v_dim,
                gate_low_rank_dim, conv_size):
    key_dim = hidden_size                       # expand_k = 1.0
    value_dim = hidden_size                     # expand_v = 1.0
    gain = 2 ** (-2.5)
    ks = jax.random.split(key, 8)
    return {
        "conv_w": jax.random.uniform(ks[0], (conv_size, hidden_size),
                                     jnp.float32, -0.5, 0.5),
        "q_w": _xavier(ks[1], hidden_size, key_dim, gain),
        "k_w": _xavier(ks[2], hidden_size, key_dim, gain),
        "v_w": _xavier(ks[3], hidden_size, value_dim, gain),
        "g_w": _xavier(ks[4], hidden_size, value_dim, gain),
        "s1_w": _xavier(ks[5], hidden_size, gate_low_rank_dim, gain),
        "s2_w": _xavier(ks[6], gate_low_rank_dim, num_heads * num_slots, gain),
        "s2_b": jnp.zeros((num_heads * num_slots,), jnp.float32),
        "o_w": _xavier(ks[7], value_dim, hidden_size, gain),
        "gnorm_w": jnp.ones((1, head_v_dim), jnp.float32),
    }


if __name__ == "__main__":
    # small config consistent with the module
    B, T = 2, 16
    hidden_size = 64
    num_heads = 4
    head_k_dim = hidden_size // num_heads       # 16
    head_v_dim = hidden_size // num_heads       # 16
    num_slots = head_k_dim                      # default
    gate_low_rank_dim = 16
    conv_size = 4
    clamp_min, clamp_max = -32.0, 32.0
    eps = 1e-5

    root = jax.random.PRNGKey(0)
    k_par, k_in = jax.random.split(root)
    params = init_params(k_par, hidden_size, num_heads, num_slots,
                         head_v_dim, gate_low_rank_dim, conv_size)

    hidden_states = jax.random.normal(k_in, (B, T, hidden_size), jnp.float32)

    fwd = jax.jit(functools.partial(
        abc_attention_forward,
        num_heads=num_heads, num_slots=num_slots,
        clamp_min=clamp_min, clamp_max=clamp_max, eps=eps))

    out = jax.block_until_ready(fwd(params, hidden_states))

    assert out.shape == (B, T, hidden_size)
    assert bool(jnp.all(jnp.isfinite(out)))
    print("KERNEL_OK")
</pallas_src>

<mosaic_0001>
module attributes {stable_mosaic.version = 11 : i64} {
  func.func @_shortconv_kernel(%arg0: i32, %arg1: memref<1x16x64xf32, #tpu.memory_space<vmem>>, %arg2: memref<4x64xf32, #tpu.memory_space<vmem>>, %arg3: memref<1x16x64xbf16, #tpu.memory_space<vmem>>, %arg4: memref<19x64xf32, #tpu.memory_space<vmem>>) attributes {dimension_semantics = [#tpu.dimension_semantics<parallel>], iteration_bounds = array<i64: 2>, scalar_prefetch = 0 : i64, scratch_operands = 1 : i64, tpu.core_type = #tpu.core_type<tc>, window_params = [{transform_indices = @transform_0, window_bounds = array<i64: 1, 16, 64>}, {pipeline_mode = #tpu.pipeline_mode<synchronous>, transform_indices = @transform_1, window_bounds = array<i64: 4, 64>}, {transform_indices = @transform_2, window_bounds = array<i64: 1, 16, 64>}]} {
    %cst = arith.constant 0.000000e+00 : f32
    %0 = vector.broadcast %cst : f32 to vector<19x64xf32>
    %c0 = arith.constant 0 : index
    %c0_0 = arith.constant 0 : index
    %1 = vector.load %arg4[%c0, %c0_0] : memref<19x64xf32, #tpu.memory_space<vmem>>, vector<19x64xf32>
    tpu.vector_store %arg4[%c0, %c0_0], %0 {strides = array<i32>} : memref<19x64xf32, #tpu.memory_space<vmem>>, vector<19x64xf32>,
    %c0_1 = arith.constant 0 : index
    %c0_2 = arith.constant 0 : index
    %c0_3 = arith.constant 0 : index
    %2 = vector.load %arg1[%c0_1, %c0_2, %c0_3] : memref<1x16x64xf32, #tpu.memory_space<vmem>>, vector<1x16x64xf32>
    %3 = vector.shape_cast %2 : vector<1x16x64xf32> to vector<16x64xf32>
    %c3 = arith.constant 3 : index
    %c0_4 = arith.constant 0 : index
    %4 = vector.load %arg4[%c3, %c0_4] : memref<19x64xf32, #tpu.memory_space<vmem>>, vector<16x64xf32>
    tpu.vector_store %arg4[%c3, %c0_4], %3 {strides = array<i32>} : memref<19x64xf32, #tpu.memory_space<vmem>>, vector<16x64xf32>,
    %cst_5 = arith.constant 0.000000e+00 : f32
    %5 = vector.broadcast %cst_5 : f32 to vector<16x64xf32>
    %c0_6 = arith.constant 0 : index
    %c0_7 = arith.constant 0 : index
    %6 = vector.load %arg4[%c0_6, %c0_7] : memref<19x64xf32, #tpu.memory_space<vmem>>, vector<16x64xf32>
    %c0_8 = arith.constant 0 : index
    %c0_9 = arith.constant 0 : index
    %7 = vector.load %arg2[%c0_8, %c0_9] : memref<4x64xf32, #tpu.memory_space<vmem>>, vector<1x64xf32>
    %8 = vector.broadcast %7 : vector<1x64xf32> to vector<16x64xf32>
    %9 = arith.mulf %6, %8 : vector<16x64xf32>
    %10 = arith.addf %5, %9 : vector<16x64xf32>
    %c1 = arith.constant 1 : index
    %c0_10 = arith.constant 0 : index
    %11 = vector.load %arg4[%c1, %c0_10] : memref<19x64xf32, #tpu.memory_space<vmem>>, vector<16x64xf32>
    %c1_11 = arith.constant 1 : index
    %c0_12 = arith.constant 0 : index
    %12 = vector.load %arg2[%c1_11, %c0_12] : memref<4x64xf32, #tpu.memory_space<vmem>>, vector<1x64xf32>
    %13 = vector.broadcast %12 : vector<1x64xf32> to vector<16x64xf32>
    %14 = arith.mulf %11, %13 : vector<16x64xf32>
    %15 = arith.addf %10, %14 : vector<16x64xf32>
    %c2 = arith.constant 2 : index
    %c0_13 = arith.constant 0 : index
    %16 = vector.load %arg4[%c2, %c0_13] : memref<19x64xf32, #tpu.memory_space<vmem>>, vector<16x64xf32>
    %c2_14 = arith.constant 2 : index
    %c0_15 = arith.constant 0 : index
    %17 = vector.load %arg2[%c2_14, %c0_15] : memref<4x64xf32, #tpu.memory_space<vmem>>, vector<1x64xf32>
    %18 = vector.broadcast %17 : vector<1x64xf32> to vector<16x64xf32>
    %19 = arith.mulf %16, %18 : vector<16x64xf32>
    %20 = arith.addf %15, %19 : vector<16x64xf32>
    %c3_16 = arith.constant 3 : index
    %c0_17 = arith.constant 0 : index
    %21 = vector.load %arg4[%c3_16, %c0_17] : memref<19x64xf32, #tpu.memory_space<vmem>>, vector<16x64xf32>
    %c3_18 = arith.constant 3 : index
    %c0_19 = arith.constant 0 : index
    %22 = vector.load %arg2[%c3_18, %c0_19] : memref<4x64xf32, #tpu.memory_space<vmem>>, vector<1x64xf32>
    %23 = vector.broadcast %22 : vector<1x64xf32> to vector<16x64xf32>
    %24 = arith.mulf %21, %23 : vector<16x64xf32>
    %25 = arith.addf %20, %24 : vector<16x64xf32>
    %26 = arith.negf %25 : vector<16x64xf32>
    %27 = math.exp %26 : vector<16x64xf32>
    %cst_20 = arith.constant 1.000000e+00 : f32
    %28 = vector.broadcast %cst_20 : f32 to vector<16x64xf32>
    %29 = arith.addf %28, %27 : vector<16x64xf32>
    %30 = arith.divf %28, %29 : vector<16x64xf32>
    %31 = arith.mulf %25, %30 : vector<16x64xf32>
    %32 = arith.truncf %31 : vector<16x64xf32> to vector<16x64xbf16>
    %c0_21 = arith.constant 0 : index
    %c0_22 = arith.constant 0 : index
    %c0_23 = arith.constant 0 : index
    %33 = vector.load %arg3[%c0_21, %c0_22, %c0_23] : memref<1x16x64xbf16, #tpu.memory_space<vmem>>, vector<1x16x64xbf16>
    %34 = vector.shape_cast %33 : vector<1x16x64xbf16> to vector<16x64xbf16>
    %35 = vector.shape_cast %32 : vector<16x64xbf16> to vector<1x16x64xbf16>
    tpu.vector_store %arg3[%c0_21, %c0_22, %c0_23], %35 {strides = array<i32>} : memref<1x16x64xbf16, #tpu.memory_space<vmem>>, vector<1x16x64xbf16>,
    return
  }
  func.func @transform_0(%arg0: i32) -> (i32, i32, i32) {
    %c0_i32 = arith.constant 0 : i32
    %c0_i32_0 = arith.constant 0 : i32
    %c0_i32_1 = arith.constant 0 : i32
    return %arg0, %c0_i32, %c0_i32_0 : i32, i32, i32
  }
  func.func @transform_1(%arg0: i32) -> (i32, i32) {
    %c0_i32 = arith.constant 0 : i32
    %c0_i32_0 = arith.constant 0 : i32
    %c0_i32_1 = arith.constant 0 : i32
    return %c0_i32, %c0_i32_0 : i32, i32
  }
  func.func @transform_2(%arg0: i32) -> (i32, i32, i32) {
    %c0_i32 = arith.constant 0 : i32
    %c0_i32_0 = arith.constant 0 : i32
    %c0_i32_1 = arith.constant 0 : i32
    return %arg0, %c0_i32, %c0_i32_0 : i32, i32, i32
  }
}

module attributes {stable_mosaic.version = 11 : i64} {
  func.func @_matmul_kernel(%arg0: i32, %arg1: i32, %arg2: i32, %arg3: memref<32x64xbf16, #tpu.memory_space<vmem>>, %arg4: memref<64x256xbf16, #tpu.memory_space<vmem>>, %arg5: memref<32x256xbf16, #tpu.memory_space<vmem>>, %arg6: memref<32x256xf32, #tpu.memory_space<vmem>>) attributes {dimension_semantics = [#tpu.dimension_semantics<parallel>, #tpu.dimension_semantics<parallel>, #tpu.dimension_semantics<arbitrary>], iteration_bounds = array<i64: 1, 1, 1>, scalar_prefetch = 0 : i64, scratch_operands = 1 : i64, tpu.core_type = #tpu.core_type<tc>, window_params = [{transform_indices = @transform_0, window_bounds = array<i64: 32, 64>}, {transform_indices = @transform_1, window_bounds = array<i64: 64, 256>}, {transform_indices = @transform_2, window_bounds = array<i64: 32, 256>}]} {
    %c0_i32 = arith.constant 0 : i32
    %0 = arith.cmpi eq, %arg2, %c0_i32 : i32
    %1 = arith.extui %0 : i1 to i32
    %c0_i32_0 = arith.constant 0 : i32
    %2 = arith.cmpi ne, %1, %c0_i32_0 : i32
    scf.if %2 {
      %cst_10 = arith.constant 0.000000e+00 : f32
      %12 = vector.broadcast %cst_10 : f32 to vector<32x256xf32>
      %c0_11 = arith.constant 0 : index
      %c0_12 = arith.constant 0 : index
      %13 = vector.load %arg6[%c0_11, %c0_12] : memref<32x256xf32, #tpu.memory_space<vmem>>, vector<32x256xf32>
      tpu.vector_store %arg6[%c0_11, %c0_12], %12 {strides = array<i32>} : memref<32x256xf32, #tpu.memory_space<vmem>>, vector<32x256xf32>,
    } else {
    }
    %c0 = arith.constant 0 : index
    %c0_1 = arith.constant 0 : index
    %3 = vector.load %arg6[%c0, %c0_1] : memref<32x256xf32, #tpu.memory_space<vmem>>, vector<32x256xf32>
    %c0_2 = arith.constant 0 : index
    %c0_3 = arith.constant 0 : index
    %4 = vector.load %arg3[%c0_2, %c0_3] : memref<32x64xbf16, #tpu.memory_space<vmem>>, vector<32x64xbf16>
    %c0_4 = arith.constant 0 : index
    %c0_5 = arith.constant 0 : index
    %5 = vector.load %arg4[%c0_4, %c0_5] : memref<64x256xbf16, #tpu.memory_space<vmem>>, vector<64x256xbf16>
    %cst = arith.constant dense<0.000000e+00> : vector<32x256xf32>
    %6 = tpu.matmul %4, %5, %cst {dimension_numbers = #tpu.dot_dimension_numbers<[1], [0], [0], [1], [0, 0, 1, 1], [], []>} : vector<32x64xbf16>, vector<64x256xbf16>, vector<32x256xf32> -> vector<32x256xf32>
    %7 = arith.addf %3, %6 : vector<32x256xf32>
    %c0_6 = arith.constant 0 : index
    %c0_7 = arith.constant 0 : index
    %8 = vector.load %arg6[%c0_6, %c0_7] : memref<32x256xf32, #tpu.memory_space<vmem>>, vector<32x256xf32>
    tpu.vector_store %arg6[%c0_6, %c0_7], %7 {strides = array<i32>} : memref<32x256xf32, #tpu.memory_space<vmem>>, vector<32x256xf32>,
    %c0_i32_8 = arith.constant 0 : i32
    %9 = arith.cmpi eq, %arg2, %c0_i32_8 : i32
    %10 = arith.extui %9 : i1 to i32
    %c0_i32_9 = arith.constant 0 : i32
    %11 = arith.cmpi ne, %10, %c0_i32_9 : i32
    scf.if %11 {
      %c0_10 = arith.constant 0 : index
      %c0_11 = arith.constant 0 : index
      %12 = vector.load %arg6[%c0_10, %c0_11] : memref<32x256xf32, #tpu.memory_space<vmem>>, vector<32x256xf32>
      %13 = arith.truncf %12 : vector<32x256xf32> to vector<32x256xbf16>
      %c0_12 = arith.constant 0 : index
      %c0_13 = arith.constant 0 : index
      %14 = vector.load %arg5[%c0_12, %c0_13] : memref<32x256xbf16, #tpu.memory_space<vmem>>, vector<32x256xbf16>
      tpu.vector_store %arg5[%c0_12, %c0_13], %13 {strides = array<i32>} : memref<32x256xbf16, #tpu.memory_space<vmem>>, vector<32x256xbf16>,
    } else {
    }
    return
  }
  func.func @transform_0(%arg0: i32, %arg1: i32, %arg2: i32) -> (i32, i32) {
    %c0_i32 = arith.constant 0 : i32
    return %arg0, %arg2 : i32, i32
  }
  func.func @transform_1(%arg0: i32, %arg1: i32, %arg2: i32) -> (i32, i32) {
    %c0_i32 = arith.constant 0 : i32
    return %arg2, %arg1 : i32, i32
  }
  func.func @transform_2(%arg0: i32, %arg1: i32, %arg2: i32) -> (i32, i32) {
    %c0_i32 = arith.constant 0 : i32
    return %arg0, %arg1 : i32, i32
  }
}

module attributes {stable_mosaic.version = 11 : i64} {
  func.func @_lowrank_s_kernel(%arg0: i32, %arg1: memref<32x64xbf16, #tpu.memory_space<vmem>>, %arg2: memref<64x16xbf16, #tpu.memory_space<vmem>>, %arg3: memref<16x64xf32, #tpu.memory_space<vmem>>, %arg4: memref<1x64xf32, #tpu.memory_space<vmem>>, %arg5: memref<32x64xf32, #tpu.memory_space<vmem>>) attributes {dimension_semantics = [#tpu.dimension_semantics<parallel>], iteration_bounds = array<i64: 1>, scalar_prefetch = 0 : i64, scratch_operands = 0 : i64, tpu.core_type = #tpu.core_type<tc>, window_params = [{transform_indices = @transform_0, window_bounds = array<i64: 32, 64>}, {pipeline_mode = #tpu.pipeline_mode<synchronous>, transform_indices = @transform_1, window_bounds = array<i64: 64, 16>}, {pipeline_mode = #tpu.pipeline_mode<synchronous>, transform_indices = @transform_2, window_bounds = array<i64: 16, 64>}, {pipeline_mode = #tpu.pipeline_mode<synchronous>, transform_indices = @transform_3, window_bounds = array<i64: 1, 64>}, {transform_indices = @transform_4, window_bounds = array<i64: 32, 64>}]} {
    %c0 = arith.constant 0 : index
    %c0_0 = arith.constant 0 : index
    %0 = vector.load %arg1[%c0, %c0_0] : memref<32x64xbf16, #tpu.memory_space<vmem>>, vector<32x64xbf16>
    %c0_1 = arith.constant 0 : index
    %c0_2 = arith.constant 0 : index
    %1 = vector.load %arg2[%c0_1, %c0_2] : memref<64x16xbf16, #tpu.memory_space<vmem>>, vector<64x16xbf16>
    %cst = arith.constant dense<0.000000e+00> : vector<32x16xf32>
    %2 = tpu.matmul %0, %1, %cst {dimension_numbers = #tpu.dot_dimension_numbers<[1], [0], [0], [1], [0, 0, 1, 1], [], []>} : vector<32x64xbf16>, vector<64x16xbf16>, vector<32x16xf32> -> vector<32x16xf32>
    %c0_3 = arith.constant 0 : index
    %c0_4 = arith.constant 0 : index
    %3 = vector.load %arg3[%c0_3, %c0_4] : memref<16x64xf32, #tpu.memory_space<vmem>>, vector<16x64xf32>
    %cst_5 = arith.constant dense<0.000000e+00> : vector<32x64xf32>
    %4 = tpu.matmul %2, %3, %cst_5 {dimension_numbers = #tpu.dot_dimension_numbers<[1], [0], [0], [1], [0, 0, 1, 1], [], []>} : vector<32x16xf32>, vector<16x64xf32>, vector<32x64xf32> -> vector<32x64xf32>
    %c0_6 = arith.constant 0 : index
    %c0_7 = arith.constant 0 : index
    %5 = vector.load %arg4[%c0_6, %c0_7] : memref<1x64xf32, #tpu.memory_space<vmem>>, vector<1x64xf32>
    %6 = vector.broadcast %5 : vector<1x64xf32> to vector<32x64xf32>
    %7 = arith.addf %4, %6 : vector<32x64xf32>
    %c0_8 = arith.constant 0 : index
    %c0_9 = arith.constant 0 : index
    %8 = vector.load %arg5[%c0_8, %c0_9] : memref<32x64xf32, #tpu.memory_space<vmem>>, vector<32x64xf32>
    tpu.vector_store %arg5[%c0_8, %c0_9], %7 {strides = array<i32>} : memref<32x64xf32, #tpu.memory_space<vmem>>, vector<32x64xf32>,
    return
  }
  func.func @transform_0(%arg0: i32) -> (i32, i32) {
    %c0_i32 = arith.constant 0 : i32
    %c0_i32_0 = arith.constant 0 : i32
    return %arg0, %c0_i32 : i32, i32
  }
  func.func @transform_1(%arg0: i32) -> (i32, i32) {
    %c0_i32 = arith.constant 0 : i32
    %c0_i32_0 = arith.constant 0 : i32
    %c0_i32_1 = arith.constant 0 : i32
    return %c0_i32, %c0_i32_0 : i32, i32
  }
  func.func @transform_2(%arg0: i32) -> (i32, i32) {
    %c0_i32 = arith.constant 0 : i32
    %c0_i32_0 = arith.constant 0 : i32
    %c0_i32_1 = arith.constant 0 : i32
    return %c0_i32, %c0_i32_0 : i32, i32
  }
  func.func @transform_3(%arg0: i32) -> (i32, i32) {
    %c0_i32 = arith.constant 0 : i32
    %c0_i32_0 = arith.constant 0 : i32
    %c0_i32_1 = arith.constant 0 : i32
    return %c0_i32, %c0_i32_0 : i32, i32
  }
  func.func @transform_4(%arg0: i32) -> (i32, i32) {
    %c0_i32 = arith.constant 0 : i32
    %c0_i32_0 = arith.constant 0 : i32
    return %arg0, %c0_i32 : i32, i32
  }
}

module attributes {stable_mosaic.version = 11 : i64} {
  func.func @_abc_kernel(%arg0: i32, %arg1: i32, %arg2: memref<1x16x256xbf16, #tpu.memory_space<vmem>>, %arg3: memref<1x16x64xf32, #tpu.memory_space<vmem>>, %arg4: memref<16x16xf32, #tpu.memory_space<vmem>>, %arg5: memref<16x16xf32, #tpu.memory_space<vmem>>, %arg6: memref<16x16xf32, #tpu.memory_space<vmem>>, %arg7: memref<16x16xf32, #tpu.memory_space<vmem>>, %arg8: memref<1x16x64xbf16, #tpu.memory_space<vmem>>, %arg9: memref<1x64xf32, #tpu.memory_space<vmem>>, %arg10: memref<64x16xf32, #tpu.memory_space<vmem>>, %arg11: memref<64x16xf32, #tpu.memory_space<vmem>>) attributes {dimension_semantics = [#tpu.dimension_semantics<parallel>, #tpu.dimension_semantics<arbitrary>], iteration_bounds = array<i64: 2, 1>, scalar_prefetch = 0 : i64, scratch_operands = 3 : i64, tpu.core_type = #tpu.core_type<tc>, window_params = [{transform_indices = @transform_0, window_bounds = array<i64: 1, 16, 256>}, {transform_indices = @transform_1, window_bounds = array<i64: 1, 16, 64>}, {transform_indices = @transform_2, window_bounds = array<i64: 16, 16>}, {transform_indices = @transform_3, window_bounds = array<i64: 16, 16>}, {transform_indices = @transform_4, window_bounds = array<i64: 16, 16>}, {transform_indices = @transform_5, window_bounds = array<i64: 16, 16>}, {transform_indices = @transform_6, window_bounds = array<i64: 1, 16, 64>}]} {
    %c0_i32 = arith.constant 0 : i32
    %0 = arith.cmpi eq, %arg1, %c0_i32 : i32
    %1 = arith.extui %0 : i1 to i32
    %c0_i32_0 = arith.constant 0 : i32
    %2 = arith.cmpi ne, %1, %c0_i32_0 : i32
    scf.if %2 {
      %cst_106 = arith.constant -1.000000e+30 : f32
      %339 = vector.broadcast %cst_106 : f32 to vector<1x64xf32>
      %c0_107 = arith.constant 0 : index
      %c0_108 = arith.constant 0 : index
      %340 = vector.load %arg9[%c0_107, %c0_108] : memref<1x64xf32, #tpu.memory_space<vmem>>, vector<1x64xf32>
      tpu.vector_store %arg9[%c0_107, %c0_108], %339 {strides = array<i32>} : memref<1x64xf32, #tpu.memory_space<vmem>>, vector<1x64xf32>,
      %cst_109 = arith.constant 0.000000e+00 : f32
      %341 = vector.broadcast %cst_109 : f32 to vector<64x16xf32>
      %c0_110 = arith.constant 0 : index
      %c0_111 = arith.constant 0 : index
      %342 = vector.load %arg10[%c0_110, %c0_111] : memref<64x16xf32, #tpu.memory_space<vmem>>, vector<64x16xf32>
      tpu.vector_store %arg10[%c0_110, %c0_111], %341 {strides = array<i32>} : memref<64x16xf32, #tpu.memory_space<vmem>>, vector<64x16xf32>,
      %cst_112 = arith.constant 0.000000e+00 : f32
      %343 = vector.broadcast %cst_112 : f32 to vector<64x16xf32>
      %c0_113 = arith.constant 0 : index
      %c0_114 = arith.constant 0 : index
      %344 = vector.load %arg11[%c0_113, %c0_114] : memref<64x16xf32, #tpu.memory_space<vmem>>, vector<64x16xf32>
      tpu.vector_store %arg11[%c0_113, %c0_114], %343 {strides = array<i32>} : memref<64x16xf32, #tpu.memory_space<vmem>>, vector<64x16xf32>,
    } else {
    }
    %c0 = arith.constant 0 : index
    %c0_1 = arith.constant 0 : index
    %c0_2 = arith.constant 0 : index
    %3 = vector.load %arg2[%c0, %c0_1, %c0_2] : memref<1x16x256xbf16, #tpu.memory_space<vmem>>, vector<1x16x256xbf16>
    %4 = vector.shape_cast %3 : vector<1x16x256xbf16> to vector<16x256xbf16>
    %c0_3 = arith.constant 0 : index
    %c0_4 = arith.constant 0 : index
    %c0_5 = arith.constant 0 : index
    %5 = vector.load %arg3[%c0_3, %c0_4, %c0_5] : memref<1x16x64xf32, #tpu.memory_space<vmem>>, vector<1x16x64xf32>
    %6 = vector.shape_cast %5 : vector<1x16x64xf32> to vector<16x64xf32>
    %cst = arith.constant -3.200000e+01 : f32
    %cst_6 = arith.constant 3.200000e+01 : f32
    %7 = vector.broadcast %cst : f32 to vector<16x64xf32>
    %8 = arith.maximumf %7, %6 : vector<16x64xf32>
    %9 = vector.broadcast %cst_6 : f32 to vector<16x64xf32>
    %10 = arith.minimumf %9, %8 : vector<16x64xf32>
    %c0_7 = arith.constant 0 : index
    %c0_8 = arith.constant 0 : index
    %11 = vector.load %arg4[%c0_7, %c0_8] : memref<16x16xf32, #tpu.memory_space<vmem>>, vector<16x16xf32>
    %c0_9 = arith.constant 0 : index
    %c0_10 = arith.constant 0 : index
    %12 = vector.load %arg5[%c0_9, %c0_10] : memref<16x16xf32, #tpu.memory_space<vmem>>, vector<16x16xf32>
    %c0_11 = arith.constant 0 : index
    %c0_12 = arith.constant 0 : index
    %13 = vector.load %arg6[%c0_11, %c0_12] : memref<16x16xf32, #tpu.memory_space<vmem>>, vector<16x16xf32>
    %c0_13 = arith.constant 0 : index
    %c0_14 = arith.constant 0 : index
    %14 = vector.load %arg7[%c0_13, %c0_14] : memref<16x16xf32, #tpu.memory_space<vmem>>, vector<16x16xf32>
    %c0_15 = arith.constant 0 : index
    %c0_16 = arith.constant 0 : index
    %15 = vector.load %arg9[%c0_15, %c0_16] : memref<1x64xf32, #tpu.memory_space<vmem>>, vector<1x64xf32>
    %cst_17 = arith.constant dense<0xFF800000> : vector<64xf32>
    %16 = vector.multi_reduction <maximumf>, %10, %cst_17 [0] : vector<16x64xf32> to vector<64xf32>
    %17 = vector.shape_cast %16 : vector<64xf32> to vector<1x64xf32>
    %18 = arith.maximumf %15, %17 : vector<1x64xf32>
    %19 = vector.broadcast %18 : vector<1x64xf32> to vector<16x64xf32>
    %20 = arith.subf %10, %19 : vector<16x64xf32>
    %21 = math.exp %20 : vector<16x64xf32>
    %22 = arith.subf %15, %18 : vector<1x64xf32>
    %23 = math.exp %22 : vector<1x64xf32>
    %24 = tpu.iota {dimensions = array<i32: 0>} : vector<16x16xi32>
    %25 = tpu.iota {dimensions = array<i32: 1>} : vector<16x16xi32>
    %26 = arith.cmpi sge, %24, %25 : vector<16x16xi32>
    %27 = arith.extui %26 : vector<16x16xi1> to vector<16x16xi32>
    %28 = arith.sitofp %27 : vector<16x16xi32> to vector<16x16xf32>
    %cst_18 = arith.constant dense<0.000000e+00> : vector<16x64xf32>
    %29 = tpu.matmul %28, %21, %cst_18 {dimension_numbers = #tpu.dot_dimension_numbers<[1], [0], [0], [1], [0, 0, 1, 1], [], []>} : vector<16x16xf32>, vector<16x64xf32>, vector<16x64xf32> -> vector<16x64xf32>
    %30 = vector.broadcast %23 : vector<1x64xf32> to vector<16x64xf32>
    %31 = arith.addf %29, %30 : vector<16x64xf32>
    %cst_19 = arith.constant 1.000000e+00 : f32
    %32 = vector.broadcast %cst_19 : f32 to vector<16x64xf32>
    %33 = arith.divf %32, %31 : vector<16x64xf32>
    %34 = vector.extract_strided_slice %4 {offsets = [0, 0], sizes = [16, 16], strides = [1, 1]} : vector<16x256xbf16> to vector<16x16xbf16>
    %35 = arith.extf %34 : vector<16x16xbf16> to vector<16x16xf32>
    %36 = vector.extract_strided_slice %4 {offsets = [0, 64], sizes = [16, 16], strides = [1, 1]} : vector<16x256xbf16> to vector<16x16xbf16>
    %37 = arith.extf %36 : vector<16x16xbf16> to vector<16x16xf32>
    %38 = vector.extract_strided_slice %4 {offsets = [0, 128], sizes = [16, 16], strides = [1, 1]} : vector<16x256xbf16> to vector<16x16xbf16>
    %39 = arith.extf %38 : vector<16x16xbf16> to vector<16x16xf32>
    %40 = arith.mulf %35, %11 : vector<16x16xf32>
    %41 = vector.extract_strided_slice %35 {offsets = [0, 8], sizes = [16, 8], strides = [1, 1]} : vector<16x16xf32> to vector<16x8xf32>
    %42 = vector.extract_strided_slice %35 {offsets = [0, 0], sizes = [16, 8], strides = [1, 1]} : vector<16x16xf32> to vector<16x8xf32>
    %43 = tpu.concatenate %41, %42 in 1 : vector<16x8xf32>, vector<16x8xf32> -> vector<16x16xf32>
    %44 = arith.mulf %43, %12 : vector<16x16xf32>
    %45 = arith.addf %40, %44 : vector<16x16xf32>
    %46 = arith.mulf %37, %13 : vector<16x16xf32>
    %47 = vector.extract_strided_slice %37 {offsets = [0, 8], sizes = [16, 8], strides = [1, 1]} : vector<16x16xf32> to vector<16x8xf32>
    %48 = vector.extract_strided_slice %37 {offsets = [0, 0], sizes = [16, 8], strides = [1, 1]} : vector<16x16xf32> to vector<16x8xf32>
    %49 = tpu.concatenate %47, %48 in 1 : vector<16x8xf32>, vector<16x8xf32> -> vector<16x16xf32>
    %50 = arith.mulf %49, %14 : vector<16x16xf32>
    %51 = arith.addf %46, %50 : vector<16x16xf32>
    %52 = vector.extract_strided_slice %21 {offsets = [0, 0], sizes = [16, 16], strides = [1, 1]} : vector<16x64xf32> to vector<16x16xf32>
    %53 = vector.extract_strided_slice %33 {offsets = [0, 0], sizes = [16, 16], strides = [1, 1]} : vector<16x64xf32> to vector<16x16xf32>
    %54 = vector.extract_strided_slice %23 {offsets = [0, 0], sizes = [1, 16], strides = [1, 1]} : vector<1x64xf32> to vector<1x16xf32>
    %c0_20 = arith.constant 0 : index
    %c0_21 = arith.constant 0 : index
    %55 = vector.load %arg10[%c0_20, %c0_21] : memref<64x16xf32, #tpu.memory_space<vmem>>, vector<16x16xf32>
    %c0_22 = arith.constant 0 : index
    %c0_23 = arith.constant 0 : index
    %56 = vector.load %arg11[%c0_22, %c0_23] : memref<64x16xf32, #tpu.memory_space<vmem>>, vector<16x16xf32>
    %57 = tpu.transpose %51, [1, 0] : vector<16x16xf32> -> vector<16x16xf32>
    %cst_24 = arith.constant dense<0.000000e+00> : vector<16x16xf32>
    %58 = tpu.matmul %45, %57, %cst_24 {dimension_numbers = #tpu.dot_dimension_numbers<[1], [0], [0], [1], [0, 0, 1, 1], [], []>} : vector<16x16xf32>, vector<16x16xf32>, vector<16x16xf32> -> vector<16x16xf32>
    %cst_25 = arith.constant 0.000000e+00 : f32
    %59 = vector.broadcast %cst_25 : f32 to vector<16x16xf32>
    %60 = arith.select %26, %58, %59 : vector<16x16xi1>, vector<16x16xf32>
    %cst_26 = arith.constant dense<0.000000e+00> : vector<16x16xf32>
    %61 = tpu.matmul %60, %52, %cst_26 {dimension_numbers = #tpu.dot_dimension_numbers<[1], [0], [0], [1], [0, 0, 1, 1], [], []>} : vector<16x16xf32>, vector<16x16xf32>, vector<16x16xf32> -> vector<16x16xf32>
    %cst_27 = arith.constant dense<0.000000e+00> : vector<16x16xf32>
    %62 = tpu.matmul %45, %55, %cst_27 {dimension_numbers = #tpu.dot_dimension_numbers<[1], [0], [0], [1], [0, 0, 1, 1], [], []>} : vector<16x16xf32>, vector<16x16xf32>, vector<16x16xf32> -> vector<16x16xf32>
    %63 = vector.broadcast %54 : vector<1x16xf32> to vector<16x16xf32>
    %64 = arith.mulf %62, %63 : vector<16x16xf32>
    %65 = arith.addf %61, %64 : vector<16x16xf32>
    %66 = arith.mulf %65, %53 : vector<16x16xf32>
    %cst_28 = arith.constant dense<0xFF800000> : vector<16xf32>
    %67 = vector.multi_reduction <maximumf>, %66, %cst_28 [1] : vector<16x16xf32> to vector<16xf32>
    %68 = vector.shape_cast %67 : vector<16xf32> to vector<16x1xf32>
    %69 = vector.broadcast %68 : vector<16x1xf32> to vector<16x16xf32>
    %70 = arith.subf %66, %69 : vector<16x16xf32>
    %71 = math.exp %70 : vector<16x16xf32>
    %cst_29 = arith.constant dense<0.000000e+00> : vector<16xf32>
    %72 = vector.multi_reduction <add>, %71, %cst_29 [1] : vector<16x16xf32> to vector<16xf32>
    %73 = vector.shape_cast %72 : vector<16xf32> to vector<16x1xf32>
    %74 = tpu.reciprocal %73 {approx = true} : vector<16x1xf32> -> vector<16x1xf32>
    %75 = vector.broadcast %74 : vector<16x1xf32> to vector<16x16xf32>
    %76 = arith.mulf %71, %75 : vector<16x16xf32>
    %77 = arith.mulf %76, %53 : vector<16x16xf32>
    %78 = tpu.transpose %52, [1, 0] : vector<16x16xf32> -> vector<16x16xf32>
    %cst_30 = arith.constant dense<0.000000e+00> : vector<16x16xf32>
    %79 = tpu.matmul %77, %78, %cst_30 {dimension_numbers = #tpu.dot_dimension_numbers<[1], [0], [0], [1], [0, 0, 1, 1], [], []>} : vector<16x16xf32>, vector<16x16xf32>, vector<16x16xf32> -> vector<16x16xf32>
    %cst_31 = arith.constant 0.000000e+00 : f32
    %80 = vector.broadcast %cst_31 : f32 to vector<16x16xf32>
    %81 = arith.select %26, %79, %80 : vector<16x16xi1>, vector<16x16xf32>
    %cst_32 = arith.constant dense<0.000000e+00> : vector<16x16xf32>
    %82 = tpu.matmul %81, %39, %cst_32 {dimension_numbers = #tpu.dot_dimension_numbers<[1], [0], [0], [1], [0, 0, 1, 1], [], []>} : vector<16x16xf32>, vector<16x16xf32>, vector<16x16xf32> -> vector<16x16xf32>
    %83 = vector.broadcast %54 : vector<1x16xf32> to vector<16x16xf32>
    %84 = arith.mulf %76, %83 : vector<16x16xf32>
    %85 = arith.mulf %84, %53 : vector<16x16xf32>
    %86 = tpu.transpose %56, [1, 0] : vector<16x16xf32> -> vector<16x16xf32>
    %cst_33 = arith.constant dense<0.000000e+00> : vector<16x16xf32>
    %87 = tpu.matmul %85, %86, %cst_33 {dimension_numbers = #tpu.dot_dimension_numbers<[1], [0], [0], [1], [0, 0, 1, 1], [], []>} : vector<16x16xf32>, vector<16x16xf32>, vector<16x16xf32> -> vector<16x16xf32>
    %88 = arith.addf %82, %87 : vector<16x16xf32>
    %89 = vector.extract_strided_slice %31 {offsets = [15, 0], sizes = [1, 16], strides = [1, 1]} : vector<16x64xf32> to vector<1x16xf32>
    %cst_34 = arith.constant 1.000000e+00 : f32
    %90 = vector.broadcast %cst_34 : f32 to vector<1x16xf32>
    %91 = arith.divf %90, %89 : vector<1x16xf32>
    %92 = vector.broadcast %54 : vector<1x16xf32> to vector<16x16xf32>
    %93 = arith.mulf %55, %92 : vector<16x16xf32>
    %94 = tpu.transpose %51, [1, 0] : vector<16x16xf32> -> vector<16x16xf32>
    %cst_35 = arith.constant dense<0.000000e+00> : vector<16x16xf32>
    %95 = tpu.matmul %94, %52, %cst_35 {dimension_numbers = #tpu.dot_dimension_numbers<[1], [0], [0], [1], [0, 0, 1, 1], [], []>} : vector<16x16xf32>, vector<16x16xf32>, vector<16x16xf32> -> vector<16x16xf32>
    %96 = arith.addf %93, %95 : vector<16x16xf32>
    %97 = vector.broadcast %91 : vector<1x16xf32> to vector<16x16xf32>
    %98 = arith.mulf %96, %97 : vector<16x16xf32>
    %c0_36 = arith.constant 0 : index
    %c0_37 = arith.constant 0 : index
    %99 = vector.load %arg10[%c0_36, %c0_37] : memref<64x16xf32, #tpu.memory_space<vmem>>, vector<16x16xf32>
    tpu.vector_store %arg10[%c0_36, %c0_37], %98 {strides = array<i32>} : memref<64x16xf32, #tpu.memory_space<vmem>>, vector<16x16xf32>,
    %100 = vector.broadcast %54 : vector<1x16xf32> to vector<16x16xf32>
    %101 = arith.mulf %56, %100 : vector<16x16xf32>
    %102 = tpu.transpose %39, [1, 0] : vector<16x16xf32> -> vector<16x16xf32>
    %cst_38 = arith.constant dense<0.000000e+00> : vector<16x16xf32>
    %103 = tpu.matmul %102, %52, %cst_38 {dimension_numbers = #tpu.dot_dimension_numbers<[1], [0], [0], [1], [0, 0, 1, 1], [], []>} : vector<16x16xf32>, vector<16x16xf32>, vector<16x16xf32> -> vector<16x16xf32>
    %104 = arith.addf %101, %103 : vector<16x16xf32>
    %105 = vector.broadcast %91 : vector<1x16xf32> to vector<16x16xf32>
    %106 = arith.mulf %104, %105 : vector<16x16xf32>
    %c0_39 = arith.constant 0 : index
    %c0_40 = arith.constant 0 : index
    %107 = vector.load %arg11[%c0_39, %c0_40] : memref<64x16xf32, #tpu.memory_space<vmem>>, vector<16x16xf32>
    tpu.vector_store %arg11[%c0_39, %c0_40], %106 {strides = array<i32>} : memref<64x16xf32, #tpu.memory_space<vmem>>, vector<16x16xf32>,
    %108 = vector.extract_strided_slice %4 {offsets = [0, 16], sizes = [16, 16], strides = [1, 1]} : vector<16x256xbf16> to vector<16x16xbf16>
    %109 = arith.extf %108 : vector<16x16xbf16> to vector<16x16xf32>
    %110 = vector.extract_strided_slice %4 {offsets = [0, 80], sizes = [16, 16], strides = [1, 1]} : vector<16x256xbf16> to vector<16x16xbf16>
    %111 = arith.extf %110 : vector<16x16xbf16> to vector<16x16xf32>
    %112 = vector.extract_strided_slice %4 {offsets = [0, 144], sizes = [16, 16], strides = [1, 1]} : vector<16x256xbf16> to vector<16x16xbf16>
    %113 = arith.extf %112 : vector<16x16xbf16> to vector<16x16xf32>
    %114 = arith.mulf %109, %11 : vector<16x16xf32>
    %115 = vector.extract_strided_slice %109 {offsets = [0, 8], sizes = [16, 8], strides = [1, 1]} : vector<16x16xf32> to vector<16x8xf32>
    %116 = vector.extract_strided_slice %109 {offsets = [0, 0], sizes = [16, 8], strides = [1, 1]} : vector<16x16xf32> to vector<16x8xf32>
    %117 = tpu.concatenate %115, %116 in 1 : vector<16x8xf32>, vector<16x8xf32> -> vector<16x16xf32>
    %118 = arith.mulf %117, %12 : vector<16x16xf32>
    %119 = arith.addf %114, %118 : vector<16x16xf32>
    %120 = arith.mulf %111, %13 : vector<16x16xf32>
    %121 = vector.extract_strided_slice %111 {offsets = [0, 8], sizes = [16, 8], strides = [1, 1]} : vector<16x16xf32> to vector<16x8xf32>
    %122 = vector.extract_strided_slice %111 {offsets = [0, 0], sizes = [16, 8], strides = [1, 1]} : vector<16x16xf32> to vector<16x8xf32>
    %123 = tpu.concatenate %121, %122 in 1 : vector<16x8xf32>, vector<16x8xf32> -> vector<16x16xf32>
    %124 = arith.mulf %123, %14 : vector<16x16xf32>
    %125 = arith.addf %120, %124 : vector<16x16xf32>
    %126 = vector.extract_strided_slice %21 {offsets = [0, 16], sizes = [16, 16], strides = [1, 1]} : vector<16x64xf32> to vector<16x16xf32>
    %127 = vector.extract_strided_slice %33 {offsets = [0, 16], sizes = [16, 16], strides = [1, 1]} : vector<16x64xf32> to vector<16x16xf32>
    %128 = vector.extract_strided_slice %23 {offsets = [0, 16], sizes = [1, 16], strides = [1, 1]} : vector<1x64xf32> to vector<1x16xf32>
    %c16 = arith.constant 16 : index
    %c0_41 = arith.constant 0 : index
    %129 = vector.load %arg10[%c16, %c0_41] : memref<64x16xf32, #tpu.memory_space<vmem>>, vector<16x16xf32>
    %c16_42 = arith.constant 16 : index
    %c0_43 = arith.constant 0 : index
    %130 = vector.load %arg11[%c16_42, %c0_43] : memref<64x16xf32, #tpu.memory_space<vmem>>, vector<16x16xf32>
    %131 = tpu.transpose %125, [1, 0] : vector<16x16xf32> -> vector<16x16xf32>
    %cst_44 = arith.constant dense<0.000000e+00> : vector<16x16xf32>
    %132 = tpu.matmul %119, %131, %cst_44 {dimension_numbers = #tpu.dot_dimension_numbers<[1], [0], [0], [1], [0, 0, 1, 1], [], []>} : vector<16x16xf32>, vector<16x16xf32>, vector<16x16xf32> -> vector<16x16xf32>
    %cst_45 = arith.constant 0.000000e+00 : f32
    %133 = vector.broadcast %cst_45 : f32 to vector<16x16xf32>
    %134 = arith.select %26, %132, %133 : vector<16x16xi1>, vector<16x16xf32>
    %cst_46 = arith.constant dense<0.000000e+00> : vector<16x16xf32>
    %135 = tpu.matmul %134, %126, %cst_46 {dimension_numbers = #tpu.dot_dimension_numbers<[1], [0], [0], [1], [0, 0, 1, 1], [], []>} : vector<16x16xf32>, vector<16x16xf32>, vector<16x16xf32> -> vector<16x16xf32>
    %cst_47 = arith.constant dense<0.000000e+00> : vector<16x16xf32>
    %136 = tpu.matmul %119, %129, %cst_47 {dimension_numbers = #tpu.dot_dimension_numbers<[1], [0], [0], [1], [0, 0, 1, 1], [], []>} : vector<16x16xf32>, vector<16x16xf32>, vector<16x16xf32> -> vector<16x16xf32>
    %137 = vector.broadcast %128 : vector<1x16xf32> to vector<16x16xf32>
    %138 = arith.mulf %136, %137 : vector<16x16xf32>
    %139 = arith.addf %135, %138 : vector<16x16xf32>
    %140 = arith.mulf %139, %127 : vector<16x16xf32>
    %cst_48 = arith.constant dense<0xFF800000> : vector<16xf32>
    %141 = vector.multi_reduction <maximumf>, %140, %cst_48 [1] : vector<16x16xf32> to vector<16xf32>
    %142 = vector.shape_cast %141 : vector<16xf32> to vector<16x1xf32>
    %143 = vector.broadcast %142 : vector<16x1xf32> to vector<16x16xf32>
    %144 = arith.subf %140, %143 : vector<16x16xf32>
    %145 = math.exp %144 : vector<16x16xf32>
    %cst_49 = arith.constant dense<0.000000e+00> : vector<16xf32>
    %146 = vector.multi_reduction <add>, %145, %cst_49 [1] : vector<16x16xf32> to vector<16xf32>
    %147 = vector.shape_cast %146 : vector<16xf32> to vector<16x1xf32>
    %148 = tpu.reciprocal %147 {approx = true} : vector<16x1xf32> -> vector<16x1xf32>
    %149 = vector.broadcast %148 : vector<16x1xf32> to vector<16x16xf32>
    %150 = arith.mulf %145, %149 : vector<16x16xf32>
    %151 = arith.mulf %150, %127 : vector<16x16xf32>
    %152 = tpu.transpose %126, [1, 0] : vector<16x16xf32> -> vector<16x16xf32>
    %cst_50 = arith.constant dense<0.000000e+00> : vector<16x16xf32>
    %153 = tpu.matmul %151, %152, %cst_50 {dimension_numbers = #tpu.dot_dimension_numbers<[1], [0], [0], [1], [0, 0, 1, 1], [], []>} : vector<16x16xf32>, vector<16x16xf32>, vector<16x16xf32> -> vector<16x16xf32>
    %cst_51 = arith.constant 0.000000e+00 : f32
    %154 = vector.broadcast %cst_51 : f32 to vector<16x16xf32>
    %155 = arith.select %26, %153, %154 : vector<16x16xi1>, vector<16x16xf32>
    %cst_52 = arith.constant dense<0.000000e+00> : vector<16x16xf32>
    %156 = tpu.matmul %155, %113, %cst_52 {dimension_numbers = #tpu.dot_dimension_numbers<[1], [0], [0], [1], [0, 0, 1, 1], [], []>} : vector<16x16xf32>, vector<16x16xf32>, vector<16x16xf32> -> vector<16x16xf32>
    %157 = vector.broadcast %128 : vector<1x16xf32> to vector<16x16xf32>
    %158 = arith.mulf %150, %157 : vector<16x16xf32>
    %159 = arith.mulf %158, %127 : vector<16x16xf32>
    %160 = tpu.transpose %130, [1, 0] : vector<16x16xf32> -> vector<16x16xf32>
    %cst_53 = arith.constant dense<0.000000e+00> : vector<16x16xf32>
    %161 = tpu.matmul %159, %160, %cst_53 {dimension_numbers = #tpu.dot_dimension_numbers<[1], [0], [0], [1], [0, 0, 1, 1], [], []>} : vector<16x16xf32>, vector<16x16xf32>, vector<16x16xf32> -> vector<16x16xf32>
    %162 = arith.addf %156, %161 : vector<16x16xf32>
    %163 = vector.extract_strided_slice %31 {offsets = [15, 16], sizes = [1, 16], strides = [1, 1]} : vector<16x64xf32> to vector<1x16xf32>
    %cst_54 = arith.constant 1.000000e+00 : f32
    %164 = vector.broadcast %cst_54 : f32 to vector<1x16xf32>
    %165 = arith.divf %164, %163 : vector<1x16xf32>
    %166 = vector.broadcast %128 : vector<1x16xf32> to vector<16x16xf32>
    %167 = arith.mulf %129, %166 : vector<16x16xf32>
    %168 = tpu.transpose %125, [1, 0] : vector<16x16xf32> -> vector<16x16xf32>
    %cst_55 = arith.constant dense<0.000000e+00> : vector<16x16xf32>
    %169 = tpu.matmul %168, %126, %cst_55 {dimension_numbers = #tpu.dot_dimension_numbers<[1], [0], [0], [1], [0, 0, 1, 1], [], []>} : vector<16x16xf32>, vector<16x16xf32>, vector<16x16xf32> -> vector<16x16xf32>
    %170 = arith.addf %167, %169 : vector<16x16xf32>
    %171 = vector.broadcast %165 : vector<1x16xf32> to vector<16x16xf32>
    %172 = arith.mulf %170, %171 : vector<16x16xf32>
    %c16_56 = arith.constant 16 : index
    %c0_57 = arith.constant 0 : index
    %173 = vector.load %arg10[%c16_56, %c0_57] : memref<64x16xf32, #tpu.memory_space<vmem>>, vector<16x16xf32>
    tpu.vector_store %arg10[%c16_56, %c0_57], %172 {strides = array<i32>} : memref<64x16xf32, #tpu.memory_space<vmem>>, vector<16x16xf32>,
    %174 = vector.broadcast %128 : vector<1x16xf32> to vector<16x16xf32>
    %175 = arith.mulf %130, %174 : vector<16x16xf32>
    %176 = tpu.transpose %113, [1, 0] : vector<16x16xf32> -> vector<16x16xf32>
    %cst_58 = arith.constant dense<0.000000e+00> : vector<16x16xf32>
    %177 = tpu.matmul %176, %126, %cst_58 {dimension_numbers = #tpu.dot_dimension_numbers<[1], [0], [0], [1], [0, 0, 1, 1], [], []>} : vector<16x16xf32>, vector<16x16xf32>, vector<16x16xf32> -> vector<16x16xf32>
    %178 = arith.addf %175, %177 : vector<16x16xf32>
    %179 = vector.broadcast %165 : vector<1x16xf32> to vector<16x16xf32>
    %180 = arith.mulf %178, %179 : vector<16x16xf32>
    %c16_59 = arith.constant 16 : index
    %c0_60 = arith.constant 0 : index
    %181 = vector.load %arg11[%c16_59, %c0_60] : memref<64x16xf32, #tpu.memory_space<vmem>>, vector<16x16xf32>
    tpu.vector_store %arg11[%c16_59, %c0_60], %180 {strides = array<i32>} : memref<64x16xf32, #tpu.memory_space<vmem>>, vector<16x16xf32>,
    %182 = vector.extract_strided_slice %4 {offsets = [0, 32], sizes = [16, 16], strides = [1, 1]} : vector<16x256xbf16> to vector<16x16xbf16>
    %183 = arith.extf %182 : vector<16x16xbf16> to vector<16x16xf32>
    %184 = vector.extract_strided_slice %4 {offsets = [0, 96], sizes = [16, 16], strides = [1, 1]} : vector<16x256xbf16> to vector<16x16xbf16>
    %185 = arith.extf %184 : vector<16x16xbf16> to vector<16x16xf32>
    %186 = vector.extract_strided_slice %4 {offsets = [0, 160], sizes = [16, 16], strides = [1, 1]} : vector<16x256xbf16> to vector<16x16xbf16>
    %187 = arith.extf %186 : vector<16x16xbf16> to vector<16x16xf32>
    %188 = arith.mulf %183, %11 : vector<16x16xf32>
    %189 = vector.extract_strided_slice %183 {offsets = [0, 8], sizes = [16, 8], strides = [1, 1]} : vector<16x16xf32> to vector<16x8xf32>
    %190 = vector.extract_strided_slice %183 {offsets = [0, 0], sizes = [16, 8], strides = [1, 1]} : vector<16x16xf32> to vector<16x8xf32>
    %191 = tpu.concatenate %189, %190 in 1 : vector<16x8xf32>, vector<16x8xf32> -> vector<16x16xf32>
    %192 = arith.mulf %191, %12 : vector<16x16xf32>
    %193 = arith.addf %188, %192 : vector<16x16xf32>
    %194 = arith.mulf %185, %13 : vector<16x16xf32>
    %195 = vector.extract_strided_slice %185 {offsets = [0, 8], sizes = [16, 8], strides = [1, 1]} : vector<16x16xf32> to vector<16x8xf32>
    %196 = vector.extract_strided_slice %185 {offsets = [0, 0], sizes = [16, 8], strides = [1, 1]} : vector<16x16xf32> to vector<16x8xf32>
    %197 = tpu.concatenate %195, %196 in 1 : vector<16x8xf32>, vector<16x8xf32> -> vector<16x16xf32>
    %198 = arith.mulf %197, %14 : vector<16x16xf32>
    %199 = arith.addf %194, %198 : vector<16x16xf32>
    %200 = vector.extract_strided_slice %21 {offsets = [0, 32], sizes = [16, 16], strides = [1, 1]} : vector<16x64xf32> to vector<16x16xf32>
    %201 = vector.extract_strided_slice %33 {offsets = [0, 32], sizes = [16, 16], strides = [1, 1]} : vector<16x64xf32> to vector<16x16xf32>
    %202 = vector.extract_strided_slice %23 {offsets = [0, 32], sizes = [1, 16], strides = [1, 1]} : vector<1x64xf32> to vector<1x16xf32>
    %c32 = arith.constant 32 : index
    %c0_61 = arith.constant 0 : index
    %203 = vector.load %arg10[%c32, %c0_61] : memref<64x16xf32, #tpu.memory_space<vmem>>, vector<16x16xf32>
    %c32_62 = arith.constant 32 : index
    %c0_63 = arith.constant 0 : index
    %204 = vector.load %arg11[%c32_62, %c0_63] : memref<64x16xf32, #tpu.memory_space<vmem>>, vector<16x16xf32>
    %205 = tpu.transpose %199, [1, 0] : vector<16x16xf32> -> vector<16x16xf32>
    %cst_64 = arith.constant dense<0.000000e+00> : vector<16x16xf32>
    %206 = tpu.matmul %193, %205, %cst_64 {dimension_numbers = #tpu.dot_dimension_numbers<[1], [0], [0], [1], [0, 0, 1, 1], [], []>} : vector<16x16xf32>, vector<16x16xf32>, vector<16x16xf32> -> vector<16x16xf32>
    %cst_65 = arith.constant 0.000000e+00 : f32
    %207 = vector.broadcast %cst_65 : f32 to vector<16x16xf32>
    %208 = arith.select %26, %206, %207 : vector<16x16xi1>, vector<16x16xf32>
    %cst_66 = arith.constant dense<0.000000e+00> : vector<16x16xf32>
    %209 = tpu.matmul %208, %200, %cst_66 {dimension_numbers = #tpu.dot_dimension_numbers<[1], [0], [0], [1], [0, 0, 1, 1], [], []>} : vector<16x16xf32>, vector<16x16xf32>, vector<16x16xf32> -> vector<16x16xf32>
    %cst_67 = arith.constant dense<0.000000e+00> : vector<16x16xf32>
    %210 = tpu.matmul %193, %203, %cst_67 {dimension_numbers = #tpu.dot_dimension_numbers<[1], [0], [0], [1], [0, 0, 1, 1], [], []>} : vector<16x16xf32>, vector<16x16xf32>, vector<16x16xf32> -> vector<16x16xf32>
    %211 = vector.broadcast %202 : vector<1x16xf32> to vector<16x16xf32>
    %212 = arith.mulf %210, %211 : vector<16x16xf32>
    %213 = arith.addf %209, %212 : vector<16x16xf32>
    %214 = arith.mulf %213, %201 : vector<16x16xf32>
    %cst_68 = arith.constant dense<0xFF800000> : vector<16xf32>
    %215 = vector.multi_reduction <maximumf>, %214, %cst_68 [1] : vector<16x16xf32> to vector<16xf32>
    %216 = vector.shape_cast %215 : vector<16xf32> to vector<16x1xf32>
    %217 = vector.broadcast %216 : vector<16x1xf32> to vector<16x16xf32>
    %218 = arith.subf %214, %217 : vector<16x16xf32>
    %219 = math.exp %218 : vector<16x16xf32>
    %cst_69 = arith.constant dense<0.000000e+00> : vector<16xf32>
    %220 = vector.multi_reduction <add>, %219, %cst_69 [1] : vector<16x16xf32> to vector<16xf32>
    %221 = vector.shape_cast %220 : vector<16xf32> to vector<16x1xf32>
    %222 = tpu.reciprocal %221 {approx = true} : vector<16x1xf32> -> vector<16x1xf32>
    %223 = vector.broadcast %222 : vector<16x1xf32> to vector<16x16xf32>
    %224 = arith.mulf %219, %223 : vector<16x16xf32>
    %225 = arith.mulf %224, %201 : vector<16x16xf32>
    %226 = tpu.transpose %200, [1, 0] : vector<16x16xf32> -> vector<16x16xf32>
    %cst_70 = arith.constant dense<0.000000e+00> : vector<16x16xf32>
    %227 = tpu.matmul %225, %226, %cst_70 {dimension_numbers = #tpu.dot_dimension_numbers<[1], [0], [0], [1], [0, 0, 1, 1], [], []>} : vector<16x16xf32>, vector<16x16xf32>, vector<16x16xf32> -> vector<16x16xf32>
    %cst_71 = arith.constant 0.000000e+00 : f32
    %228 = vector.broadcast %cst_71 : f32 to vector<16x16xf32>
    %229 = arith.select %26, %227, %228 : vector<16x16xi1>, vector<16x16xf32>
    %cst_72 = arith.constant dense<0.000000e+00> : vector<16x16xf32>
    %230 = tpu.matmul %229, %187, %cst_72 {dimension_numbers = #tpu.dot_dimension_numbers<[1], [0], [0], [1], [0, 0, 1, 1], [], []>} : vector<16x16xf32>, vector<16x16xf32>, vector<16x16xf32> -> vector<16x16xf32>
    %231 = vector.broadcast %202 : vector<1x16xf32> to vector<16x16xf32>
    %232 = arith.mulf %224, %231 : vector<16x16xf32>
    %233 = arith.mulf %232, %201 : vector<16x16xf32>
    %234 = tpu.transpose %204, [1, 0] : vector<16x16xf32> -> vector<16x16xf32>
    %cst_73 = arith.constant dense<0.000000e+00> : vector<16x16xf32>
    %235 = tpu.matmul %233, %234, %cst_73 {dimension_numbers = #tpu.dot_dimension_numbers<[1], [0], [0], [1], [0, 0, 1, 1], [], []>} : vector<16x16xf32>, vector<16x16xf32>, vector<16x16xf32> -> vector<16x16xf32>
    %236 = arith.addf %230, %235 : vector<16x16xf32>
    %237 = vector.extract_strided_slice %31 {offsets = [15, 32], sizes = [1, 16], strides = [1, 1]} : vector<16x64xf32> to vector<1x16xf32>
    %cst_74 = arith.constant 1.000000e+00 : f32
    %238 = vector.broadcast %cst_74 : f32 to vector<1x16xf32>
    %239 = arith.divf %238, %237 : vector<1x16xf32>
    %240 = vector.broadcast %202 : vector<1x16xf32> to vector<16x16xf32>
    %241 = arith.mulf %203, %240 : vector<16x16xf32>
    %242 = tpu.transpose %199, [1, 0] : vector<16x16xf32> -> vector<16x16xf32>
    %cst_75 = arith.constant dense<0.000000e+00> : vector<16x16xf32>
    %243 = tpu.matmul %242, %200, %cst_75 {dimension_numbers = #tpu.dot_dimension_numbers<[1], [0], [0], [1], [0, 0, 1, 1], [], []>} : vector<16x16xf32>, vector<16x16xf32>, vector<16x16xf32> -> vector<16x16xf32>
    %244 = arith.addf %241, %243 : vector<16x16xf32>
    %245 = vector.broadcast %239 : vector<1x16xf32> to vector<16x16xf32>
    %246 = arith.mulf %244, %245 : vector<16x16xf32>
    %c32_76 = arith.constant 32 : index
    %c0_77 = arith.constant 0 : index
    %247 = vector.load %arg10[%c32_76, %c0_77] : memref<64x16xf32, #tpu.memory_space<vmem>>, vector<16x16xf32>
    tpu.vector_store %arg10[%c32_76, %c0_77], %246 {strides = array<i32>} : memref<64x16xf32, #tpu.memory_space<vmem>>, vector<16x16xf32>,
    %248 = vector.broadcast %202 : vector<1x16xf32> to vector<16x16xf32>
    %249 = arith.mulf %204, %248 : vector<16x16xf32>
    %250 = tpu.transpose %187, [1, 0] : vector<16x16xf32> -> vector<16x16xf32>
    %cst_78 = arith.constant dense<0.000000e+00> : vector<16x16xf32>
    %251 = tpu.matmul %250, %200, %cst_78 {dimension_numbers = #tpu.dot_dimension_numbers<[1], [0], [0], [1], [0, 0, 1, 1], [], []>} : vector<16x16xf32>, vector<16x16xf32>, vector<16x16xf32> -> vector<16x16xf32>
    %252 = arith.addf %249, %251 : vector<16x16xf32>
    %253 = vector.broadcast %239 : vector<1x16xf32> to vector<16x16xf32>
    %254 = arith.mulf %252, %253 : vector<16x16xf32>
    %c32_79 = arith.constant 32 : index
    %c0_80 = arith.constant 0 : index
    %255 = vector.load %arg11[%c32_79, %c0_80] : memref<64x16xf32, #tpu.memory_space<vmem>>, vector<16x16xf32>
    tpu.vector_store %arg11[%c32_79, %c0_80], %254 {strides = array<i32>} : memref<64x16xf32, #tpu.memory_space<vmem>>, vector<16x16xf32>,
    %256 = vector.extract_strided_slice %4 {offsets = [0, 48], sizes = [16, 16], strides = [1, 1]} : vector<16x256xbf16> to vector<16x16xbf16>
    %257 = arith.extf %256 : vector<16x16xbf16> to vector<16x16xf32>
    %258 = vector.extract_strided_slice %4 {offsets = [0, 112], sizes = [16, 16], strides = [1, 1]} : vector<16x256xbf16> to vector<16x16xbf16>
    %259 = arith.extf %258 : vector<16x16xbf16> to vector<16x16xf32>
    %260 = vector.extract_strided_slice %4 {offsets = [0, 176], sizes = [16, 16], strides = [1, 1]} : vector<16x256xbf16> to vector<16x16xbf16>
    %261 = arith.extf %260 : vector<16x16xbf16> to vector<16x16xf32>
    %262 = arith.mulf %257, %11 : vector<16x16xf32>
    %263 = vector.extract_strided_slice %257 {offsets = [0, 8], sizes = [16, 8], strides = [1, 1]} : vector<16x16xf32> to vector<16x8xf32>
    %264 = vector.extract_strided_slice %257 {offsets = [0, 0], sizes = [16, 8], strides = [1, 1]} : vector<16x16xf32> to vector<16x8xf32>
    %265 = tpu.concatenate %263, %264 in 1 : vector<16x8xf32>, vector<16x8xf32> -> vector<16x16xf32>
    %266 = arith.mulf %265, %12 : vector<16x16xf32>
    %267 = arith.addf %262, %266 : vector<16x16xf32>
    %268 = arith.mulf %259, %13 : vector<16x16xf32>
    %269 = vector.extract_strided_slice %259 {offsets = [0, 8], sizes = [16, 8], strides = [1, 1]} : vector<16x16xf32> to vector<16x8xf32>
    %270 = vector.extract_strided_slice %259 {offsets = [0, 0], sizes = [16, 8], strides = [1, 1]} : vector<16x16xf32> to vector<16x8xf32>
    %271 = tpu.concatenate %269, %270 in 1 : vector<16x8xf32>, vector<16x8xf32> -> vector<16x16xf32>
    %272 = arith.mulf %271, %14 : vector<16x16xf32>
    %273 = arith.addf %268, %272 : vector<16x16xf32>
    %274 = vector.extract_strided_slice %21 {offsets = [0, 48], sizes = [16, 16], strides = [1, 1]} : vector<16x64xf32> to vector<16x16xf32>
    %275 = vector.extract_strided_slice %33 {offsets = [0, 48], sizes = [16, 16], strides = [1, 1]} : vector<16x64xf32> to vector<16x16xf32>
    %276 = vector.extract_strided_slice %23 {offsets = [0, 48], sizes = [1, 16], strides = [1, 1]} : vector<1x64xf32> to vector<1x16xf32>
    %c48 = arith.constant 48 : index
    %c0_81 = arith.constant 0 : index
    %277 = vector.load %arg10[%c48, %c0_81] : memref<64x16xf32, #tpu.memory_space<vmem>>, vector<16x16xf32>
    %c48_82 = arith.constant 48 : index
    %c0_83 = arith.constant 0 : index
    %278 = vector.load %arg11[%c48_82, %c0_83] : memref<64x16xf32, #tpu.memory_space<vmem>>, vector<16x16xf32>
    %279 = tpu.transpose %273, [1, 0] : vector<16x16xf32> -> vector<16x16xf32>
    %cst_84 = arith.constant dense<0.000000e+00> : vector<16x16xf32>
    %280 = tpu.matmul %267, %279, %cst_84 {dimension_numbers = #tpu.dot_dimension_numbers<[1], [0], [0], [1], [0, 0, 1, 1], [], []>} : vector<16x16xf32>, vector<16x16xf32>, vector<16x16xf32> -> vector<16x16xf32>
    %cst_85 = arith.constant 0.000000e+00 : f32
    %281 = vector.broadcast %cst_85 : f32 to vector<16x16xf32>
    %282 = arith.select %26, %280, %281 : vector<16x16xi1>, vector<16x16xf32>
    %cst_86 = arith.constant dense<0.000000e+00> : vector<16x16xf32>
    %283 = tpu.matmul %282, %274, %cst_86 {dimension_numbers = #tpu.dot_dimension_numbers<[1], [0], [0], [1], [0, 0, 1, 1], [], []>} : vector<16x16xf32>, vector<16x16xf32>, vector<16x16xf32> -> vector<16x16xf32>
    %cst_87 = arith.constant dense<0.000000e+00> : vector<16x16xf32>
    %284 = tpu.matmul %267, %277, %cst_87 {dimension_numbers = #tpu.dot_dimension_numbers<[1], [0], [0], [1], [0, 0, 1, 1], [], []>} : vector<16x16xf32>, vector<16x16xf32>, vector<16x16xf32> -> vector<16x16xf32>
    %285 = vector.broadcast %276 : vector<1x16xf32> to vector<16x16xf32>
    %286 = arith.mulf %284, %285 : vector<16x16xf32>
    %287 = arith.addf %283, %286 : vector<16x16xf32>
    %288 = arith.mulf %287, %275 : vector<16x16xf32>
    %cst_88 = arith.constant dense<0xFF800000> : vector<16xf32>
    %289 = vector.multi_reduction <maximumf>, %288, %cst_88 [1] : vector<16x16xf32> to vector<16xf32>
    %290 = vector.shape_cast %289 : vector<16xf32> to vector<16x1xf32>
    %291 = vector.broadcast %290 : vector<16x1xf32> to vector<16x16xf32>
    %292 = arith.subf %288, %291 : vector<16x16xf32>
    %293 = math.exp %292 : vector<16x16xf32>
    %cst_89 = arith.constant dense<0.000000e+00> : vector<16xf32>
    %294 = vector.multi_reduction <add>, %293, %cst_89 [1] : vector<16x16xf32> to vector<16xf32>
    %295 = vector.shape_cast %294 : vector<16xf32> to vector<16x1xf32>
    %296 = tpu.reciprocal %295 {approx = true} : vector<16x1xf32> -> vector<16x1xf32>
    %297 = vector.broadcast %296 : vector<16x1xf32> to vector<16x16xf32>
    %298 = arith.mulf %293, %297 : vector<16x16xf32>
    %299 = arith.mulf %298, %275 : vector<16x16xf32>
    %300 = tpu.transpose %274, [1, 0] : vector<16x16xf32> -> vector<16x16xf32>
    %cst_90 = arith.constant dense<0.000000e+00> : vector<16x16xf32>
    %301 = tpu.matmul %299, %300, %cst_90 {dimension_numbers = #tpu.dot_dimension_numbers<[1], [0], [0], [1], [0, 0, 1, 1], [], []>} : vector<16x16xf32>, vector<16x16xf32>, vector<16x16xf32> -> vector<16x16xf32>
    %cst_91 = arith.constant 0.000000e+00 : f32
    %302 = vector.broadcast %cst_91 : f32 to vector<16x16xf32>
    %303 = arith.select %26, %301, %302 : vector<16x16xi1>, vector<16x16xf32>
    %cst_92 = arith.constant dense<0.000000e+00> : vector<16x16xf32>
    %304 = tpu.matmul %303, %261, %cst_92 {dimension_numbers = #tpu.dot_dimension_numbers<[1], [0], [0], [1], [0, 0, 1, 1], [], []>} : vector<16x16xf32>, vector<16x16xf32>, vector<16x16xf32> -> vector<16x16xf32>
    %305 = vector.broadcast %276 : vector<1x16xf32> to vector<16x16xf32>
    %306 = arith.mulf %298, %305 : vector<16x16xf32>
    %307 = arith.mulf %306, %275 : vector<16x16xf32>
    %308 = tpu.transpose %278, [1, 0] : vector<16x16xf32> -> vector<16x16xf32>
    %cst_93 = arith.constant dense<0.000000e+00> : vector<16x16xf32>
    %309 = tpu.matmul %307, %308, %cst_93 {dimension_numbers = #tpu.dot_dimension_numbers<[1], [0], [0], [1], [0, 0, 1, 1], [], []>} : vector<16x16xf32>, vector<16x16xf32>, vector<16x16xf32> -> vector<16x16xf32>
    %310 = arith.addf %304, %309 : vector<16x16xf32>
    %311 = vector.extract_strided_slice %31 {offsets = [15, 48], sizes = [1, 16], strides = [1, 1]} : vector<16x64xf32> to vector<1x16xf32>
    %cst_94 = arith.constant 1.000000e+00 : f32
    %312 = vector.broadcast %cst_94 : f32 to vector<1x16xf32>
    %313 = arith.divf %312, %311 : vector<1x16xf32>
    %314 = vector.broadcast %276 : vector<1x16xf32> to vector<16x16xf32>
    %315 = arith.mulf %277, %314 : vector<16x16xf32>
    %316 = tpu.transpose %273, [1, 0] : vector<16x16xf32> -> vector<16x16xf32>
    %cst_95 = arith.constant dense<0.000000e+00> : vector<16x16xf32>
    %317 = tpu.matmul %316, %274, %cst_95 {dimension_numbers = #tpu.dot_dimension_numbers<[1], [0], [0], [1], [0, 0, 1, 1], [], []>} : vector<16x16xf32>, vector<16x16xf32>, vector<16x16xf32> -> vector<16x16xf32>
    %318 = arith.addf %315, %317 : vector<16x16xf32>
    %319 = vector.broadcast %313 : vector<1x16xf32> to vector<16x16xf32>
    %320 = arith.mulf %318, %319 : vector<16x16xf32>
    %c48_96 = arith.constant 48 : index
    %c0_97 = arith.constant 0 : index
    %321 = vector.load %arg10[%c48_96, %c0_97] : memref<64x16xf32, #tpu.memory_space<vmem>>, vector<16x16xf32>
    tpu.vector_store %arg10[%c48_96, %c0_97], %320 {strides = array<i32>} : memref<64x16xf32, #tpu.memory_space<vmem>>, vector<16x16xf32>,
    %322 = vector.broadcast %276 : vector<1x16xf32> to vector<16x16xf32>
    %323 = arith.mulf %278, %322 : vector<16x16xf32>
    %324 = tpu.transpose %261, [1, 0] : vector<16x16xf32> -> vector<16x16xf32>
    %cst_98 = arith.constant dense<0.000000e+00> : vector<16x16xf32>
    %325 = tpu.matmul %324, %274, %cst_98 {dimension_numbers = #tpu.dot_dimension_numbers<[1], [0], [0], [1], [0, 0, 1, 1], [], []>} : vector<16x16xf32>, vector<16x16xf32>, vector<16x16xf32> -> vector<16x16xf32>
    %326 = arith.addf %323, %325 : vector<16x16xf32>
    %327 = vector.broadcast %313 : vector<1x16xf32> to vector<16x16xf32>
    %328 = arith.mulf %326, %327 : vector<16x16xf32>
    %c48_99 = arith.constant 48 : index
    %c0_100 = arith.constant 0 : index
    %329 = vector.load %arg11[%c48_99, %c0_100] : memref<64x16xf32, #tpu.memory_space<vmem>>, vector<16x16xf32>
    tpu.vector_store %arg11[%c48_99, %c0_100], %328 {strides = array<i32>} : memref<64x16xf32, #tpu.memory_space<vmem>>, vector<16x16xf32>,
    %330 = vector.extract_strided_slice %31 {offsets = [15, 0], sizes = [1, 64], strides = [1, 1]} : vector<16x64xf32> to vector<1x64xf32>
    %331 = math.log %330 : vector<1x64xf32>
    %332 = arith.addf %331, %18 : vector<1x64xf32>
    %c0_101 = arith.constant 0 : index
    %c0_102 = arith.constant 0 : index
    %333 = vector.load %arg9[%c0_101, %c0_102] : memref<1x64xf32, #tpu.memory_space<vmem>>, vector<1x64xf32>
    tpu.vector_store %arg9[%c0_101, %c0_102], %332 {strides = array<i32>} : memref<1x64xf32, #tpu.memory_space<vmem>>, vector<1x64xf32>,
    %334 = tpu.concatenate %88, %162, %236, %310 in 1 : vector<16x16xf32>, vector<16x16xf32>, vector<16x16xf32>, vector<16x16xf32> -> vector<16x64xf32>
    %335 = arith.truncf %334 : vector<16x64xf32> to vector<16x64xbf16>
    %c0_103 = arith.constant 0 : index
    %c0_104 = arith.constant 0 : index
    %c0_105 = arith.constant 0 : index
    %336 = vector.load %arg8[%c0_103, %c0_104, %c0_105] : memref<1x16x64xbf16, #tpu.memory_space<vmem>>, vector<1x16x64xbf16>
    %337 = vector.shape_cast %336 : vector<1x16x64xbf16> to vector<16x64xbf16>
    %338 = vector.shape_cast %335 : vector<16x64xbf16> to vector<1x16x64xbf16>
    tpu.vector_store %arg8[%c0_103, %c0_104, %c0_105], %338 {strides = array<i32>} : memref<1x16x64xbf16, #tpu.memory_space<vmem>>, vector<1x16x64xbf16>,
    return
  }
  func.func @transform_0(%arg0: i32, %arg1: i32) -> (i32, i32, i32) {
    %c0_i32 = arith.constant 0 : i32
    %c0_i32_0 = arith.constant 0 : i32
    return %arg0, %arg1, %c0_i32 : i32, i32, i32
  }
  func.func @transform_1(%arg0: i32, %arg1: i32) -> (i32, i32, i32) {
    %c0_i32 = arith.constant 0 : i32
    %c0_i32_0 = arith.constant 0 : i32
    return %arg0, %arg1, %c0_i32 : i32, i32, i32
  }
  func.func @transform_2(%arg0: i32, %arg1: i32) -> (i32, i32) {
    %c0_i32 = arith.constant 0 : i32
    %c0_i32_0 = arith.constant 0 : i32
    return %arg1, %c0_i32 : i32, i32
  }
  func.func @transform_3(%arg0: i32, %arg1: i32) -> (i32, i32) {
    %c0_i32 = arith.constant 0 : i32
    %c0_i32_0 = arith.constant 0 : i32
    return %arg1, %c0_i32 : i32, i32
  }
  func.func @transform_4(%arg0: i32, %arg1: i32) -> (i32, i32) {
    %c0_i32 = arith.constant 0 : i32
    %c0_i32_0 = arith.constant 0 : i32
    return %arg1, %c0_i32 : i32, i32
  }
  func.func @transform_5(%arg0: i32, %arg1: i32) -> (i32, i32) {
    %c0_i32 = arith.constant 0 : i32
    %c0_i32_0 = arith.constant 0 : i32
    return %arg1, %c0_i32 : i32, i32
  }
  func.func @transform_6(%arg0: i32, %arg1: i32) -> (i32, i32, i32) {
    %c0_i32 = arith.constant 0 : i32
    %c0_i32_0 = arith.constant 0 : i32
    return %arg0, %arg1, %c0_i32 : i32, i32, i32
  }
}

module attributes {stable_mosaic.version = 11 : i64} {
  func.func @_rmsnorm_swish_gate_kernel(%arg0: i32, %arg1: memref<32x64xbf16, #tpu.memory_space<vmem>>, %arg2: memref<32x256xbf16, #tpu.memory_space<vmem>>, %arg3: memref<64x64xf32, #tpu.memory_space<vmem>>, %arg4: memref<1x64xf32, #tpu.memory_space<vmem>>, %arg5: memref<32x64xbf16, #tpu.memory_space<vmem>>) attributes {dimension_semantics = [#tpu.dimension_semantics<parallel>], iteration_bounds = array<i64: 1>, scalar_prefetch = 0 : i64, scratch_operands = 0 : i64, tpu.core_type = #tpu.core_type<tc>, window_params = [{transform_indices = @transform_0, window_bounds = array<i64: 32, 64>}, {transform_indices = @transform_1, window_bounds = array<i64: 32, 256>}, {pipeline_mode = #tpu.pipeline_mode<synchronous>, transform_indices = @transform_2, window_bounds = array<i64: 64, 64>}, {pipeline_mode = #tpu.pipeline_mode<synchronous>, transform_indices = @transform_3, window_bounds = array<i64: 1, 64>}, {transform_indices = @transform_4, window_bounds = array<i64: 32, 64>}]} {
    %c0 = arith.constant 0 : index
    %c0_0 = arith.constant 0 : index
    %0 = vector.load %arg1[%c0, %c0_0] : memref<32x64xbf16, #tpu.memory_space<vmem>>, vector<32x64xbf16>
    %1 = arith.extf %0 : vector<32x64xbf16> to vector<32x64xf32>
    %c0_1 = arith.constant 0 : index
    %c0_2 = arith.constant 0 : index
    %2 = vector.load %arg2[%c0_1, %c0_2] : memref<32x256xbf16, #tpu.memory_space<vmem>>, vector<32x256xbf16>
    %3 = vector.extract_strided_slice %2 {offsets = [0, 192], sizes = [32, 64], strides = [1, 1]} : vector<32x256xbf16> to vector<32x64xbf16>
    %4 = arith.extf %3 : vector<32x64xbf16> to vector<32x64xf32>
    %5 = arith.mulf %1, %1 : vector<32x64xf32>
    %c0_3 = arith.constant 0 : index
    %c0_4 = arith.constant 0 : index
    %6 = vector.load %arg3[%c0_3, %c0_4] : memref<64x64xf32, #tpu.memory_space<vmem>>, vector<64x64xf32>
    %cst = arith.constant dense<0.000000e+00> : vector<32x64xf32>
    %7 = tpu.matmul %5, %6, %cst {dimension_numbers = #tpu.dot_dimension_numbers<[1], [0], [0], [1], [0, 0, 1, 1], [], []>} : vector<32x64xf32>, vector<64x64xf32>, vector<32x64xf32> -> vector<32x64xf32>
    %cst_5 = arith.constant 9.99999974E-6 : f32
    %8 = vector.broadcast %cst_5 : f32 to vector<32x64xf32>
    %9 = arith.addf %7, %8 : vector<32x64xf32>
    %10 = math.rsqrt %9 : vector<32x64xf32>
    %11 = arith.mulf %1, %10 : vector<32x64xf32>
    %c0_6 = arith.constant 0 : index
    %c0_7 = arith.constant 0 : index
    %12 = vector.load %arg4[%c0_6, %c0_7] : memref<1x64xf32, #tpu.memory_space<vmem>>, vector<1x64xf32>
    %13 = vector.broadcast %12 : vector<1x64xf32> to vector<32x64xf32>
    %14 = arith.mulf %11, %13 : vector<32x64xf32>
    %15 = arith.negf %4 : vector<32x64xf32>
    %16 = math.exp %15 : vector<32x64xf32>
    %cst_8 = arith.constant 1.000000e+00 : f32
    %17 = vector.broadcast %cst_8 : f32 to vector<32x64xf32>
    %18 = arith.addf %17, %16 : vector<32x64xf32>
    %19 = arith.divf %17, %18 : vector<32x64xf32>
    %20 = arith.mulf %4, %19 : vector<32x64xf32>
    %21 = arith.mulf %14, %20 : vector<32x64xf32>
    %22 = arith.truncf %21 : vector<32x64xf32> to vector<32x64xbf16>
    %c0_9 = arith.constant 0 : index
    %c0_10 = arith.constant 0 : index
    %23 = vector.load %arg5[%c0_9, %c0_10] : memref<32x64xbf16, #tpu.memory_space<vmem>>, vector<32x64xbf16>
    tpu.vector_store %arg5[%c0_9, %c0_10], %22 {strides = array<i32>} : memref<32x64xbf16, #tpu.memory_space<vmem>>, vector<32x64xbf16>,
    return
  }
  func.func @transform_0(%arg0: i32) -> (i32, i32) {
    %c0_i32 = arith.constant 0 : i32
    %c0_i32_0 = arith.constant 0 : i32
    return %arg0, %c0_i32 : i32, i32
  }
  func.func @transform_1(%arg0: i32) -> (i32, i32) {
    %c0_i32 = arith.constant 0 : i32
    %c0_i32_0 = arith.constant 0 : i32
    return %arg0, %c0_i32 : i32, i32
  }
  func.func @transform_2(%arg0: i32) -> (i32, i32) {
    %c0_i32 = arith.constant 0 : i32
    %c0_i32_0 = arith.constant 0 : i32
    %c0_i32_1 = arith.constant 0 : i32
    return %c0_i32, %c0_i32_0 : i32, i32
  }
  func.func @transform_3(%arg0: i32) -> (i32, i32) {
    %c0_i32 = arith.constant 0 : i32
    %c0_i32_0 = arith.constant 0 : i32
    %c0_i32_1 = arith.constant 0 : i32
    return %c0_i32, %c0_i32_0 : i32, i32
  }
  func.func @transform_4(%arg0: i32) -> (i32, i32) {
    %c0_i32 = arith.constant 0 : i32
    %c0_i32_0 = arith.constant 0 : i32
    return %arg0, %c0_i32 : i32, i32
  }
}

module attributes {stable_mosaic.version = 11 : i64} {
  func.func @_matmul_kernel(%arg0: i32, %arg1: i32, %arg2: i32, %arg3: memref<32x64xbf16, #tpu.memory_space<vmem>>, %arg4: memref<64x64xbf16, #tpu.memory_space<vmem>>, %arg5: memref<32x64xf32, #tpu.memory_space<vmem>>, %arg6: memref<32x64xf32, #tpu.memory_space<vmem>>) attributes {dimension_semantics = [#tpu.dimension_semantics<parallel>, #tpu.dimension_semantics<parallel>, #tpu.dimension_semantics<arbitrary>], iteration_bounds = array<i64: 1, 1, 1>, scalar_prefetch = 0 : i64, scratch_operands = 1 : i64, tpu.core_type = #tpu.core_type<tc>, window_params = [{transform_indices = @transform_0, window_bounds = array<i64: 32, 64>}, {transform_indices = @transform_1, window_bounds = array<i64: 64, 64>}, {transform_indices = @transform_2, window_bounds = array<i64: 32, 64>}]} {
    %c0_i32 = arith.constant 0 : i32
    %0 = arith.cmpi eq, %arg2, %c0_i32 : i32
    %1 = arith.extui %0 : i1 to i32
    %c0_i32_0 = arith.constant 0 : i32
    %2 = arith.cmpi ne, %1, %c0_i32_0 : i32
    scf.if %2 {
      %cst_10 = arith.constant 0.000000e+00 : f32
      %12 = vector.broadcast %cst_10 : f32 to vector<32x64xf32>
      %c0_11 = arith.constant 0 : index
      %c0_12 = arith.constant 0 : index
      %13 = vector.load %arg6[%c0_11, %c0_12] : memref<32x64xf32, #tpu.memory_space<vmem>>, vector<32x64xf32>
      tpu.vector_store %arg6[%c0_11, %c0_12], %12 {strides = array<i32>} : memref<32x64xf32, #tpu.memory_space<vmem>>, vector<32x64xf32>,
    } else {
    }
    %c0 = arith.constant 0 : index
    %c0_1 = arith.constant 0 : index
    %3 = vector.load %arg6[%c0, %c0_1] : memref<32x64xf32, #tpu.memory_space<vmem>>, vector<32x64xf32>
    %c0_2 = arith.constant 0 : index
    %c0_3 = arith.constant 0 : index
    %4 = vector.load %arg3[%c0_2, %c0_3] : memref<32x64xbf16, #tpu.memory_space<vmem>>, vector<32x64xbf16>
    %c0_4 = arith.constant 0 : index
    %c0_5 = arith.constant 0 : index
    %5 = vector.load %arg4[%c0_4, %c0_5] : memref<64x64xbf16, #tpu.memory_space<vmem>>, vector<64x64xbf16>
    %cst = arith.constant dense<0.000000e+00> : vector<32x64xf32>
    %6 = tpu.matmul %4, %5, %cst {dimension_numbers = #tpu.dot_dimension_numbers<[1], [0], [0], [1], [0, 0, 1, 1], [], []>} : vector<32x64xbf16>, vector<64x64xbf16>, vector<32x64xf32> -> vector<32x64xf32>
    %7 = arith.addf %3, %6 : vector<32x64xf32>
    %c0_6 = arith.constant 0 : index
    %c0_7 = arith.constant 0 : index
    %8 = vector.load %arg6[%c0_6, %c0_7] : memref<32x64xf32, #tpu.memory_space<vmem>>, vector<32x64xf32>
    tpu.vector_store %arg6[%c0_6, %c0_7], %7 {strides = array<i32>} : memref<32x64xf32, #tpu.memory_space<vmem>>, vector<32x64xf32>,
    %c0_i32_8 = arith.constant 0 : i32
    %9 = arith.cmpi eq, %arg2, %c0_i32_8 : i32
    %10 = arith.extui %9 : i1 to i32
    %c0_i32_9 = arith.constant 0 : i32
    %11 = arith.cmpi ne, %10, %c0_i32_9 : i32
    scf.if %11 {
      %c0_10 = arith.constant 0 : index
      %c0_11 = arith.constant 0 : index
      %12 = vector.load %arg6[%c0_10, %c0_11] : memref<32x64xf32, #tpu.memory_space<vmem>>, vector<32x64xf32>
      %c0_12 = arith.constant 0 : index
      %c0_13 = arith.constant 0 : index
      %13 = vector.load %arg5[%c0_12, %c0_13] : memref<32x64xf32, #tpu.memory_space<vmem>>, vector<32x64xf32>
      tpu.vector_store %arg5[%c0_12, %c0_13], %12 {strides = array<i32>} : memref<32x64xf32, #tpu.memory_space<vmem>>, vector<32x64xf32>,
    } else {
    }
    return
  }
  func.func @transform_0(%arg0: i32, %arg1: i32, %arg2: i32) -> (i32, i32) {
    %c0_i32 = arith.constant 0 : i32
    return %arg0, %arg2 : i32, i32
  }
  func.func @transform_1(%arg0: i32, %arg1: i32, %arg2: i32) -> (i32, i32) {
    %c0_i32 = arith.constant 0 : i32
    return %arg2, %arg1 : i32, i32
  }
  func.func @transform_2(%arg0: i32, %arg1: i32, %arg2: i32) -> (i32, i32) {
    %c0_i32 = arith.constant 0 : i32
    return %arg0, %arg1 : i32, i32
  }
}

</mosaic_0001>

<llo_original>
// kernel: abc_attention_forward.6
$region0: #{abc_attention_forward.6}
  #allocation0 [shape = 'u32[]', space=smem, size = 0x4, offset = 0x4, fixed_abs, tag = 'smem constant byte address 0x4 - core index']
  #allocation1 [shape = 'u32[144,128]{1,0:T(1,128)}', space=vmem, size = 0x12000, scoped, tag = 'internal scratch']
  #allocation2 [shape = 'f32[19,64]{1,0:T(8,128)}', space=vmem, size = 0x3000, scoped, tag = 'scratch operand']
  %s0 = inlined_call_operand.vmem [shape: f32[2,16,64], index: 0, kind: input, shape index: {}]
  %s1 = inlined_call_operand.vmem [shape: f32[4,64], index: 1, kind: input, shape index: {}]
  %s2 = inlined_call_operand.vmem [shape: bf16[2,16,64], index: 2, kind: output, shape index: {}]
  %s3 = sld [smem:[#allocation0]]
  $region41: #{abc_attention_forward.6} parent=0
    _
  %s5 = ssub.s32 1, %s3
  %s6 = scalar_select 0, %s5, %s3
  loop: start=0, step=1, limit=4
  $region2: #{abc_attention_forward.6} parent=0 // loop_pre_header
    _
  $region3: #{abc_attention_forward.6} parent=0 // loop_header
    %s8 = sphi 0, %s12
    %p9 = scmp.ge.s32.totalorder %s8, 4
    %s18 = sphi 0, %s20
    %s21 = sphi 0, %s18
    %s22 = sphi 0, %s21
    %s38 = sphi 0, %s22
    %s42 = sphi 0, %s42
    %s44 = sphi 0, %s42
    %s45 = sphi 0, %s44
    %s59 = sphi 0, %s45
    %s65 = sphi 0, %s67
    %s68 = sphi 0, %s65
    %s69 = sphi 0, %s68
    %s85 = sphi 0, %s69
  $region4: #{abc_attention_forward.6} parent=0 // loop_header_branch
    %11 = sbr.rel (%p9) target = $region8
  $region5: #{abc_attention_forward.6} parent=0 // loop_body
    %s13 = ssub.s32 %s8, 1
    %s14 = ssub.s32 %s8, 2
    %s15 = sadd.s32 %s8, 1
    %s16 = ssub.s32 %s8, %s15
    %p17 = scmp.eq.s32.totalorder %s16, 0
    %s19 = sadd.s32 %s18, 1
    %s20 = scalar_select %p17, %s18, %s19
    %p23 = pneg %p17
    %p24 = scmp.eq.s32.totalorder %s8, 1
    %p25 = por %p23, %p24
    %p26 = scmp.ne.s32.totalorder %s18, %s21
    %p27 = scmp.eq.s32.totalorder %s8, 0
    %p28 = por %p26, %p27
    %p29 = scmp.ne.s32.totalorder %s18, %s21
    %p30 = scmp.eq.s32.totalorder %s13, 1
    %p31 = por %p29, %p30
    %p32 = scmp.ne.s32.totalorder %s21, %s22
    %p33 = scmp.eq.s32.totalorder %s13, 0
    %p34 = por %p32, %p33
    %p35 = scmp.ne.s32.totalorder %s21, %s22
    %p36 = scmp.eq.s32.totalorder %s14, 1
    %p37 = por %p35, %p36
    %p39 = scmp.ne.s32.totalorder %s22, %s38
    %p40 = scmp.eq.s32.totalorder %s14, 0
    %p41 = por %p39, %p40
    %s43 = sadd.s32 %s42, 1
    %p46 = scmp.eq.s32.totalorder %s8, 1
    %p47 = scmp.ne.s32.totalorder %s42, %s44
    %p48 = scmp.eq.s32.totalorder %s8, 0
    %p49 = por %p47, %p48
    %p50 = scmp.ne.s32.totalorder %s42, %s44
    %p51 = scmp.eq.s32.totalorder %s13, 1
    %p52 = por %p50, %p51
    %p53 = scmp.ne.s32.totalorder %s44, %s45
    %p54 = scmp.eq.s32.totalorder %s13, 0
    %p55 = por %p53, %p54
    %p56 = scmp.ne.s32.totalorder %s44, %s45
    %p57 = scmp.eq.s32.totalorder %s14, 1
    %p58 = por %p56, %p57
    %p60 = scmp.ne.s32.totalorder %s45, %s59
    %p61 = scmp.eq.s32.totalorder %s14, 0
    %p62 = por %p60, %p61
    %s63 = ssub.s32 %s8, %s15
    %p64 = scmp.eq.s32.totalorder %s63, 0
    %s66 = sadd.s32 %s65, 1
    %s67 = scalar_select %p64, %s65, %s66
    %p70 = pneg %p64
    %p71 = scmp.eq.s32.totalorder %s8, 1
    %p72 = por %p70, %p71
    %p73 = scmp.ne.s32.totalorder %s65, %s68
    %p74 = scmp.eq.s32.totalorder %s8, 0
    %p75 = por %p73, %p74
    %p76 = scmp.ne.s32.totalorder %s65, %s68
    %p77 = scmp.eq.s32.totalorder %s13, 1
    %p78 = por %p76, %p77
    %p79 = scmp.ne.s32.totalorder %s68, %s69
    %p80 = scmp.eq.s32.totalorder %s13, 0
    %p81 = por %p79, %p80
    %p82 = scmp.ne.s32.totalorder %s68, %s69
    %p83 = scmp.eq.s32.totalorder %s14, 1
    %p84 = por %p82, %p83
    %p86 = scmp.ne.s32.totalorder %s69, %s85
    %p87 = scmp.eq.s32.totalorder %s14, 0
    %p88 = por %p86, %p87
    %p89 = scmp.le.s32.totalorder 1, %s8
    %p90 = scmp.lt.s32.totalorder %s8, 3
    %p91 = pnand %p89, %p90
    %p92 = pneg %p91
    // Predicated region
    $region9: #{abc_attention_forward.6} parent=5 // pred_check
      _
    $region10: #{abc_attention_forward.6} parent=5 // pred_check_branch
      %94 = sbr.rel (%p91) target = $region12
    $region11: #{abc_attention_forward.6} parent=5 // pred_region
      %s95 = ssub.s32 %s8, 1
      // Predicated region
      $region13: #{abc_attention_forward.6} parent=11 // pred_check
        %p96 = pneg %p55
      $region14: #{abc_attention_forward.6} parent=11 // pred_check_branch
        %98 = sbr.rel (%p96) target = $region16
      $region15: #{abc_attention_forward.6} parent=11 // pred_region
        _
      $region16: #{abc_attention_forward.6} parent=11 // pred_fallthru
        _
    $region12: #{abc_attention_forward.6} parent=5 // pred_fallthru
      _
    %p99 = scmp.lt.s32.totalorder %s8, 2
    // Predicated region
    $region17: #{abc_attention_forward.6} parent=5 // pred_check
      %p100 = pneg %p99
    $region18: #{abc_attention_forward.6} parent=5 // pred_check_branch
      %102 = sbr.rel (%p100) target = $region20
    $region19: #{abc_attention_forward.6} parent=5 // pred_region
      // Predicated region
      $region21: #{abc_attention_forward.6} parent=19 // pred_check
        %p103 = pneg %p28
      $region22: #{abc_attention_forward.6} parent=19 // pred_check_branch
        %105 = sbr.rel (%p103) target = $region24
      $region23: #{abc_attention_forward.6} parent=19 // pred_region
        %p106 = scmp.lt.s32.totalorder %s8, 1
        %s107 = scalar_select %p106, %s8, 1
        %s108 = smul.addr %s107, 2
        %s109 = smul.addr %s108, 8
        %s110 = scalar_lea.vmem %s0, %s109
      $region24: #{abc_attention_forward.6} parent=19 // pred_fallthru
        _
    $region20: #{abc_attention_forward.6} parent=5 // pred_fallthru
      _
    %p111 = scmp.le.s32.totalorder 1, %s8
    %p112 = scmp.lt.s32.totalorder %s8, 3
    %p113 = pnand %p111, %p112
    %p114 = pneg %p113
    // Predicated region
    $region25: #{abc_attention_forward.6} parent=5 // pred_check
      _
    $region26: #{abc_attention_forward.6} parent=5 // pred_check_branch
      %116 = sbr.rel (%p113) target = $region28
    $region27: #{abc_attention_forward.6} parent=5 // pred_region
      %s117 = ssub.s32 %s8, 1
      %p118 = scmp.lt.s32.totalorder %s13, 1
      %s119 = scalar_select %p118, %s13, 1
      %s120 = smul.addr %s119, 2
      %s121 = smul.addr %s120, 8
      %s122 = scalar_lea.vmem %s0, %s121
      %p123 = pneg %p34
      %p124 = pneg %p31
      %p125 = pneg %p55
      %p126 = pneg %p52
      %p127 = pneg %p81
      %p128 = pneg %p78
      %p129 = scmp.lt.s32.totalorder %s13, 1
      %s130 = scalar_select %p129, %s13, 1
      %s131 = smul.addr %s130, 2
      %s132 = smul.addr %s131, 4
      %s133 = scalar_lea.vmem %s2, %s132
      %p134 = scmp.lt.s32.totalorder %s13, 1
      %s135 = scalar_select %p134, %s13, 1
      %s136 = smul.addr %s135, 2
      %s137 = smul.addr %s136, 8
      %s138 = scalar_lea.vmem %s0, %s137
      %p139 = scmp.lt.s32.totalorder %s13, 1
      %s140 = scalar_select %p139, %s13, 1
      %s141 = smul.addr %s140, 2
      %s142 = smul.addr %s141, 4
      %s143 = scalar_lea.vmem %s2, %s142
      %vm144 = vcmask 523264
      %145 = vst.msk [vmem:[#allocation2] sm:$0xff] %vm144, 0.0
      %146 = vst.msk [vmem:[#allocation2 + $0x8] sm:$0xff] %vm144, 0.0
      %vm147 = vcmask 518144
      %148 = vst.msk [vmem:[#allocation2 + $0x10] sm:$0x7] %vm147, 0.0
      %v149 = vld [vmem:[%s138] sm:$0xff]
      %v150 = vld [vmem:[%s138 + $0x8] sm:$0xff]
      %151 = vst.msk [vmem:[#allocation2 + $0x3] sm:$0xff] %vm144, %v149
      %152 = vst.msk [vmem:[#allocation2 + $0xb] sm:$0xff] %vm144, %v150
      %v153 = vld [vmem:[#allocation2] sm:$0xff]
      %v154 = vld [vmem:[#allocation2 + $0x8] sm:$0xff]
      %v155 = vld [vmem:[%s1] sm:$0x1]
      %v156 = vlaneseq
      %v157 = vshrl.u32 %v156, 7
      %v158 = vsub.s32 0, %v157
      %v159 = vrot.slane %v155, %v158
      %v160 = vmul.f32 %v153, %v159
      %v161 = vmul.f32 %v154, %v159
      %v162 = vadd.f32 %v160, 0.0
      %v163 = vadd.f32 %v161, 0.0
      %v164 = vld [vmem:[#allocation2 + $0x1] sm:$0xff]
      %v165 = vld [vmem:[#allocation2 + $0x9] sm:$0xff]
      %v166 = vld [vmem:[%s1 + $0x1] sm:$0x1]
      %v167 = vlaneseq
      %v168 = vshrl.u32 %v167, 7
      %v169 = vsub.s32 0, %v168
      %v170 = vrot.slane %v166, %v169
      %v171 = vmul.f32 %v164, %v170
      %v172 = vmul.f32 %v165, %v170
      %v173 = vadd.f32 %v162, %v171
      %v174 = vadd.f32 %v163, %v172
      %v175 = vld [vmem:[#allocation2 + $0x2] sm:$0xff]
      %v176 = vld [vmem:[#allocation2 + $0xa] sm:$0xff]
      %v177 = vld [vmem:[%s1 + $0x2] sm:$0x1]
      %v178 = vlaneseq
      %v179 = vshrl.u32 %v178, 7
      %v180 = vsub.s32 0, %v179
      %v181 = vrot.slane %v177, %v180
      %v182 = vmul.f32 %v175, %v181
      %v183 = vmul.f32 %v176, %v181
      %v184 = vadd.f32 %v173, %v182
      %v185 = vadd.f32 %v174, %v183
      %v186 = vld [vmem:[#allocation2 + $0x3] sm:$0xff]
      %v187 = vld [vmem:[#allocation2 + $0xb] sm:$0xff]
      %v188 = vld [vmem:[%s1 + $0x3] sm:$0x1]
      %v189 = vlaneseq
      %v190 = vshrl.u32 %v189, 7
      %v191 = vsub.s32 0, %v190
      %v192 = vrot.slane %v188, %v191
      %v193 = vmul.f32 %v186, %v192
      %v194 = vmul.f32 %v187, %v192
      %v195 = vadd.f32 %v184, %v193
      %v196 = vadd.f32 %v185, %v194
      %v197 = vxor.u32 %v195, 2147483648
      %v198 = vxor.u32 %v196, 2147483648
      %v199 = vmul.f32 %v197, 1.442695
      %v200 = vpow.pop %v199
      %v201 = vmul.f32 %v198, 1.442695
      %v202 = vpow.pop %v201
      %v203 = vadd.f32 %v200, 1.0
      %v204 = vadd.f32 %v202, 1.0
      %v205 = vrcp.pop %v203
      %v206 = vmul.f32 1.0, %v205
      %v207 = vrcp.pop %v204
      %v208 = vmul.f32 1.0, %v207
      %v209 = vmul.f32 %v195, %v206
      %v210 = vmul.f32 %v196, %v208
      %v211 = vpack.c.bf16 %v210, %v209
      %v213 = vunpack.c.l.b16 %v211
      %v214 = vunpack.c.h.b16 %v211
      %v215 = vpack.c.b16 %v213, %v213
      %v216 = vpack.c.b16 %v214, %v214
      %vm219 = vcmask 519168
      %220 = vst.msk [vmem:[%s143] sm:$0xf] %vm219, %v215
      %221 = vst.msk [vmem:[%s143 + $0x4] sm:$0xf] %vm219, %v216
      %p222 = scmp.lt.s32.totalorder %s13, 1
      %s223 = scalar_select %p222, %s13, 1
      %s224 = smul.addr %s223, 2
      %s225 = smul.addr %s224, 4
      %s226 = scalar_lea.vmem %s2, %s225
      // Predicated region
      $region29: #{abc_attention_forward.6} parent=27 // pred_check
        %p227 = pneg %p78
      $region30: #{abc_attention_forward.6} parent=27 // pred_check_branch
        %229 = sbr.rel (%p227) target = $region32
      $region31: #{abc_attention_forward.6} parent=27 // pred_region
        _
      $region32: #{abc_attention_forward.6} parent=27 // pred_fallthru
        _
    $region28: #{abc_attention_forward.6} parent=5 // pred_fallthru
      _
    %p230 = scmp.le.s32.totalorder 2, %s8
    // Predicated region
    $region33: #{abc_attention_forward.6} parent=5 // pred_check
      %p231 = pneg %p230
    $region34: #{abc_attention_forward.6} parent=5 // pred_check_branch
      %233 = sbr.rel (%p231) target = $region36
    $region35: #{abc_attention_forward.6} parent=5 // pred_region
      %s234 = ssub.s32 %s8, 2
      // Predicated region
      $region37: #{abc_attention_forward.6} parent=35 // pred_check
        %p235 = pneg %p84
      $region38: #{abc_attention_forward.6} parent=35 // pred_check_branch
        %237 = sbr.rel (%p235) target = $region40
      $region39: #{abc_attention_forward.6} parent=35 // pred_region
        %p238 = scmp.lt.s32.totalorder %s14, 1
        %s239 = scalar_select %p238, %s14, 1
        %s240 = smul.addr %s239, 2
        %s241 = smul.addr %s240, 4
        %s242 = scalar_lea.vmem %s2, %s241
      $region40: #{abc_attention_forward.6} parent=35 // pred_fallthru
        _
    $region36: #{abc_attention_forward.6} parent=5 // pred_fallthru
      _
  $region6: #{abc_attention_forward.6} parent=0 // loop_footer
    %s12 = sadd.s32 1, %s8
  $region7: #{abc_attention_forward.6} parent=0 // loop_footer_branch
    %7 = sbr.rel target = $region3
  $region8: #{abc_attention_forward.6} parent=0 // loop_exit
    _

// kernel: abc_attention_forward.7
$region0: #{abc_attention_forward.7}
  #allocation0 [shape = 'u32[]', space=smem, size = 0x4, offset = 0x4, fixed_abs, tag = 'smem constant byte address 0x4 - core index']
  #allocation1 [shape = 'u32[144,128]{1,0:T(1,128)}', space=vmem, size = 0x12000, scoped, tag = 'internal scratch']
  #allocation2 [shape = 'f32[32,256]{1,0:T(8,128)}', space=vmem, size = 0x8000, scoped, tag = 'scratch operand']
  %s0 = inlined_call_operand.vmem [shape: bf16[32,64], index: 0, kind: input, shape index: {}]
  %s1 = inlined_call_operand.vmem [shape: bf16[64,256], index: 1, kind: input, shape index: {}]
  %s2 = inlined_call_operand.vmem [shape: bf16[32,256], index: 2, kind: output, shape index: {}]
  %s3 = sld [smem:[#allocation0]]
  $region26: #{abc_attention_forward.7} parent=0
    _
  %s5 = ssub.s32 1, %s3
  %s6 = scalar_select 0, %s5, %s3
  // Predicated region
  $region2: #{abc_attention_forward.7} parent=0 // pred_check
    _
  $region3: #{abc_attention_forward.7} parent=0 // pred_check_branch
    %8 = sbr.rel (0) target = $region5
  $region4: #{abc_attention_forward.7} parent=0 // pred_region
    _
  $region5: #{abc_attention_forward.7} parent=0 // pred_fallthru
    _
  // Predicated region
  $region6: #{abc_attention_forward.7} parent=0 // pred_check
    _
  $region7: #{abc_attention_forward.7} parent=0 // pred_check_branch
    %10 = sbr.rel (0) target = $region9
  $region8: #{abc_attention_forward.7} parent=0 // pred_region
    _
  $region9: #{abc_attention_forward.7} parent=0 // pred_fallthru
    _
  %p12 = scmp.eq.s32.totalorder 0, 0
  // Predicated region
  $region10: #{abc_attention_forward.7} parent=0 // pred_check
    %p13 = pneg %p12
  $region11: #{abc_attention_forward.7} parent=0 // pred_check_branch
    %15 = sbr.rel (%p13) target = $region13
  $region12: #{abc_attention_forward.7} parent=0 // pred_region
    %16 = vst [vmem:[#allocation2] sm:$0xff] 0.0
    %17 = vst [vmem:[#allocation2 + $0x8] sm:$0xff] 0.0
    %18 = vst [vmem:[#allocation2 + $0x10] sm:$0xff] 0.0
    %19 = vst [vmem:[#allocation2 + $0x18] sm:$0xff] 0.0
    %20 = vst [vmem:[#allocation2 + $0x20] sm:$0xff] 0.0
    %21 = vst [vmem:[#allocation2 + $0x28] sm:$0xff] 0.0
    %22 = vst [vmem:[#allocation2 + $0x30] sm:$0xff] 0.0
    %23 = vst [vmem:[#allocation2 + $0x38] sm:$0xff] 0.0
  $region13: #{abc_attention_forward.7} parent=0 // pred_fallthru
    _
  %v24 = vld [vmem:[#allocation2] sm:$0xff]
  %v25 = vld [vmem:[#allocation2 + $0x8] sm:$0xff]
  %v26 = vld [vmem:[#allocation2 + $0x10] sm:$0xff]
  %v27 = vld [vmem:[#allocation2 + $0x18] sm:$0xff]
  %v28 = vld [vmem:[#allocation2 + $0x20] sm:$0xff]
  %v29 = vld [vmem:[#allocation2 + $0x28] sm:$0xff]
  %v30 = vld [vmem:[#allocation2 + $0x30] sm:$0xff]
  %v31 = vld [vmem:[#allocation2 + $0x38] sm:$0xff]
  %v32 = vld [vmem:[%s0] sm:$0xf]
  %v33 = vld [vmem:[%s0 + $0x4] sm:$0xf]
  %v34 = vld [vmem:[%s0 + $0x8] sm:$0xf]
  %v35 = vld [vmem:[%s0 + $0xc] sm:$0xf]
  %v36 = vld [vmem:[%s1] sm:$0xff]
  %v37 = vld [vmem:[%s1 + $0x8] sm:$0xff]
  %v38 = vld [vmem:[%s1 + $0x10] sm:$0xff]
  %v39 = vld [vmem:[%s1 + $0x18] sm:$0xff]
  %v40 = vld [vmem:[%s1 + $0x20] sm:$0xff]
  %v41 = vld [vmem:[%s1 + $0x28] sm:$0xff]
  %v42 = vld [vmem:[%s1 + $0x30] sm:$0xff]
  %v43 = vld [vmem:[%s1 + $0x38] sm:$0xff]
  %v48 = vunpack.c.l.b16 %v32
  %v49 = vunpack.c.l.b16 %v33
  %v50 = vunpack.c.l.b16 %v34
  %v51 = vunpack.c.l.b16 %v35
  %v52 = vpack.c.b16 %v49, %v48
  %v53 = vpack.c.b16 %v51, %v50
  %v62 = vunpack.c.l.b16 %v36
  %v63 = vunpack.c.h.b16 %v36
  %v64 = vunpack.c.l.b16 %v37
  %v65 = vunpack.c.h.b16 %v37
  %v66 = vunpack.c.l.b16 %v38
  %v67 = vunpack.c.h.b16 %v38
  %v68 = vunpack.c.l.b16 %v39
  %v69 = vunpack.c.h.b16 %v39
  %v70 = vunpack.c.l.b16 %v40
  %v71 = vunpack.c.h.b16 %v40
  %v72 = vunpack.c.l.b16 %v41
  %v73 = vunpack.c.h.b16 %v41
  %v74 = vunpack.c.l.b16 %v42
  %v75 = vunpack.c.h.b16 %v42
  %v76 = vunpack.c.l.b16 %v43
  %v77 = vunpack.c.h.b16 %v43
  %v78 = vpack.c.b16 %v64, %v62
  %v79 = vpack.c.b16 %v65, %v63
  %v80 = vpack.c.b16 %v68, %v66
  %v81 = vpack.c.b16 %v69, %v67
  %v82 = vpack.c.b16 %v72, %v70
  %v83 = vpack.c.b16 %v73, %v71
  %v84 = vpack.c.b16 %v76, %v74
  %v85 = vpack.c.b16 %v77, %v75
  %vm94 = vcmask 523264
  %v96 = vsel %vm94, %v52, 0
  %v99 = vsel %vm94, %v53, 0
  %101 = vmatprep.subr.bf16.mxu0 %v79
  %102 = vmatpush1.bf16.msra.mxu0 %v78
  %103 = vmatprep.subr.bf16.mxu0 %v81
  %104 = vmatpush1.bf16.msra.mxu0 %v80
  %105 = vmatprep.subr.bf16.mxu0 %v83
  %106 = vmatpush1.bf16.msra.mxu0 %v82
  %107 = vmatprep.subr.bf16.mxu0 %v85
  %108 = vmatpush1.bf16.msra.mxu0 %v84
  %109 = vmatprep.subr.bf16.mxu0 0
  %110 = vmatpush1.bf16.msra.mxu0 0
  %111 = vmatprep.subr.bf16.mxu0 0
  %112 = vmatpush1.bf16.msra.mxu0 0
  %113 = vmatprep.subr.bf16.mxu0 0
  %114 = vmatpush1.bf16.msra.mxu0 0
  %115 = vmatprep.subr.bf16.mxu0 0
  %116 = vmatpush1.bf16.msra.mxu0 0
  %117 = vmatprep.subr.bf16.mxu0 0
  %118 = vmatpush1.bf16.msra.mxu0 0
  %119 = vmatprep.subr.bf16.mxu0 0
  %120 = vmatpush1.bf16.msra.mxu0 0
  %121 = vmatprep.subr.bf16.mxu0 0
  %122 = vmatpush1.bf16.msra.mxu0 0
  %123 = vmatprep.subr.bf16.mxu0 0
  %124 = vmatpush1.bf16.msra.mxu0 0
  %125 = vmatprep.subr.bf16.mxu0 0
  %126 = vmatpush1.bf16.msra.mxu0 0
  %127 = vmatprep.subr.bf16.mxu0 0
  %128 = vmatpush1.bf16.msra.mxu0 0
  %129 = vmatprep.subr.bf16.mxu0 0
  %130 = vmatpush1.bf16.msra.mxu0 0
  %131 = vmatprep.subr.bf16.mxu0 0
  %132 = vmatpush1.bf16.msra.mxu0 0
  %133 = vmatprep.mubr.bf16.mxu0 0
  %134 = vmatmul.mubr.bf16.gmra.mrb[0].mxu0 %v96
  %v135 = vpop.f32.mrb[0].mxu0
  %v136 = vadd.f32 0.0, %v135
  %v137 = vpop.f32.mrb[0].mxu0
  %v138 = vadd.f32 0.0, %v137
  %v139 = vpop.f32.mrb[0].mxu0
  %v140 = vadd.f32 0.0, %v139
  %v141 = vpop.f32.mrb[0].mxu0
  %v142 = vadd.f32 0.0, %v141
  %143 = vmatprep.mubr.bf16.mxu0 0
  %144 = vmatmul.mubr.bf16.gmra.mrb[0].mxu0 %v99
  %v145 = vpop.f32.mrb[0].mxu0
  %v146 = vadd.f32 0.0, %v145
  %v147 = vpop.f32.mrb[0].mxu0
  %v148 = vadd.f32 0.0, %v147
  %v149 = vpop.f32.mrb[0].mxu0
  %v150 = vadd.f32 0.0, %v149
  %v151 = vpop.f32.mrb[0].mxu0
  %v152 = vadd.f32 0.0, %v151
  %153 = vdwg.mxu0
  %v154 = vadd.f32 %v24, %v136
  %v155 = vadd.f32 %v25, %v138
  %v156 = vadd.f32 %v26, %v140
  %v157 = vadd.f32 %v27, %v142
  %v158 = vadd.f32 %v28, %v146
  %v159 = vadd.f32 %v29, %v148
  %v160 = vadd.f32 %v30, %v150
  %v161 = vadd.f32 %v31, %v152
  %162 = vst [vmem:[#allocation2] sm:$0xff] %v154
  %163 = vst [vmem:[#allocation2 + $0x8] sm:$0xff] %v155
  %164 = vst [vmem:[#allocation2 + $0x10] sm:$0xff] %v156
  %165 = vst [vmem:[#allocation2 + $0x18] sm:$0xff] %v157
  %166 = vst [vmem:[#allocation2 + $0x20] sm:$0xff] %v158
  %167 = vst [vmem:[#allocation2 + $0x28] sm:$0xff] %v159
  %168 = vst [vmem:[#allocation2 + $0x30] sm:$0xff] %v160
  %169 = vst [vmem:[#allocation2 + $0x38] sm:$0xff] %v161
  // Predicated region
  $region14: #{abc_attention_forward.7} parent=0 // pred_check
    %p170 = pneg %p12
  $region15: #{abc_attention_forward.7} parent=0 // pred_check_branch
    %172 = sbr.rel (%p170) target = $region17
  $region16: #{abc_attention_forward.7} parent=0 // pred_region
    %v173 = vld [vmem:[#allocation2] sm:$0xff]
    %v174 = vld [vmem:[#allocation2 + $0x8] sm:$0xff]
    %v175 = vld [vmem:[#allocation2 + $0x10] sm:$0xff]
    %v176 = vld [vmem:[#allocation2 + $0x18] sm:$0xff]
    %v177 = vld [vmem:[#allocation2 + $0x20] sm:$0xff]
    %v178 = vld [vmem:[#allocation2 + $0x28] sm:$0xff]
    %v179 = vld [vmem:[#allocation2 + $0x30] sm:$0xff]
    %v180 = vld [vmem:[#allocation2 + $0x38] sm:$0xff]
    %v181 = vpack.c.bf16 %v175, %v173
    %v182 = vpack.c.bf16 %v176, %v174
    %v183 = vpack.c.bf16 %v179, %v177
    %v184 = vpack.c.bf16 %v180, %v178
    %v189 = vunpack.c.l.b16 %v181
    %v190 = vunpack.c.l.b16 %v182
    %v191 = vunpack.c.h.b16 %v181
    %v192 = vunpack.c.h.b16 %v182
    %v193 = vunpack.c.l.b16 %v183
    %v194 = vunpack.c.l.b16 %v184
    %v195 = vunpack.c.h.b16 %v183
    %v196 = vunpack.c.h.b16 %v184
    %v197 = vpack.c.b16 %v190, %v189
    %v198 = vpack.c.b16 %v192, %v191
    %v199 = vpack.c.b16 %v194, %v193
    %v200 = vpack.c.b16 %v196, %v195
    %205 = vst [vmem:[%s2] sm:$0xff] %v197
    %206 = vst [vmem:[%s2 + $0x8] sm:$0xff] %v198
    %207 = vst [vmem:[%s2 + $0x10] sm:$0xff] %v199
    %208 = vst [vmem:[%s2 + $0x18] sm:$0xff] %v200
  $region17: #{abc_attention_forward.7} parent=0 // pred_fallthru
    _
  // Predicated region
  $region18: #{abc_attention_forward.7} parent=0 // pred_check
    _
  $region19: #{abc_attention_forward.7} parent=0 // pred_check_branch
    %210 = sbr.rel (0) target = $region21
  $region20: #{abc_attention_forward.7} parent=0 // pred_region
    _
  $region21: #{abc_attention_forward.7} parent=0 // pred_fallthru
    _
  // Predicated region
  $region22: #{abc_attention_forward.7} parent=0 // pred_check
    _
  $region23: #{abc_attention_forward.7} parent=0 // pred_check_branch
    %212 = sbr.rel (0) target = $region25
  $region24: #{abc_attention_forward.7} parent=0 // pred_region
    _
  $region25: #{abc_attention_forward.7} parent=0 // pred_fallthru
    _

// kernel: abc_attention_forward.8
$region0: #{abc_attention_forward.8}
  #allocation0 [shape = 'u32[]', space=smem, size = 0x4, offset = 0x4, fixed_abs, tag = 'smem constant byte address 0x4 - core index']
  #allocation1 [shape = 'u32[144,128]{1,0:T(1,128)}', space=vmem, size = 0x12000, scoped, tag = 'internal scratch']
  %s0 = inlined_call_operand.vmem [shape: bf16[32,64], index: 0, kind: input, shape index: {}]
  %s1 = inlined_call_operand.vmem [shape: bf16[64,16], index: 1, kind: input, shape index: {}]
  %s2 = inlined_call_operand.vmem [shape: f32[16,64], index: 2, kind: input, shape index: {}]
  %s3 = inlined_call_operand.vmem [shape: f32[1,64], index: 3, kind: input, shape index: {}]
  %s4 = inlined_call_operand.vmem [shape: f32[32,64], index: 4, kind: output, shape index: {}]
  %s5 = sld [smem:[#allocation0]]
  $region26: #{abc_attention_forward.8} parent=0
    _
  %s7 = ssub.s32 1, %s5
  %s8 = scalar_select 0, %s7, %s5
  // Predicated region
  $region2: #{abc_attention_forward.8} parent=0 // pred_check
    _
  $region3: #{abc_attention_forward.8} parent=0 // pred_check_branch
    %10 = sbr.rel (0) target = $region5
  $region4: #{abc_attention_forward.8} parent=0 // pred_region
    _
  $region5: #{abc_attention_forward.8} parent=0 // pred_fallthru
    _
  // Predicated region
  $region6: #{abc_attention_forward.8} parent=0 // pred_check
    _
  $region7: #{abc_attention_forward.8} parent=0 // pred_check_branch
    %12 = sbr.rel (0) target = $region9
  $region8: #{abc_attention_forward.8} parent=0 // pred_region
    _
  $region9: #{abc_attention_forward.8} parent=0 // pred_fallthru
    _
  // Predicated region
  $region10: #{abc_attention_forward.8} parent=0 // pred_check
    _
  $region11: #{abc_attention_forward.8} parent=0 // pred_check_branch
    %14 = sbr.rel (0) target = $region13
  $region12: #{abc_attention_forward.8} parent=0 // pred_region
    _
  $region13: #{abc_attention_forward.8} parent=0 // pred_fallthru
    _
  // Predicated region
  $region14: #{abc_attention_forward.8} parent=0 // pred_check
    _
  $region15: #{abc_attention_forward.8} parent=0 // pred_check_branch
    %16 = sbr.rel (0) target = $region17
  $region16: #{abc_attention_forward.8} parent=0 // pred_region
    _
  $region17: #{abc_attention_forward.8} parent=0 // pred_fallthru
    _
  %v18 = vld [vmem:[%s0] sm:$0xf]
  %v19 = vld [vmem:[%s0 + $0x4] sm:$0xf]
  %v20 = vld [vmem:[%s0 + $0x8] sm:$0xf]
  %v21 = vld [vmem:[%s0 + $0xc] sm:$0xf]
  %v22 = vld [vmem:[%s1] sm:$0xf]
  %v23 = vld [vmem:[%s1 + $0x4] sm:$0xf]
  %v24 = vld [vmem:[%s1 + $0x8] sm:$0xf]
  %v25 = vld [vmem:[%s1 + $0xc] sm:$0xf]
  %v26 = vld [vmem:[%s1 + $0x10] sm:$0xf]
  %v27 = vld [vmem:[%s1 + $0x14] sm:$0xf]
  %v28 = vld [vmem:[%s1 + $0x18] sm:$0xf]
  %v29 = vld [vmem:[%s1 + $0x1c] sm:$0xf]
  %v34 = vunpack.c.l.b16 %v18
  %v35 = vunpack.c.l.b16 %v19
  %v36 = vunpack.c.l.b16 %v20
  %v37 = vunpack.c.l.b16 %v21
  %v38 = vpack.c.b16 %v35, %v34
  %v39 = vpack.c.b16 %v37, %v36
  %v48 = vunpack.c.l.b16 %v22
  %v49 = vunpack.c.l.b16 %v23
  %v50 = vunpack.c.l.b16 %v24
  %v51 = vunpack.c.l.b16 %v25
  %v52 = vunpack.c.l.b16 %v26
  %v53 = vunpack.c.l.b16 %v27
  %v54 = vunpack.c.l.b16 %v28
  %v55 = vunpack.c.l.b16 %v29
  %v56 = vpack.c.b16 %v49, %v48
  %v57 = vpack.c.b16 %v51, %v50
  %v58 = vpack.c.b16 %v53, %v52
  %v59 = vpack.c.b16 %v55, %v54
  %vm64 = vcmask 523264
  %v66 = vsel %vm64, %v38, 0
  %v69 = vsel %vm64, %v39, 0
  %71 = vmatprep.subr.bf16.mxu0 0
  %72 = vmatpush1.bf16.msra.mxu0 %v56
  %73 = vmatprep.subr.bf16.mxu0 0
  %74 = vmatpush1.bf16.msra.mxu0 %v57
  %75 = vmatprep.subr.bf16.mxu0 0
  %76 = vmatpush1.bf16.msra.mxu0 %v58
  %77 = vmatprep.subr.bf16.mxu0 0
  %78 = vmatpush1.bf16.msra.mxu0 %v59
  %79 = vmatprep.subr.bf16.mxu0 0
  %80 = vmatpush1.bf16.msra.mxu0 0
  %81 = vmatprep.subr.bf16.mxu0 0
  %82 = vmatpush1.bf16.msra.mxu0 0
  %83 = vmatprep.subr.bf16.mxu0 0
  %84 = vmatpush1.bf16.msra.mxu0 0
  %85 = vmatprep.subr.bf16.mxu0 0
  %86 = vmatpush1.bf16.msra.mxu0 0
  %87 = vmatprep.subr.bf16.mxu0 0
  %88 = vmatpush1.bf16.msra.mxu0 0
  %89 = vmatprep.subr.bf16.mxu0 0
  %90 = vmatpush1.bf16.msra.mxu0 0
  %91 = vmatprep.subr.bf16.mxu0 0
  %92 = vmatpush1.bf16.msra.mxu0 0
  %93 = vmatprep.subr.bf16.mxu0 0
  %94 = vmatpush1.bf16.msra.mxu0 0
  %95 = vmatprep.subr.bf16.mxu0 0
  %96 = vmatpush1.bf16.msra.mxu0 0
  %97 = vmatprep.subr.bf16.mxu0 0
  %98 = vmatpush1.bf16.msra.mxu0 0
  %99 = vmatprep.subr.bf16.mxu0 0
  %100 = vmatpush1.bf16.msra.mxu0 0
  %101 = vmatprep.subr.bf16.mxu0 0
  %102 = vmatpush1.bf16.msra.mxu0 0
  %103 = vmatprep.mubr.bf16.mxu0 0
  %104 = vmatmul.mubr.bf16.gmra.mrb[0].mxu0 %v66
  %v105 = vpop.f32.mrb[0].mxu0
  %v106 = vadd.f32 0.0, %v105
  %v107 = vpop.f32.mrb[0].mxu0
  %v108 = vpop.f32.mrb[0].mxu0
  %v109 = vadd.f32 0.0, %v108
  %v110 = vpop.f32.mrb[0].mxu0
  %111 = vmatprep.mubr.bf16.mxu0 0
  %112 = vmatmul.mubr.bf16.gmra.mrb[0].mxu0 %v69
  %v113 = vpop.f32.mrb[0].mxu0
  %v114 = vadd.f32 0.0, %v113
  %v115 = vpop.f32.mrb[0].mxu0
  %v116 = vpop.f32.mrb[0].mxu0
  %v117 = vadd.f32 0.0, %v116
  %v118 = vpop.f32.mrb[0].mxu0
  %119 = vdwg.mxu0
  %v120 = vld [vmem:[%s2] sm:$0xff]
  %v121 = vld [vmem:[%s2 + $0x8] sm:$0xff]
  %v122 = vld [vmem:[%s3] sm:$0x1]
  %v124 = vlaneseq
  %v125 = vshrl.u32 %v124, 7
  %v126 = vsub.s32 0, %v125
  %v127 = vrot.slane %v122, %v126
  %vm129 = vcmask 130048
  %v131 = vsel %vm129, %v106, 0
  %v134 = vsel %vm129, %v109, 0
  %v137 = vsel %vm129, %v114, 0
  %v140 = vsel %vm129, %v117, 0
  %142 = vmatprep.subr.mxu0 0.0
  %143 = vmatpush1.msra.mxu0 %v120
  %144 = vmatprep.subr.mxu0 0.0
  %145 = vmatpush1.msra.mxu0 %v121
  %146 = vmatprep.subr.mxu0 0.0
  %147 = vmatpush1.msra.mxu0 0.0
  %148 = vmatprep.subr.mxu0 0.0
  %149 = vmatpush1.msra.mxu0 0.0
  %150 = vmatprep.subr.mxu0 0.0
  %151 = vmatpush1.msra.mxu0 0.0
  %152 = vmatprep.subr.mxu0 0.0
  %153 = vmatpush1.msra.mxu0 0.0
  %154 = vmatprep.subr.mxu0 0.0
  %155 = vmatpush1.msra.mxu0 0.0
  %156 = vmatprep.subr.mxu0 0.0
  %157 = vmatpush1.msra.mxu0 0.0
  %158 = vmatprep.subr.mxu0 0.0
  %159 = vmatpush1.msra.mxu0 0.0
  %160 = vmatprep.subr.mxu0 0.0
  %161 = vmatpush1.msra.mxu0 0.0
  %162 = vmatprep.subr.mxu0 0.0
  %163 = vmatpush1.msra.mxu0 0.0
  %164 = vmatprep.subr.mxu0 0.0
  %165 = vmatpush1.msra.mxu0 0.0
  %166 = vmatprep.subr.mxu0 0.0
  %167 = vmatpush1.msra.mxu0 0.0
  %168 = vmatprep.subr.mxu0 0.0
  %169 = vmatpush1.msra.mxu0 0.0
  %170 = vmatprep.subr.mxu0 0.0
  %171 = vmatpush1.msra.mxu0 0.0
  %172 = vmatprep.subr.mxu0 0.0
  %173 = vmatpush1.msra.mxu0 0.0
  %174 = vmatprep.subr.mxu0 0.0
  %175 = vmatpush1.msra.mxu0 0.0
  %176 = vmatprep.subr.mxu0 0.0
  %177 = vmatpush1.msra.mxu0 0.0
  %178 = vmatprep.subr.mxu0 0.0
  %179 = vmatpush1.msra.mxu0 0.0
  %180 = vmatprep.subr.mxu0 0.0
  %181 = vmatpush1.msra.mxu0 0.0
  %182 = vmatprep.subr.mxu0 0.0
  %183 = vmatpush1.msra.mxu0 0.0
  %184 = vmatprep.subr.mxu0 0.0
  %185 = vmatpush1.msra.mxu0 0.0
  %186 = vmatprep.subr.mxu0 0.0
  %187 = vmatpush1.msra.mxu0 0.0
  %188 = vmatprep.subr.mxu0 0.0
  %189 = vmatpush1.msra.mxu0 0.0
  %190 = vmatprep.subr.mxu0 0.0
  %191 = vmatpush1.msra.mxu0 0.0
  %192 = vmatprep.subr.mxu0 0.0
  %193 = vmatpush1.msra.mxu0 0.0
  %194 = vmatprep.subr.mxu0 0.0
  %195 = vmatpush1.msra.mxu0 0.0
  %196 = vmatprep.subr.mxu0 0.0
  %197 = vmatpush1.msra.mxu0 0.0
  %198 = vmatprep.subr.mxu0 0.0
  %199 = vmatpush1.msra.mxu0 0.0
  %200 = vmatprep.subr.mxu0 0.0
  %201 = vmatpush1.msra.mxu0 0.0
  %202 = vmatprep.subr.mxu0 0.0
  %203 = vmatpush1.msra.mxu0 0.0
  %204 = vmatprep.subr.mxu0 0.0
  %205 = vmatpush1.msra.mxu0 0.0
  %206 = vmatprep.mubr.f32.mxu0 0.0
  %207 = vmatmul.mubr.f32.gmra.mrb[0].mxu0 %v131
  %v208 = vpop.f32.mrb[0].mxu0
  %v209 = vadd.f32 %v127, %v208
  %v210 = vpop.f32.mrb[0].mxu0
  %211 = vmatprep.mubr.f32.mxu0 0.0
  %212 = vmatmul.mubr.f32.gmra.mrb[0].mxu0 %v134
  %v213 = vpop.f32.mrb[0].mxu0
  %v214 = vadd.f32 %v127, %v213
  %v215 = vpop.f32.mrb[0].mxu0
  %216 = vmatprep.mubr.f32.mxu0 0.0
  %217 = vmatmul.mubr.f32.gmra.mrb[0].mxu0 %v137
  %v218 = vpop.f32.mrb[0].mxu0
  %v219 = vadd.f32 %v127, %v218
  %v220 = vpop.f32.mrb[0].mxu0
  %221 = vmatprep.mubr.f32.mxu0 0.0
  %222 = vmatmul.mubr.f32.gmra.mrb[0].mxu0 %v140
  %v223 = vpop.f32.mrb[0].mxu0
  %v224 = vadd.f32 %v127, %v223
  %v225 = vpop.f32.mrb[0].mxu0
  %226 = vdwg.mxu0
  %227 = vst.msk [vmem:[%s4] sm:$0xff] %vm64, %v209
  %228 = vst.msk [vmem:[%s4 + $0x8] sm:$0xff] %vm64, %v214
  %229 = vst.msk [vmem:[%s4 + $0x10] sm:$0xff] %vm64, %v219
  %230 = vst.msk [vmem:[%s4 + $0x18] sm:$0xff] %vm64, %v224
  // Predicated region
  $region18: #{abc_attention_forward.8} parent=0 // pred_check
    _
  $region19: #{abc_attention_forward.8} parent=0 // pred_check_branch
    %232 = sbr.rel (0) target = $region21
  $region20: #{abc_attention_forward.8} parent=0 // pred_region
    _
  $region21: #{abc_attention_forward.8} parent=0 // pred_fallthru
    _
  // Predicated region
  $region22: #{abc_attention_forward.8} parent=0 // pred_check
    _
  $region23: #{abc_attention_forward.8} parent=0 // pred_check_branch
    %234 = sbr.rel (0) target = $region25
  $region24: #{abc_attention_forward.8} parent=0 // pred_region
    _
  $region25: #{abc_attention_forward.8} parent=0 // pred_fallthru
    _

// kernel: abc_attention_forward.10
$region0: #{abc_attention_forward.10}
  #allocation0 [shape = 'u32[]', space=smem, size = 0x4, offset = 0x4, fixed_abs, tag = 'smem constant byte address 0x4 - core index']
  #allocation1 [shape = 'u32[144,128]{1,0:T(1,128)}', space=vmem, size = 0x12000, scoped, tag = 'internal scratch']
  %s0 = inlined_call_operand.vmem [shape: bf16[32,64], index: 0, kind: input, shape index: {}]
  %s1 = inlined_call_operand.vmem [shape: bf16[32,256], index: 1, kind: input, shape index: {}]
  %s2 = inlined_call_operand.vmem [shape: f32[64,64], index: 2, kind: input, shape index: {}]
  %s3 = inlined_call_operand.vmem [shape: f32[1,64], index: 3, kind: input, shape index: {}]
  %s4 = inlined_call_operand.vmem [shape: bf16[32,64], index: 4, kind: output, shape index: {}]
  %s5 = sld [smem:[#allocation0]]
  $region26: #{abc_attention_forward.10} parent=0
    _
  %s7 = ssub.s32 1, %s5
  %s8 = scalar_select 0, %s7, %s5
  // Predicated region
  $region2: #{abc_attention_forward.10} parent=0 // pred_check
    _
  $region3: #{abc_attention_forward.10} parent=0 // pred_check_branch
    %10 = sbr.rel (0) target = $region5
  $region4: #{abc_attention_forward.10} parent=0 // pred_region
    _
  $region5: #{abc_attention_forward.10} parent=0 // pred_fallthru
    _
  // Predicated region
  $region6: #{abc_attention_forward.10} parent=0 // pred_check
    _
  $region7: #{abc_attention_forward.10} parent=0 // pred_check_branch
    %12 = sbr.rel (0) target = $region9
  $region8: #{abc_attention_forward.10} parent=0 // pred_region
    _
  $region9: #{abc_attention_forward.10} parent=0 // pred_fallthru
    _
  // Predicated region
  $region10: #{abc_attention_forward.10} parent=0 // pred_check
    _
  $region11: #{abc_attention_forward.10} parent=0 // pred_check_branch
    %14 = sbr.rel (0) target = $region13
  $region12: #{abc_attention_forward.10} parent=0 // pred_region
    _
  $region13: #{abc_attention_forward.10} parent=0 // pred_fallthru
    _
  // Predicated region
  $region14: #{abc_attention_forward.10} parent=0 // pred_check
    _
  $region15: #{abc_attention_forward.10} parent=0 // pred_check_branch
    %16 = sbr.rel (0) target = $region17
  $region16: #{abc_attention_forward.10} parent=0 // pred_region
    _
  $region17: #{abc_attention_forward.10} parent=0 // pred_fallthru
    _
  %v17 = vld [vmem:[%s0] sm:$0xf]
  %v18 = vld [vmem:[%s0 + $0x4] sm:$0xf]
  %v19 = vld [vmem:[%s0 + $0x8] sm:$0xf]
  %v20 = vld [vmem:[%s0 + $0xc] sm:$0xf]
  %v21 = vunpack.c.l.bf16 %v17
  %v22 = vunpack.c.l.bf16 %v18
  %v23 = vunpack.c.l.bf16 %v19
  %v24 = vunpack.c.l.bf16 %v20
  %v25 = vld [vmem:[%s1] sm:$0xff]
  %v26 = vld [vmem:[%s1 + $0x8] sm:$0xff]
  %v27 = vld [vmem:[%s1 + $0x10] sm:$0xff]
  %v28 = vld [vmem:[%s1 + $0x18] sm:$0xff]
  %33 = vrot.lane.b32.xlu0 %v25, 64
  %v34 = vpop.permute.xlu0 %33
  %35 = vrot.lane.b32.xlu0 %v26, 64
  %v36 = vpop.permute.xlu0 %35
  %37 = vrot.lane.b32.xlu0 %v27, 64
  %v38 = vpop.permute.xlu0 %37
  %39 = vrot.lane.b32.xlu0 %v28, 64
  %v40 = vpop.permute.xlu0 %39
  %v41 = vrot.slane %v34, 4
  %v42 = vrot.slane %v36, 4
  %v43 = vrot.slane %v38, 4
  %v44 = vrot.slane %v40, 4
  %v49 = vunpack.c.l.bf16 %v41
  %v50 = vunpack.c.l.bf16 %v42
  %v51 = vunpack.c.l.bf16 %v43
  %v52 = vunpack.c.l.bf16 %v44
  %v53 = vmul.f32 %v21, %v21
  %v54 = vmul.f32 %v22, %v22
  %v55 = vmul.f32 %v23, %v23
  %v56 = vmul.f32 %v24, %v24
  %v57 = vld [vmem:[%s2] sm:$0xff]
  %v58 = vld [vmem:[%s2 + $0x8] sm:$0xff]
  %v59 = vld [vmem:[%s2 + $0x10] sm:$0xff]
  %v60 = vld [vmem:[%s2 + $0x18] sm:$0xff]
  %v61 = vld [vmem:[%s2 + $0x20] sm:$0xff]
  %v62 = vld [vmem:[%s2 + $0x28] sm:$0xff]
  %v63 = vld [vmem:[%s2 + $0x30] sm:$0xff]
  %v64 = vld [vmem:[%s2 + $0x38] sm:$0xff]
  %vm65 = vcmask 523264
  %v67 = vsel %vm65, %v53, 0
  %v70 = vsel %vm65, %v54, 0
  %v73 = vsel %vm65, %v55, 0
  %v76 = vsel %vm65, %v56, 0
  %78 = vmatprep.subr.mxu0 0.0
  %79 = vmatpush1.msra.mxu0 %v57
  %80 = vmatprep.subr.mxu0 0.0
  %81 = vmatpush1.msra.mxu0 %v58
  %82 = vmatprep.subr.mxu0 0.0
  %83 = vmatpush1.msra.mxu0 %v59
  %84 = vmatprep.subr.mxu0 0.0
  %85 = vmatpush1.msra.mxu0 %v60
  %86 = vmatprep.subr.mxu0 0.0
  %87 = vmatpush1.msra.mxu0 %v61
  %88 = vmatprep.subr.mxu0 0.0
  %89 = vmatpush1.msra.mxu0 %v62
  %90 = vmatprep.subr.mxu0 0.0
  %91 = vmatpush1.msra.mxu0 %v63
  %92 = vmatprep.subr.mxu0 0.0
  %93 = vmatpush1.msra.mxu0 %v64
  %94 = vmatprep.subr.mxu0 0.0
  %95 = vmatpush1.msra.mxu0 0.0
  %96 = vmatprep.subr.mxu0 0.0
  %97 = vmatpush1.msra.mxu0 0.0
  %98 = vmatprep.subr.mxu0 0.0
  %99 = vmatpush1.msra.mxu0 0.0
  %100 = vmatprep.subr.mxu0 0.0
  %101 = vmatpush1.msra.mxu0 0.0
  %102 = vmatprep.subr.mxu0 0.0
  %103 = vmatpush1.msra.mxu0 0.0
  %104 = vmatprep.subr.mxu0 0.0
  %105 = vmatpush1.msra.mxu0 0.0
  %106 = vmatprep.subr.mxu0 0.0
  %107 = vmatpush1.msra.mxu0 0.0
  %108 = vmatprep.subr.mxu0 0.0
  %109 = vmatpush1.msra.mxu0 0.0
  %110 = vmatprep.subr.mxu0 0.0
  %111 = vmatpush1.msra.mxu0 0.0
  %112 = vmatprep.subr.mxu0 0.0
  %113 = vmatpush1.msra.mxu0 0.0
  %114 = vmatprep.subr.mxu0 0.0
  %115 = vmatpush1.msra.mxu0 0.0
  %116 = vmatprep.subr.mxu0 0.0
  %117 = vmatpush1.msra.mxu0 0.0
  %118 = vmatprep.subr.mxu0 0.0
  %119 = vmatpush1.msra.mxu0 0.0
  %120 = vmatprep.subr.mxu0 0.0
  %121 = vmatpush1.msra.mxu0 0.0
  %122 = vmatprep.subr.mxu0 0.0
  %123 = vmatpush1.msra.mxu0 0.0
  %124 = vmatprep.subr.mxu0 0.0
  %125 = vmatpush1.msra.mxu0 0.0
  %126 = vmatprep.subr.mxu0 0.0
  %127 = vmatpush1.msra.mxu0 0.0
  %128 = vmatprep.subr.mxu0 0.0
  %129 = vmatpush1.msra.mxu0 0.0
  %130 = vmatprep.subr.mxu0 0.0
  %131 = vmatpush1.msra.mxu0 0.0
  %132 = vmatprep.subr.mxu0 0.0
  %133 = vmatpush1.msra.mxu0 0.0
  %134 = vmatprep.subr.mxu0 0.0
  %135 = vmatpush1.msra.mxu0 0.0
  %136 = vmatprep.subr.mxu0 0.0
  %137 = vmatpush1.msra.mxu0 0.0
  %138 = vmatprep.subr.mxu0 0.0
  %139 = vmatpush1.msra.mxu0 0.0
  %140 = vmatprep.subr.mxu0 0.0
  %141 = vmatpush1.msra.mxu0 0.0
  %142 = vmatprep.mubr.f32.mxu0 0.0
  %143 = vmatmul.mubr.f32.gmra.mrb[0].mxu0 %v67
  %v144 = vpop.f32.mrb[0].mxu0
  %v145 = vadd.f32 1e-05, %v144
  %v146 = vpop.f32.mrb[0].mxu0
  %147 = vmatprep.mubr.f32.mxu0 0.0
  %148 = vmatmul.mubr.f32.gmra.mrb[0].mxu0 %v70
  %v149 = vpop.f32.mrb[0].mxu0
  %v150 = vadd.f32 1e-05, %v149
  %v151 = vpop.f32.mrb[0].mxu0
  %152 = vmatprep.mubr.f32.mxu0 0.0
  %153 = vmatmul.mubr.f32.gmra.mrb[0].mxu0 %v73
  %v154 = vpop.f32.mrb[0].mxu0
  %v155 = vadd.f32 1e-05, %v154
  %v156 = vpop.f32.mrb[0].mxu0
  %157 = vmatprep.mubr.f32.mxu0 0.0
  %158 = vmatmul.mubr.f32.gmra.mrb[0].mxu0 %v76
  %v159 = vpop.f32.mrb[0].mxu0
  %v160 = vadd.f32 1e-05, %v159
  %v161 = vpop.f32.mrb[0].mxu0
  %162 = vdwg.mxu0
  %v163 = vrsqrt.pop %v145
  %v164 = vrsqrt.pop %v150
  %v165 = vrsqrt.pop %v155
  %v166 = vrsqrt.pop %v160
  %v167 = vmul.f32 %v21, %v163
  %v168 = vmul.f32 %v22, %v164
  %v169 = vmul.f32 %v23, %v165
  %v170 = vmul.f32 %v24, %v166
  %v171 = vld [vmem:[%s3] sm:$0x1]
  %v173 = vlaneseq
  %v174 = vshrl.u32 %v173, 7
  %v175 = vsub.s32 0, %v174
  %v176 = vrot.slane %v171, %v175
  %v178 = vmul.f32 %v167, %v176
  %v179 = vmul.f32 %v168, %v176
  %v180 = vmul.f32 %v169, %v176
  %v181 = vmul.f32 %v170, %v176
  %v182 = vxor.u32 %v49, 2147483648
  %v183 = vxor.u32 %v50, 2147483648
  %v184 = vxor.u32 %v51, 2147483648
  %v185 = vxor.u32 %v52, 2147483648
  %v186 = vmul.f32 %v182, 1.442695
  %v187 = vpow.pop %v186
  %v188 = vmul.f32 %v183, 1.442695
  %v189 = vpow.pop %v188
  %v190 = vmul.f32 %v184, 1.442695
  %v191 = vpow.pop %v190
  %v192 = vmul.f32 %v185, 1.442695
  %v193 = vpow.pop %v192
  %v194 = vadd.f32 %v187, 1.0
  %v195 = vadd.f32 %v189, 1.0
  %v196 = vadd.f32 %v191, 1.0
  %v197 = vadd.f32 %v193, 1.0
  %v198 = vrcp.pop %v194
  %v199 = vmul.f32 1.0, %v198
  %v200 = vrcp.pop %v195
  %v201 = vmul.f32 1.0, %v200
  %v202 = vrcp.pop %v196
  %v203 = vmul.f32 1.0, %v202
  %v204 = vrcp.pop %v197
  %v205 = vmul.f32 1.0, %v204
  %v206 = vmul.f32 %v49, %v199
  %v207 = vmul.f32 %v50, %v201
  %v208 = vmul.f32 %v51, %v203
  %v209 = vmul.f32 %v52, %v205
  %v210 = vmul.f32 %v178, %v206
  %v211 = vmul.f32 %v179, %v207
  %v212 = vmul.f32 %v180, %v208
  %v213 = vmul.f32 %v181, %v209
  %v214 = vpack.c.bf16 %v211, %v210
  %v215 = vpack.c.bf16 %v213, %v212
  %v218 = vunpack.c.l.b16 %v214
  %v219 = vunpack.c.h.b16 %v214
  %v220 = vunpack.c.l.b16 %v215
  %v221 = vunpack.c.h.b16 %v215
  %v222 = vpack.c.b16 %v218, %v218
  %v223 = vpack.c.b16 %v219, %v219
  %v224 = vpack.c.b16 %v220, %v220
  %v225 = vpack.c.b16 %v221, %v221
  %vm230 = vcmask 519168
  %231 = vst.msk [vmem:[%s4] sm:$0xf] %vm230, %v222
  %232 = vst.msk [vmem:[%s4 + $0x4] sm:$0xf] %vm230, %v223
  %233 = vst.msk [vmem:[%s4 + $0x8] sm:$0xf] %vm230, %v224
  %234 = vst.msk [vmem:[%s4 + $0xc] sm:$0xf] %vm230, %v225
  // Predicated region
  $region18: #{abc_attention_forward.10} parent=0 // pred_check
    _
  $region19: #{abc_attention_forward.10} parent=0 // pred_check_branch
    %236 = sbr.rel (0) target = $region21
  $region20: #{abc_attention_forward.10} parent=0 // pred_region
    _
  $region21: #{abc_attention_forward.10} parent=0 // pred_fallthru
    _
  // Predicated region
  $region22: #{abc_attention_forward.10} parent=0 // pred_check
    _
  $region23: #{abc_attention_forward.10} parent=0 // pred_check_branch
    %238 = sbr.rel (0) target = $region25
  $region24: #{abc_attention_forward.10} parent=0 // pred_region
    _
  $region25: #{abc_attention_forward.10} parent=0 // pred_fallthru
    _

// kernel: abc_attention_forward.11
$region0: #{abc_attention_forward.11}
  #allocation0 [shape = 'u32[]', space=smem, size = 0x4, offset = 0x4, fixed_abs, tag = 'smem constant byte address 0x4 - core index']
  #allocation1 [shape = 'u32[144,128]{1,0:T(1,128)}', space=vmem, size = 0x12000, scoped, tag = 'internal scratch']
  #allocation2 [shape = 'f32[32,64]{1,0:T(8,128)}', space=vmem, size = 0x4000, scoped, tag = 'scratch operand']
  %s0 = inlined_call_operand.vmem [shape: bf16[32,64], index: 0, kind: input, shape index: {}]
  %s1 = inlined_call_operand.vmem [shape: bf16[64,64], index: 1, kind: input, shape index: {}]
  %s2 = inlined_call_operand.hbm [shape: f32[32,64], index: 2, kind: output, shape index: {}]
  %s3 = sld [smem:[#allocation0]]
  $region26: #{abc_attention_forward.11} parent=0
    _
  %s5 = ssub.s32 1, %s3
  %s6 = scalar_select 0, %s5, %s3
  $region1: #{abc_attention_forward.11} parent=0
    #allocation3 [shape = 'u8[16384]{0}', space=vmem, size = 0x4000, scoped, tag = 'output window, operand 0, single buffered']
    #allocation4 [shape = 's32[1]{0}', space=sflag, size = 0x4, scoped, tag = 'scoped memory for abc_attention_forward.11']
    %7 = vsyncpa [#allocation4], 0
    // Predicated region
    $region2: #{abc_attention_forward.11} parent=1 // pred_check
      _
    $region3: #{abc_attention_forward.11} parent=1 // pred_check_branch
      %9 = sbr.rel (0) target = $region5
    $region4: #{abc_attention_forward.11} parent=1 // pred_region
      _
    $region5: #{abc_attention_forward.11} parent=1 // pred_fallthru
      _
    // Predicated region
    $region6: #{abc_attention_forward.11} parent=1 // pred_check
      _
    $region7: #{abc_attention_forward.11} parent=1 // pred_check_branch
      %11 = sbr.rel (0) target = $region9
    $region8: #{abc_attention_forward.11} parent=1 // pred_region
      _
    $region9: #{abc_attention_forward.11} parent=1 // pred_fallthru
      _
    %p13 = scmp.eq.s32.totalorder 0, 0
    // Predicated region
    $region10: #{abc_attention_forward.11} parent=1 // pred_check
      %p14 = pneg %p13
    $region11: #{abc_attention_forward.11} parent=1 // pred_check_branch
      %16 = sbr.rel (%p14) target = $region13
    $region12: #{abc_attention_forward.11} parent=1 // pred_region
      %vm17 = vcmask 523264
      %18 = vst.msk [vmem:[#allocation2] sm:$0xff] %vm17, 0.0
      %19 = vst.msk [vmem:[#allocation2 + $0x8] sm:$0xff] %vm17, 0.0
      %20 = vst.msk [vmem:[#allocation2 + $0x10] sm:$0xff] %vm17, 0.0
      %21 = vst.msk [vmem:[#allocation2 + $0x18] sm:$0xff] %vm17, 0.0
    $region13: #{abc_attention_forward.11} parent=1 // pred_fallthru
      _
    %v22 = vld [vmem:[#allocation2] sm:$0xff]
    %v23 = vld [vmem:[#allocation2 + $0x8] sm:$0xff]
    %v24 = vld [vmem:[#allocation2 + $0x10] sm:$0xff]
    %v25 = vld [vmem:[#allocation2 + $0x18] sm:$0xff]
    %v26 = vld [vmem:[%s0] sm:$0xf]
    %v27 = vld [vmem:[%s0 + $0x4] sm:$0xf]
    %v28 = vld [vmem:[%s0 + $0x8] sm:$0xf]
    %v29 = vld [vmem:[%s0 + $0xc] sm:$0xf]
    %v30 = vld [vmem:[%s1] sm:$0xf]
    %v31 = vld [vmem:[%s1 + $0x4] sm:$0xf]
    %v32 = vld [vmem:[%s1 + $0x8] sm:$0xf]
    %v33 = vld [vmem:[%s1 + $0xc] sm:$0xf]
    %v34 = vld [vmem:[%s1 + $0x10] sm:$0xf]
    %v35 = vld [vmem:[%s1 + $0x14] sm:$0xf]
    %v36 = vld [vmem:[%s1 + $0x18] sm:$0xf]
    %v37 = vld [vmem:[%s1 + $0x1c] sm:$0xf]
    %v42 = vunpack.c.l.b16 %v26
    %v43 = vunpack.c.l.b16 %v27
    %v44 = vunpack.c.l.b16 %v28
    %v45 = vunpack.c.l.b16 %v29
    %v46 = vpack.c.b16 %v43, %v42
    %v47 = vpack.c.b16 %v45, %v44
    %v56 = vunpack.c.l.b16 %v30
    %v57 = vunpack.c.l.b16 %v31
    %v58 = vunpack.c.l.b16 %v32
    %v59 = vunpack.c.l.b16 %v33
    %v60 = vunpack.c.l.b16 %v34
    %v61 = vunpack.c.l.b16 %v35
    %v62 = vunpack.c.l.b16 %v36
    %v63 = vunpack.c.l.b16 %v37
    %v64 = vpack.c.b16 %v57, %v56
    %v65 = vpack.c.b16 %v59, %v58
    %v66 = vpack.c.b16 %v61, %v60
    %v67 = vpack.c.b16 %v63, %v62
    %vm72 = vcmask 523264
    %v74 = vsel %vm72, %v46, 0
    %v77 = vsel %vm72, %v47, 0
    %79 = vmatprep.subr.bf16.mxu0 0
    %80 = vmatpush1.bf16.msra.mxu0 %v64
    %81 = vmatprep.subr.bf16.mxu0 0
    %82 = vmatpush1.bf16.msra.mxu0 %v65
    %83 = vmatprep.subr.bf16.mxu0 0
    %84 = vmatpush1.bf16.msra.mxu0 %v66
    %85 = vmatprep.subr.bf16.mxu0 0
    %86 = vmatpush1.bf16.msra.mxu0 %v67
    %87 = vmatprep.subr.bf16.mxu0 0
    %88 = vmatpush1.bf16.msra.mxu0 0
    %89 = vmatprep.subr.bf16.mxu0 0
    %90 = vmatpush1.bf16.msra.mxu0 0
    %91 = vmatprep.subr.bf16.mxu0 0
    %92 = vmatpush1.bf16.msra.mxu0 0
    %93 = vmatprep.subr.bf16.mxu0 0
    %94 = vmatpush1.bf16.msra.mxu0 0
    %95 = vmatprep.subr.bf16.mxu0 0
    %96 = vmatpush1.bf16.msra.mxu0 0
    %97 = vmatprep.subr.bf16.mxu0 0
    %98 = vmatpush1.bf16.msra.mxu0 0
    %99 = vmatprep.subr.bf16.mxu0 0
    %100 = vmatpush1.bf16.msra.mxu0 0
    %101 = vmatprep.subr.bf16.mxu0 0
    %102 = vmatpush1.bf16.msra.mxu0 0
    %103 = vmatprep.subr.bf16.mxu0 0
    %104 = vmatpush1.bf16.msra.mxu0 0
    %105 = vmatprep.subr.bf16.mxu0 0
    %106 = vmatpush1.bf16.msra.mxu0 0
    %107 = vmatprep.subr.bf16.mxu0 0
    %108 = vmatpush1.bf16.msra.mxu0 0
    %109 = vmatprep.subr.bf16.mxu0 0
    %110 = vmatpush1.bf16.msra.mxu0 0
    %111 = vmatprep.mubr.bf16.mxu0 0
    %112 = vmatmul.mubr.bf16.gmra.mrb[0].mxu0 %v74
    %v113 = vpop.f32.mrb[0].mxu0
    %v114 = vadd.f32 0.0, %v113
    %v115 = vpop.f32.mrb[0].mxu0
    %v116 = vpop.f32.mrb[0].mxu0
    %v117 = vadd.f32 0.0, %v116
    %v118 = vpop.f32.mrb[0].mxu0
    %119 = vmatprep.mubr.bf16.mxu0 0
    %120 = vmatmul.mubr.bf16.gmra.mrb[0].mxu0 %v77
    %v121 = vpop.f32.mrb[0].mxu0
    %v122 = vadd.f32 0.0, %v121
    %v123 = vpop.f32.mrb[0].mxu0
    %v124 = vpop.f32.mrb[0].mxu0
    %v125 = vadd.f32 0.0, %v124
    %v126 = vpop.f32.mrb[0].mxu0
    %127 = vdwg.mxu0
    %v128 = vadd.f32 %v22, %v114
    %v129 = vadd.f32 %v23, %v117
    %v130 = vadd.f32 %v24, %v122
    %v131 = vadd.f32 %v25, %v125
    %132 = vst.msk [vmem:[#allocation2] sm:$0xff] %vm72, %v128
    %133 = vst.msk [vmem:[#allocation2 + $0x8] sm:$0xff] %vm72, %v129
    %134 = vst.msk [vmem:[#allocation2 + $0x10] sm:$0xff] %vm72, %v130
    %135 = vst.msk [vmem:[#allocation2 + $0x18] sm:$0xff] %vm72, %v131
    // Predicated region
    $region14: #{abc_attention_forward.11} parent=1 // pred_check
      %p136 = pneg %p13
    $region15: #{abc_attention_forward.11} parent=1 // pred_check_branch
      %138 = sbr.rel (%p136) target = $region17
    $region16: #{abc_attention_forward.11} parent=1 // pred_region
      %v139 = vld [vmem:[#allocation2] sm:$0xff]
      %v140 = vld [vmem:[#allocation2 + $0x8] sm:$0xff]
      %v141 = vld [vmem:[#allocation2 + $0x10] sm:$0xff]
      %v142 = vld [vmem:[#allocation2 + $0x18] sm:$0xff]
      %143 = vst.msk [vmem:[#allocation3] sm:$0xff] %vm72, %v139
      %144 = vst.msk [vmem:[#allocation3 + $0x8] sm:$0xff] %vm72, %v140
      %145 = vst.msk [vmem:[#allocation3 + $0x10] sm:$0xff] %vm72, %v141
      %146 = vst.msk [vmem:[#allocation3 + $0x18] sm:$0xff] %vm72, %v142
    $region17: #{abc_attention_forward.11} parent=1 // pred_fallthru
      _
    // Predicated region
    $region18: #{abc_attention_forward.11} parent=1 // pred_check
      _
    $region19: #{abc_attention_forward.11} parent=1 // pred_check_branch
      %148 = sbr.rel (0) target = $region21
    $region20: #{abc_attention_forward.11} parent=1 // pred_region
      %s150 = ssub.s32 512, 512
      %151 = vsyncadd [#allocation4], %s150
      %s152 = sshll.u32 [#allocation3], 4
      %s153 = int_to_ptr.vmem [resolvable:$true] %s152
      %158 = dma.vmem_to_hbm [thread:$0]  %s153, 512, %s2, [#allocation4], 128, 128, 8
    $region21: #{abc_attention_forward.11} parent=1 // pred_fallthru
      _
    // Predicated region
    $region22: #{abc_attention_forward.11} parent=1 // pred_check
      _
    $region23: #{abc_attention_forward.11} parent=1 // pred_check_branch
      %160 = sbr.rel (0) target = $region25
    $region24: #{abc_attention_forward.11} parent=1 // pred_region
      %161 = dma.done [#allocation4], 512
    $region25: #{abc_attention_forward.11} parent=1 // pred_fallthru
      _
    %162 = vsyncpa [#allocation4], 1

// kernel: abc_attention_forward.9
$region0: #{abc_attention_forward.9}
  #allocation0 [shape = 'u32[]', space=smem, size = 0x4, offset = 0x4, fixed_abs, tag = 'smem constant byte address 0x4 - core index']
  #allocation1 [shape = 'u32[144,128]{1,0:T(1,128)}', space=vmem, size = 0x12000, scoped, tag = 'internal scratch']
  #allocation2 [shape = 'f32[1,64]{1,0:T(1,128)}', space=vmem, size = 0x200, scoped, tag = 'scratch operand']
  #allocation3 [shape = 'f32[64,16]{1,0:T(8,128)}', space=vmem, size = 0x8000, scoped, tag = 'scratch operand']
  #allocation4 [shape = 'f32[64,16]{1,0:T(8,128)}', space=vmem, size = 0x8000, scoped, tag = 'scratch operand']
  %s0 = inlined_call_operand.vmem [shape: bf16[2,16,256], index: 0, kind: input, shape index: {}]
  %s1 = inlined_call_operand.vmem [shape: f32[2,16,64], index: 1, kind: input, shape index: {}]
  %s2 = inlined_call_operand.vmem [shape: f32[16,16], index: 2, kind: input, shape index: {}]
  %s3 = inlined_call_operand.vmem [shape: f32[16,16], index: 3, kind: input, shape index: {}]
  %s4 = inlined_call_operand.vmem [shape: f32[16,16], index: 4, kind: input, shape index: {}]
  %s5 = inlined_call_operand.vmem [shape: f32[16,16], index: 5, kind: input, shape index: {}]
  %s6 = inlined_call_operand.vmem [shape: bf16[2,16,64], index: 6, kind: output, shape index: {}]
  %s7 = sld [smem:[#allocation0]]
  $region61: #{abc_attention_forward.9} parent=0
    _
  %s9 = ssub.s32 1, %s7
  %s10 = scalar_select 0, %s9, %s7
  loop: start=0, step=1, limit=4
  $region2: #{abc_attention_forward.9} parent=0 // loop_pre_header
    _
  $region3: #{abc_attention_forward.9} parent=0 // loop_header
    %s12 = sphi 0, %s16
    %p13 = scmp.ge.s32.totalorder %s12, 4
    %s19 = sphi 0, %s31
    %s20 = sphi 0, %s27
    %s21 = sphi 0, %s19
    %s22 = sphi 0, %s20
    %s23 = sphi 0, %s21
    %s24 = sphi 0, %s22
    %s36 = sphi 0, %s38
    %s39 = sphi 0, %s36
    %s40 = sphi 0, %s39
    %s56 = sphi 0, %s40
    %s64 = sphi 0, %s66
    %s67 = sphi 0, %s64
    %s68 = sphi 0, %s67
    %s84 = sphi 0, %s68
    %s90 = sphi 0, %s92
    %s93 = sphi 0, %s90
    %s94 = sphi 0, %s93
    %s110 = sphi 0, %s94
    %s116 = sphi 0, %s118
    %s119 = sphi 0, %s116
    %s120 = sphi 0, %s119
    %s136 = sphi 0, %s120
    %s142 = sphi 0, %s144
    %s145 = sphi 0, %s142
    %s146 = sphi 0, %s145
    %s162 = sphi 0, %s146
    %s168 = sphi 0, %s170
    %s171 = sphi 0, %s168
    %s172 = sphi 0, %s171
    %s188 = sphi 0, %s172
    %s196 = sphi 0, %s198
    %s199 = sphi 0, %s196
    %s200 = sphi 0, %s199
    %s216 = sphi 0, %s200
  $region4: #{abc_attention_forward.9} parent=0 // loop_header_branch
    %15 = sbr.rel (%p13) target = $region8
  $region5: #{abc_attention_forward.9} parent=0 // loop_body
    %s17 = ssub.s32 %s12, 1
    %s18 = ssub.s32 %s12, 2
    %s25 = sadd.s32 1, %s20
    %p26 = scmp.ge.s32.totalorder %s25, 1
    %s27 = scalar_select %p26, 0, %s25
    %s28 = sadd.s32 1, %s19
    %s29 = scalar_select %p26, %s28, %s19
    %p30 = scmp.ge.s32.totalorder %s29, 2
    %s31 = scalar_select %p30, 0, %s29
    %s32 = ssub.s32 %s19, %s31
    %s33 = ssub.s32 %s20, %s27
    %s34 = sor.u32 %s32, %s33
    %p35 = scmp.eq.s32.totalorder %s34, 0
    %s37 = sadd.s32 %s36, 1
    %s38 = scalar_select %p35, %s36, %s37
    %p41 = pneg %p35
    %p42 = scmp.eq.s32.totalorder %s12, 1
    %p43 = por %p41, %p42
    %p44 = scmp.ne.s32.totalorder %s36, %s39
    %p45 = scmp.eq.s32.totalorder %s12, 0
    %p46 = por %p44, %p45
    %p47 = scmp.ne.s32.totalorder %s36, %s39
    %p48 = scmp.eq.s32.totalorder %s17, 1
    %p49 = por %p47, %p48
    %p50 = scmp.ne.s32.totalorder %s39, %s40
    %p51 = scmp.eq.s32.totalorder %s17, 0
    %p52 = por %p50, %p51
    %p53 = scmp.ne.s32.totalorder %s39, %s40
    %p54 = scmp.eq.s32.totalorder %s18, 1
    %p55 = por %p53, %p54
    %p57 = scmp.ne.s32.totalorder %s40, %s56
    %p58 = scmp.eq.s32.totalorder %s18, 0
    %p59 = por %p57, %p58
    %s60 = ssub.s32 %s19, %s31
    %s61 = ssub.s32 %s20, %s27
    %s62 = sor.u32 %s60, %s61
    %p63 = scmp.eq.s32.totalorder %s62, 0
    %s65 = sadd.s32 %s64, 1
    %s66 = scalar_select %p63, %s64, %s65
    %p69 = pneg %p63
    %p70 = scmp.eq.s32.totalorder %s12, 1
    %p71 = por %p69, %p70
    %p72 = scmp.ne.s32.totalorder %s64, %s67
    %p73 = scmp.eq.s32.totalorder %s12, 0
    %p74 = por %p72, %p73
    %p75 = scmp.ne.s32.totalorder %s64, %s67
    %p76 = scmp.eq.s32.totalorder %s17, 1
    %p77 = por %p75, %p76
    %p78 = scmp.ne.s32.totalorder %s67, %s68
    %p79 = scmp.eq.s32.totalorder %s17, 0
    %p80 = por %p78, %p79
    %p81 = scmp.ne.s32.totalorder %s67, %s68
    %p82 = scmp.eq.s32.totalorder %s18, 1
    %p83 = por %p81, %p82
    %p85 = scmp.ne.s32.totalorder %s68, %s84
    %p86 = scmp.eq.s32.totalorder %s18, 0
    %p87 = por %p85, %p86
    %s88 = ssub.s32 %s20, %s27
    %p89 = scmp.eq.s32.totalorder %s88, 0
    %s91 = sadd.s32 %s90, 1
    %s92 = scalar_select %p89, %s90, %s91
    %p95 = pneg %p89
    %p96 = scmp.eq.s32.totalorder %s12, 1
    %p97 = por %p95, %p96
    %p98 = scmp.ne.s32.totalorder %s90, %s93
    %p99 = scmp.eq.s32.totalorder %s12, 0
    %p100 = por %p98, %p99
    %p101 = scmp.ne.s32.totalorder %s90, %s93
    %p102 = scmp.eq.s32.totalorder %s17, 1
    %p103 = por %p101, %p102
    %p104 = scmp.ne.s32.totalorder %s93, %s94
    %p105 = scmp.eq.s32.totalorder %s17, 0
    %p106 = por %p104, %p105
    %p107 = scmp.ne.s32.totalorder %s93, %s94
    %p108 = scmp.eq.s32.totalorder %s18, 1
    %p109 = por %p107, %p108
    %p111 = scmp.ne.s32.totalorder %s94, %s110
    %p112 = scmp.eq.s32.totalorder %s18, 0
    %p113 = por %p111, %p112
    %s114 = ssub.s32 %s20, %s27
    %p115 = scmp.eq.s32.totalorder %s114, 0
    %s117 = sadd.s32 %s116, 1
    %s118 = scalar_select %p115, %s116, %s117
    %p121 = pneg %p115
    %p122 = scmp.eq.s32.totalorder %s12, 1
    %p123 = por %p121, %p122
    %p124 = scmp.ne.s32.totalorder %s116, %s119
    %p125 = scmp.eq.s32.totalorder %s12, 0
    %p126 = por %p124, %p125
    %p127 = scmp.ne.s32.totalorder %s116, %s119
    %p128 = scmp.eq.s32.totalorder %s17, 1
    %p129 = por %p127, %p128
    %p130 = scmp.ne.s32.totalorder %s119, %s120
    %p131 = scmp.eq.s32.totalorder %s17, 0
    %p132 = por %p130, %p131
    %p133 = scmp.ne.s32.totalorder %s119, %s120
    %p134 = scmp.eq.s32.totalorder %s18, 1
    %p135 = por %p133, %p134
    %p137 = scmp.ne.s32.totalorder %s120, %s136
    %p138 = scmp.eq.s32.totalorder %s18, 0
    %p139 = por %p137, %p138
    %s140 = ssub.s32 %s20, %s27
    %p141 = scmp.eq.s32.totalorder %s140, 0
    %s143 = sadd.s32 %s142, 1
    %s144 = scalar_select %p141, %s142, %s143
    %p147 = pneg %p141
    %p148 = scmp.eq.s32.totalorder %s12, 1
    %p149 = por %p147, %p148
    %p150 = scmp.ne.s32.totalorder %s142, %s145
    %p151 = scmp.eq.s32.totalorder %s12, 0
    %p152 = por %p150, %p151
    %p153 = scmp.ne.s32.totalorder %s142, %s145
    %p154 = scmp.eq.s32.totalorder %s17, 1
    %p155 = por %p153, %p154
    %p156 = scmp.ne.s32.totalorder %s145, %s146
    %p157 = scmp.eq.s32.totalorder %s17, 0
    %p158 = por %p156, %p157
    %p159 = scmp.ne.s32.totalorder %s145, %s146
    %p160 = scmp.eq.s32.totalorder %s18, 1
    %p161 = por %p159, %p160
    %p163 = scmp.ne.s32.totalorder %s146, %s162
    %p164 = scmp.eq.s32.totalorder %s18, 0
    %p165 = por %p163, %p164
    %s166 = ssub.s32 %s20, %s27
    %p167 = scmp.eq.s32.totalorder %s166, 0
    %s169 = sadd.s32 %s168, 1
    %s170 = scalar_select %p167, %s168, %s169
    %p173 = pneg %p167
    %p174 = scmp.eq.s32.totalorder %s12, 1
    %p175 = por %p173, %p174
    %p176 = scmp.ne.s32.totalorder %s168, %s171
    %p177 = scmp.eq.s32.totalorder %s12, 0
    %p178 = por %p176, %p177
    %p179 = scmp.ne.s32.totalorder %s168, %s171
    %p180 = scmp.eq.s32.totalorder %s17, 1
    %p181 = por %p179, %p180
    %p182 = scmp.ne.s32.totalorder %s171, %s172
    %p183 = scmp.eq.s32.totalorder %s17, 0
    %p184 = por %p182, %p183
    %p185 = scmp.ne.s32.totalorder %s171, %s172
    %p186 = scmp.eq.s32.totalorder %s18, 1
    %p187 = por %p185, %p186
    %p189 = scmp.ne.s32.totalorder %s172, %s188
    %p190 = scmp.eq.s32.totalorder %s18, 0
    %p191 = por %p189, %p190
    %s192 = ssub.s32 %s19, %s31
    %s193 = ssub.s32 %s20, %s27
    %s194 = sor.u32 %s192, %s193
    %p195 = scmp.eq.s32.totalorder %s194, 0
    %s197 = sadd.s32 %s196, 1
    %s198 = scalar_select %p195, %s196, %s197
    %p201 = pneg %p195
    %p202 = scmp.eq.s32.totalorder %s12, 1
    %p203 = por %p201, %p202
    %p204 = scmp.ne.s32.totalorder %s196, %s199
    %p205 = scmp.eq.s32.totalorder %s12, 0
    %p206 = por %p204, %p205
    %p207 = scmp.ne.s32.totalorder %s196, %s199
    %p208 = scmp.eq.s32.totalorder %s17, 1
    %p209 = por %p207, %p208
    %p210 = scmp.ne.s32.totalorder %s199, %s200
    %p211 = scmp.eq.s32.totalorder %s17, 0
    %p212 = por %p210, %p211
    %p213 = scmp.ne.s32.totalorder %s199, %s200
    %p214 = scmp.eq.s32.totalorder %s18, 1
    %p215 = por %p213, %p214
    %p217 = scmp.ne.s32.totalorder %s200, %s216
    %p218 = scmp.eq.s32.totalorder %s18, 0
    %p219 = por %p217, %p218
    %p220 = scmp.le.s32.totalorder 1, %s12
    %p221 = scmp.lt.s32.totalorder %s12, 3
    %p222 = pnand %p220, %p221
    %p223 = pneg %p222
    // Predicated region
    $region9: #{abc_attention_forward.9} parent=5 // pred_check
      _
    $region10: #{abc_attention_forward.9} parent=5 // pred_check_branch
      %225 = sbr.rel (%p222) target = $region12
    $region11: #{abc_attention_forward.9} parent=5 // pred_region
      %s226 = ssub.s32 %s12, 1
      // Predicated region
      $region13: #{abc_attention_forward.9} parent=11 // pred_check
        %p227 = pneg %p106
      $region14: #{abc_attention_forward.9} parent=11 // pred_check_branch
        %229 = sbr.rel (%p227) target = $region16
      $region15: #{abc_attention_forward.9} parent=11 // pred_region
        %s230 = smul.u32 2, %s22
        %p231 = scmp.lt.s32.totalorder %s230, 1
        %s232 = scalar_select %p231, %s230, 1
        %s233 = smul.addr %s232, 8
        %s234 = scalar_lea.vmem %s2, %s233
        %s235 = smul.u32 2, %s22
      $region16: #{abc_attention_forward.9} parent=11 // pred_fallthru
        _
      // Predicated region
      $region17: #{abc_attention_forward.9} parent=11 // pred_check
        %p236 = pneg %p132
      $region18: #{abc_attention_forward.9} parent=11 // pred_check_branch
        %238 = sbr.rel (%p236) target = $region20
      $region19: #{abc_attention_forward.9} parent=11 // pred_region
        %s239 = smul.u32 2, %s22
        %p240 = scmp.lt.s32.totalorder %s239, 1
        %s241 = scalar_select %p240, %s239, 1
        %s242 = smul.addr %s241, 8
        %s243 = scalar_lea.vmem %s3, %s242
        %s244 = smul.u32 2, %s22
      $region20: #{abc_attention_forward.9} parent=11 // pred_fallthru
        _
      // Predicated region
      $region21: #{abc_attention_forward.9} parent=11 // pred_check
        %p245 = pneg %p158
      $region22: #{abc_attention_forward.9} parent=11 // pred_check_branch
        %247 = sbr.rel (%p245) target = $region24
      $region23: #{abc_attention_forward.9} parent=11 // pred_region
        %s248 = smul.u32 2, %s22
        %p249 = scmp.lt.s32.totalorder %s248, 1
        %s250 = scalar_select %p249, %s248, 1
        %s251 = smul.addr %s250, 8
        %s252 = scalar_lea.vmem %s4, %s251
        %s253 = smul.u32 2, %s22
      $region24: #{abc_attention_forward.9} parent=11 // pred_fallthru
        _
      // Predicated region
      $region25: #{abc_attention_forward.9} parent=11 // pred_check
        %p254 = pneg %p184
      $region26: #{abc_attention_forward.9} parent=11 // pred_check_branch
        %256 = sbr.rel (%p254) target = $region28
      $region27: #{abc_attention_forward.9} parent=11 // pred_region
        %s257 = smul.u32 2, %s22
        %p258 = scmp.lt.s32.totalorder %s257, 1
        %s259 = scalar_select %p258, %s257, 1
        %s260 = smul.addr %s259, 8
        %s261 = scalar_lea.vmem %s5, %s260
        %s262 = smul.u32 2, %s22
      $region28: #{abc_attention_forward.9} parent=11 // pred_fallthru
        _
    $region12: #{abc_attention_forward.9} parent=5 // pred_fallthru
      _
    %p263 = scmp.lt.s32.totalorder %s12, 2
    // Predicated region
    $region29: #{abc_attention_forward.9} parent=5 // pred_check
      %p264 = pneg %p263
    $region30: #{abc_attention_forward.9} parent=5 // pred_check_branch
      %266 = sbr.rel (%p264) target = $region32
    $region31: #{abc_attention_forward.9} parent=5 // pred_region
      // Predicated region
      $region33: #{abc_attention_forward.9} parent=31 // pred_check
        %p267 = pneg %p46
      $region34: #{abc_attention_forward.9} parent=31 // pred_check_branch
        %269 = sbr.rel (%p267) target = $region36
      $region35: #{abc_attention_forward.9} parent=31 // pred_region
        %s270 = smul.u32 2, %s20
        %p271 = scmp.lt.s32.totalorder %s19, 1
        %s272 = scalar_select %p271, %s19, 1
        %p273 = scmp.lt.s32.totalorder %s270, 1
        %s274 = scalar_select %p273, %s270, 1
        %s275 = smul.addr %s274, 2
        %s276 = smul.addr %s272, 4
        %s277 = sadd.s32 %s275, %s276
        %s278 = smul.addr %s277, 4
        %s279 = scalar_lea.vmem %s0, %s278
        %s280 = smul.u32 2, %s20
      $region36: #{abc_attention_forward.9} parent=31 // pred_fallthru
        _
      // Predicated region
      $region37: #{abc_attention_forward.9} parent=31 // pred_check
        %p281 = pneg %p74
      $region38: #{abc_attention_forward.9} parent=31 // pred_check_branch
        %283 = sbr.rel (%p281) target = $region40
      $region39: #{abc_attention_forward.9} parent=31 // pred_region
        %s284 = smul.u32 2, %s20
        %p285 = scmp.lt.s32.totalorder %s19, 1
        %s286 = scalar_select %p285, %s19, 1
        %p287 = scmp.lt.s32.totalorder %s284, 1
        %s288 = scalar_select %p287, %s284, 1
        %s289 = smul.addr %s286, 2
        %s290 = sadd.s32 %s288, %s289
        %s291 = smul.addr %s290, 8
        %s292 = scalar_lea.vmem %s1, %s291
        %s293 = smul.u32 2, %s20
      $region40: #{abc_attention_forward.9} parent=31 // pred_fallthru
        _
    $region32: #{abc_attention_forward.9} parent=5 // pred_fallthru
      _
    %p294 = scmp.le.s32.totalorder 1, %s12
    %p295 = scmp.lt.s32.totalorder %s12, 3
    %p296 = pnand %p294, %p295
    %p297 = pneg %p296
    // Predicated region
    $region41: #{abc_attention_forward.9} parent=5 // pred_check
      _
    $region42: #{abc_attention_forward.9} parent=5 // pred_check_branch
      %299 = sbr.rel (%p296) target = $region44
    $region43: #{abc_attention_forward.9} parent=5 // pred_region
      %s300 = ssub.s32 %s12, 1
      %s301 = smul.u32 2, %s22
      %p302 = scmp.lt.s32.totalorder %s21, 1
      %s303 = scalar_select %p302, %s21, 1
      %p304 = scmp.lt.s32.totalorder %s301, 1
      %s305 = scalar_select %p304, %s301, 1
      %s306 = smul.addr %s305, 2
      %s307 = smul.addr %s303, 4
      %s308 = sadd.s32 %s306, %s307
      %s309 = smul.addr %s308, 4
      %s310 = scalar_lea.vmem %s0, %s309
      %p311 = pneg %p52
      %p312 = pneg %p49
      %s313 = smul.u32 2, %s22
      %p314 = scmp.lt.s32.totalorder %s21, 1
      %s315 = scalar_select %p314, %s21, 1
      %p316 = scmp.lt.s32.totalorder %s313, 1
      %s317 = scalar_select %p316, %s313, 1
      %s318 = smul.addr %s315, 2
      %s319 = sadd.s32 %s317, %s318
      %s320 = smul.addr %s319, 8
      %s321 = scalar_lea.vmem %s1, %s320
      %p322 = pneg %p80
      %p323 = pneg %p77
      %s324 = smul.u32 2, %s22
      %p325 = scmp.lt.s32.totalorder %s324, 1
      %s326 = scalar_select %p325, %s324, 1
      %s327 = smul.addr %s326, 8
      %s328 = scalar_lea.vmem %s2, %s327
      %p329 = pneg %p106
      %p330 = pneg %p103
      %s331 = smul.u32 2, %s22
      %p332 = scmp.lt.s32.totalorder %s331, 1
      %s333 = scalar_select %p332, %s331, 1
      %s334 = smul.addr %s333, 8
      %s335 = scalar_lea.vmem %s3, %s334
      %p336 = pneg %p132
      %p337 = pneg %p129
      %s338 = smul.u32 2, %s22
      %p339 = scmp.lt.s32.totalorder %s338, 1
      %s340 = scalar_select %p339, %s338, 1
      %s341 = smul.addr %s340, 8
      %s342 = scalar_lea.vmem %s4, %s341
      %p343 = pneg %p158
      %p344 = pneg %p155
      %s345 = smul.u32 2, %s22
      %p346 = scmp.lt.s32.totalorder %s345, 1
      %s347 = scalar_select %p346, %s345, 1
      %s348 = smul.addr %s347, 8
      %s349 = scalar_lea.vmem %s5, %s348
      %p350 = pneg %p184
      %p351 = pneg %p181
      %p352 = pneg %p212
      %p353 = pneg %p209
      %s354 = smul.u32 2, %s22
      %p355 = scmp.lt.s32.totalorder %s21, 1
      %s356 = scalar_select %p355, %s21, 1
      %p357 = scmp.lt.s32.totalorder %s354, 1
      %s358 = scalar_select %p357, %s354, 1
      %s359 = smul.addr %s356, 2
      %s360 = sadd.s32 %s358, %s359
      %s361 = smul.addr %s360, 4
      %s362 = scalar_lea.vmem %s6, %s361
      %s363 = smul.u32 2, %s22
      %p364 = scmp.lt.s32.totalorder %s21, 1
      %s365 = scalar_select %p364, %s21, 1
      %p366 = scmp.lt.s32.totalorder %s363, 1
      %s367 = scalar_select %p366, %s363, 1
      %s368 = smul.addr %s367, 2
      %s369 = smul.addr %s365, 4
      %s370 = sadd.s32 %s368, %s369
      %s371 = smul.addr %s370, 4
      %s372 = scalar_lea.vmem %s0, %s371
      %s373 = smul.u32 2, %s22
      %s374 = smul.u32 2, %s22
      %p375 = scmp.lt.s32.totalorder %s21, 1
      %s376 = scalar_select %p375, %s21, 1
      %p377 = scmp.lt.s32.totalorder %s374, 1
      %s378 = scalar_select %p377, %s374, 1
      %s379 = smul.addr %s376, 2
      %s380 = sadd.s32 %s378, %s379
      %s381 = smul.addr %s380, 8
      %s382 = scalar_lea.vmem %s1, %s381
      %s383 = smul.u32 2, %s22
      %s384 = smul.u32 2, %s22
      %p385 = scmp.lt.s32.totalorder %s384, 1
      %s386 = scalar_select %p385, %s384, 1
      %s387 = smul.addr %s386, 8
      %s388 = scalar_lea.vmem %s2, %s387
      %s389 = smul.u32 2, %s22
      %s390 = smul.u32 2, %s22
      %p391 = scmp.lt.s32.totalorder %s390, 1
      %s392 = scalar_select %p391, %s390, 1
      %s393 = smul.addr %s392, 8
      %s394 = scalar_lea.vmem %s3, %s393
      %s395 = smul.u32 2, %s22
      %s396 = smul.u32 2, %s22
      %p397 = scmp.lt.s32.totalorder %s396, 1
      %s398 = scalar_select %p397, %s396, 1
      %s399 = smul.addr %s398, 8
      %s400 = scalar_lea.vmem %s4, %s399
      %s401 = smul.u32 2, %s22
      %s402 = smul.u32 2, %s22
      %p403 = scmp.lt.s32.totalorder %s402, 1
      %s404 = scalar_select %p403, %s402, 1
      %s405 = smul.addr %s404, 8
      %s406 = scalar_lea.vmem %s5, %s405
      %s407 = smul.u32 2, %s22
      %s408 = smul.u32 2, %s22
      %p409 = scmp.lt.s32.totalorder %s21, 1
      %s410 = scalar_select %p409, %s21, 1
      %p411 = scmp.lt.s32.totalorder %s408, 1
      %s412 = scalar_select %p411, %s408, 1
      %s413 = smul.addr %s410, 2
      %s414 = sadd.s32 %s412, %s413
      %s415 = smul.addr %s414, 4
      %s416 = scalar_lea.vmem %s6, %s415
      %s417 = smul.u32 2, %s22
      %p418 = scmp.eq.s32.totalorder %s22, 0
      // Predicated region
      $region45: #{abc_attention_forward.9} parent=43 // pred_check
        %p419 = pneg %p418
      $region46: #{abc_attention_forward.9} parent=43 // pred_check_branch
        %421 = sbr.rel (%p419) target = $region48
      $region47: #{abc_attention_forward.9} parent=43 // pred_region
        %vm422 = vcmask 516096
        %423 = vst.msk [vmem:[#allocation2] sm:$0x1] %vm422, -1e+30
        %vm424 = vcmask 130048
        %425 = vst.msk [vmem:[#allocation3] sm:$0xff] %vm424, 0.0
        %426 = vst.msk [vmem:[#allocation3 + $0x8] sm:$0xff] %vm424, 0.0
        %427 = vst.msk [vmem:[#allocation3 + $0x10] sm:$0xff] %vm424, 0.0
        %428 = vst.msk [vmem:[#allocation3 + $0x18] sm:$0xff] %vm424, 0.0
        %429 = vst.msk [vmem:[#allocation3 + $0x20] sm:$0xff] %vm424, 0.0
        %430 = vst.msk [vmem:[#allocation3 + $0x28] sm:$0xff] %vm424, 0.0
        %431 = vst.msk [vmem:[#allocation3 + $0x30] sm:$0xff] %vm424, 0.0
        %432 = vst.msk [vmem:[#allocation3 + $0x38] sm:$0xff] %vm424, 0.0
        %433 = vst.msk [vmem:[#allocation4] sm:$0xff] %vm424, 0.0
        %434 = vst.msk [vmem:[#allocation4 + $0x8] sm:$0xff] %vm424, 0.0
        %435 = vst.msk [vmem:[#allocation4 + $0x10] sm:$0xff] %vm424, 0.0
        %436 = vst.msk [vmem:[#allocation4 + $0x18] sm:$0xff] %vm424, 0.0
        %437 = vst.msk [vmem:[#allocation4 + $0x20] sm:$0xff] %vm424, 0.0
        %438 = vst.msk [vmem:[#allocation4 + $0x28] sm:$0xff] %vm424, 0.0
        %439 = vst.msk [vmem:[#allocation4 + $0x30] sm:$0xff] %vm424, 0.0
        %440 = vst.msk [vmem:[#allocation4 + $0x38] sm:$0xff] %vm424, 0.0
      $region48: #{abc_attention_forward.9} parent=43 // pred_fallthru
        _
      %v441 = vld [vmem:[%s372] sm:$0xff]
      %v442 = vld [vmem:[%s372 + $0x8] sm:$0xff]
      %v443 = vld [vmem:[%s382] sm:$0xff]
      %v444 = vld [vmem:[%s382 + $0x8] sm:$0xff]
      %v445 = vmax.f32 %v443, -32.0
      %v446 = vmax.f32 %v444, -32.0
      %v447 = vmin.f32 %v445, 32.0
      %v448 = vmin.f32 %v446, 32.0
      %v449 = vld [vmem:[%s388] sm:$0xff]
      %v450 = vld [vmem:[%s388 + $0x8] sm:$0xff]
      %v451 = vld [vmem:[%s394] sm:$0xff]
      %v452 = vld [vmem:[%s394 + $0x8] sm:$0xff]
      %v453 = vld [vmem:[%s400] sm:$0xff]
      %v454 = vld [vmem:[%s400 + $0x8] sm:$0xff]
      %v455 = vld [vmem:[%s406] sm:$0xff]
      %v456 = vld [vmem:[%s406 + $0x8] sm:$0xff]
      %v457 = vld [vmem:[#allocation2] sm:$0x1]
      %vm458 = vcmask 523264
      %v459 = vsel %vm458, %v447, -inf
      %v460 = vsel %vm458, %v448, -inf
      %v461 = vmax.f32 %v459, %v460
      %v462 = vrot.slane %v461, 4
      %v463 = vmax.f32 %v461, %v462
      %v464 = vrot.slane %v463, 2
      %v465 = vmax.f32 %v463, %v464
      %v466 = vrot.slane %v465, 1
      %v467 = vmax.f32 %v465, %v466
      %v468 = vmax.f32 %v457, %v467
      %v470 = vlaneseq
      %v471 = vshrl.u32 %v470, 7
      %v472 = vsub.s32 0, %v471
      %v473 = vrot.slane %v468, %v472
      %v475 = vsub.f32 %v447, %v473
      %v476 = vsub.f32 %v448, %v473
      %v477 = vmul.f32 %v475, 1.442695
      %v478 = vpow.pop %v477
      %v479 = vmul.f32 %v476, 1.442695
      %v480 = vpow.pop %v479
      %v481 = vsub.f32 %v457, %v468
      %v482 = vmul.f32 %v481, 1.442695
      %v483 = vpow.pop %v482
      %v484 = vlaneseq
      %v485 = vshrl.u32 %v484, 7
      %v486 = vadd.s32 %v485, 8
      %v487 = vlaneseq
      %v488 = vand.u32 %v487, 127
      %vm489 = vcmp.ge.s32.totalorder %v485, %v488
      %vm490 = vcmp.ge.s32.totalorder %v486, %v488
      %v491 = vsel %vm489, 1, 0
      %v492 = vsel %vm490, 1, 0
      %v493 = vcvt.s32.f32 %v491
      %v494 = vcvt.s32.f32 %v492
      %v496 = vlaneseq
      %v497 = vshrl.u32 %v496, 7
      %v498 = vsub.s32 0, %v497
      %v499 = vrot.slane %v483, %v498
      %vm501 = vcmask 130048
      %v503 = vsel %vm501, %v493, 0
      %v506 = vsel %vm501, %v494, 0
      %508 = vmatprep.subr.mxu0 0.0
      %509 = vmatpush1.msra.mxu0 %v478
      %510 = vmatprep.subr.mxu0 0.0
      %511 = vmatpush1.msra.mxu0 %v480
      %512 = vmatprep.subr.mxu0 0.0
      %513 = vmatpush1.msra.mxu0 0.0
      %514 = vmatprep.subr.mxu0 0.0
      %515 = vmatpush1.msra.mxu0 0.0
      %516 = vmatprep.subr.mxu0 0.0
      %517 = vmatpush1.msra.mxu0 0.0
      %518 = vmatprep.subr.mxu0 0.0
      %519 = vmatpush1.msra.mxu0 0.0
      %520 = vmatprep.subr.mxu0 0.0
      %521 = vmatpush1.msra.mxu0 0.0
      %522 = vmatprep.subr.mxu0 0.0
      %523 = vmatpush1.msra.mxu0 0.0
      %524 = vmatprep.subr.mxu0 0.0
      %525 = vmatpush1.msra.mxu0 0.0
      %526 = vmatprep.subr.mxu0 0.0
      %527 = vmatpush1.msra.mxu0 0.0
      %528 = vmatprep.subr.mxu0 0.0
      %529 = vmatpush1.msra.mxu0 0.0
      %530 = vmatprep.subr.mxu0 0.0
      %531 = vmatpush1.msra.mxu0 0.0
      %532 = vmatprep.subr.mxu0 0.0
      %533 = vmatpush1.msra.mxu0 0.0
      %534 = vmatprep.subr.mxu0 0.0
      %535 = vmatpush1.msra.mxu0 0.0
      %536 = vmatprep.subr.mxu0 0.0
      %537 = vmatpush1.msra.mxu0 0.0
      %538 = vmatprep.subr.mxu0 0.0
      %539 = vmatpush1.msra.mxu0 0.0
      %540 = vmatprep.subr.mxu0 0.0
      %541 = vmatpush1.msra.mxu0 0.0
      %542 = vmatprep.subr.mxu0 0.0
      %543 = vmatpush1.msra.mxu0 0.0
      %544 = vmatprep.subr.mxu0 0.0
      %545 = vmatpush1.msra.mxu0 0.0
      %546 = vmatprep.subr.mxu0 0.0
      %547 = vmatpush1.msra.mxu0 0.0
      %548 = vmatprep.subr.mxu0 0.0
      %549 = vmatpush1.msra.mxu0 0.0
      %550 = vmatprep.subr.mxu0 0.0
      %551 = vmatpush1.msra.mxu0 0.0
      %552 = vmatprep.subr.mxu0 0.0
      %553 = vmatpush1.msra.mxu0 0.0
      %554 = vmatprep.subr.mxu0 0.0
      %555 = vmatpush1.msra.mxu0 0.0
      %556 = vmatprep.subr.mxu0 0.0
      %557 = vmatpush1.msra.mxu0 0.0
      %558 = vmatprep.subr.mxu0 0.0
      %559 = vmatpush1.msra.mxu0 0.0
      %560 = vmatprep.subr.mxu0 0.0
      %561 = vmatpush1.msra.mxu0 0.0
      %562 = vmatprep.subr.mxu0 0.0
      %563 = vmatpush1.msra.mxu0 0.0
      %564 = vmatprep.subr.mxu0 0.0
      %565 = vmatpush1.msra.mxu0 0.0
      %566 = vmatprep.subr.mxu0 0.0
      %567 = vmatpush1.msra.mxu0 0.0
      %568 = vmatprep.subr.mxu0 0.0
      %569 = vmatpush1.msra.mxu0 0.0
      %570 = vmatprep.subr.mxu0 0.0
      %571 = vmatpush1.msra.mxu0 0.0
      %572 = vmatprep.mubr.f32.mxu0 0.0
      %573 = vmatmul.mubr.f32.gmra.mrb[0].mxu0 %v503
      %v574 = vpop.f32.mrb[0].mxu0
      %v575 = vadd.f32 %v499, %v574
      %v576 = vpop.f32.mrb[0].mxu0
      %577 = vmatprep.mubr.f32.mxu0 0.0
      %578 = vmatmul.mubr.f32.gmra.mrb[0].mxu0 %v506
      %v579 = vpop.f32.mrb[0].mxu0
      %v580 = vadd.f32 %v499, %v579
      %v581 = vpop.f32.mrb[0].mxu0
      %582 = vdwg.mxu0
      %v583 = vrcp.pop %v575
      %v584 = vmul.f32 1.0, %v583
      %v585 = vrcp.pop %v580
      %v586 = vmul.f32 1.0, %v585
      %v587 = vunpack.c.l.bf16 %v441
      %v588 = vunpack.c.l.bf16 %v442
      %v591 = vrot.slane %v441, 4
      %v592 = vrot.slane %v442, 4
      %v595 = vunpack.c.l.bf16 %v591
      %v596 = vunpack.c.l.bf16 %v592
      %v597 = vmul.f32 %v587, %v449
      %v598 = vmul.f32 %v588, %v450
      %601 = vrot.lane.b32.xlu0 %v587, 120
      %v602 = vpop.permute.xlu0 %601
      %603 = vrot.lane.b32.xlu0 %v588, 120
      %v604 = vpop.permute.xlu0 %603
      %607 = vrot.lane.b32.xlu0 %v587, 8
      %v608 = vpop.permute.xlu0 %607
      %609 = vrot.lane.b32.xlu0 %v588, 8
      %v610 = vpop.permute.xlu0 %609
      %vm613 = vcmask 64512
      %v614 = vsel %vm613, %v602, %v608
      %v615 = vsel %vm613, %v604, %v610
      %v616 = vmul.f32 %v614, %v451
      %v617 = vmul.f32 %v615, %v452
      %v618 = vadd.f32 %v597, %v616
      %v619 = vadd.f32 %v598, %v617
      %622 = vrot.lane.b32.xlu0 %v453, 64
      %v623 = vpop.permute.xlu0 %622
      %624 = vrot.lane.b32.xlu0 %v454, 64
      %v625 = vpop.permute.xlu0 %624
      %v628 = vmul.f32 %v587, %v623
      %v629 = vmul.f32 %v588, %v625
      %630 = vrot.lane.b32.xlu0 %v587, 56
      %v631 = vpop.permute.xlu0 %630
      %632 = vrot.lane.b32.xlu0 %v588, 56
      %v633 = vpop.permute.xlu0 %632
      %636 = vrot.lane.b32.xlu0 %v587, 72
      %v637 = vpop.permute.xlu0 %636
      %638 = vrot.lane.b32.xlu0 %v588, 72
      %v639 = vpop.permute.xlu0 %638
      %v642 = vsel %vm613, %v631, %v637
      %v643 = vsel %vm613, %v633, %v639
      %v644 = vmul.f32 %v642, %v455
      %v645 = vmul.f32 %v643, %v456
      %648 = vrot.lane.b32.xlu0 %v644, 64
      %v649 = vpop.permute.xlu0 %648
      %650 = vrot.lane.b32.xlu0 %v645, 64
      %v651 = vpop.permute.xlu0 %650
      %v654 = vadd.f32 %v628, %v649
      %v655 = vadd.f32 %v629, %v651
      %v656 = vld [vmem:[#allocation3] sm:$0xff]
      %v657 = vld [vmem:[#allocation3 + $0x8] sm:$0xff]
      %v658 = vld [vmem:[#allocation4] sm:$0xff]
      %v659 = vld [vmem:[#allocation4 + $0x8] sm:$0xff]
      %662 = vrot.lane.b32.xlu0 %v654, 64
      %v663 = vpop.permute.xlu0 %662
      %664 = vrot.lane.b32.xlu0 %v655, 64
      %v665 = vpop.permute.xlu0 %664
      %668 = vxpose.xlu0.b32.start [1/16] %v663, 128
      %669 = vxpose.xlu0.b32.cont [2/16] %v665, 128
      %670 = vxpose.xlu0.b32.cont [3/16] 0.0, 128
      %671 = vxpose.xlu0.b32.cont [4/16] 0.0, 128
      %672 = vxpose.xlu0.b32.cont [5/16] 0.0, 128
      %673 = vxpose.xlu0.b32.cont [6/16] 0.0, 128
      %674 = vxpose.xlu0.b32.cont [7/16] 0.0, 128
      %675 = vxpose.xlu0.b32.cont [8/16] 0.0, 128
      %676 = vxpose.xlu0.b32.cont [9/16] 0.0, 128
      %677 = vxpose.xlu0.b32.cont [10/16] 0.0, 128
      %678 = vxpose.xlu0.b32.cont [11/16] 0.0, 128
      %679 = vxpose.xlu0.b32.cont [12/16] 0.0, 128
      %680 = vxpose.xlu0.b32.cont [13/16] 0.0, 128
      %681 = vxpose.xlu0.b32.cont [14/16] 0.0, 128
      %682 = vxpose.xlu0.b32.cont [15/16] 0.0, 128
      %683 = vxpose.xlu0.b32.end [16/16] 0.0, 128
      %v684 = vpop.trf.xlu0
      %v685 = vpop.trf.xlu0
      %v686 = vpop.trf.xlu0
      %v687 = vpop.trf.xlu0
      %v688 = vpop.trf.xlu0
      %v689 = vpop.trf.xlu0
      %v690 = vpop.trf.xlu0
      %v691 = vpop.trf.xlu0
      %v692 = vpop.trf.xlu0
      %v693 = vpop.trf.xlu0
      %v694 = vpop.trf.xlu0
      %v695 = vpop.trf.xlu0
      %v696 = vpop.trf.xlu0
      %v697 = vpop.trf.xlu0
      %v698 = vpop.trf.xlu0
      %v699 = vpop.trf.xlu0
      %v701 = vsel %vm501, %v618, 0
      %v704 = vsel %vm501, %v619, 0
      %706 = vmatprep.subr.mxu0 0.0
      %707 = vmatpush1.msra.mxu0 %v684
      %708 = vmatprep.subr.mxu0 0.0
      %709 = vmatpush1.msra.mxu0 %v685
      %710 = vmatprep.subr.mxu0 0.0
      %711 = vmatpush1.msra.mxu0 0.0
      %712 = vmatprep.subr.mxu0 0.0
      %713 = vmatpush1.msra.mxu0 0.0
      %714 = vmatprep.subr.mxu0 0.0
      %715 = vmatpush1.msra.mxu0 0.0
      %716 = vmatprep.subr.mxu0 0.0
      %717 = vmatpush1.msra.mxu0 0.0
      %718 = vmatprep.subr.mxu0 0.0
      %719 = vmatpush1.msra.mxu0 0.0
      %720 = vmatprep.subr.mxu0 0.0
      %721 = vmatpush1.msra.mxu0 0.0
      %722 = vmatprep.subr.mxu0 0.0
      %723 = vmatpush1.msra.mxu0 0.0
      %724 = vmatprep.subr.mxu0 0.0
      %725 = vmatpush1.msra.mxu0 0.0
      %726 = vmatprep.subr.mxu0 0.0
      %727 = vmatpush1.msra.mxu0 0.0
      %728 = vmatprep.subr.mxu0 0.0
      %729 = vmatpush1.msra.mxu0 0.0
      %730 = vmatprep.subr.mxu0 0.0
      %731 = vmatpush1.msra.mxu0 0.0
      %732 = vmatprep.subr.mxu0 0.0
      %733 = vmatpush1.msra.mxu0 0.0
      %734 = vmatprep.subr.mxu0 0.0
      %735 = vmatpush1.msra.mxu0 0.0
      %736 = vmatprep.subr.mxu0 0.0
      %737 = vmatpush1.msra.mxu0 0.0
      %738 = vmatprep.subr.mxu0 0.0
      %739 = vmatpush1.msra.mxu0 0.0
      %740 = vmatprep.subr.mxu0 0.0
      %741 = vmatpush1.msra.mxu0 0.0
      %742 = vmatprep.subr.mxu0 0.0
      %743 = vmatpush1.msra.mxu0 0.0
      %744 = vmatprep.subr.mxu0 0.0
      %745 = vmatpush1.msra.mxu0 0.0
      %746 = vmatprep.subr.mxu0 0.0
      %747 = vmatpush1.msra.mxu0 0.0
      %748 = vmatprep.subr.mxu0 0.0
      %749 = vmatpush1.msra.mxu0 0.0
      %750 = vmatprep.subr.mxu0 0.0
      %751 = vmatpush1.msra.mxu0 0.0
      %752 = vmatprep.subr.mxu0 0.0
      %753 = vmatpush1.msra.mxu0 0.0
      %754 = vmatprep.subr.mxu0 0.0
      %755 = vmatpush1.msra.mxu0 0.0
      %756 = vmatprep.subr.mxu0 0.0
      %757 = vmatpush1.msra.mxu0 0.0
      %758 = vmatprep.subr.mxu0 0.0
      %759 = vmatpush1.msra.mxu0 0.0
      %760 = vmatprep.subr.mxu0 0.0
      %761 = vmatpush1.msra.mxu0 0.0
      %762 = vmatprep.subr.mxu0 0.0
      %763 = vmatpush1.msra.mxu0 0.0
      %764 = vmatprep.subr.mxu0 0.0
      %765 = vmatpush1.msra.mxu0 0.0
      %766 = vmatprep.subr.mxu0 0.0
      %767 = vmatpush1.msra.mxu0 0.0
      %768 = vmatprep.subr.mxu0 0.0
      %769 = vmatpush1.msra.mxu0 0.0
      %770 = vmatprep.mubr.f32.mxu0 0.0
      %771 = vmatmul.mubr.f32.gmra.mrb[0].mxu0 %v701
      %v772 = vpop.f32.mrb[0].mxu0
      %v773 = vadd.f32 0.0, %v772
      %v774 = vpop.f32.mrb[0].mxu0
      %775 = vmatprep.mubr.f32.mxu0 0.0
      %776 = vmatmul.mubr.f32.gmra.mrb[0].mxu0 %v704
      %v777 = vpop.f32.mrb[0].mxu0
      %v778 = vadd.f32 0.0, %v777
      %v779 = vpop.f32.mrb[0].mxu0
      %780 = vdwg.mxu0
      %v781 = vsel %vm489, %v773, 0.0
      %v782 = vsel %vm490, %v778, 0.0
      %783 = vmatprep.subr.mxu0 0.0
      %784 = vmatpush1.msra.mxu0 %v656
      %785 = vmatprep.subr.mxu0 0.0
      %786 = vmatpush1.msra.mxu0 %v657
      %787 = vmatprep.subr.mxu0 0.0
      %788 = vmatpush1.msra.mxu0 0.0
      %789 = vmatprep.subr.mxu0 0.0
      %790 = vmatpush1.msra.mxu0 0.0
      %791 = vmatprep.subr.mxu0 0.0
      %792 = vmatpush1.msra.mxu0 0.0
      %793 = vmatprep.subr.mxu0 0.0
      %794 = vmatpush1.msra.mxu0 0.0
      %795 = vmatprep.subr.mxu0 0.0
      %796 = vmatpush1.msra.mxu0 0.0
      %797 = vmatprep.subr.mxu0 0.0
      %798 = vmatpush1.msra.mxu0 0.0
      %799 = vmatprep.subr.mxu0 0.0
      %800 = vmatpush1.msra.mxu0 0.0
      %801 = vmatprep.subr.mxu0 0.0
      %802 = vmatpush1.msra.mxu0 0.0
      %803 = vmatprep.subr.mxu0 0.0
      %804 = vmatpush1.msra.mxu0 0.0
      %805 = vmatprep.subr.mxu0 0.0
      %806 = vmatpush1.msra.mxu0 0.0
      %807 = vmatprep.subr.mxu0 0.0
      %808 = vmatpush1.msra.mxu0 0.0
      %809 = vmatprep.subr.mxu0 0.0
      %810 = vmatpush1.msra.mxu0 0.0
      %811 = vmatprep.subr.mxu0 0.0
      %812 = vmatpush1.msra.mxu0 0.0
      %813 = vmatprep.subr.mxu0 0.0
      %814 = vmatpush1.msra.mxu0 0.0
      %815 = vmatprep.subr.mxu0 0.0
      %816 = vmatpush1.msra.mxu0 0.0
      %817 = vmatprep.subr.mxu0 0.0
      %818 = vmatpush1.msra.mxu0 0.0
      %819 = vmatprep.subr.mxu0 0.0
      %820 = vmatpush1.msra.mxu0 0.0
      %821 = vmatprep.subr.mxu0 0.0
      %822 = vmatpush1.msra.mxu0 0.0
      %823 = vmatprep.subr.mxu0 0.0
      %824 = vmatpush1.msra.mxu0 0.0
      %825 = vmatprep.subr.mxu0 0.0
      %826 = vmatpush1.msra.mxu0 0.0
      %827 = vmatprep.subr.mxu0 0.0
      %828 = vmatpush1.msra.mxu0 0.0
      %829 = vmatprep.subr.mxu0 0.0
      %830 = vmatpush1.msra.mxu0 0.0
      %831 = vmatprep.subr.mxu0 0.0
      %832 = vmatpush1.msra.mxu0 0.0
      %833 = vmatprep.subr.mxu0 0.0
      %834 = vmatpush1.msra.mxu0 0.0
      %835 = vmatprep.subr.mxu0 0.0
      %836 = vmatpush1.msra.mxu0 0.0
      %837 = vmatprep.subr.mxu0 0.0
      %838 = vmatpush1.msra.mxu0 0.0
      %839 = vmatprep.subr.mxu0 0.0
      %840 = vmatpush1.msra.mxu0 0.0
      %841 = vmatprep.subr.mxu0 0.0
      %842 = vmatpush1.msra.mxu0 0.0
      %843 = vmatprep.subr.mxu0 0.0
      %844 = vmatpush1.msra.mxu0 0.0
      %845 = vmatprep.subr.mxu0 0.0
      %846 = vmatpush1.msra.mxu0 0.0
      %847 = vmatprep.mubr.f32.mxu0 0.0
      %848 = vmatmul.mubr.f32.gmra.mrb[0].mxu0 %v701
      %v849 = vpop.f32.mrb[0].mxu0
      %v850 = vadd.f32 0.0, %v849
      %v851 = vpop.f32.mrb[0].mxu0
      %852 = vmatprep.mubr.f32.mxu0 0.0
      %853 = vmatmul.mubr.f32.gmra.mrb[0].mxu0 %v704
      %v854 = vpop.f32.mrb[0].mxu0
      %v855 = vadd.f32 0.0, %v854
      %v856 = vpop.f32.mrb[0].mxu0
      %857 = vdwg.mxu0
      %v858 = vmul.f32 %v850, %v499
      %v859 = vmul.f32 %v855, %v499
      %v861 = vsel %vm501, %v781, 0
      %v864 = vsel %vm501, %v782, 0
      %866 = vmatprep.subr.mxu0 0.0
      %867 = vmatpush1.msra.mxu0 %v478
      %868 = vmatprep.subr.mxu0 0.0
      %869 = vmatpush1.msra.mxu0 %v480
      %870 = vmatprep.subr.mxu0 0.0
      %871 = vmatpush1.msra.mxu0 0.0
      %872 = vmatprep.subr.mxu0 0.0
      %873 = vmatpush1.msra.mxu0 0.0
      %874 = vmatprep.subr.mxu0 0.0
      %875 = vmatpush1.msra.mxu0 0.0
      %876 = vmatprep.subr.mxu0 0.0
      %877 = vmatpush1.msra.mxu0 0.0
      %878 = vmatprep.subr.mxu0 0.0
      %879 = vmatpush1.msra.mxu0 0.0
      %880 = vmatprep.subr.mxu0 0.0
      %881 = vmatpush1.msra.mxu0 0.0
      %882 = vmatprep.subr.mxu0 0.0
      %883 = vmatpush1.msra.mxu0 0.0
      %884 = vmatprep.subr.mxu0 0.0
      %885 = vmatpush1.msra.mxu0 0.0
      %886 = vmatprep.subr.mxu0 0.0
      %887 = vmatpush1.msra.mxu0 0.0
      %888 = vmatprep.subr.mxu0 0.0
      %889 = vmatpush1.msra.mxu0 0.0
      %890 = vmatprep.subr.mxu0 0.0
      %891 = vmatpush1.msra.mxu0 0.0
      %892 = vmatprep.subr.mxu0 0.0
      %893 = vmatpush1.msra.mxu0 0.0
      %894 = vmatprep.subr.mxu0 0.0
      %895 = vmatpush1.msra.mxu0 0.0
      %896 = vmatprep.subr.mxu0 0.0
      %897 = vmatpush1.msra.mxu0 0.0
      %898 = vmatprep.subr.mxu0 0.0
      %899 = vmatpush1.msra.mxu0 0.0
      %900 = vmatprep.subr.mxu0 0.0
      %901 = vmatpush1.msra.mxu0 0.0
      %902 = vmatprep.subr.mxu0 0.0
      %903 = vmatpush1.msra.mxu0 0.0
      %904 = vmatprep.subr.mxu0 0.0
      %905 = vmatpush1.msra.mxu0 0.0
      %906 = vmatprep.subr.mxu0 0.0
      %907 = vmatpush1.msra.mxu0 0.0
      %908 = vmatprep.subr.mxu0 0.0
      %909 = vmatpush1.msra.mxu0 0.0
      %910 = vmatprep.subr.mxu0 0.0
      %911 = vmatpush1.msra.mxu0 0.0
      %912 = vmatprep.subr.mxu0 0.0
      %913 = vmatpush1.msra.mxu0 0.0
      %914 = vmatprep.subr.mxu0 0.0
      %915 = vmatpush1.msra.mxu0 0.0
      %916 = vmatprep.subr.mxu0 0.0
      %917 = vmatpush1.msra.mxu0 0.0
      %918 = vmatprep.subr.mxu0 0.0
      %919 = vmatpush1.msra.mxu0 0.0
      %920 = vmatprep.subr.mxu0 0.0
      %921 = vmatpush1.msra.mxu0 0.0
      %922 = vmatprep.subr.mxu0 0.0
      %923 = vmatpush1.msra.mxu0 0.0
      %924 = vmatprep.subr.mxu0 0.0
      %925 = vmatpush1.msra.mxu0 0.0
      %926 = vmatprep.subr.mxu0 0.0
      %927 = vmatpush1.msra.mxu0 0.0
      %928 = vmatprep.subr.mxu0 0.0
      %929 = vmatpush1.msra.mxu0 0.0
      %930 = vmatprep.mubr.f32.mxu0 0.0
      %931 = vmatmul.mubr.f32.gmra.mrb[0].mxu0 %v861
      %v932 = vpop.f32.mrb[0].mxu0
      %v933 = vadd.f32 %v858, %v932
      %v934 = vpop.f32.mrb[0].mxu0
      %935 = vmatprep.mubr.f32.mxu0 0.0
      %936 = vmatmul.mubr.f32.gmra.mrb[0].mxu0 %v864
      %v937 = vpop.f32.mrb[0].mxu0
      %v938 = vadd.f32 %v859, %v937
      %v939 = vpop.f32.mrb[0].mxu0
      %940 = vdwg.mxu0
      %v941 = vmul.f32 %v933, %v584
      %v942 = vmul.f32 %v938, %v586
      %v943 = vsel %vm501, %v941, -inf
      %944 = vmax.xlane.f32.xlu0 %v943
      %v945 = vpop.xlane.xlu0 %944
      %v946 = vsel %vm501, %v942, -inf
      %947 = vmax.xlane.f32.xlu0 %v946
      %v948 = vpop.xlane.xlu0 %947
      %v949 = vsub.f32 %v941, %v945
      %v950 = vsub.f32 %v942, %v948
      %v951 = vmul.f32 %v949, 1.442695
      %v952 = vpow.pop %v951
      %v953 = vmul.f32 %v950, 1.442695
      %v954 = vpow.pop %v953
      %v955 = vsel %vm501, %v952, 0.0
      %956 = vadd.xlane.f32.xlu0 %v955
      %v957 = vpop.xlane.xlu0 %956
      %v958 = vsel %vm501, %v954, 0.0
      %959 = vadd.xlane.f32.xlu0 %v958
      %v960 = vpop.xlane.xlu0 %959
      %v961 = vrcp.pop %v957
      %v962 = vrcp.pop %v960
      %v963 = vmul.f32 %v952, %v961
      %v964 = vmul.f32 %v954, %v962
      %v965 = vmul.f32 %v963, %v584
      %v966 = vmul.f32 %v964, %v586
      %v968 = vsel %vm501, %v965, 0
      %v971 = vsel %vm501, %v966, 0
      %v974 = vsel %vm501, %v478, 0
      %v977 = vsel %vm501, %v480, 0
      %979 = vmatprep.subr.mxu0 0.0
      %980 = vmatpush1.xpose.msra.mxu0 %v974
      %981 = vmatprep.subr.mxu0 0.0
      %982 = vmatpush1.xpose.msra.mxu0 %v977
      %983 = vmatprep.subr.mxu0 0.0
      %984 = vmatpush1.xpose.msra.mxu0 0.0
      %985 = vmatprep.subr.mxu0 0.0
      %986 = vmatpush1.xpose.msra.mxu0 0.0
      %987 = vmatprep.subr.mxu0 0.0
      %988 = vmatpush1.xpose.msra.mxu0 0.0
      %989 = vmatprep.subr.mxu0 0.0
      %990 = vmatpush1.xpose.msra.mxu0 0.0
      %991 = vmatprep.subr.mxu0 0.0
      %992 = vmatpush1.xpose.msra.mxu0 0.0
      %993 = vmatprep.subr.mxu0 0.0
      %994 = vmatpush1.xpose.msra.mxu0 0.0
      %995 = vmatprep.subr.mxu0 0.0
      %996 = vmatpush1.xpose.msra.mxu0 0.0
      %997 = vmatprep.subr.mxu0 0.0
      %998 = vmatpush1.xpose.msra.mxu0 0.0
      %999 = vmatprep.subr.mxu0 0.0
      %1000 = vmatpush1.xpose.msra.mxu0 0.0
      %1001 = vmatprep.subr.mxu0 0.0
      %1002 = vmatpush1.xpose.msra.mxu0 0.0
      %1003 = vmatprep.subr.mxu0 0.0
      %1004 = vmatpush1.xpose.msra.mxu0 0.0
      %1005 = vmatprep.subr.mxu0 0.0
      %1006 = vmatpush1.xpose.msra.mxu0 0.0
      %1007 = vmatprep.subr.mxu0 0.0
      %1008 = vmatpush1.xpose.msra.mxu0 0.0
      %1009 = vmatprep.subr.mxu0 0.0
      %1010 = vmatpush1.xpose.msra.mxu0 0.0
      %1011 = vmatprep.subr.mxu0 0.0
      %1012 = vmatpush1.xpose.msra.mxu0 0.0
      %1013 = vmatprep.subr.mxu0 0.0
      %1014 = vmatpush1.xpose.msra.mxu0 0.0
      %1015 = vmatprep.subr.mxu0 0.0
      %1016 = vmatpush1.xpose.msra.mxu0 0.0
      %1017 = vmatprep.subr.mxu0 0.0
      %1018 = vmatpush1.xpose.msra.mxu0 0.0
      %1019 = vmatprep.subr.mxu0 0.0
      %1020 = vmatpush1.xpose.msra.mxu0 0.0
      %1021 = vmatprep.subr.mxu0 0.0
      %1022 = vmatpush1.xpose.msra.mxu0 0.0
      %1023 = vmatprep.subr.mxu0 0.0
      %1024 = vmatpush1.xpose.msra.mxu0 0.0
      %1025 = vmatprep.subr.mxu0 0.0
      %1026 = vmatpush1.xpose.msra.mxu0 0.0
      %1027 = vmatprep.subr.mxu0 0.0
      %1028 = vmatpush1.xpose.msra.mxu0 0.0
      %1029 = vmatprep.subr.mxu0 0.0
      %1030 = vmatpush1.xpose.msra.mxu0 0.0
      %1031 = vmatprep.subr.mxu0 0.0
      %1032 = vmatpush1.xpose.msra.mxu0 0.0
      %1033 = vmatprep.subr.mxu0 0.0
      %1034 = vmatpush1.xpose.msra.mxu0 0.0
      %1035 = vmatprep.subr.mxu0 0.0
      %1036 = vmatpush1.xpose.msra.mxu0 0.0
      %1037 = vmatprep.subr.mxu0 0.0
      %1038 = vmatpush1.xpose.msra.mxu0 0.0
      %1039 = vmatprep.subr.mxu0 0.0
      %1040 = vmatpush1.xpose.msra.mxu0 0.0
      %1041 = vmatprep.subr.mxu0 0.0
      %1042 = vmatpush1.xpose.msra.mxu0 0.0
      %1043 = vmatprep.mubr.f32.mxu0 0.0
      %1044 = vmatmul.mubr.f32.gmra.mrb[0].mxu0 %v968
      %v1045 = vpop.f32.mrb[0].mxu0
      %v1046 = vadd.f32 0.0, %v1045
      %v1047 = vpop.f32.mrb[0].mxu0
      %1048 = vmatprep.mubr.f32.mxu0 0.0
      %1049 = vmatmul.mubr.f32.gmra.mrb[0].mxu0 %v971
      %v1050 = vpop.f32.mrb[0].mxu0
      %v1051 = vadd.f32 0.0, %v1050
      %v1052 = vpop.f32.mrb[0].mxu0
      %1053 = vdwg.mxu0
      %v1054 = vsel %vm489, %v1046, 0.0
      %v1055 = vsel %vm490, %v1051, 0.0
      %v1056 = vmul.f32 %v963, %v499
      %v1057 = vmul.f32 %v964, %v499
      %v1058 = vmul.f32 %v1056, %v584
      %v1059 = vmul.f32 %v1057, %v586
      %v1061 = vsel %vm501, %v1058, 0
      %v1064 = vsel %vm501, %v1059, 0
      %v1067 = vsel %vm501, %v658, 0
      %v1070 = vsel %vm501, %v659, 0
      %1072 = vmatprep.subr.mxu0 0.0
      %1073 = vmatpush1.xpose.msra.mxu0 %v1067
      %1074 = vmatprep.subr.mxu0 0.0
      %1075 = vmatpush1.xpose.msra.mxu0 %v1070
      %1076 = vmatprep.subr.mxu0 0.0
      %1077 = vmatpush1.xpose.msra.mxu0 0.0
      %1078 = vmatprep.subr.mxu0 0.0
      %1079 = vmatpush1.xpose.msra.mxu0 0.0
      %1080 = vmatprep.subr.mxu0 0.0
      %1081 = vmatpush1.xpose.msra.mxu0 0.0
      %1082 = vmatprep.subr.mxu0 0.0
      %1083 = vmatpush1.xpose.msra.mxu0 0.0
      %1084 = vmatprep.subr.mxu0 0.0
      %1085 = vmatpush1.xpose.msra.mxu0 0.0
      %1086 = vmatprep.subr.mxu0 0.0
      %1087 = vmatpush1.xpose.msra.mxu0 0.0
      %1088 = vmatprep.subr.mxu0 0.0
      %1089 = vmatpush1.xpose.msra.mxu0 0.0
      %1090 = vmatprep.subr.mxu0 0.0
      %1091 = vmatpush1.xpose.msra.mxu0 0.0
      %1092 = vmatprep.subr.mxu0 0.0
      %1093 = vmatpush1.xpose.msra.mxu0 0.0
      %1094 = vmatprep.subr.mxu0 0.0
      %1095 = vmatpush1.xpose.msra.mxu0 0.0
      %1096 = vmatprep.subr.mxu0 0.0
      %1097 = vmatpush1.xpose.msra.mxu0 0.0
      %1098 = vmatprep.subr.mxu0 0.0
      %1099 = vmatpush1.xpose.msra.mxu0 0.0
      %1100 = vmatprep.subr.mxu0 0.0
      %1101 = vmatpush1.xpose.msra.mxu0 0.0
      %1102 = vmatprep.subr.mxu0 0.0
      %1103 = vmatpush1.xpose.msra.mxu0 0.0
      %1104 = vmatprep.subr.mxu0 0.0
      %1105 = vmatpush1.xpose.msra.mxu0 0.0
      %1106 = vmatprep.subr.mxu0 0.0
      %1107 = vmatpush1.xpose.msra.mxu0 0.0
      %1108 = vmatprep.subr.mxu0 0.0
      %1109 = vmatpush1.xpose.msra.mxu0 0.0
      %1110 = vmatprep.subr.mxu0 0.0
      %1111 = vmatpush1.xpose.msra.mxu0 0.0
      %1112 = vmatprep.subr.mxu0 0.0
      %1113 = vmatpush1.xpose.msra.mxu0 0.0
      %1114 = vmatprep.subr.mxu0 0.0
      %1115 = vmatpush1.xpose.msra.mxu0 0.0
      %1116 = vmatprep.subr.mxu0 0.0
      %1117 = vmatpush1.xpose.msra.mxu0 0.0
      %1118 = vmatprep.subr.mxu0 0.0
      %1119 = vmatpush1.xpose.msra.mxu0 0.0
      %1120 = vmatprep.subr.mxu0 0.0
      %1121 = vmatpush1.xpose.msra.mxu0 0.0
      %1122 = vmatprep.subr.mxu0 0.0
      %1123 = vmatpush1.xpose.msra.mxu0 0.0
      %1124 = vmatprep.subr.mxu0 0.0
      %1125 = vmatpush1.xpose.msra.mxu0 0.0
      %1126 = vmatprep.subr.mxu0 0.0
      %1127 = vmatpush1.xpose.msra.mxu0 0.0
      %1128 = vmatprep.subr.mxu0 0.0
      %1129 = vmatpush1.xpose.msra.mxu0 0.0
      %1130 = vmatprep.subr.mxu0 0.0
      %1131 = vmatpush1.xpose.msra.mxu0 0.0
      %1132 = vmatprep.subr.mxu0 0.0
      %1133 = vmatpush1.xpose.msra.mxu0 0.0
      %1134 = vmatprep.subr.mxu0 0.0
      %1135 = vmatpush1.xpose.msra.mxu0 0.0
      %1136 = vmatprep.mubr.f32.mxu0 0.0
      %1137 = vmatmul.mubr.f32.gmra.mrb[0].mxu0 %v1061
      %v1138 = vpop.f32.mrb[0].mxu0
      %v1139 = vadd.f32 0.0, %v1138
      %v1140 = vpop.f32.mrb[0].mxu0
      %1141 = vmatprep.mubr.f32.mxu0 0.0
      %1142 = vmatmul.mubr.f32.gmra.mrb[0].mxu0 %v1064
      %v1143 = vpop.f32.mrb[0].mxu0
      %v1144 = vadd.f32 0.0, %v1143
      %v1145 = vpop.f32.mrb[0].mxu0
      %1146 = vdwg.mxu0
      %v1148 = vsel %vm501, %v1054, 0
      %v1151 = vsel %vm501, %v1055, 0
      %1153 = vmatprep.subr.mxu0 0.0
      %1154 = vmatpush1.msra.mxu0 %v595
      %1155 = vmatprep.subr.mxu0 0.0
      %1156 = vmatpush1.msra.mxu0 %v596
      %1157 = vmatprep.subr.mxu0 0.0
      %1158 = vmatpush1.msra.mxu0 0.0
      %1159 = vmatprep.subr.mxu0 0.0
      %1160 = vmatpush1.msra.mxu0 0.0
      %1161 = vmatprep.subr.mxu0 0.0
      %1162 = vmatpush1.msra.mxu0 0.0
      %1163 = vmatprep.subr.mxu0 0.0
      %1164 = vmatpush1.msra.mxu0 0.0
      %1165 = vmatprep.subr.mxu0 0.0
      %1166 = vmatpush1.msra.mxu0 0.0
      %1167 = vmatprep.subr.mxu0 0.0
      %1168 = vmatpush1.msra.mxu0 0.0
      %1169 = vmatprep.subr.mxu0 0.0
      %1170 = vmatpush1.msra.mxu0 0.0
      %1171 = vmatprep.subr.mxu0 0.0
      %1172 = vmatpush1.msra.mxu0 0.0
      %1173 = vmatprep.subr.mxu0 0.0
      %1174 = vmatpush1.msra.mxu0 0.0
      %1175 = vmatprep.subr.mxu0 0.0
      %1176 = vmatpush1.msra.mxu0 0.0
      %1177 = vmatprep.subr.mxu0 0.0
      %1178 = vmatpush1.msra.mxu0 0.0
      %1179 = vmatprep.subr.mxu0 0.0
      %1180 = vmatpush1.msra.mxu0 0.0
      %1181 = vmatprep.subr.mxu0 0.0
      %1182 = vmatpush1.msra.mxu0 0.0
      %1183 = vmatprep.subr.mxu0 0.0
      %1184 = vmatpush1.msra.mxu0 0.0
      %1185 = vmatprep.subr.mxu0 0.0
      %1186 = vmatpush1.msra.mxu0 0.0
      %1187 = vmatprep.subr.mxu0 0.0
      %1188 = vmatpush1.msra.mxu0 0.0
      %1189 = vmatprep.subr.mxu0 0.0
      %1190 = vmatpush1.msra.mxu0 0.0
      %1191 = vmatprep.subr.mxu0 0.0
      %1192 = vmatpush1.msra.mxu0 0.0
      %1193 = vmatprep.subr.mxu0 0.0
      %1194 = vmatpush1.msra.mxu0 0.0
      %1195 = vmatprep.subr.mxu0 0.0
      %1196 = vmatpush1.msra.mxu0 0.0
      %1197 = vmatprep.subr.mxu0 0.0
      %1198 = vmatpush1.msra.mxu0 0.0
      %1199 = vmatprep.subr.mxu0 0.0
      %1200 = vmatpush1.msra.mxu0 0.0
      %1201 = vmatprep.subr.mxu0 0.0
      %1202 = vmatpush1.msra.mxu0 0.0
      %1203 = vmatprep.subr.mxu0 0.0
      %1204 = vmatpush1.msra.mxu0 0.0
      %1205 = vmatprep.subr.mxu0 0.0
      %1206 = vmatpush1.msra.mxu0 0.0
      %1207 = vmatprep.subr.mxu0 0.0
      %1208 = vmatpush1.msra.mxu0 0.0
      %1209 = vmatprep.subr.mxu0 0.0
      %1210 = vmatpush1.msra.mxu0 0.0
      %1211 = vmatprep.subr.mxu0 0.0
      %1212 = vmatpush1.msra.mxu0 0.0
      %1213 = vmatprep.subr.mxu0 0.0
      %1214 = vmatpush1.msra.mxu0 0.0
      %1215 = vmatprep.subr.mxu0 0.0
      %1216 = vmatpush1.msra.mxu0 0.0
      %1217 = vmatprep.mubr.f32.mxu0 0.0
      %1218 = vmatmul.mubr.f32.gmra.mrb[0].mxu0 %v1148
      %v1219 = vpop.f32.mrb[0].mxu0
      %v1220 = vadd.f32 %v1139, %v1219
      %v1221 = vpop.f32.mrb[0].mxu0
      %1222 = vmatprep.mubr.f32.mxu0 0.0
      %1223 = vmatmul.mubr.f32.gmra.mrb[0].mxu0 %v1151
      %v1224 = vpop.f32.mrb[0].mxu0
      %v1225 = vadd.f32 %v1144, %v1224
      %v1226 = vpop.f32.mrb[0].mxu0
      %1227 = vdwg.mxu0
      %v1228 = vmul.f32 %v656, %v499
      %v1229 = vmul.f32 %v657, %v499
      %v1231 = vsel %vm501, %v684, 0
      %v1234 = vsel %vm501, %v685, 0
      %1236 = vmatprep.subr.mxu0 0.0
      %1237 = vmatpush1.msra.mxu0 %v478
      %1238 = vmatprep.subr.mxu0 0.0
      %1239 = vmatpush1.msra.mxu0 %v480
      %1240 = vmatprep.subr.mxu0 0.0
      %1241 = vmatpush1.msra.mxu0 0.0
      %1242 = vmatprep.subr.mxu0 0.0
      %1243 = vmatpush1.msra.mxu0 0.0
      %1244 = vmatprep.subr.mxu0 0.0
      %1245 = vmatpush1.msra.mxu0 0.0
      %1246 = vmatprep.subr.mxu0 0.0
      %1247 = vmatpush1.msra.mxu0 0.0
      %1248 = vmatprep.subr.mxu0 0.0
      %1249 = vmatpush1.msra.mxu0 0.0
      %1250 = vmatprep.subr.mxu0 0.0
      %1251 = vmatpush1.msra.mxu0 0.0
      %1252 = vmatprep.subr.mxu0 0.0
      %1253 = vmatpush1.msra.mxu0 0.0
      %1254 = vmatprep.subr.mxu0 0.0
      %1255 = vmatpush1.msra.mxu0 0.0
      %1256 = vmatprep.subr.mxu0 0.0
      %1257 = vmatpush1.msra.mxu0 0.0
      %1258 = vmatprep.subr.mxu0 0.0
      %1259 = vmatpush1.msra.mxu0 0.0
      %1260 = vmatprep.subr.mxu0 0.0
      %1261 = vmatpush1.msra.mxu0 0.0
      %1262 = vmatprep.subr.mxu0 0.0
      %1263 = vmatpush1.msra.mxu0 0.0
      %1264 = vmatprep.subr.mxu0 0.0
      %1265 = vmatpush1.msra.mxu0 0.0
      %1266 = vmatprep.subr.mxu0 0.0
      %1267 = vmatpush1.msra.mxu0 0.0
      %1268 = vmatprep.subr.mxu0 0.0
      %1269 = vmatpush1.msra.mxu0 0.0
      %1270 = vmatprep.subr.mxu0 0.0
      %1271 = vmatpush1.msra.mxu0 0.0
      %1272 = vmatprep.subr.mxu0 0.0
      %1273 = vmatpush1.msra.mxu0 0.0
      %1274 = vmatprep.subr.mxu0 0.0
      %1275 = vmatpush1.msra.mxu0 0.0
      %1276 = vmatprep.subr.mxu0 0.0
      %1277 = vmatpush1.msra.mxu0 0.0
      %1278 = vmatprep.subr.mxu0 0.0
      %1279 = vmatpush1.msra.mxu0 0.0
      %1280 = vmatprep.subr.mxu0 0.0
      %1281 = vmatpush1.msra.mxu0 0.0
      %1282 = vmatprep.subr.mxu0 0.0
      %1283 = vmatpush1.msra.mxu0 0.0
      %1284 = vmatprep.subr.mxu0 0.0
      %1285 = vmatpush1.msra.mxu0 0.0
      %1286 = vmatprep.subr.mxu0 0.0
      %1287 = vmatpush1.msra.mxu0 0.0
      %1288 = vmatprep.subr.mxu0 0.0
      %1289 = vmatpush1.msra.mxu0 0.0
      %1290 = vmatprep.subr.mxu0 0.0
      %1291 = vmatpush1.msra.mxu0 0.0
      %1292 = vmatprep.subr.mxu0 0.0
      %1293 = vmatpush1.msra.mxu0 0.0
      %1294 = vmatprep.subr.mxu0 0.0
      %1295 = vmatpush1.msra.mxu0 0.0
      %1296 = vmatprep.subr.mxu0 0.0
      %1297 = vmatpush1.msra.mxu0 0.0
      %1298 = vmatprep.subr.mxu0 0.0
      %1299 = vmatpush1.msra.mxu0 0.0
      %1300 = vmatprep.mubr.f32.mxu0 0.0
      %1301 = vmatmul.mubr.f32.gmra.mrb[0].mxu0 %v1231
      %v1302 = vpop.f32.mrb[0].mxu0
      %v1303 = vadd.f32 0.0, %v1302
      %v1304 = vpop.f32.mrb[0].mxu0
      %1305 = vmatprep.mubr.f32.mxu0 0.0
      %1306 = vmatmul.mubr.f32.gmra.mrb[0].mxu0 %v1234
      %v1307 = vpop.f32.mrb[0].mxu0
      %v1308 = vadd.f32 0.0, %v1307
      %v1309 = vpop.f32.mrb[0].mxu0
      %1310 = vdwg.mxu0
      %v1311 = vadd.f32 %v1228, %v1303
      %v1312 = vadd.f32 %v1229, %v1308
      %v1313 = vlaneseq
      %v1314 = vshrl.u32 %v1313, 7
      %v1315 = vsub.s32 7, %v1314
      %v1316 = vrot.slane %v586, %v1315
      %v1317 = vmul.f32 %v1311, %v1316
      %v1318 = vmul.f32 %v1312, %v1316
      %1319 = vst.msk [vmem:[#allocation3] sm:$0xff] %vm501, %v1317
      %1320 = vst.msk [vmem:[#allocation3 + $0x8] sm:$0xff] %vm501, %v1318
      %v1321 = vmul.f32 %v658, %v499
      %v1322 = vmul.f32 %v659, %v499
      %1323 = vxpose.xlu0.b32.start [1/16] %v595, 128
      %1324 = vxpose.xlu0.b32.cont [2/16] %v596, 128
      %1325 = vxpose.xlu0.b32.cont [3/16] 0.0, 128
      %1326 = vxpose.xlu0.b32.cont [4/16] 0.0, 128
      %1327 = vxpose.xlu0.b32.cont [5/16] 0.0, 128
      %1328 = vxpose.xlu0.b32.cont [6/16] 0.0, 128
      %1329 = vxpose.xlu0.b32.cont [7/16] 0.0, 128
      %1330 = vxpose.xlu0.b32.cont [8/16] 0.0, 128
      %1331 = vxpose.xlu0.b32.cont [9/16] 0.0, 128
      %1332 = vxpose.xlu0.b32.cont [10/16] 0.0, 128
      %1333 = vxpose.xlu0.b32.cont [11/16] 0.0, 128
      %1334 = vxpose.xlu0.b32.cont [12/16] 0.0, 128
      %1335 = vxpose.xlu0.b32.cont [13/16] 0.0, 128
      %1336 = vxpose.xlu0.b32.cont [14/16] 0.0, 128
      %1337 = vxpose.xlu0.b32.cont [15/16] 0.0, 128
      %1338 = vxpose.xlu0.b32.end [16/16] 0.0, 128
      %v1339 = vpop.trf.xlu0
      %v1340 = vpop.trf.xlu0
      %v1341 = vpop.trf.xlu0
      %v1342 = vpop.trf.xlu0
      %v1343 = vpop.trf.xlu0
      %v1344 = vpop.trf.xlu0
      %v1345 = vpop.trf.xlu0
      %v1346 = vpop.trf.xlu0
      %v1347 = vpop.trf.xlu0
      %v1348 = vpop.trf.xlu0
      %v1349 = vpop.trf.xlu0
      %v1350 = vpop.trf.xlu0
      %v1351 = vpop.trf.xlu0
      %v1352 = vpop.trf.xlu0
      %v1353 = vpop.trf.xlu0
      %v1354 = vpop.trf.xlu0
      %v1356 = vsel %vm501, %v1339, 0
      %v1359 = vsel %vm501, %v1340, 0
      %1361 = vmatprep.subr.mxu0 0.0
      %1362 = vmatpush1.msra.mxu0 %v478
      %1363 = vmatprep.subr.mxu0 0.0
      %1364 = vmatpush1.msra.mxu0 %v480
      %1365 = vmatprep.subr.mxu0 0.0
      %1366 = vmatpush1.msra.mxu0 0.0
      %1367 = vmatprep.subr.mxu0 0.0
      %1368 = vmatpush1.msra.mxu0 0.0
      %1369 = vmatprep.subr.mxu0 0.0
      %1370 = vmatpush1.msra.mxu0 0.0
      %1371 = vmatprep.subr.mxu0 0.0
      %1372 = vmatpush1.msra.mxu0 0.0
      %1373 = vmatprep.subr.mxu0 0.0
      %1374 = vmatpush1.msra.mxu0 0.0
      %1375 = vmatprep.subr.mxu0 0.0
      %1376 = vmatpush1.msra.mxu0 0.0
      %1377 = vmatprep.subr.mxu0 0.0
      %1378 = vmatpush1.msra.mxu0 0.0
      %1379 = vmatprep.subr.mxu0 0.0
      %1380 = vmatpush1.msra.mxu0 0.0
      %1381 = vmatprep.subr.mxu0 0.0
      %1382 = vmatpush1.msra.mxu0 0.0
      %1383 = vmatprep.subr.mxu0 0.0
      %1384 = vmatpush1.msra.mxu0 0.0
      %1385 = vmatprep.subr.mxu0 0.0
      %1386 = vmatpush1.msra.mxu0 0.0
      %1387 = vmatprep.subr.mxu0 0.0
      %1388 = vmatpush1.msra.mxu0 0.0
      %1389 = vmatprep.subr.mxu0 0.0
      %1390 = vmatpush1.msra.mxu0 0.0
      %1391 = vmatprep.subr.mxu0 0.0
      %1392 = vmatpush1.msra.mxu0 0.0
      %1393 = vmatprep.subr.mxu0 0.0
      %1394 = vmatpush1.msra.mxu0 0.0
      %1395 = vmatprep.subr.mxu0 0.0
      %1396 = vmatpush1.msra.mxu0 0.0
      %1397 = vmatprep.subr.mxu0 0.0
      %1398 = vmatpush1.msra.mxu0 0.0
      %1399 = vmatprep.subr.mxu0 0.0
      %1400 = vmatpush1.msra.mxu0 0.0
      %1401 = vmatprep.subr.mxu0 0.0
      %1402 = vmatpush1.msra.mxu0 0.0
      %1403 = vmatprep.subr.mxu0 0.0
      %1404 = vmatpush1.msra.mxu0 0.0
      %1405 = vmatprep.subr.mxu0 0.0
      %1406 = vmatpush1.msra.mxu0 0.0
      %1407 = vmatprep.subr.mxu0 0.0
      %1408 = vmatpush1.msra.mxu0 0.0
      %1409 = vmatprep.subr.mxu0 0.0
      %1410 = vmatpush1.msra.mxu0 0.0
      %1411 = vmatprep.subr.mxu0 0.0
      %1412 = vmatpush1.msra.mxu0 0.0
      %1413 = vmatprep.subr.mxu0 0.0
      %1414 = vmatpush1.msra.mxu0 0.0
      %1415 = vmatprep.subr.mxu0 0.0
      %1416 = vmatpush1.msra.mxu0 0.0
      %1417 = vmatprep.subr.mxu0 0.0
      %1418 = vmatpush1.msra.mxu0 0.0
      %1419 = vmatprep.subr.mxu0 0.0
      %1420 = vmatpush1.msra.mxu0 0.0
      %1421 = vmatprep.subr.mxu0 0.0
      %1422 = vmatpush1.msra.mxu0 0.0
      %1423 = vmatprep.subr.mxu0 0.0
      %1424 = vmatpush1.msra.mxu0 0.0
      %1425 = vmatprep.mubr.f32.mxu0 0.0
      %1426 = vmatmul.mubr.f32.gmra.mrb[0].mxu0 %v1356
      %v1427 = vpop.f32.mrb[0].mxu0
      %v1428 = vadd.f32 0.0, %v1427
      %v1429 = vpop.f32.mrb[0].mxu0
      %1430 = vmatprep.mubr.f32.mxu0 0.0
      %1431 = vmatmul.mubr.f32.gmra.mrb[0].mxu0 %v1359
      %v1432 = vpop.f32.mrb[0].mxu0
      %v1433 = vadd.f32 0.0, %v1432
      %v1434 = vpop.f32.mrb[0].mxu0
      %1435 = vdwg.mxu0
      %v1436 = vadd.f32 %v1321, %v1428
      %v1437 = vadd.f32 %v1322, %v1433
      %v1438 = vmul.f32 %v1436, %v1316
      %v1439 = vmul.f32 %v1437, %v1316
      %1440 = vst.msk [vmem:[#allocation4] sm:$0xff] %vm501, %v1438
      %1441 = vst.msk [vmem:[#allocation4 + $0x8] sm:$0xff] %vm501, %v1439
      %1442 = vrot.lane.b32.xlu0 %v441, 112
      %v1443 = vpop.permute.xlu0 %1442
      %1444 = vrot.lane.b32.xlu0 %v442, 112
      %v1445 = vpop.permute.xlu0 %1444
      %v1446 = vrot.slane %v1443, 4
      %v1447 = vrot.slane %v1445, 4
      %v1450 = vunpack.c.l.bf16 %v1446
      %v1451 = vunpack.c.l.bf16 %v1447
      %1454 = vrot.lane.b32.xlu0 %v449, 16
      %v1455 = vpop.permute.xlu0 %1454
      %1456 = vrot.lane.b32.xlu0 %v450, 16
      %v1457 = vpop.permute.xlu0 %1456
      %v1460 = vmul.f32 %v587, %v1455
      %v1461 = vmul.f32 %v588, %v1457
      %1462 = vrot.lane.b32.xlu0 %v587, 104
      %v1463 = vpop.permute.xlu0 %1462
      %1464 = vrot.lane.b32.xlu0 %v588, 104
      %v1465 = vpop.permute.xlu0 %1464
      %v1468 = vsel %vm613, %v1463, %v602
      %v1469 = vsel %vm613, %v1465, %v604
      %v1470 = vmul.f32 %v1468, %v451
      %v1471 = vmul.f32 %v1469, %v452
      %1474 = vrot.lane.b32.xlu0 %v1470, 16
      %v1475 = vpop.permute.xlu0 %1474
      %1476 = vrot.lane.b32.xlu0 %v1471, 16
      %v1477 = vpop.permute.xlu0 %1476
      %v1480 = vadd.f32 %v1460, %v1475
      %v1481 = vadd.f32 %v1461, %v1477
      %1482 = vrot.lane.b32.xlu0 %v453, 80
      %v1483 = vpop.permute.xlu0 %1482
      %1484 = vrot.lane.b32.xlu0 %v454, 80
      %v1485 = vpop.permute.xlu0 %1484
      %v1488 = vmul.f32 %v587, %v1483
      %v1489 = vmul.f32 %v588, %v1485
      %1490 = vrot.lane.b32.xlu0 %v587, 40
      %v1491 = vpop.permute.xlu0 %1490
      %1492 = vrot.lane.b32.xlu0 %v588, 40
      %v1493 = vpop.permute.xlu0 %1492
      %v1496 = vsel %vm613, %v1491, %v631
      %v1497 = vsel %vm613, %v1493, %v633
      %v1498 = vmul.f32 %v1496, %v455
      %v1499 = vmul.f32 %v1497, %v456
      %1502 = vrot.lane.b32.xlu0 %v1498, 80
      %v1503 = vpop.permute.xlu0 %1502
      %1504 = vrot.lane.b32.xlu0 %v1499, 80
      %v1505 = vpop.permute.xlu0 %1504
      %v1508 = vadd.f32 %v1488, %v1503
      %v1509 = vadd.f32 %v1489, %v1505
      %v1510 = vld [vmem:[#allocation3 + $0x10] sm:$0xff]
      %v1511 = vld [vmem:[#allocation3 + $0x18] sm:$0xff]
      %v1512 = vld [vmem:[#allocation4 + $0x10] sm:$0xff]
      %v1513 = vld [vmem:[#allocation4 + $0x18] sm:$0xff]
      %1516 = vrot.lane.b32.xlu0 %v1508, 48
      %v1517 = vpop.permute.xlu0 %1516
      %1518 = vrot.lane.b32.xlu0 %v1509, 48
      %v1519 = vpop.permute.xlu0 %1518
      %1522 = vxpose.xlu0.b32.start [1/16] %v1517, 128
      %1523 = vxpose.xlu0.b32.cont [2/16] %v1519, 128
      %1524 = vxpose.xlu0.b32.cont [3/16] 0.0, 128
      %1525 = vxpose.xlu0.b32.cont [4/16] 0.0, 128
      %1526 = vxpose.xlu0.b32.cont [5/16] 0.0, 128
      %1527 = vxpose.xlu0.b32.cont [6/16] 0.0, 128
      %1528 = vxpose.xlu0.b32.cont [7/16] 0.0, 128
      %1529 = vxpose.xlu0.b32.cont [8/16] 0.0, 128
      %1530 = vxpose.xlu0.b32.cont [9/16] 0.0, 128
      %1531 = vxpose.xlu0.b32.cont [10/16] 0.0, 128
      %1532 = vxpose.xlu0.b32.cont [11/16] 0.0, 128
      %1533 = vxpose.xlu0.b32.cont [12/16] 0.0, 128
      %1534 = vxpose.xlu0.b32.cont [13/16] 0.0, 128
      %1535 = vxpose.xlu0.b32.cont [14/16] 0.0, 128
      %1536 = vxpose.xlu0.b32.cont [15/16] 0.0, 128
      %1537 = vxpose.xlu0.b32.end [16/16] 0.0, 128
      %v1538 = vpop.trf.xlu0
      %v1539 = vpop.trf.xlu0
      %v1540 = vpop.trf.xlu0
      %v1541 = vpop.trf.xlu0
      %v1542 = vpop.trf.xlu0
      %v1543 = vpop.trf.xlu0
      %v1544 = vpop.trf.xlu0
      %v1545 = vpop.trf.xlu0
      %v1546 = vpop.trf.xlu0
      %v1547 = vpop.trf.xlu0
      %v1548 = vpop.trf.xlu0
      %v1549 = vpop.trf.xlu0
      %v1550 = vpop.trf.xlu0
      %v1551 = vpop.trf.xlu0
      %v1552 = vpop.trf.xlu0
      %v1553 = vpop.trf.xlu0
      %1556 = vrot.lane.b32.xlu0 %v1480, 112
      %v1557 = vpop.permute.xlu0 %1556
      %1558 = vrot.lane.b32.xlu0 %v1481, 112
      %v1559 = vpop.permute.xlu0 %1558
      %v1560 = vsel %vm501, %v1557, 0
      %v1562 = vsel %vm501, %v1559, 0
      %1564 = vmatprep.subr.mxu0 0.0
      %1565 = vmatpush1.msra.mxu0 %v1538
      %1566 = vmatprep.subr.mxu0 0.0
      %1567 = vmatpush1.msra.mxu0 %v1539
      %1568 = vmatprep.subr.mxu0 0.0
      %1569 = vmatpush1.msra.mxu0 0.0
      %1570 = vmatprep.subr.mxu0 0.0
      %1571 = vmatpush1.msra.mxu0 0.0
      %1572 = vmatprep.subr.mxu0 0.0
      %1573 = vmatpush1.msra.mxu0 0.0
      %1574 = vmatprep.subr.mxu0 0.0
      %1575 = vmatpush1.msra.mxu0 0.0
      %1576 = vmatprep.subr.mxu0 0.0
      %1577 = vmatpush1.msra.mxu0 0.0
      %1578 = vmatprep.subr.mxu0 0.0
      %1579 = vmatpush1.msra.mxu0 0.0
      %1580 = vmatprep.subr.mxu0 0.0
      %1581 = vmatpush1.msra.mxu0 0.0
      %1582 = vmatprep.subr.mxu0 0.0
      %1583 = vmatpush1.msra.mxu0 0.0
      %1584 = vmatprep.subr.mxu0 0.0
      %1585 = vmatpush1.msra.mxu0 0.0
      %1586 = vmatprep.subr.mxu0 0.0
      %1587 = vmatpush1.msra.mxu0 0.0
      %1588 = vmatprep.subr.mxu0 0.0
      %1589 = vmatpush1.msra.mxu0 0.0
      %1590 = vmatprep.subr.mxu0 0.0
      %1591 = vmatpush1.msra.mxu0 0.0
      %1592 = vmatprep.subr.mxu0 0.0
      %1593 = vmatpush1.msra.mxu0 0.0
      %1594 = vmatprep.subr.mxu0 0.0
      %1595 = vmatpush1.msra.mxu0 0.0
      %1596 = vmatprep.subr.mxu0 0.0
      %1597 = vmatpush1.msra.mxu0 0.0
      %1598 = vmatprep.subr.mxu0 0.0
      %1599 = vmatpush1.msra.mxu0 0.0
      %1600 = vmatprep.subr.mxu0 0.0
      %1601 = vmatpush1.msra.mxu0 0.0
      %1602 = vmatprep.subr.mxu0 0.0
      %1603 = vmatpush1.msra.mxu0 0.0
      %1604 = vmatprep.subr.mxu0 0.0
      %1605 = vmatpush1.msra.mxu0 0.0
      %1606 = vmatprep.subr.mxu0 0.0
      %1607 = vmatpush1.msra.mxu0 0.0
      %1608 = vmatprep.subr.mxu0 0.0
      %1609 = vmatpush1.msra.mxu0 0.0
      %1610 = vmatprep.subr.mxu0 0.0
      %1611 = vmatpush1.msra.mxu0 0.0
      %1612 = vmatprep.subr.mxu0 0.0
      %1613 = vmatpush1.msra.mxu0 0.0
      %1614 = vmatprep.subr.mxu0 0.0
      %1615 = vmatpush1.msra.mxu0 0.0
      %1616 = vmatprep.subr.mxu0 0.0
      %1617 = vmatpush1.msra.mxu0 0.0
      %1618 = vmatprep.subr.mxu0 0.0
      %1619 = vmatpush1.msra.mxu0 0.0
      %1620 = vmatprep.subr.mxu0 0.0
      %1621 = vmatpush1.msra.mxu0 0.0
      %1622 = vmatprep.subr.mxu0 0.0
      %1623 = vmatpush1.msra.mxu0 0.0
      %1624 = vmatprep.subr.mxu0 0.0
      %1625 = vmatpush1.msra.mxu0 0.0
      %1626 = vmatprep.subr.mxu0 0.0
      %1627 = vmatpush1.msra.mxu0 0.0
      %1628 = vmatprep.mubr.f32.mxu0 0.0
      %1629 = vmatmul.mubr.f32.gmra.mrb[0].mxu0 %v1560
      %v1630 = vpop.f32.mrb[0].mxu0
      %v1631 = vadd.f32 0.0, %v1630
      %v1632 = vpop.f32.mrb[0].mxu0
      %1633 = vmatprep.mubr.f32.mxu0 0.0
      %1634 = vmatmul.mubr.f32.gmra.mrb[0].mxu0 %v1562
      %v1635 = vpop.f32.mrb[0].mxu0
      %v1636 = vadd.f32 0.0, %v1635
      %v1637 = vpop.f32.mrb[0].mxu0
      %1638 = vdwg.mxu0
      %v1639 = vsel %vm489, %v1631, 0.0
      %v1640 = vsel %vm490, %v1636, 0.0
      %1641 = vmatprep.subr.mxu0 0.0
      %1642 = vmatpush1.msra.mxu0 %v1510
      %1643 = vmatprep.subr.mxu0 0.0
      %1644 = vmatpush1.msra.mxu0 %v1511
      %1645 = vmatprep.subr.mxu0 0.0
      %1646 = vmatpush1.msra.mxu0 0.0
      %1647 = vmatprep.subr.mxu0 0.0
      %1648 = vmatpush1.msra.mxu0 0.0
      %1649 = vmatprep.subr.mxu0 0.0
      %1650 = vmatpush1.msra.mxu0 0.0
      %1651 = vmatprep.subr.mxu0 0.0
      %1652 = vmatpush1.msra.mxu0 0.0
      %1653 = vmatprep.subr.mxu0 0.0
      %1654 = vmatpush1.msra.mxu0 0.0
      %1655 = vmatprep.subr.mxu0 0.0
      %1656 = vmatpush1.msra.mxu0 0.0
      %1657 = vmatprep.subr.mxu0 0.0
      %1658 = vmatpush1.msra.mxu0 0.0
      %1659 = vmatprep.subr.mxu0 0.0
      %1660 = vmatpush1.msra.mxu0 0.0
      %1661 = vmatprep.subr.mxu0 0.0
      %1662 = vmatpush1.msra.mxu0 0.0
      %1663 = vmatprep.subr.mxu0 0.0
      %1664 = vmatpush1.msra.mxu0 0.0
      %1665 = vmatprep.subr.mxu0 0.0
      %1666 = vmatpush1.msra.mxu0 0.0
      %1667 = vmatprep.subr.mxu0 0.0
      %1668 = vmatpush1.msra.mxu0 0.0
      %1669 = vmatprep.subr.mxu0 0.0
      %1670 = vmatpush1.msra.mxu0 0.0
      %1671 = vmatprep.subr.mxu0 0.0
      %1672 = vmatpush1.msra.mxu0 0.0
      %1673 = vmatprep.subr.mxu0 0.0
      %1674 = vmatpush1.msra.mxu0 0.0
      %1675 = vmatprep.subr.mxu0 0.0
      %1676 = vmatpush1.msra.mxu0 0.0
      %1677 = vmatprep.subr.mxu0 0.0
      %1678 = vmatpush1.msra.mxu0 0.0
      %1679 = vmatprep.subr.mxu0 0.0
      %1680 = vmatpush1.msra.mxu0 0.0
      %1681 = vmatprep.subr.mxu0 0.0
      %1682 = vmatpush1.msra.mxu0 0.0
      %1683 = vmatprep.subr.mxu0 0.0
      %1684 = vmatpush1.msra.mxu0 0.0
      %1685 = vmatprep.subr.mxu0 0.0
      %1686 = vmatpush1.msra.mxu0 0.0
      %1687 = vmatprep.subr.mxu0 0.0
      %1688 = vmatpush1.msra.mxu0 0.0
      %1689 = vmatprep.subr.mxu0 0.0
      %1690 = vmatpush1.msra.mxu0 0.0
      %1691 = vmatprep.subr.mxu0 0.0
      %1692 = vmatpush1.msra.mxu0 0.0
      %1693 = vmatprep.subr.mxu0 0.0
      %1694 = vmatpush1.msra.mxu0 0.0
      %1695 = vmatprep.subr.mxu0 0.0
      %1696 = vmatpush1.msra.mxu0 0.0
      %1697 = vmatprep.subr.mxu0 0.0
      %1698 = vmatpush1.msra.mxu0 0.0
      %1699 = vmatprep.subr.mxu0 0.0
      %1700 = vmatpush1.msra.mxu0 0.0
      %1701 = vmatprep.subr.mxu0 0.0
      %1702 = vmatpush1.msra.mxu0 0.0
      %1703 = vmatprep.subr.mxu0 0.0
      %1704 = vmatpush1.msra.mxu0 0.0
      %1705 = vmatprep.mubr.f32.mxu0 0.0
      %1706 = vmatmul.mubr.f32.gmra.mrb[0].mxu0 %v1560
      %v1707 = vpop.f32.mrb[0].mxu0
      %v1708 = vadd.f32 0.0, %v1707
      %v1709 = vpop.f32.mrb[0].mxu0
      %1710 = vmatprep.mubr.f32.mxu0 0.0
      %1711 = vmatmul.mubr.f32.gmra.mrb[0].mxu0 %v1562
      %v1712 = vpop.f32.mrb[0].mxu0
      %v1713 = vadd.f32 0.0, %v1712
      %v1714 = vpop.f32.mrb[0].mxu0
      %1715 = vdwg.mxu0
      %1716 = vrot.lane.b32.xlu0 %v499, 112
      %v1717 = vpop.permute.xlu0 %1716
      %v1719 = vmul.f32 %v1708, %v1717
      %v1720 = vmul.f32 %v1713, %v1717
      %1721 = vrot.lane.b32.xlu0 %v478, 112
      %v1722 = vpop.permute.xlu0 %1721
      %1723 = vrot.lane.b32.xlu0 %v480, 112
      %v1724 = vpop.permute.xlu0 %1723
      %v1728 = vsel %vm501, %v1639, 0
      %v1731 = vsel %vm501, %v1640, 0
      %1733 = vmatprep.subr.mxu0 0.0
      %1734 = vmatpush1.msra.mxu0 %v1722
      %1735 = vmatprep.subr.mxu0 0.0
      %1736 = vmatpush1.msra.mxu0 %v1724
      %1737 = vmatprep.subr.mxu0 0.0
      %1738 = vmatpush1.msra.mxu0 0.0
      %1739 = vmatprep.subr.mxu0 0.0
      %1740 = vmatpush1.msra.mxu0 0.0
      %1741 = vmatprep.subr.mxu0 0.0
      %1742 = vmatpush1.msra.mxu0 0.0
      %1743 = vmatprep.subr.mxu0 0.0
      %1744 = vmatpush1.msra.mxu0 0.0
      %1745 = vmatprep.subr.mxu0 0.0
      %1746 = vmatpush1.msra.mxu0 0.0
      %1747 = vmatprep.subr.mxu0 0.0
      %1748 = vmatpush1.msra.mxu0 0.0
      %1749 = vmatprep.subr.mxu0 0.0
      %1750 = vmatpush1.msra.mxu0 0.0
      %1751 = vmatprep.subr.mxu0 0.0
      %1752 = vmatpush1.msra.mxu0 0.0
      %1753 = vmatprep.subr.mxu0 0.0
      %1754 = vmatpush1.msra.mxu0 0.0
      %1755 = vmatprep.subr.mxu0 0.0
      %1756 = vmatpush1.msra.mxu0 0.0
      %1757 = vmatprep.subr.mxu0 0.0
      %1758 = vmatpush1.msra.mxu0 0.0
      %1759 = vmatprep.subr.mxu0 0.0
      %1760 = vmatpush1.msra.mxu0 0.0
      %1761 = vmatprep.subr.mxu0 0.0
      %1762 = vmatpush1.msra.mxu0 0.0
      %1763 = vmatprep.subr.mxu0 0.0
      %1764 = vmatpush1.msra.mxu0 0.0
      %1765 = vmatprep.subr.mxu0 0.0
      %1766 = vmatpush1.msra.mxu0 0.0
      %1767 = vmatprep.subr.mxu0 0.0
      %1768 = vmatpush1.msra.mxu0 0.0
      %1769 = vmatprep.subr.mxu0 0.0
      %1770 = vmatpush1.msra.mxu0 0.0
      %1771 = vmatprep.subr.mxu0 0.0
      %1772 = vmatpush1.msra.mxu0 0.0
      %1773 = vmatprep.subr.mxu0 0.0
      %1774 = vmatpush1.msra.mxu0 0.0
      %1775 = vmatprep.subr.mxu0 0.0
      %1776 = vmatpush1.msra.mxu0 0.0
      %1777 = vmatprep.subr.mxu0 0.0
      %1778 = vmatpush1.msra.mxu0 0.0
      %1779 = vmatprep.subr.mxu0 0.0
      %1780 = vmatpush1.msra.mxu0 0.0
      %1781 = vmatprep.subr.mxu0 0.0
      %1782 = vmatpush1.msra.mxu0 0.0
      %1783 = vmatprep.subr.mxu0 0.0
      %1784 = vmatpush1.msra.mxu0 0.0
      %1785 = vmatprep.subr.mxu0 0.0
      %1786 = vmatpush1.msra.mxu0 0.0
      %1787 = vmatprep.subr.mxu0 0.0
      %1788 = vmatpush1.msra.mxu0 0.0
      %1789 = vmatprep.subr.mxu0 0.0
      %1790 = vmatpush1.msra.mxu0 0.0
      %1791 = vmatprep.subr.mxu0 0.0
      %1792 = vmatpush1.msra.mxu0 0.0
      %1793 = vmatprep.subr.mxu0 0.0
      %1794 = vmatpush1.msra.mxu0 0.0
      %1795 = vmatprep.subr.mxu0 0.0
      %1796 = vmatpush1.msra.mxu0 0.0
      %1797 = vmatprep.mubr.f32.mxu0 0.0
      %1798 = vmatmul.mubr.f32.gmra.mrb[0].mxu0 %v1728
      %v1799 = vpop.f32.mrb[0].mxu0
      %v1800 = vadd.f32 %v1719, %v1799
      %v1801 = vpop.f32.mrb[0].mxu0
      %1802 = vmatprep.mubr.f32.mxu0 0.0
      %1803 = vmatmul.mubr.f32.gmra.mrb[0].mxu0 %v1731
      %v1804 = vpop.f32.mrb[0].mxu0
      %v1805 = vadd.f32 %v1720, %v1804
      %v1806 = vpop.f32.mrb[0].mxu0
      %1807 = vdwg.mxu0
      %1810 = vrot.lane.b32.xlu0 %v584, 112
      %v1811 = vpop.permute.xlu0 %1810
      %1812 = vrot.lane.b32.xlu0 %v586, 112
      %v1813 = vpop.permute.xlu0 %1812
      %v1816 = vmul.f32 %v1800, %v1811
      %v1817 = vmul.f32 %v1805, %v1813
      %v1818 = vsel %vm501, %v1816, -inf
      %1819 = vmax.xlane.f32.xlu0 %v1818
      %v1820 = vpop.xlane.xlu0 %1819
      %v1821 = vsel %vm501, %v1817, -inf
      %1822 = vmax.xlane.f32.xlu0 %v1821
      %v1823 = vpop.xlane.xlu0 %1822
      %v1824 = vsub.f32 %v1816, %v1820
      %v1825 = vsub.f32 %v1817, %v1823
      %v1826 = vmul.f32 %v1824, 1.442695
      %v1827 = vpow.pop %v1826
      %v1828 = vmul.f32 %v1825, 1.442695
      %v1829 = vpow.pop %v1828
      %v1830 = vsel %vm501, %v1827, 0.0
      %1831 = vadd.xlane.f32.xlu0 %v1830
      %v1832 = vpop.xlane.xlu0 %1831
      %v1833 = vsel %vm501, %v1829, 0.0
      %1834 = vadd.xlane.f32.xlu0 %v1833
      %v1835 = vpop.xlane.xlu0 %1834
      %v1836 = vrcp.pop %v1832
      %v1837 = vrcp.pop %v1835
      %v1838 = vmul.f32 %v1827, %v1836
      %v1839 = vmul.f32 %v1829, %v1837
      %v1840 = vmul.f32 %v1838, %v1811
      %v1841 = vmul.f32 %v1839, %v1813
      %v1843 = vsel %vm501, %v1840, 0
      %v1846 = vsel %vm501, %v1841, 0
      %v1848 = vsel %vm501, %v1722, 0
      %v1850 = vsel %vm501, %v1724, 0
      %1852 = vmatprep.subr.mxu0 0.0
      %1853 = vmatpush1.xpose.msra.mxu0 %v1848
      %1854 = vmatprep.subr.mxu0 0.0
      %1855 = vmatpush1.xpose.msra.mxu0 %v1850
      %1856 = vmatprep.subr.mxu0 0.0
      %1857 = vmatpush1.xpose.msra.mxu0 0.0
      %1858 = vmatprep.subr.mxu0 0.0
      %1859 = vmatpush1.xpose.msra.mxu0 0.0
      %1860 = vmatprep.subr.mxu0 0.0
      %1861 = vmatpush1.xpose.msra.mxu0 0.0
      %1862 = vmatprep.subr.mxu0 0.0
      %1863 = vmatpush1.xpose.msra.mxu0 0.0
      %1864 = vmatprep.subr.mxu0 0.0
      %1865 = vmatpush1.xpose.msra.mxu0 0.0
      %1866 = vmatprep.subr.mxu0 0.0
      %1867 = vmatpush1.xpose.msra.mxu0 0.0
      %1868 = vmatprep.subr.mxu0 0.0
      %1869 = vmatpush1.xpose.msra.mxu0 0.0
      %1870 = vmatprep.subr.mxu0 0.0
      %1871 = vmatpush1.xpose.msra.mxu0 0.0
      %1872 = vmatprep.subr.mxu0 0.0
      %1873 = vmatpush1.xpose.msra.mxu0 0.0
      %1874 = vmatprep.subr.mxu0 0.0
      %1875 = vmatpush1.xpose.msra.mxu0 0.0
      %1876 = vmatprep.subr.mxu0 0.0
      %1877 = vmatpush1.xpose.msra.mxu0 0.0
      %1878 = vmatprep.subr.mxu0 0.0
      %1879 = vmatpush1.xpose.msra.mxu0 0.0
      %1880 = vmatprep.subr.mxu0 0.0
      %1881 = vmatpush1.xpose.msra.mxu0 0.0
      %1882 = vmatprep.subr.mxu0 0.0
      %1883 = vmatpush1.xpose.msra.mxu0 0.0
      %1884 = vmatprep.subr.mxu0 0.0
      %1885 = vmatpush1.xpose.msra.mxu0 0.0
      %1886 = vmatprep.subr.mxu0 0.0
      %1887 = vmatpush1.xpose.msra.mxu0 0.0
      %1888 = vmatprep.subr.mxu0 0.0
      %1889 = vmatpush1.xpose.msra.mxu0 0.0
      %1890 = vmatprep.subr.mxu0 0.0
      %1891 = vmatpush1.xpose.msra.mxu0 0.0
      %1892 = vmatprep.subr.mxu0 0.0
      %1893 = vmatpush1.xpose.msra.mxu0 0.0
      %1894 = vmatprep.subr.mxu0 0.0
      %1895 = vmatpush1.xpose.msra.mxu0 0.0
      %1896 = vmatprep.subr.mxu0 0.0
      %1897 = vmatpush1.xpose.msra.mxu0 0.0
      %1898 = vmatprep.subr.mxu0 0.0
      %1899 = vmatpush1.xpose.msra.mxu0 0.0
      %1900 = vmatprep.subr.mxu0 0.0
      %1901 = vmatpush1.xpose.msra.mxu0 0.0
      %1902 = vmatprep.subr.mxu0 0.0
      %1903 = vmatpush1.xpose.msra.mxu0 0.0
      %1904 = vmatprep.subr.mxu0 0.0
      %1905 = vmatpush1.xpose.msra.mxu0 0.0
      %1906 = vmatprep.subr.mxu0 0.0
      %1907 = vmatpush1.xpose.msra.mxu0 0.0
      %1908 = vmatprep.subr.mxu0 0.0
      %1909 = vmatpush1.xpose.msra.mxu0 0.0
      %1910 = vmatprep.subr.mxu0 0.0
      %1911 = vmatpush1.xpose.msra.mxu0 0.0
      %1912 = vmatprep.subr.mxu0 0.0
      %1913 = vmatpush1.xpose.msra.mxu0 0.0
      %1914 = vmatprep.subr.mxu0 0.0
      %1915 = vmatpush1.xpose.msra.mxu0 0.0
      %1916 = vmatprep.mubr.f32.mxu0 0.0
      %1917 = vmatmul.mubr.f32.gmra.mrb[0].mxu0 %v1843
      %v1918 = vpop.f32.mrb[0].mxu0
      %v1919 = vadd.f32 0.0, %v1918
      %v1920 = vpop.f32.mrb[0].mxu0
      %1921 = vmatprep.mubr.f32.mxu0 0.0
      %1922 = vmatmul.mubr.f32.gmra.mrb[0].mxu0 %v1846
      %v1923 = vpop.f32.mrb[0].mxu0
      %v1924 = vadd.f32 0.0, %v1923
      %v1925 = vpop.f32.mrb[0].mxu0
      %1926 = vdwg.mxu0
      %v1927 = vsel %vm489, %v1919, 0.0
      %v1928 = vsel %vm490, %v1924, 0.0
      %v1929 = vmul.f32 %v1838, %v1717
      %v1930 = vmul.f32 %v1839, %v1717
      %v1931 = vmul.f32 %v1929, %v1811
      %v1932 = vmul.f32 %v1930, %v1813
      %v1934 = vsel %vm501, %v1931, 0
      %v1937 = vsel %vm501, %v1932, 0
      %v1940 = vsel %vm501, %v1512, 0
      %v1943 = vsel %vm501, %v1513, 0
      %1945 = vmatprep.subr.mxu0 0.0
      %1946 = vmatpush1.xpose.msra.mxu0 %v1940
      %1947 = vmatprep.subr.mxu0 0.0
      %1948 = vmatpush1.xpose.msra.mxu0 %v1943
      %1949 = vmatprep.subr.mxu0 0.0
      %1950 = vmatpush1.xpose.msra.mxu0 0.0
      %1951 = vmatprep.subr.mxu0 0.0
      %1952 = vmatpush1.xpose.msra.mxu0 0.0
      %1953 = vmatprep.subr.mxu0 0.0
      %1954 = vmatpush1.xpose.msra.mxu0 0.0
      %1955 = vmatprep.subr.mxu0 0.0
      %1956 = vmatpush1.xpose.msra.mxu0 0.0
      %1957 = vmatprep.subr.mxu0 0.0
      %1958 = vmatpush1.xpose.msra.mxu0 0.0
      %1959 = vmatprep.subr.mxu0 0.0
      %1960 = vmatpush1.xpose.msra.mxu0 0.0
      %1961 = vmatprep.subr.mxu0 0.0
      %1962 = vmatpush1.xpose.msra.mxu0 0.0
      %1963 = vmatprep.subr.mxu0 0.0
      %1964 = vmatpush1.xpose.msra.mxu0 0.0
      %1965 = vmatprep.subr.mxu0 0.0
      %1966 = vmatpush1.xpose.msra.mxu0 0.0
      %1967 = vmatprep.subr.mxu0 0.0
      %1968 = vmatpush1.xpose.msra.mxu0 0.0
      %1969 = vmatprep.subr.mxu0 0.0
      %1970 = vmatpush1.xpose.msra.mxu0 0.0
      %1971 = vmatprep.subr.mxu0 0.0
      %1972 = vmatpush1.xpose.msra.mxu0 0.0
      %1973 = vmatprep.subr.mxu0 0.0
      %1974 = vmatpush1.xpose.msra.mxu0 0.0
      %1975 = vmatprep.subr.mxu0 0.0
      %1976 = vmatpush1.xpose.msra.mxu0 0.0
      %1977 = vmatprep.subr.mxu0 0.0
      %1978 = vmatpush1.xpose.msra.mxu0 0.0
      %1979 = vmatprep.subr.mxu0 0.0
      %1980 = vmatpush1.xpose.msra.mxu0 0.0
      %1981 = vmatprep.subr.mxu0 0.0
      %1982 = vmatpush1.xpose.msra.mxu0 0.0
      %1983 = vmatprep.subr.mxu0 0.0
      %1984 = vmatpush1.xpose.msra.mxu0 0.0
      %1985 = vmatprep.subr.mxu0 0.0
      %1986 = vmatpush1.xpose.msra.mxu0 0.0
      %1987 = vmatprep.subr.mxu0 0.0
      %1988 = vmatpush1.xpose.msra.mxu0 0.0
      %1989 = vmatprep.subr.mxu0 0.0
      %1990 = vmatpush1.xpose.msra.mxu0 0.0
      %1991 = vmatprep.subr.mxu0 0.0
      %1992 = vmatpush1.xpose.msra.mxu0 0.0
      %1993 = vmatprep.subr.mxu0 0.0
      %1994 = vmatpush1.xpose.msra.mxu0 0.0
      %1995 = vmatprep.subr.mxu0 0.0
      %1996 = vmatpush1.xpose.msra.mxu0 0.0
      %1997 = vmatprep.subr.mxu0 0.0
      %1998 = vmatpush1.xpose.msra.mxu0 0.0
      %1999 = vmatprep.subr.mxu0 0.0
      %2000 = vmatpush1.xpose.msra.mxu0 0.0
      %2001 = vmatprep.subr.mxu0 0.0
      %2002 = vmatpush1.xpose.msra.mxu0 0.0
      %2003 = vmatprep.subr.mxu0 0.0
      %2004 = vmatpush1.xpose.msra.mxu0 0.0
      %2005 = vmatprep.subr.mxu0 0.0
      %2006 = vmatpush1.xpose.msra.mxu0 0.0
      %2007 = vmatprep.subr.mxu0 0.0
      %2008 = vmatpush1.xpose.msra.mxu0 0.0
      %2009 = vmatprep.mubr.f32.mxu0 0.0
      %2010 = vmatmul.mubr.f32.gmra.mrb[0].mxu0 %v1934
      %v2011 = vpop.f32.mrb[0].mxu0
      %v2012 = vadd.f32 0.0, %v2011
      %v2013 = vpop.f32.mrb[0].mxu0
      %2014 = vmatprep.mubr.f32.mxu0 0.0
      %2015 = vmatmul.mubr.f32.gmra.mrb[0].mxu0 %v1937
      %v2016 = vpop.f32.mrb[0].mxu0
      %v2017 = vadd.f32 0.0, %v2016
      %v2018 = vpop.f32.mrb[0].mxu0
      %2019 = vdwg.mxu0
      %v2021 = vsel %vm501, %v1927, 0
      %v2024 = vsel %vm501, %v1928, 0
      %2026 = vmatprep.subr.mxu0 0.0
      %2027 = vmatpush1.msra.mxu0 %v1450
      %2028 = vmatprep.subr.mxu0 0.0
      %2029 = vmatpush1.msra.mxu0 %v1451
      %2030 = vmatprep.subr.mxu0 0.0
      %2031 = vmatpush1.msra.mxu0 0.0
      %2032 = vmatprep.subr.mxu0 0.0
      %2033 = vmatpush1.msra.mxu0 0.0
      %2034 = vmatprep.subr.mxu0 0.0
      %2035 = vmatpush1.msra.mxu0 0.0
      %2036 = vmatprep.subr.mxu0 0.0
      %2037 = vmatpush1.msra.mxu0 0.0
      %2038 = vmatprep.subr.mxu0 0.0
      %2039 = vmatpush1.msra.mxu0 0.0
      %2040 = vmatprep.subr.mxu0 0.0
      %2041 = vmatpush1.msra.mxu0 0.0
      %2042 = vmatprep.subr.mxu0 0.0
      %2043 = vmatpush1.msra.mxu0 0.0
      %2044 = vmatprep.subr.mxu0 0.0
      %2045 = vmatpush1.msra.mxu0 0.0
      %2046 = vmatprep.subr.mxu0 0.0
      %2047 = vmatpush1.msra.mxu0 0.0
      %2048 = vmatprep.subr.mxu0 0.0
      %2049 = vmatpush1.msra.mxu0 0.0
      %2050 = vmatprep.subr.mxu0 0.0
      %2051 = vmatpush1.msra.mxu0 0.0
      %2052 = vmatprep.subr.mxu0 0.0
      %2053 = vmatpush1.msra.mxu0 0.0
      %2054 = vmatprep.subr.mxu0 0.0
      %2055 = vmatpush1.msra.mxu0 0.0
      %2056 = vmatprep.subr.mxu0 0.0
      %2057 = vmatpush1.msra.mxu0 0.0
      %2058 = vmatprep.subr.mxu0 0.0
      %2059 = vmatpush1.msra.mxu0 0.0
      %2060 = vmatprep.subr.mxu0 0.0
      %2061 = vmatpush1.msra.mxu0 0.0
      %2062 = vmatprep.subr.mxu0 0.0
      %2063 = vmatpush1.msra.mxu0 0.0
      %2064 = vmatprep.subr.mxu0 0.0
      %2065 = vmatpush1.msra.mxu0 0.0
      %2066 = vmatprep.subr.mxu0 0.0
      %2067 = vmatpush1.msra.mxu0 0.0
      %2068 = vmatprep.subr.mxu0 0.0
      %2069 = vmatpush1.msra.mxu0 0.0
      %2070 = vmatprep.subr.mxu0 0.0
      %2071 = vmatpush1.msra.mxu0 0.0
      %2072 = vmatprep.subr.mxu0 0.0
      %2073 = vmatpush1.msra.mxu0 0.0
      %2074 = vmatprep.subr.mxu0 0.0
      %2075 = vmatpush1.msra.mxu0 0.0
      %2076 = vmatprep.subr.mxu0 0.0
      %2077 = vmatpush1.msra.mxu0 0.0
      %2078 = vmatprep.subr.mxu0 0.0
      %2079 = vmatpush1.msra.mxu0 0.0
      %2080 = vmatprep.subr.mxu0 0.0
      %2081 = vmatpush1.msra.mxu0 0.0
      %2082 = vmatprep.subr.mxu0 0.0
      %2083 = vmatpush1.msra.mxu0 0.0
      %2084 = vmatprep.subr.mxu0 0.0
      %2085 = vmatpush1.msra.mxu0 0.0
      %2086 = vmatprep.subr.mxu0 0.0
      %2087 = vmatpush1.msra.mxu0 0.0
      %2088 = vmatprep.subr.mxu0 0.0
      %2089 = vmatpush1.msra.mxu0 0.0
      %2090 = vmatprep.mubr.f32.mxu0 0.0
      %2091 = vmatmul.mubr.f32.gmra.mrb[0].mxu0 %v2021
      %v2092 = vpop.f32.mrb[0].mxu0
      %v2093 = vadd.f32 %v2012, %v2092
      %v2094 = vpop.f32.mrb[0].mxu0
      %2095 = vmatprep.mubr.f32.mxu0 0.0
      %2096 = vmatmul.mubr.f32.gmra.mrb[0].mxu0 %v2024
      %v2097 = vpop.f32.mrb[0].mxu0
      %v2098 = vadd.f32 %v2017, %v2097
      %v2099 = vpop.f32.mrb[0].mxu0
      %2100 = vdwg.mxu0
      %v2101 = vmul.f32 %v1510, %v1717
      %v2102 = vmul.f32 %v1511, %v1717
      %v2104 = vsel %vm501, %v1538, 0
      %v2107 = vsel %vm501, %v1539, 0
      %2109 = vmatprep.subr.mxu0 0.0
      %2110 = vmatpush1.msra.mxu0 %v1722
      %2111 = vmatprep.subr.mxu0 0.0
      %2112 = vmatpush1.msra.mxu0 %v1724
      %2113 = vmatprep.subr.mxu0 0.0
      %2114 = vmatpush1.msra.mxu0 0.0
      %2115 = vmatprep.subr.mxu0 0.0
      %2116 = vmatpush1.msra.mxu0 0.0
      %2117 = vmatprep.subr.mxu0 0.0
      %2118 = vmatpush1.msra.mxu0 0.0
      %2119 = vmatprep.subr.mxu0 0.0
      %2120 = vmatpush1.msra.mxu0 0.0
      %2121 = vmatprep.subr.mxu0 0.0
      %2122 = vmatpush1.msra.mxu0 0.0
      %2123 = vmatprep.subr.mxu0 0.0
      %2124 = vmatpush1.msra.mxu0 0.0
      %2125 = vmatprep.subr.mxu0 0.0
      %2126 = vmatpush1.msra.mxu0 0.0
      %2127 = vmatprep.subr.mxu0 0.0
      %2128 = vmatpush1.msra.mxu0 0.0
      %2129 = vmatprep.subr.mxu0 0.0
      %2130 = vmatpush1.msra.mxu0 0.0
      %2131 = vmatprep.subr.mxu0 0.0
      %2132 = vmatpush1.msra.mxu0 0.0
      %2133 = vmatprep.subr.mxu0 0.0
      %2134 = vmatpush1.msra.mxu0 0.0
      %2135 = vmatprep.subr.mxu0 0.0
      %2136 = vmatpush1.msra.mxu0 0.0
      %2137 = vmatprep.subr.mxu0 0.0
      %2138 = vmatpush1.msra.mxu0 0.0
      %2139 = vmatprep.subr.mxu0 0.0
      %2140 = vmatpush1.msra.mxu0 0.0
      %2141 = vmatprep.subr.mxu0 0.0
      %2142 = vmatpush1.msra.mxu0 0.0
      %2143 = vmatprep.subr.mxu0 0.0
      %2144 = vmatpush1.msra.mxu0 0.0
      %2145 = vmatprep.subr.mxu0 0.0
      %2146 = vmatpush1.msra.mxu0 0.0
      %2147 = vmatprep.subr.mxu0 0.0
      %2148 = vmatpush1.msra.mxu0 0.0
      %2149 = vmatprep.subr.mxu0 0.0
      %2150 = vmatpush1.msra.mxu0 0.0
      %2151 = vmatprep.subr.mxu0 0.0
      %2152 = vmatpush1.msra.mxu0 0.0
      %2153 = vmatprep.subr.mxu0 0.0
      %2154 = vmatpush1.msra.mxu0 0.0
      %2155 = vmatprep.subr.mxu0 0.0
      %2156 = vmatpush1.msra.mxu0 0.0
      %2157 = vmatprep.subr.mxu0 0.0
      %2158 = vmatpush1.msra.mxu0 0.0
      %2159 = vmatprep.subr.mxu0 0.0
      %2160 = vmatpush1.msra.mxu0 0.0
      %2161 = vmatprep.subr.mxu0 0.0
      %2162 = vmatpush1.msra.mxu0 0.0
      %2163 = vmatprep.subr.mxu0 0.0
      %2164 = vmatpush1.msra.mxu0 0.0
      %2165 = vmatprep.subr.mxu0 0.0
      %2166 = vmatpush1.msra.mxu0 0.0
      %2167 = vmatprep.subr.mxu0 0.0
      %2168 = vmatpush1.msra.mxu0 0.0
      %2169 = vmatprep.subr.mxu0 0.0
      %2170 = vmatpush1.msra.mxu0 0.0
      %2171 = vmatprep.subr.mxu0 0.0
      %2172 = vmatpush1.msra.mxu0 0.0
      %2173 = vmatprep.mubr.f32.mxu0 0.0
      %2174 = vmatmul.mubr.f32.gmra.mrb[0].mxu0 %v2104
      %v2175 = vpop.f32.mrb[0].mxu0
      %v2176 = vadd.f32 0.0, %v2175
      %v2177 = vpop.f32.mrb[0].mxu0
      %2178 = vmatprep.mubr.f32.mxu0 0.0
      %2179 = vmatmul.mubr.f32.gmra.mrb[0].mxu0 %v2107
      %v2180 = vpop.f32.mrb[0].mxu0
      %v2181 = vadd.f32 0.0, %v2180
      %v2182 = vpop.f32.mrb[0].mxu0
      %2183 = vdwg.mxu0
      %v2184 = vadd.f32 %v2101, %v2176
      %v2185 = vadd.f32 %v2102, %v2181
      %2187 = vrot.lane.b32.xlu0 %v1316, 112
      %v2188 = vpop.permute.xlu0 %2187
      %v2190 = vmul.f32 %v2184, %v2188
      %v2191 = vmul.f32 %v2185, %v2188
      %2192 = vst.msk [vmem:[#allocation3 + $0x10] sm:$0xff] %vm501, %v2190
      %2193 = vst.msk [vmem:[#allocation3 + $0x18] sm:$0xff] %vm501, %v2191
      %v2194 = vmul.f32 %v1512, %v1717
      %v2195 = vmul.f32 %v1513, %v1717
      %2196 = vxpose.xlu0.b32.start [1/16] %v1450, 128
      %2197 = vxpose.xlu0.b32.cont [2/16] %v1451, 128
      %2198 = vxpose.xlu0.b32.cont [3/16] 0.0, 128
      %2199 = vxpose.xlu0.b32.cont [4/16] 0.0, 128
      %2200 = vxpose.xlu0.b32.cont [5/16] 0.0, 128
      %2201 = vxpose.xlu0.b32.cont [6/16] 0.0, 128
      %2202 = vxpose.xlu0.b32.cont [7/16] 0.0, 128
      %2203 = vxpose.xlu0.b32.cont [8/16] 0.0, 128
      %2204 = vxpose.xlu0.b32.cont [9/16] 0.0, 128
      %2205 = vxpose.xlu0.b32.cont [10/16] 0.0, 128
      %2206 = vxpose.xlu0.b32.cont [11/16] 0.0, 128
      %2207 = vxpose.xlu0.b32.cont [12/16] 0.0, 128
      %2208 = vxpose.xlu0.b32.cont [13/16] 0.0, 128
      %2209 = vxpose.xlu0.b32.cont [14/16] 0.0, 128
      %2210 = vxpose.xlu0.b32.cont [15/16] 0.0, 128
      %2211 = vxpose.xlu0.b32.end [16/16] 0.0, 128
      %v2212 = vpop.trf.xlu0
      %v2213 = vpop.trf.xlu0
      %v2214 = vpop.trf.xlu0
      %v2215 = vpop.trf.xlu0
      %v2216 = vpop.trf.xlu0
      %v2217 = vpop.trf.xlu0
      %v2218 = vpop.trf.xlu0
      %v2219 = vpop.trf.xlu0
      %v2220 = vpop.trf.xlu0
      %v2221 = vpop.trf.xlu0
      %v2222 = vpop.trf.xlu0
      %v2223 = vpop.trf.xlu0
      %v2224 = vpop.trf.xlu0
      %v2225 = vpop.trf.xlu0
      %v2226 = vpop.trf.xlu0
      %v2227 = vpop.trf.xlu0
      %v2229 = vsel %vm501, %v2212, 0
      %v2232 = vsel %vm501, %v2213, 0
      %2234 = vmatprep.subr.mxu0 0.0
      %2235 = vmatpush1.msra.mxu0 %v1722
      %2236 = vmatprep.subr.mxu0 0.0
      %2237 = vmatpush1.msra.mxu0 %v1724
      %2238 = vmatprep.subr.mxu0 0.0
      %2239 = vmatpush1.msra.mxu0 0.0
      %2240 = vmatprep.subr.mxu0 0.0
      %2241 = vmatpush1.msra.mxu0 0.0
      %2242 = vmatprep.subr.mxu0 0.0
      %2243 = vmatpush1.msra.mxu0 0.0
      %2244 = vmatprep.subr.mxu0 0.0
      %2245 = vmatpush1.msra.mxu0 0.0
      %2246 = vmatprep.subr.mxu0 0.0
      %2247 = vmatpush1.msra.mxu0 0.0
      %2248 = vmatprep.subr.mxu0 0.0
      %2249 = vmatpush1.msra.mxu0 0.0
      %2250 = vmatprep.subr.mxu0 0.0
      %2251 = vmatpush1.msra.mxu0 0.0
      %2252 = vmatprep.subr.mxu0 0.0
      %2253 = vmatpush1.msra.mxu0 0.0
      %2254 = vmatprep.subr.mxu0 0.0
      %2255 = vmatpush1.msra.mxu0 0.0
      %2256 = vmatprep.subr.mxu0 0.0
      %2257 = vmatpush1.msra.mxu0 0.0
      %2258 = vmatprep.subr.mxu0 0.0
      %2259 = vmatpush1.msra.mxu0 0.0
      %2260 = vmatprep.subr.mxu0 0.0
      %2261 = vmatpush1.msra.mxu0 0.0
      %2262 = vmatprep.subr.mxu0 0.0
      %2263 = vmatpush1.msra.mxu0 0.0
      %2264 = vmatprep.subr.mxu0 0.0
      %2265 = vmatpush1.msra.mxu0 0.0
      %2266 = vmatprep.subr.mxu0 0.0
      %2267 = vmatpush1.msra.mxu0 0.0
      %2268 = vmatprep.subr.mxu0 0.0
      %2269 = vmatpush1.msra.mxu0 0.0
      %2270 = vmatprep.subr.mxu0 0.0
      %2271 = vmatpush1.msra.mxu0 0.0
      %2272 = vmatprep.subr.mxu0 0.0
      %2273 = vmatpush1.msra.mxu0 0.0
      %2274 = vmatprep.subr.mxu0 0.0
      %2275 = vmatpush1.msra.mxu0 0.0
      %2276 = vmatprep.subr.mxu0 0.0
      %2277 = vmatpush1.msra.mxu0 0.0
      %2278 = vmatprep.subr.mxu0 0.0
      %2279 = vmatpush1.msra.mxu0 0.0
      %2280 = vmatprep.subr.mxu0 0.0
      %2281 = vmatpush1.msra.mxu0 0.0
      %2282 = vmatprep.subr.mxu0 0.0
      %2283 = vmatpush1.msra.mxu0 0.0
      %2284 = vmatprep.subr.mxu0 0.0
      %2285 = vmatpush1.msra.mxu0 0.0
      %2286 = vmatprep.subr.mxu0 0.0
      %2287 = vmatpush1.msra.mxu0 0.0
      %2288 = vmatprep.subr.mxu0 0.0
      %2289 = vmatpush1.msra.mxu0 0.0
      %2290 = vmatprep.subr.mxu0 0.0
      %2291 = vmatpush1.msra.mxu0 0.0
      %2292 = vmatprep.subr.mxu0 0.0
      %2293 = vmatpush1.msra.mxu0 0.0
      %2294 = vmatprep.subr.mxu0 0.0
      %2295 = vmatpush1.msra.mxu0 0.0
      %2296 = vmatprep.subr.mxu0 0.0
      %2297 = vmatpush1.msra.mxu0 0.0
      %2298 = vmatprep.mubr.f32.mxu0 0.0
      %2299 = vmatmul.mubr.f32.gmra.mrb[0].mxu0 %v2229
      %v2300 = vpop.f32.mrb[0].mxu0
      %v2301 = vadd.f32 0.0, %v2300
      %v2302 = vpop.f32.mrb[0].mxu0
      %2303 = vmatprep.mubr.f32.mxu0 0.0
      %2304 = vmatmul.mubr.f32.gmra.mrb[0].mxu0 %v2232
      %v2305 = vpop.f32.mrb[0].mxu0
      %v2306 = vadd.f32 0.0, %v2305
      %v2307 = vpop.f32.mrb[0].mxu0
      %2308 = vdwg.mxu0
      %v2309 = vadd.f32 %v2194, %v2301
      %v2310 = vadd.f32 %v2195, %v2306
      %v2311 = vmul.f32 %v2309, %v2188
      %v2312 = vmul.f32 %v2310, %v2188
      %2313 = vst.msk [vmem:[#allocation4 + $0x10] sm:$0xff] %vm501, %v2311
      %2314 = vst.msk [vmem:[#allocation4 + $0x18] sm:$0xff] %vm501, %v2312
      %2315 = vrot.lane.b32.xlu0 %v441, 96
      %v2316 = vpop.permute.xlu0 %2315
      %2317 = vrot.lane.b32.xlu0 %v442, 96
      %v2318 = vpop.permute.xlu0 %2317
      %v2319 = vrot.slane %v2316, 4
      %v2320 = vrot.slane %v2318, 4
      %v2323 = vunpack.c.l.bf16 %v2319
      %v2324 = vunpack.c.l.bf16 %v2320
      %2325 = vrot.lane.b32.xlu0 %v449, 32
      %v2326 = vpop.permute.xlu0 %2325
      %2327 = vrot.lane.b32.xlu0 %v450, 32
      %v2328 = vpop.permute.xlu0 %2327
      %v2331 = vmul.f32 %v587, %v2326
      %v2332 = vmul.f32 %v588, %v2328
      %2333 = vrot.lane.b32.xlu0 %v587, 88
      %v2334 = vpop.permute.xlu0 %2333
      %2335 = vrot.lane.b32.xlu0 %v588, 88
      %v2336 = vpop.permute.xlu0 %2335
      %v2339 = vsel %vm613, %v2334, %v1463
      %v2340 = vsel %vm613, %v2336, %v1465
      %v2341 = vmul.f32 %v2339, %v451
      %v2342 = vmul.f32 %v2340, %v452
      %2345 = vrot.lane.b32.xlu0 %v2341, 32
      %v2346 = vpop.permute.xlu0 %2345
      %2347 = vrot.lane.b32.xlu0 %v2342, 32
      %v2348 = vpop.permute.xlu0 %2347
      %v2351 = vadd.f32 %v2331, %v2346
      %v2352 = vadd.f32 %v2332, %v2348
      %2353 = vrot.lane.b32.xlu0 %v453, 96
      %v2354 = vpop.permute.xlu0 %2353
      %2355 = vrot.lane.b32.xlu0 %v454, 96
      %v2356 = vpop.permute.xlu0 %2355
      %v2359 = vmul.f32 %v587, %v2354
      %v2360 = vmul.f32 %v588, %v2356
      %2361 = vrot.lane.b32.xlu0 %v587, 24
      %v2362 = vpop.permute.xlu0 %2361
      %2363 = vrot.lane.b32.xlu0 %v588, 24
      %v2364 = vpop.permute.xlu0 %2363
      %v2367 = vsel %vm613, %v2362, %v1491
      %v2368 = vsel %vm613, %v2364, %v1493
      %v2369 = vmul.f32 %v2367, %v455
      %v2370 = vmul.f32 %v2368, %v456
      %2373 = vrot.lane.b32.xlu0 %v2369, 96
      %v2374 = vpop.permute.xlu0 %2373
      %2375 = vrot.lane.b32.xlu0 %v2370, 96
      %v2376 = vpop.permute.xlu0 %2375
      %v2379 = vadd.f32 %v2359, %v2374
      %v2380 = vadd.f32 %v2360, %v2376
      %v2381 = vld [vmem:[#allocation3 + $0x20] sm:$0xff]
      %v2382 = vld [vmem:[#allocation3 + $0x28] sm:$0xff]
      %v2383 = vld [vmem:[#allocation4 + $0x20] sm:$0xff]
      %v2384 = vld [vmem:[#allocation4 + $0x28] sm:$0xff]
      %2387 = vrot.lane.b32.xlu0 %v2379, 32
      %v2388 = vpop.permute.xlu0 %2387
      %2389 = vrot.lane.b32.xlu0 %v2380, 32
      %v2390 = vpop.permute.xlu0 %2389
      %2393 = vxpose.xlu0.b32.start [1/16] %v2388, 128
      %2394 = vxpose.xlu0.b32.cont [2/16] %v2390, 128
      %2395 = vxpose.xlu0.b32.cont [3/16] 0.0, 128
      %2396 = vxpose.xlu0.b32.cont [4/16] 0.0, 128
      %2397 = vxpose.xlu0.b32.cont [5/16] 0.0, 128
      %2398 = vxpose.xlu0.b32.cont [6/16] 0.0, 128
      %2399 = vxpose.xlu0.b32.cont [7/16] 0.0, 128
      %2400 = vxpose.xlu0.b32.cont [8/16] 0.0, 128
      %2401 = vxpose.xlu0.b32.cont [9/16] 0.0, 128
      %2402 = vxpose.xlu0.b32.cont [10/16] 0.0, 128
      %2403 = vxpose.xlu0.b32.cont [11/16] 0.0, 128
      %2404 = vxpose.xlu0.b32.cont [12/16] 0.0, 128
      %2405 = vxpose.xlu0.b32.cont [13/16] 0.0, 128
      %2406 = vxpose.xlu0.b32.cont [14/16] 0.0, 128
      %2407 = vxpose.xlu0.b32.cont [15/16] 0.0, 128
      %2408 = vxpose.xlu0.b32.end [16/16] 0.0, 128
      %v2409 = vpop.trf.xlu0
      %v2410 = vpop.trf.xlu0
      %v2411 = vpop.trf.xlu0
      %v2412 = vpop.trf.xlu0
      %v2413 = vpop.trf.xlu0
      %v2414 = vpop.trf.xlu0
      %v2415 = vpop.trf.xlu0
      %v2416 = vpop.trf.xlu0
      %v2417 = vpop.trf.xlu0
      %v2418 = vpop.trf.xlu0
      %v2419 = vpop.trf.xlu0
      %v2420 = vpop.trf.xlu0
      %v2421 = vpop.trf.xlu0
      %v2422 = vpop.trf.xlu0
      %v2423 = vpop.trf.xlu0
      %v2424 = vpop.trf.xlu0
      %2427 = vrot.lane.b32.xlu0 %v2351, 96
      %v2428 = vpop.permute.xlu0 %2427
      %2429 = vrot.lane.b32.xlu0 %v2352, 96
      %v2430 = vpop.permute.xlu0 %2429
      %v2431 = vsel %vm501, %v2428, 0
      %v2433 = vsel %vm501, %v2430, 0
      %2435 = vmatprep.subr.mxu0 0.0
      %2436 = vmatpush1.msra.mxu0 %v2409
      %2437 = vmatprep.subr.mxu0 0.0
      %2438 = vmatpush1.msra.mxu0 %v2410
      %2439 = vmatprep.subr.mxu0 0.0
      %2440 = vmatpush1.msra.mxu0 0.0
      %2441 = vmatprep.subr.mxu0 0.0
      %2442 = vmatpush1.msra.mxu0 0.0
      %2443 = vmatprep.subr.mxu0 0.0
      %2444 = vmatpush1.msra.mxu0 0.0
      %2445 = vmatprep.subr.mxu0 0.0
      %2446 = vmatpush1.msra.mxu0 0.0
      %2447 = vmatprep.subr.mxu0 0.0
      %2448 = vmatpush1.msra.mxu0 0.0
      %2449 = vmatprep.subr.mxu0 0.0
      %2450 = vmatpush1.msra.mxu0 0.0
      %2451 = vmatprep.subr.mxu0 0.0
      %2452 = vmatpush1.msra.mxu0 0.0
      %2453 = vmatprep.subr.mxu0 0.0
      %2454 = vmatpush1.msra.mxu0 0.0
      %2455 = vmatprep.subr.mxu0 0.0
      %2456 = vmatpush1.msra.mxu0 0.0
      %2457 = vmatprep.subr.mxu0 0.0
      %2458 = vmatpush1.msra.mxu0 0.0
      %2459 = vmatprep.subr.mxu0 0.0
      %2460 = vmatpush1.msra.mxu0 0.0
      %2461 = vmatprep.subr.mxu0 0.0
      %2462 = vmatpush1.msra.mxu0 0.0
      %2463 = vmatprep.subr.mxu0 0.0
      %2464 = vmatpush1.msra.mxu0 0.0
      %2465 = vmatprep.subr.mxu0 0.0
      %2466 = vmatpush1.msra.mxu0 0.0
      %2467 = vmatprep.subr.mxu0 0.0
      %2468 = vmatpush1.msra.mxu0 0.0
      %2469 = vmatprep.subr.mxu0 0.0
      %2470 = vmatpush1.msra.mxu0 0.0
      %2471 = vmatprep.subr.mxu0 0.0
      %2472 = vmatpush1.msra.mxu0 0.0
      %2473 = vmatprep.subr.mxu0 0.0
      %2474 = vmatpush1.msra.mxu0 0.0
      %2475 = vmatprep.subr.mxu0 0.0
      %2476 = vmatpush1.msra.mxu0 0.0
      %2477 = vmatprep.subr.mxu0 0.0
      %2478 = vmatpush1.msra.mxu0 0.0
      %2479 = vmatprep.subr.mxu0 0.0
      %2480 = vmatpush1.msra.mxu0 0.0
      %2481 = vmatprep.subr.mxu0 0.0
      %2482 = vmatpush1.msra.mxu0 0.0
      %2483 = vmatprep.subr.mxu0 0.0
      %2484 = vmatpush1.msra.mxu0 0.0
      %2485 = vmatprep.subr.mxu0 0.0
      %2486 = vmatpush1.msra.mxu0 0.0
      %2487 = vmatprep.subr.mxu0 0.0
      %2488 = vmatpush1.msra.mxu0 0.0
      %2489 = vmatprep.subr.mxu0 0.0
      %2490 = vmatpush1.msra.mxu0 0.0
      %2491 = vmatprep.subr.mxu0 0.0
      %2492 = vmatpush1.msra.mxu0 0.0
      %2493 = vmatprep.subr.mxu0 0.0
      %2494 = vmatpush1.msra.mxu0 0.0
      %2495 = vmatprep.subr.mxu0 0.0
      %2496 = vmatpush1.msra.mxu0 0.0
      %2497 = vmatprep.subr.mxu0 0.0
      %2498 = vmatpush1.msra.mxu0 0.0
      %2499 = vmatprep.mubr.f32.mxu0 0.0
      %2500 = vmatmul.mubr.f32.gmra.mrb[0].mxu0 %v2431
      %v2501 = vpop.f32.mrb[0].mxu0
      %v2502 = vadd.f32 0.0, %v2501
      %v2503 = vpop.f32.mrb[0].mxu0
      %2504 = vmatprep.mubr.f32.mxu0 0.0
      %2505 = vmatmul.mubr.f32.gmra.mrb[0].mxu0 %v2433
      %v2506 = vpop.f32.mrb[0].mxu0
      %v2507 = vadd.f32 0.0, %v2506
      %v2508 = vpop.f32.mrb[0].mxu0
      %2509 = vdwg.mxu0
      %v2510 = vsel %vm489, %v2502, 0.0
      %v2511 = vsel %vm490, %v2507, 0.0
      %2512 = vmatprep.subr.mxu0 0.0
      %2513 = vmatpush1.msra.mxu0 %v2381
      %2514 = vmatprep.subr.mxu0 0.0
      %2515 = vmatpush1.msra.mxu0 %v2382
      %2516 = vmatprep.subr.mxu0 0.0
      %2517 = vmatpush1.msra.mxu0 0.0
      %2518 = vmatprep.subr.mxu0 0.0
      %2519 = vmatpush1.msra.mxu0 0.0
      %2520 = vmatprep.subr.mxu0 0.0
      %2521 = vmatpush1.msra.mxu0 0.0
      %2522 = vmatprep.subr.mxu0 0.0
      %2523 = vmatpush1.msra.mxu0 0.0
      %2524 = vmatprep.subr.mxu0 0.0
      %2525 = vmatpush1.msra.mxu0 0.0
      %2526 = vmatprep.subr.mxu0 0.0
      %2527 = vmatpush1.msra.mxu0 0.0
      %2528 = vmatprep.subr.mxu0 0.0
      %2529 = vmatpush1.msra.mxu0 0.0
      %2530 = vmatprep.subr.mxu0 0.0
      %2531 = vmatpush1.msra.mxu0 0.0
      %2532 = vmatprep.subr.mxu0 0.0
      %2533 = vmatpush1.msra.mxu0 0.0
      %2534 = vmatprep.subr.mxu0 0.0
      %2535 = vmatpush1.msra.mxu0 0.0
      %2536 = vmatprep.subr.mxu0 0.0
      %2537 = vmatpush1.msra.mxu0 0.0
      %2538 = vmatprep.subr.mxu0 0.0
      %2539 = vmatpush1.msra.mxu0 0.0
      %2540 = vmatprep.subr.mxu0 0.0
      %2541 = vmatpush1.msra.mxu0 0.0
      %2542 = vmatprep.subr.mxu0 0.0
      %2543 = vmatpush1.msra.mxu0 0.0
      %2544 = vmatprep.subr.mxu0 0.0
      %2545 = vmatpush1.msra.mxu0 0.0
      %2546 = vmatprep.subr.mxu0 0.0
      %2547 = vmatpush1.msra.mxu0 0.0
      %2548 = vmatprep.subr.mxu0 0.0
      %2549 = vmatpush1.msra.mxu0 0.0
      %2550 = vmatprep.subr.mxu0 0.0
      %2551 = vmatpush1.msra.mxu0 0.0
      %2552 = vmatprep.subr.mxu0 0.0
      %2553 = vmatpush1.msra.mxu0 0.0
      %2554 = vmatprep.subr.mxu0 0.0
      %2555 = vmatpush1.msra.mxu0 0.0
      %2556 = vmatprep.subr.mxu0 0.0
      %2557 = vmatpush1.msra.mxu0 0.0
      %2558 = vmatprep.subr.mxu0 0.0
      %2559 = vmatpush1.msra.mxu0 0.0
      %2560 = vmatprep.subr.mxu0 0.0
      %2561 = vmatpush1.msra.mxu0 0.0
      %2562 = vmatprep.subr.mxu0 0.0
      %2563 = vmatpush1.msra.mxu0 0.0
      %2564 = vmatprep.subr.mxu0 0.0
      %2565 = vmatpush1.msra.mxu0 0.0
      %2566 = vmatprep.subr.mxu0 0.0
      %2567 = vmatpush1.msra.mxu0 0.0
      %2568 = vmatprep.subr.mxu0 0.0
      %2569 = vmatpush1.msra.mxu0 0.0
      %2570 = vmatprep.subr.mxu0 0.0
      %2571 = vmatpush1.msra.mxu0 0.0
      %2572 = vmatprep.subr.mxu0 0.0
      %2573 = vmatpush1.msra.mxu0 0.0
      %2574 = vmatprep.subr.mxu0 0.0
      %2575 = vmatpush1.msra.mxu0 0.0
      %2576 = vmatprep.mubr.f32.mxu0 0.0
      %2577 = vmatmul.mubr.f32.gmra.mrb[0].mxu0 %v2431
      %v2578 = vpop.f32.mrb[0].mxu0
      %v2579 = vadd.f32 0.0, %v2578
      %v2580 = vpop.f32.mrb[0].mxu0
      %2581 = vmatprep.mubr.f32.mxu0 0.0
      %2582 = vmatmul.mubr.f32.gmra.mrb[0].mxu0 %v2433
      %v2583 = vpop.f32.mrb[0].mxu0
      %v2584 = vadd.f32 0.0, %v2583
      %v2585 = vpop.f32.mrb[0].mxu0
      %2586 = vdwg.mxu0
      %2587 = vrot.lane.b32.xlu0 %v499, 96
      %v2588 = vpop.permute.xlu0 %2587
      %v2590 = vmul.f32 %v2579, %v2588
      %v2591 = vmul.f32 %v2584, %v2588
      %2592 = vrot.lane.b32.xlu0 %v478, 96
      %v2593 = vpop.permute.xlu0 %2592
      %2594 = vrot.lane.b32.xlu0 %v480, 96
      %v2595 = vpop.permute.xlu0 %2594
      %v2599 = vsel %vm501, %v2510, 0
      %v2602 = vsel %vm501, %v2511, 0
      %2604 = vmatprep.subr.mxu0 0.0
      %2605 = vmatpush1.msra.mxu0 %v2593
      %2606 = vmatprep.subr.mxu0 0.0
      %2607 = vmatpush1.msra.mxu0 %v2595
      %2608 = vmatprep.subr.mxu0 0.0
      %2609 = vmatpush1.msra.mxu0 0.0
      %2610 = vmatprep.subr.mxu0 0.0
      %2611 = vmatpush1.msra.mxu0 0.0
      %2612 = vmatprep.subr.mxu0 0.0
      %2613 = vmatpush1.msra.mxu0 0.0
      %2614 = vmatprep.subr.mxu0 0.0
      %2615 = vmatpush1.msra.mxu0 0.0
      %2616 = vmatprep.subr.mxu0 0.0
      %2617 = vmatpush1.msra.mxu0 0.0
      %2618 = vmatprep.subr.mxu0 0.0
      %2619 = vmatpush1.msra.mxu0 0.0
      %2620 = vmatprep.subr.mxu0 0.0
      %2621 = vmatpush1.msra.mxu0 0.0
      %2622 = vmatprep.subr.mxu0 0.0
      %2623 = vmatpush1.msra.mxu0 0.0
      %2624 = vmatprep.subr.mxu0 0.0
      %2625 = vmatpush1.msra.mxu0 0.0
      %2626 = vmatprep.subr.mxu0 0.0
      %2627 = vmatpush1.msra.mxu0 0.0
      %2628 = vmatprep.subr.mxu0 0.0
      %2629 = vmatpush1.msra.mxu0 0.0
      %2630 = vmatprep.subr.mxu0 0.0
      %2631 = vmatpush1.msra.mxu0 0.0
      %2632 = vmatprep.subr.mxu0 0.0
      %2633 = vmatpush1.msra.mxu0 0.0
      %2634 = vmatprep.subr.mxu0 0.0
      %2635 = vmatpush1.msra.mxu0 0.0
      %2636 = vmatprep.subr.mxu0 0.0
      %2637 = vmatpush1.msra.mxu0 0.0
      %2638 = vmatprep.subr.mxu0 0.0
      %2639 = vmatpush1.msra.mxu0 0.0
      %2640 = vmatprep.subr.mxu0 0.0
      %2641 = vmatpush1.msra.mxu0 0.0
      %2642 = vmatprep.subr.mxu0 0.0
      %2643 = vmatpush1.msra.mxu0 0.0
      %2644 = vmatprep.subr.mxu0 0.0
      %2645 = vmatpush1.msra.mxu0 0.0
      %2646 = vmatprep.subr.mxu0 0.0
      %2647 = vmatpush1.msra.mxu0 0.0
      %2648 = vmatprep.subr.mxu0 0.0
      %2649 = vmatpush1.msra.mxu0 0.0
      %2650 = vmatprep.subr.mxu0 0.0
      %2651 = vmatpush1.msra.mxu0 0.0
      %2652 = vmatprep.subr.mxu0 0.0
      %2653 = vmatpush1.msra.mxu0 0.0
      %2654 = vmatprep.subr.mxu0 0.0
      %2655 = vmatpush1.msra.mxu0 0.0
      %2656 = vmatprep.subr.mxu0 0.0
      %2657 = vmatpush1.msra.mxu0 0.0
      %2658 = vmatprep.subr.mxu0 0.0
      %2659 = vmatpush1.msra.mxu0 0.0
      %2660 = vmatprep.subr.mxu0 0.0
      %2661 = vmatpush1.msra.mxu0 0.0
      %2662 = vmatprep.subr.mxu0 0.0
      %2663 = vmatpush1.msra.mxu0 0.0
      %2664 = vmatprep.subr.mxu0 0.0
      %2665 = vmatpush1.msra.mxu0 0.0
      %2666 = vmatprep.subr.mxu0 0.0
      %2667 = vmatpush1.msra.mxu0 0.0
      %2668 = vmatprep.mubr.f32.mxu0 0.0
      %2669 = vmatmul.mubr.f32.gmra.mrb[0].mxu0 %v2599
      %v2670 = vpop.f32.mrb[0].mxu0
      %v2671 = vadd.f32 %v2590, %v2670
      %v2672 = vpop.f32.mrb[0].mxu0
      %2673 = vmatprep.mubr.f32.mxu0 0.0
      %2674 = vmatmul.mubr.f32.gmra.mrb[0].mxu0 %v2602
      %v2675 = vpop.f32.mrb[0].mxu0
      %v2676 = vadd.f32 %v2591, %v2675
      %v2677 = vpop.f32.mrb[0].mxu0
      %2678 = vdwg.mxu0
      %2679 = vrot.lane.b32.xlu0 %v584, 96
      %v2680 = vpop.permute.xlu0 %2679
      %2681 = vrot.lane.b32.xlu0 %v586, 96
      %v2682 = vpop.permute.xlu0 %2681
      %v2685 = vmul.f32 %v2671, %v2680
      %v2686 = vmul.f32 %v2676, %v2682
      %v2687 = vsel %vm501, %v2685, -inf
      %2688 = vmax.xlane.f32.xlu0 %v2687
      %v2689 = vpop.xlane.xlu0 %2688
      %v2690 = vsel %vm501, %v2686, -inf
      %2691 = vmax.xlane.f32.xlu0 %v2690
      %v2692 = vpop.xlane.xlu0 %2691
      %v2693 = vsub.f32 %v2685, %v2689
      %v2694 = vsub.f32 %v2686, %v2692
      %v2695 = vmul.f32 %v2693, 1.442695
      %v2696 = vpow.pop %v2695
      %v2697 = vmul.f32 %v2694, 1.442695
      %v2698 = vpow.pop %v2697
      %v2699 = vsel %vm501, %v2696, 0.0
      %2700 = vadd.xlane.f32.xlu0 %v2699
      %v2701 = vpop.xlane.xlu0 %2700
      %v2702 = vsel %vm501, %v2698, 0.0
      %2703 = vadd.xlane.f32.xlu0 %v2702
      %v2704 = vpop.xlane.xlu0 %2703
      %v2705 = vrcp.pop %v2701
      %v2706 = vrcp.pop %v2704
      %v2707 = vmul.f32 %v2696, %v2705
      %v2708 = vmul.f32 %v2698, %v2706
      %v2709 = vmul.f32 %v2707, %v2680
      %v2710 = vmul.f32 %v2708, %v2682
      %v2712 = vsel %vm501, %v2709, 0
      %v2715 = vsel %vm501, %v2710, 0
      %v2717 = vsel %vm501, %v2593, 0
      %v2719 = vsel %vm501, %v2595, 0
      %2721 = vmatprep.subr.mxu0 0.0
      %2722 = vmatpush1.xpose.msra.mxu0 %v2717
      %2723 = vmatprep.subr.mxu0 0.0
      %2724 = vmatpush1.xpose.msra.mxu0 %v2719
      %2725 = vmatprep.subr.mxu0 0.0
      %2726 = vmatpush1.xpose.msra.mxu0 0.0
      %2727 = vmatprep.subr.mxu0 0.0
      %2728 = vmatpush1.xpose.msra.mxu0 0.0
      %2729 = vmatprep.subr.mxu0 0.0
      %2730 = vmatpush1.xpose.msra.mxu0 0.0
      %2731 = vmatprep.subr.mxu0 0.0
      %2732 = vmatpush1.xpose.msra.mxu0 0.0
      %2733 = vmatprep.subr.mxu0 0.0
      %2734 = vmatpush1.xpose.msra.mxu0 0.0
      %2735 = vmatprep.subr.mxu0 0.0
      %2736 = vmatpush1.xpose.msra.mxu0 0.0
      %2737 = vmatprep.subr.mxu0 0.0
      %2738 = vmatpush1.xpose.msra.mxu0 0.0
      %2739 = vmatprep.subr.mxu0 0.0
      %2740 = vmatpush1.xpose.msra.mxu0 0.0
      %2741 = vmatprep.subr.mxu0 0.0
      %2742 = vmatpush1.xpose.msra.mxu0 0.0
      %2743 = vmatprep.subr.mxu0 0.0
      %2744 = vmatpush1.xpose.msra.mxu0 0.0
      %2745 = vmatprep.subr.mxu0 0.0
      %2746 = vmatpush1.xpose.msra.mxu0 0.0
      %2747 = vmatprep.subr.mxu0 0.0
      %2748 = vmatpush1.xpose.msra.mxu0 0.0
      %2749 = vmatprep.subr.mxu0 0.0
      %2750 = vmatpush1.xpose.msra.mxu0 0.0
      %2751 = vmatprep.subr.mxu0 0.0
      %2752 = vmatpush1.xpose.msra.mxu0 0.0
      %2753 = vmatprep.subr.mxu0 0.0
      %2754 = vmatpush1.xpose.msra.mxu0 0.0
      %2755 = vmatprep.subr.mxu0 0.0
      %2756 = vmatpush1.xpose.msra.mxu0 0.0
      %2757 = vmatprep.subr.mxu0 0.0
      %2758 = vmatpush1.xpose.msra.mxu0 0.0
      %2759 = vmatprep.subr.mxu0 0.0
      %2760 = vmatpush1.xpose.msra.mxu0 0.0
      %2761 = vmatprep.subr.mxu0 0.0
      %2762 = vmatpush1.xpose.msra.mxu0 0.0
      %2763 = vmatprep.subr.mxu0 0.0
      %2764 = vmatpush1.xpose.msra.mxu0 0.0
      %2765 = vmatprep.subr.mxu0 0.0
      %2766 = vmatpush1.xpose.msra.mxu0 0.0
      %2767 = vmatprep.subr.mxu0 0.0
      %2768 = vmatpush1.xpose.msra.mxu0 0.0
      %2769 = vmatprep.subr.mxu0 0.0
      %2770 = vmatpush1.xpose.msra.mxu0 0.0
      %2771 = vmatprep.subr.mxu0 0.0
      %2772 = vmatpush1.xpose.msra.mxu0 0.0
      %2773 = vmatprep.subr.mxu0 0.0
      %2774 = vmatpush1.xpose.msra.mxu0 0.0
      %2775 = vmatprep.subr.mxu0 0.0
      %2776 = vmatpush1.xpose.msra.mxu0 0.0
      %2777 = vmatprep.subr.mxu0 0.0
      %2778 = vmatpush1.xpose.msra.mxu0 0.0
      %2779 = vmatprep.subr.mxu0 0.0
      %2780 = vmatpush1.xpose.msra.mxu0 0.0
      %2781 = vmatprep.subr.mxu0 0.0
      %2782 = vmatpush1.xpose.msra.mxu0 0.0
      %2783 = vmatprep.subr.mxu0 0.0
      %2784 = vmatpush1.xpose.msra.mxu0 0.0
      %2785 = vmatprep.mubr.f32.mxu0 0.0
      %2786 = vmatmul.mubr.f32.gmra.mrb[0].mxu0 %v2712
      %v2787 = vpop.f32.mrb[0].mxu0
      %v2788 = vadd.f32 0.0, %v2787
      %v2789 = vpop.f32.mrb[0].mxu0
      %2790 = vmatprep.mubr.f32.mxu0 0.0
      %2791 = vmatmul.mubr.f32.gmra.mrb[0].mxu0 %v2715
      %v2792 = vpop.f32.mrb[0].mxu0
      %v2793 = vadd.f32 0.0, %v2792
      %v2794 = vpop.f32.mrb[0].mxu0
      %2795 = vdwg.mxu0
      %v2796 = vsel %vm489, %v2788, 0.0
      %v2797 = vsel %vm490, %v2793, 0.0
      %v2798 = vmul.f32 %v2707, %v2588
      %v2799 = vmul.f32 %v2708, %v2588
      %v2800 = vmul.f32 %v2798, %v2680
      %v2801 = vmul.f32 %v2799, %v2682
      %v2803 = vsel %vm501, %v2800, 0
      %v2806 = vsel %vm501, %v2801, 0
      %v2809 = vsel %vm501, %v2383, 0
      %v2812 = vsel %vm501, %v2384, 0
      %2814 = vmatprep.subr.mxu0 0.0
      %2815 = vmatpush1.xpose.msra.mxu0 %v2809
      %2816 = vmatprep.subr.mxu0 0.0
      %2817 = vmatpush1.xpose.msra.mxu0 %v2812
      %2818 = vmatprep.subr.mxu0 0.0
      %2819 = vmatpush1.xpose.msra.mxu0 0.0
      %2820 = vmatprep.subr.mxu0 0.0
      %2821 = vmatpush1.xpose.msra.mxu0 0.0
      %2822 = vmatprep.subr.mxu0 0.0
      %2823 = vmatpush1.xpose.msra.mxu0 0.0
      %2824 = vmatprep.subr.mxu0 0.0
      %2825 = vmatpush1.xpose.msra.mxu0 0.0
      %2826 = vmatprep.subr.mxu0 0.0
      %2827 = vmatpush1.xpose.msra.mxu0 0.0
      %2828 = vmatprep.subr.mxu0 0.0
      %2829 = vmatpush1.xpose.msra.mxu0 0.0
      %2830 = vmatprep.subr.mxu0 0.0
      %2831 = vmatpush1.xpose.msra.mxu0 0.0
      %2832 = vmatprep.subr.mxu0 0.0
      %2833 = vmatpush1.xpose.msra.mxu0 0.0
      %2834 = vmatprep.subr.mxu0 0.0
      %2835 = vmatpush1.xpose.msra.mxu0 0.0
      %2836 = vmatprep.subr.mxu0 0.0
      %2837 = vmatpush1.xpose.msra.mxu0 0.0
      %2838 = vmatprep.subr.mxu0 0.0
      %2839 = vmatpush1.xpose.msra.mxu0 0.0
      %2840 = vmatprep.subr.mxu0 0.0
      %2841 = vmatpush1.xpose.msra.mxu0 0.0
      %2842 = vmatprep.subr.mxu0 0.0
      %2843 = vmatpush1.xpose.msra.mxu0 0.0
      %2844 = vmatprep.subr.mxu0 0.0
      %2845 = vmatpush1.xpose.msra.mxu0 0.0
      %2846 = vmatprep.subr.mxu0 0.0
      %2847 = vmatpush1.xpose.msra.mxu0 0.0
      %2848 = vmatprep.subr.mxu0 0.0
      %2849 = vmatpush1.xpose.msra.mxu0 0.0
      %2850 = vmatprep.subr.mxu0 0.0
      %2851 = vmatpush1.xpose.msra.mxu0 0.0
      %2852 = vmatprep.subr.mxu0 0.0
      %2853 = vmatpush1.xpose.msra.mxu0 0.0
      %2854 = vmatprep.subr.mxu0 0.0
      %2855 = vmatpush1.xpose.msra.mxu0 0.0
      %2856 = vmatprep.subr.mxu0 0.0
      %2857 = vmatpush1.xpose.msra.mxu0 0.0
      %2858 = vmatprep.subr.mxu0 0.0
      %2859 = vmatpush1.xpose.msra.mxu0 0.0
      %2860 = vmatprep.subr.mxu0 0.0
      %2861 = vmatpush1.xpose.msra.mxu0 0.0
      %2862 = vmatprep.subr.mxu0 0.0
      %2863 = vmatpush1.xpose.msra.mxu0 0.0
      %2864 = vmatprep.subr.mxu0 0.0
      %2865 = vmatpush1.xpose.msra.mxu0 0.0
      %2866 = vmatprep.subr.mxu0 0.0
      %2867 = vmatpush1.xpose.msra.mxu0 0.0
      %2868 = vmatprep.subr.mxu0 0.0
      %2869 = vmatpush1.xpose.msra.mxu0 0.0
      %2870 = vmatprep.subr.mxu0 0.0
      %2871 = vmatpush1.xpose.msra.mxu0 0.0
      %2872 = vmatprep.subr.mxu0 0.0
      %2873 = vmatpush1.xpose.msra.mxu0 0.0
      %2874 = vmatprep.subr.mxu0 0.0
      %2875 = vmatpush1.xpose.msra.mxu0 0.0
      %2876 = vmatprep.subr.mxu0 0.0
      %2877 = vmatpush1.xpose.msra.mxu0 0.0
      %2878 = vmatprep.mubr.f32.mxu0 0.0
      %2879 = vmatmul.mubr.f32.gmra.mrb[0].mxu0 %v2803
      %v2880 = vpop.f32.mrb[0].mxu0
      %v2881 = vadd.f32 0.0, %v2880
      %v2882 = vpop.f32.mrb[0].mxu0
      %2883 = vmatprep.mubr.f32.mxu0 0.0
      %2884 = vmatmul.mubr.f32.gmra.mrb[0].mxu0 %v2806
      %v2885 = vpop.f32.mrb[0].mxu0
      %v2886 = vadd.f32 0.0, %v2885
      %v2887 = vpop.f32.mrb[0].mxu0
      %2888 = vdwg.mxu0
      %v2890 = vsel %vm501, %v2796, 0
      %v2893 = vsel %vm501, %v2797, 0
      %2895 = vmatprep.subr.mxu0 0.0
      %2896 = vmatpush1.msra.mxu0 %v2323
      %2897 = vmatprep.subr.mxu0 0.0
      %2898 = vmatpush1.msra.mxu0 %v2324
      %2899 = vmatprep.subr.mxu0 0.0
      %2900 = vmatpush1.msra.mxu0 0.0
      %2901 = vmatprep.subr.mxu0 0.0
      %2902 = vmatpush1.msra.mxu0 0.0
      %2903 = vmatprep.subr.mxu0 0.0
      %2904 = vmatpush1.msra.mxu0 0.0
      %2905 = vmatprep.subr.mxu0 0.0
      %2906 = vmatpush1.msra.mxu0 0.0
      %2907 = vmatprep.subr.mxu0 0.0
      %2908 = vmatpush1.msra.mxu0 0.0
      %2909 = vmatprep.subr.mxu0 0.0
      %2910 = vmatpush1.msra.mxu0 0.0
      %2911 = vmatprep.subr.mxu0 0.0
      %2912 = vmatpush1.msra.mxu0 0.0
      %2913 = vmatprep.subr.mxu0 0.0
      %2914 = vmatpush1.msra.mxu0 0.0
      %2915 = vmatprep.subr.mxu0 0.0
      %2916 = vmatpush1.msra.mxu0 0.0
      %2917 = vmatprep.subr.mxu0 0.0
      %2918 = vmatpush1.msra.mxu0 0.0
      %2919 = vmatprep.subr.mxu0 0.0
      %2920 = vmatpush1.msra.mxu0 0.0
      %2921 = vmatprep.subr.mxu0 0.0
      %2922 = vmatpush1.msra.mxu0 0.0
      %2923 = vmatprep.subr.mxu0 0.0
      %2924 = vmatpush1.msra.mxu0 0.0
      %2925 = vmatprep.subr.mxu0 0.0
      %2926 = vmatpush1.msra.mxu0 0.0
      %2927 = vmatprep.subr.mxu0 0.0
      %2928 = vmatpush1.msra.mxu0 0.0
      %2929 = vmatprep.subr.mxu0 0.0
      %2930 = vmatpush1.msra.mxu0 0.0
      %2931 = vmatprep.subr.mxu0 0.0
      %2932 = vmatpush1.msra.mxu0 0.0
      %2933 = vmatprep.subr.mxu0 0.0
      %2934 = vmatpush1.msra.mxu0 0.0
      %2935 = vmatprep.subr.mxu0 0.0
      %2936 = vmatpush1.msra.mxu0 0.0
      %2937 = vmatprep.subr.mxu0 0.0
      %2938 = vmatpush1.msra.mxu0 0.0
      %2939 = vmatprep.subr.mxu0 0.0
      %2940 = vmatpush1.msra.mxu0 0.0
      %2941 = vmatprep.subr.mxu0 0.0
      %2942 = vmatpush1.msra.mxu0 0.0
      %2943 = vmatprep.subr.mxu0 0.0
      %2944 = vmatpush1.msra.mxu0 0.0
      %2945 = vmatprep.subr.mxu0 0.0
      %2946 = vmatpush1.msra.mxu0 0.0
      %2947 = vmatprep.subr.mxu0 0.0
      %2948 = vmatpush1.msra.mxu0 0.0
      %2949 = vmatprep.subr.mxu0 0.0
      %2950 = vmatpush1.msra.mxu0 0.0
      %2951 = vmatprep.subr.mxu0 0.0
      %2952 = vmatpush1.msra.mxu0 0.0
      %2953 = vmatprep.subr.mxu0 0.0
      %2954 = vmatpush1.msra.mxu0 0.0
      %2955 = vmatprep.subr.mxu0 0.0
      %2956 = vmatpush1.msra.mxu0 0.0
      %2957 = vmatprep.subr.mxu0 0.0
      %2958 = vmatpush1.msra.mxu0 0.0
      %2959 = vmatprep.mubr.f32.mxu0 0.0
      %2960 = vmatmul.mubr.f32.gmra.mrb[0].mxu0 %v2890
      %v2961 = vpop.f32.mrb[0].mxu0
      %v2962 = vadd.f32 %v2881, %v2961
      %v2963 = vpop.f32.mrb[0].mxu0
      %2964 = vmatprep.mubr.f32.mxu0 0.0
      %2965 = vmatmul.mubr.f32.gmra.mrb[0].mxu0 %v2893
      %v2966 = vpop.f32.mrb[0].mxu0
      %v2967 = vadd.f32 %v2886, %v2966
      %v2968 = vpop.f32.mrb[0].mxu0
      %2969 = vdwg.mxu0
      %v2970 = vmul.f32 %v2381, %v2588
      %v2971 = vmul.f32 %v2382, %v2588
      %v2973 = vsel %vm501, %v2409, 0
      %v2976 = vsel %vm501, %v2410, 0
      %2978 = vmatprep.subr.mxu0 0.0
      %2979 = vmatpush1.msra.mxu0 %v2593
      %2980 = vmatprep.subr.mxu0 0.0
      %2981 = vmatpush1.msra.mxu0 %v2595
      %2982 = vmatprep.subr.mxu0 0.0
      %2983 = vmatpush1.msra.mxu0 0.0
      %2984 = vmatprep.subr.mxu0 0.0
      %2985 = vmatpush1.msra.mxu0 0.0
      %2986 = vmatprep.subr.mxu0 0.0
      %2987 = vmatpush1.msra.mxu0 0.0
      %2988 = vmatprep.subr.mxu0 0.0
      %2989 = vmatpush1.msra.mxu0 0.0
      %2990 = vmatprep.subr.mxu0 0.0
      %2991 = vmatpush1.msra.mxu0 0.0
      %2992 = vmatprep.subr.mxu0 0.0
      %2993 = vmatpush1.msra.mxu0 0.0
      %2994 = vmatprep.subr.mxu0 0.0
      %2995 = vmatpush1.msra.mxu0 0.0
      %2996 = vmatprep.subr.mxu0 0.0
      %2997 = vmatpush1.msra.mxu0 0.0
      %2998 = vmatprep.subr.mxu0 0.0
      %2999 = vmatpush1.msra.mxu0 0.0
      %3000 = vmatprep.subr.mxu0 0.0
      %3001 = vmatpush1.msra.mxu0 0.0
      %3002 = vmatprep.subr.mxu0 0.0
      %3003 = vmatpush1.msra.mxu0 0.0
      %3004 = vmatprep.subr.mxu0 0.0
      %3005 = vmatpush1.msra.mxu0 0.0
      %3006 = vmatprep.subr.mxu0 0.0
      %3007 = vmatpush1.msra.mxu0 0.0
      %3008 = vmatprep.subr.mxu0 0.0
      %3009 = vmatpush1.msra.mxu0 0.0
      %3010 = vmatprep.subr.mxu0 0.0
      %3011 = vmatpush1.msra.mxu0 0.0
      %3012 = vmatprep.subr.mxu0 0.0
      %3013 = vmatpush1.msra.mxu0 0.0
      %3014 = vmatprep.subr.mxu0 0.0
      %3015 = vmatpush1.msra.mxu0 0.0
      %3016 = vmatprep.subr.mxu0 0.0
      %3017 = vmatpush1.msra.mxu0 0.0
      %3018 = vmatprep.subr.mxu0 0.0
      %3019 = vmatpush1.msra.mxu0 0.0
      %3020 = vmatprep.subr.mxu0 0.0
      %3021 = vmatpush1.msra.mxu0 0.0
      %3022 = vmatprep.subr.mxu0 0.0
      %3023 = vmatpush1.msra.mxu0 0.0
      %3024 = vmatprep.subr.mxu0 0.0
      %3025 = vmatpush1.msra.mxu0 0.0
      %3026 = vmatprep.subr.mxu0 0.0
      %3027 = vmatpush1.msra.mxu0 0.0
      %3028 = vmatprep.subr.mxu0 0.0
      %3029 = vmatpush1.msra.mxu0 0.0
      %3030 = vmatprep.subr.mxu0 0.0
      %3031 = vmatpush1.msra.mxu0 0.0
      %3032 = vmatprep.subr.mxu0 0.0
      %3033 = vmatpush1.msra.mxu0 0.0
      %3034 = vmatprep.subr.mxu0 0.0
      %3035 = vmatpush1.msra.mxu0 0.0
      %3036 = vmatprep.subr.mxu0 0.0
      %3037 = vmatpush1.msra.mxu0 0.0
      %3038 = vmatprep.subr.mxu0 0.0
      %3039 = vmatpush1.msra.mxu0 0.0
      %3040 = vmatprep.subr.mxu0 0.0
      %3041 = vmatpush1.msra.mxu0 0.0
      %3042 = vmatprep.mubr.f32.mxu0 0.0
      %3043 = vmatmul.mubr.f32.gmra.mrb[0].mxu0 %v2973
      %v3044 = vpop.f32.mrb[0].mxu0
      %v3045 = vadd.f32 0.0, %v3044
      %v3046 = vpop.f32.mrb[0].mxu0
      %3047 = vmatprep.mubr.f32.mxu0 0.0
      %3048 = vmatmul.mubr.f32.gmra.mrb[0].mxu0 %v2976
      %v3049 = vpop.f32.mrb[0].mxu0
      %v3050 = vadd.f32 0.0, %v3049
      %v3051 = vpop.f32.mrb[0].mxu0
      %3052 = vdwg.mxu0
      %v3053 = vadd.f32 %v2970, %v3045
      %v3054 = vadd.f32 %v2971, %v3050
      %3055 = vrot.lane.b32.xlu0 %v1316, 96
      %v3056 = vpop.permute.xlu0 %3055
      %v3058 = vmul.f32 %v3053, %v3056
      %v3059 = vmul.f32 %v3054, %v3056
      %3060 = vst.msk [vmem:[#allocation3 + $0x20] sm:$0xff] %vm501, %v3058
      %3061 = vst.msk [vmem:[#allocation3 + $0x28] sm:$0xff] %vm501, %v3059
      %v3062 = vmul.f32 %v2383, %v2588
      %v3063 = vmul.f32 %v2384, %v2588
      %3064 = vxpose.xlu0.b32.start [1/16] %v2323, 128
      %3065 = vxpose.xlu0.b32.cont [2/16] %v2324, 128
      %3066 = vxpose.xlu0.b32.cont [3/16] 0.0, 128
      %3067 = vxpose.xlu0.b32.cont [4/16] 0.0, 128
      %3068 = vxpose.xlu0.b32.cont [5/16] 0.0, 128
      %3069 = vxpose.xlu0.b32.cont [6/16] 0.0, 128
      %3070 = vxpose.xlu0.b32.cont [7/16] 0.0, 128
      %3071 = vxpose.xlu0.b32.cont [8/16] 0.0, 128
      %3072 = vxpose.xlu0.b32.cont [9/16] 0.0, 128
      %3073 = vxpose.xlu0.b32.cont [10/16] 0.0, 128
      %3074 = vxpose.xlu0.b32.cont [11/16] 0.0, 128
      %3075 = vxpose.xlu0.b32.cont [12/16] 0.0, 128
      %3076 = vxpose.xlu0.b32.cont [13/16] 0.0, 128
      %3077 = vxpose.xlu0.b32.cont [14/16] 0.0, 128
      %3078 = vxpose.xlu0.b32.cont [15/16] 0.0, 128
      %3079 = vxpose.xlu0.b32.end [16/16] 0.0, 128
      %v3080 = vpop.trf.xlu0
      %v3081 = vpop.trf.xlu0
      %v3082 = vpop.trf.xlu0
      %v3083 = vpop.trf.xlu0
      %v3084 = vpop.trf.xlu0
      %v3085 = vpop.trf.xlu0
      %v3086 = vpop.trf.xlu0
      %v3087 = vpop.trf.xlu0
      %v3088 = vpop.trf.xlu0
      %v3089 = vpop.trf.xlu0
      %v3090 = vpop.trf.xlu0
      %v3091 = vpop.trf.xlu0
      %v3092 = vpop.trf.xlu0
      %v3093 = vpop.trf.xlu0
      %v3094 = vpop.trf.xlu0
      %v3095 = vpop.trf.xlu0
      %v3097 = vsel %vm501, %v3080, 0
      %v3100 = vsel %vm501, %v3081, 0
      %3102 = vmatprep.subr.mxu0 0.0
      %3103 = vmatpush1.msra.mxu0 %v2593
      %3104 = vmatprep.subr.mxu0 0.0
      %3105 = vmatpush1.msra.mxu0 %v2595
      %3106 = vmatprep.subr.mxu0 0.0
      %3107 = vmatpush1.msra.mxu0 0.0
      %3108 = vmatprep.subr.mxu0 0.0
      %3109 = vmatpush1.msra.mxu0 0.0
      %3110 = vmatprep.subr.mxu0 0.0
      %3111 = vmatpush1.msra.mxu0 0.0
      %3112 = vmatprep.subr.mxu0 0.0
      %3113 = vmatpush1.msra.mxu0 0.0
      %3114 = vmatprep.subr.mxu0 0.0
      %3115 = vmatpush1.msra.mxu0 0.0
      %3116 = vmatprep.subr.mxu0 0.0
      %3117 = vmatpush1.msra.mxu0 0.0
      %3118 = vmatprep.subr.mxu0 0.0
      %3119 = vmatpush1.msra.mxu0 0.0
      %3120 = vmatprep.subr.mxu0 0.0
      %3121 = vmatpush1.msra.mxu0 0.0
      %3122 = vmatprep.subr.mxu0 0.0
      %3123 = vmatpush1.msra.mxu0 0.0
      %3124 = vmatprep.subr.mxu0 0.0
      %3125 = vmatpush1.msra.mxu0 0.0
      %3126 = vmatprep.subr.mxu0 0.0
      %3127 = vmatpush1.msra.mxu0 0.0
      %3128 = vmatprep.subr.mxu0 0.0
      %3129 = vmatpush1.msra.mxu0 0.0
      %3130 = vmatprep.subr.mxu0 0.0
      %3131 = vmatpush1.msra.mxu0 0.0
      %3132 = vmatprep.subr.mxu0 0.0
      %3133 = vmatpush1.msra.mxu0 0.0
      %3134 = vmatprep.subr.mxu0 0.0
      %3135 = vmatpush1.msra.mxu0 0.0
      %3136 = vmatprep.subr.mxu0 0.0
      %3137 = vmatpush1.msra.mxu0 0.0
      %3138 = vmatprep.subr.mxu0 0.0
      %3139 = vmatpush1.msra.mxu0 0.0
      %3140 = vmatprep.subr.mxu0 0.0
      %3141 = vmatpush1.msra.mxu0 0.0
      %3142 = vmatprep.subr.mxu0 0.0
      %3143 = vmatpush1.msra.mxu0 0.0
      %3144 = vmatprep.subr.mxu0 0.0
      %3145 = vmatpush1.msra.mxu0 0.0
      %3146 = vmatprep.subr.mxu0 0.0
      %3147 = vmatpush1.msra.mxu0 0.0
      %3148 = vmatprep.subr.mxu0 0.0
      %3149 = vmatpush1.msra.mxu0 0.0
      %3150 = vmatprep.subr.mxu0 0.0
      %3151 = vmatpush1.msra.mxu0 0.0
      %3152 = vmatprep.subr.mxu0 0.0
      %3153 = vmatpush1.msra.mxu0 0.0
      %3154 = vmatprep.subr.mxu0 0.0
      %3155 = vmatpush1.msra.mxu0 0.0
      %3156 = vmatprep.subr.mxu0 0.0
      %3157 = vmatpush1.msra.mxu0 0.0
      %3158 = vmatprep.subr.mxu0 0.0
      %3159 = vmatpush1.msra.mxu0 0.0
      %3160 = vmatprep.subr.mxu0 0.0
      %3161 = vmatpush1.msra.mxu0 0.0
      %3162 = vmatprep.subr.mxu0 0.0
      %3163 = vmatpush1.msra.mxu0 0.0
      %3164 = vmatprep.subr.mxu0 0.0
      %3165 = vmatpush1.msra.mxu0 0.0
      %3166 = vmatprep.mubr.f32.mxu0 0.0
      %3167 = vmatmul.mubr.f32.gmra.mrb[0].mxu0 %v3097
      %v3168 = vpop.f32.mrb[0].mxu0
      %v3169 = vadd.f32 0.0, %v3168
      %v3170 = vpop.f32.mrb[0].mxu0
      %3171 = vmatprep.mubr.f32.mxu0 0.0
      %3172 = vmatmul.mubr.f32.gmra.mrb[0].mxu0 %v3100
      %v3173 = vpop.f32.mrb[0].mxu0
      %v3174 = vadd.f32 0.0, %v3173
      %v3175 = vpop.f32.mrb[0].mxu0
      %3176 = vdwg.mxu0
      %v3177 = vadd.f32 %v3062, %v3169
      %v3178 = vadd.f32 %v3063, %v3174
      %v3179 = vmul.f32 %v3177, %v3056
      %v3180 = vmul.f32 %v3178, %v3056
      %3181 = vst.msk [vmem:[#allocation4 + $0x20] sm:$0xff] %vm501, %v3179
      %3182 = vst.msk [vmem:[#allocation4 + $0x28] sm:$0xff] %vm501, %v3180
      %3183 = vrot.lane.b32.xlu0 %v441, 80
      %v3184 = vpop.permute.xlu0 %3183
      %3185 = vrot.lane.b32.xlu0 %v442, 80
      %v3186 = vpop.permute.xlu0 %3185
      %v3187 = vrot.slane %v3184, 4
      %v3188 = vrot.slane %v3186, 4
      %v3191 = vunpack.c.l.bf16 %v3187
      %v3192 = vunpack.c.l.bf16 %v3188
      %3193 = vrot.lane.b32.xlu0 %v449, 48
      %v3194 = vpop.permute.xlu0 %3193
      %3195 = vrot.lane.b32.xlu0 %v450, 48
      %v3196 = vpop.permute.xlu0 %3195
      %v3199 = vmul.f32 %v587, %v3194
      %v3200 = vmul.f32 %v588, %v3196
      %v3201 = vsel %vm613, %v637, %v2334
      %v3202 = vsel %vm613, %v639, %v2336
      %v3203 = vmul.f32 %v3201, %v451
      %v3204 = vmul.f32 %v3202, %v452
      %3207 = vrot.lane.b32.xlu0 %v3203, 48
      %v3208 = vpop.permute.xlu0 %3207
      %3209 = vrot.lane.b32.xlu0 %v3204, 48
      %v3210 = vpop.permute.xlu0 %3209
      %v3213 = vadd.f32 %v3199, %v3208
      %v3214 = vadd.f32 %v3200, %v3210
      %3215 = vrot.lane.b32.xlu0 %v453, 112
      %v3216 = vpop.permute.xlu0 %3215
      %3217 = vrot.lane.b32.xlu0 %v454, 112
      %v3218 = vpop.permute.xlu0 %3217
      %v3221 = vmul.f32 %v587, %v3216
      %v3222 = vmul.f32 %v588, %v3218
      %v3223 = vsel %vm613, %v608, %v2362
      %v3224 = vsel %vm613, %v610, %v2364
      %v3225 = vmul.f32 %v3223, %v455
      %v3226 = vmul.f32 %v3224, %v456
      %3229 = vrot.lane.b32.xlu0 %v3225, 112
      %v3230 = vpop.permute.xlu0 %3229
      %3231 = vrot.lane.b32.xlu0 %v3226, 112
      %v3232 = vpop.permute.xlu0 %3231
      %v3235 = vadd.f32 %v3221, %v3230
      %v3236 = vadd.f32 %v3222, %v3232
      %v3237 = vld [vmem:[#allocation3 + $0x30] sm:$0xff]
      %v3238 = vld [vmem:[#allocation3 + $0x38] sm:$0xff]
      %v3239 = vld [vmem:[#allocation4 + $0x30] sm:$0xff]
      %v3240 = vld [vmem:[#allocation4 + $0x38] sm:$0xff]
      %3243 = vrot.lane.b32.xlu0 %v3235, 16
      %v3244 = vpop.permute.xlu0 %3243
      %3245 = vrot.lane.b32.xlu0 %v3236, 16
      %v3246 = vpop.permute.xlu0 %3245
      %3249 = vxpose.xlu0.b32.start [1/16] %v3244, 128
      %3250 = vxpose.xlu0.b32.cont [2/16] %v3246, 128
      %3251 = vxpose.xlu0.b32.cont [3/16] 0.0, 128
      %3252 = vxpose.xlu0.b32.cont [4/16] 0.0, 128
      %3253 = vxpose.xlu0.b32.cont [5/16] 0.0, 128
      %3254 = vxpose.xlu0.b32.cont [6/16] 0.0, 128
      %3255 = vxpose.xlu0.b32.cont [7/16] 0.0, 128
      %3256 = vxpose.xlu0.b32.cont [8/16] 0.0, 128
      %3257 = vxpose.xlu0.b32.cont [9/16] 0.0, 128
      %3258 = vxpose.xlu0.b32.cont [10/16] 0.0, 128
      %3259 = vxpose.xlu0.b32.cont [11/16] 0.0, 128
      %3260 = vxpose.xlu0.b32.cont [12/16] 0.0, 128
      %3261 = vxpose.xlu0.b32.cont [13/16] 0.0, 128
      %3262 = vxpose.xlu0.b32.cont [14/16] 0.0, 128
      %3263 = vxpose.xlu0.b32.cont [15/16] 0.0, 128
      %3264 = vxpose.xlu0.b32.end [16/16] 0.0, 128
      %v3265 = vpop.trf.xlu0
      %v3266 = vpop.trf.xlu0
      %v3267 = vpop.trf.xlu0
      %v3268 = vpop.trf.xlu0
      %v3269 = vpop.trf.xlu0
      %v3270 = vpop.trf.xlu0
      %v3271 = vpop.trf.xlu0
      %v3272 = vpop.trf.xlu0
      %v3273 = vpop.trf.xlu0
      %v3274 = vpop.trf.xlu0
      %v3275 = vpop.trf.xlu0
      %v3276 = vpop.trf.xlu0
      %v3277 = vpop.trf.xlu0
      %v3278 = vpop.trf.xlu0
      %v3279 = vpop.trf.xlu0
      %v3280 = vpop.trf.xlu0
      %3283 = vrot.lane.b32.xlu0 %v3213, 80
      %v3284 = vpop.permute.xlu0 %3283
      %3285 = vrot.lane.b32.xlu0 %v3214, 80
      %v3286 = vpop.permute.xlu0 %3285
      %v3287 = vsel %vm501, %v3284, 0
      %v3289 = vsel %vm501, %v3286, 0
      %3291 = vmatprep.subr.mxu0 0.0
      %3292 = vmatpush1.msra.mxu0 %v3265
      %3293 = vmatprep.subr.mxu0 0.0
      %3294 = vmatpush1.msra.mxu0 %v3266
      %3295 = vmatprep.subr.mxu0 0.0
      %3296 = vmatpush1.msra.mxu0 0.0
      %3297 = vmatprep.subr.mxu0 0.0
      %3298 = vmatpush1.msra.mxu0 0.0
      %3299 = vmatprep.subr.mxu0 0.0
      %3300 = vmatpush1.msra.mxu0 0.0
      %3301 = vmatprep.subr.mxu0 0.0
      %3302 = vmatpush1.msra.mxu0 0.0
      %3303 = vmatprep.subr.mxu0 0.0
      %3304 = vmatpush1.msra.mxu0 0.0
      %3305 = vmatprep.subr.mxu0 0.0
      %3306 = vmatpush1.msra.mxu0 0.0
      %3307 = vmatprep.subr.mxu0 0.0
      %3308 = vmatpush1.msra.mxu0 0.0
      %3309 = vmatprep.subr.mxu0 0.0
      %3310 = vmatpush1.msra.mxu0 0.0
      %3311 = vmatprep.subr.mxu0 0.0
      %3312 = vmatpush1.msra.mxu0 0.0
      %3313 = vmatprep.subr.mxu0 0.0
      %3314 = vmatpush1.msra.mxu0 0.0
      %3315 = vmatprep.subr.mxu0 0.0
      %3316 = vmatpush1.msra.mxu0 0.0
      %3317 = vmatprep.subr.mxu0 0.0
      %3318 = vmatpush1.msra.mxu0 0.0
      %3319 = vmatprep.subr.mxu0 0.0
      %3320 = vmatpush1.msra.mxu0 0.0
      %3321 = vmatprep.subr.mxu0 0.0
      %3322 = vmatpush1.msra.mxu0 0.0
      %3323 = vmatprep.subr.mxu0 0.0
      %3324 = vmatpush1.msra.mxu0 0.0
      %3325 = vmatprep.subr.mxu0 0.0
      %3326 = vmatpush1.msra.mxu0 0.0
      %3327 = vmatprep.subr.mxu0 0.0
      %3328 = vmatpush1.msra.mxu0 0.0
      %3329 = vmatprep.subr.mxu0 0.0
      %3330 = vmatpush1.msra.mxu0 0.0
      %3331 = vmatprep.subr.mxu0 0.0
      %3332 = vmatpush1.msra.mxu0 0.0
      %3333 = vmatprep.subr.mxu0 0.0
      %3334 = vmatpush1.msra.mxu0 0.0
      %3335 = vmatprep.subr.mxu0 0.0
      %3336 = vmatpush1.msra.mxu0 0.0
      %3337 = vmatprep.subr.mxu0 0.0
      %3338 = vmatpush1.msra.mxu0 0.0
      %3339 = vmatprep.subr.mxu0 0.0
      %3340 = vmatpush1.msra.mxu0 0.0
      %3341 = vmatprep.subr.mxu0 0.0
      %3342 = vmatpush1.msra.mxu0 0.0
      %3343 = vmatprep.subr.mxu0 0.0
      %3344 = vmatpush1.msra.mxu0 0.0
      %3345 = vmatprep.subr.mxu0 0.0
      %3346 = vmatpush1.msra.mxu0 0.0
      %3347 = vmatprep.subr.mxu0 0.0
      %3348 = vmatpush1.msra.mxu0 0.0
      %3349 = vmatprep.subr.mxu0 0.0
      %3350 = vmatpush1.msra.mxu0 0.0
      %3351 = vmatprep.subr.mxu0 0.0
      %3352 = vmatpush1.msra.mxu0 0.0
      %3353 = vmatprep.subr.mxu0 0.0
      %3354 = vmatpush1.msra.mxu0 0.0
      %3355 = vmatprep.mubr.f32.mxu0 0.0
      %3356 = vmatmul.mubr.f32.gmra.mrb[0].mxu0 %v3287
      %v3357 = vpop.f32.mrb[0].mxu0
      %v3358 = vadd.f32 0.0, %v3357
      %v3359 = vpop.f32.mrb[0].mxu0
      %3360 = vmatprep.mubr.f32.mxu0 0.0
      %3361 = vmatmul.mubr.f32.gmra.mrb[0].mxu0 %v3289
      %v3362 = vpop.f32.mrb[0].mxu0
      %v3363 = vadd.f32 0.0, %v3362
      %v3364 = vpop.f32.mrb[0].mxu0
      %3365 = vdwg.mxu0
      %v3366 = vsel %vm489, %v3358, 0.0
      %v3367 = vsel %vm490, %v3363, 0.0
      %3368 = vmatprep.subr.mxu0 0.0
      %3369 = vmatpush1.msra.mxu0 %v3237
      %3370 = vmatprep.subr.mxu0 0.0
      %3371 = vmatpush1.msra.mxu0 %v3238
      %3372 = vmatprep.subr.mxu0 0.0
      %3373 = vmatpush1.msra.mxu0 0.0
      %3374 = vmatprep.subr.mxu0 0.0
      %3375 = vmatpush1.msra.mxu0 0.0
      %3376 = vmatprep.subr.mxu0 0.0
      %3377 = vmatpush1.msra.mxu0 0.0
      %3378 = vmatprep.subr.mxu0 0.0
      %3379 = vmatpush1.msra.mxu0 0.0
      %3380 = vmatprep.subr.mxu0 0.0
      %3381 = vmatpush1.msra.mxu0 0.0
      %3382 = vmatprep.subr.mxu0 0.0
      %3383 = vmatpush1.msra.mxu0 0.0
      %3384 = vmatprep.subr.mxu0 0.0
      %3385 = vmatpush1.msra.mxu0 0.0
      %3386 = vmatprep.subr.mxu0 0.0
      %3387 = vmatpush1.msra.mxu0 0.0
      %3388 = vmatprep.subr.mxu0 0.0
      %3389 = vmatpush1.msra.mxu0 0.0
      %3390 = vmatprep.subr.mxu0 0.0
      %3391 = vmatpush1.msra.mxu0 0.0
      %3392 = vmatprep.subr.mxu0 0.0
      %3393 = vmatpush1.msra.mxu0 0.0
      %3394 = vmatprep.subr.mxu0 0.0
      %3395 = vmatpush1.msra.mxu0 0.0
      %3396 = vmatprep.subr.mxu0 0.0
      %3397 = vmatpush1.msra.mxu0 0.0
      %3398 = vmatprep.subr.mxu0 0.0
      %3399 = vmatpush1.msra.mxu0 0.0
      %3400 = vmatprep.subr.mxu0 0.0
      %3401 = vmatpush1.msra.mxu0 0.0
      %3402 = vmatprep.subr.mxu0 0.0
      %3403 = vmatpush1.msra.mxu0 0.0
      %3404 = vmatprep.subr.mxu0 0.0
      %3405 = vmatpush1.msra.mxu0 0.0
      %3406 = vmatprep.subr.mxu0 0.0
      %3407 = vmatpush1.msra.mxu0 0.0
      %3408 = vmatprep.subr.mxu0 0.0
      %3409 = vmatpush1.msra.mxu0 0.0
      %3410 = vmatprep.subr.mxu0 0.0
      %3411 = vmatpush1.msra.mxu0 0.0
      %3412 = vmatprep.subr.mxu0 0.0
      %3413 = vmatpush1.msra.mxu0 0.0
      %3414 = vmatprep.subr.mxu0 0.0
      %3415 = vmatpush1.msra.mxu0 0.0
      %3416 = vmatprep.subr.mxu0 0.0
      %3417 = vmatpush1.msra.mxu0 0.0
      %3418 = vmatprep.subr.mxu0 0.0
      %3419 = vmatpush1.msra.mxu0 0.0
      %3420 = vmatprep.subr.mxu0 0.0
      %3421 = vmatpush1.msra.mxu0 0.0
      %3422 = vmatprep.subr.mxu0 0.0
      %3423 = vmatpush1.msra.mxu0 0.0
      %3424 = vmatprep.subr.mxu0 0.0
      %3425 = vmatpush1.msra.mxu0 0.0
      %3426 = vmatprep.subr.mxu0 0.0
      %3427 = vmatpush1.msra.mxu0 0.0
      %3428 = vmatprep.subr.mxu0 0.0
      %3429 = vmatpush1.msra.mxu0 0.0
      %3430 = vmatprep.subr.mxu0 0.0
      %3431 = vmatpush1.msra.mxu0 0.0
      %3432 = vmatprep.mubr.f32.mxu0 0.0
      %3433 = vmatmul.mubr.f32.gmra.mrb[0].mxu0 %v3287
      %v3434 = vpop.f32.mrb[0].mxu0
      %v3435 = vadd.f32 0.0, %v3434
      %v3436 = vpop.f32.mrb[0].mxu0
      %3437 = vmatprep.mubr.f32.mxu0 0.0
      %3438 = vmatmul.mubr.f32.gmra.mrb[0].mxu0 %v3289
      %v3439 = vpop.f32.mrb[0].mxu0
      %v3440 = vadd.f32 0.0, %v3439
      %v3441 = vpop.f32.mrb[0].mxu0
      %3442 = vdwg.mxu0
      %3443 = vrot.lane.b32.xlu0 %v499, 80
      %v3444 = vpop.permute.xlu0 %3443
      %v3446 = vmul.f32 %v3435, %v3444
      %v3447 = vmul.f32 %v3440, %v3444
      %3448 = vrot.lane.b32.xlu0 %v478, 80
      %v3449 = vpop.permute.xlu0 %3448
      %3450 = vrot.lane.b32.xlu0 %v480, 80
      %v3451 = vpop.permute.xlu0 %3450
      %v3455 = vsel %vm501, %v3366, 0
      %v3458 = vsel %vm501, %v3367, 0
      %3460 = vmatprep.subr.mxu0 0.0
      %3461 = vmatpush1.msra.mxu0 %v3449
      %3462 = vmatprep.subr.mxu0 0.0
      %3463 = vmatpush1.msra.mxu0 %v3451
      %3464 = vmatprep.subr.mxu0 0.0
      %3465 = vmatpush1.msra.mxu0 0.0
      %3466 = vmatprep.subr.mxu0 0.0
      %3467 = vmatpush1.msra.mxu0 0.0
      %3468 = vmatprep.subr.mxu0 0.0
      %3469 = vmatpush1.msra.mxu0 0.0
      %3470 = vmatprep.subr.mxu0 0.0
      %3471 = vmatpush1.msra.mxu0 0.0
      %3472 = vmatprep.subr.mxu0 0.0
      %3473 = vmatpush1.msra.mxu0 0.0
      %3474 = vmatprep.subr.mxu0 0.0
      %3475 = vmatpush1.msra.mxu0 0.0
      %3476 = vmatprep.subr.mxu0 0.0
      %3477 = vmatpush1.msra.mxu0 0.0
      %3478 = vmatprep.subr.mxu0 0.0
      %3479 = vmatpush1.msra.mxu0 0.0
      %3480 = vmatprep.subr.mxu0 0.0
      %3481 = vmatpush1.msra.mxu0 0.0
      %3482 = vmatprep.subr.mxu0 0.0
      %3483 = vmatpush1.msra.mxu0 0.0
      %3484 = vmatprep.subr.mxu0 0.0
      %3485 = vmatpush1.msra.mxu0 0.0
      %3486 = vmatprep.subr.mxu0 0.0
      %3487 = vmatpush1.msra.mxu0 0.0
      %3488 = vmatprep.subr.mxu0 0.0
      %3489 = vmatpush1.msra.mxu0 0.0
      %3490 = vmatprep.subr.mxu0 0.0
      %3491 = vmatpush1.msra.mxu0 0.0
      %3492 = vmatprep.subr.mxu0 0.0
      %3493 = vmatpush1.msra.mxu0 0.0
      %3494 = vmatprep.subr.mxu0 0.0
      %3495 = vmatpush1.msra.mxu0 0.0
      %3496 = vmatprep.subr.mxu0 0.0
      %3497 = vmatpush1.msra.mxu0 0.0
      %3498 = vmatprep.subr.mxu0 0.0
      %3499 = vmatpush1.msra.mxu0 0.0
      %3500 = vmatprep.subr.mxu0 0.0
      %3501 = vmatpush1.msra.mxu0 0.0
      %3502 = vmatprep.subr.mxu0 0.0
      %3503 = vmatpush1.msra.mxu0 0.0
      %3504 = vmatprep.subr.mxu0 0.0
      %3505 = vmatpush1.msra.mxu0 0.0
      %3506 = vmatprep.subr.mxu0 0.0
      %3507 = vmatpush1.msra.mxu0 0.0
      %3508 = vmatprep.subr.mxu0 0.0
      %3509 = vmatpush1.msra.mxu0 0.0
      %3510 = vmatprep.subr.mxu0 0.0
      %3511 = vmatpush1.msra.mxu0 0.0
      %3512 = vmatprep.subr.mxu0 0.0
      %3513 = vmatpush1.msra.mxu0 0.0
      %3514 = vmatprep.subr.mxu0 0.0
      %3515 = vmatpush1.msra.mxu0 0.0
      %3516 = vmatprep.subr.mxu0 0.0
      %3517 = vmatpush1.msra.mxu0 0.0
      %3518 = vmatprep.subr.mxu0 0.0
      %3519 = vmatpush1.msra.mxu0 0.0
      %3520 = vmatprep.subr.mxu0 0.0
      %3521 = vmatpush1.msra.mxu0 0.0
      %3522 = vmatprep.subr.mxu0 0.0
      %3523 = vmatpush1.msra.mxu0 0.0
      %3524 = vmatprep.mubr.f32.mxu0 0.0
      %3525 = vmatmul.mubr.f32.gmra.mrb[0].mxu0 %v3455
      %v3526 = vpop.f32.mrb[0].mxu0
      %v3527 = vadd.f32 %v3446, %v3526
      %v3528 = vpop.f32.mrb[0].mxu0
      %3529 = vmatprep.mubr.f32.mxu0 0.0
      %3530 = vmatmul.mubr.f32.gmra.mrb[0].mxu0 %v3458
      %v3531 = vpop.f32.mrb[0].mxu0
      %v3532 = vadd.f32 %v3447, %v3531
      %v3533 = vpop.f32.mrb[0].mxu0
      %3534 = vdwg.mxu0
      %3535 = vrot.lane.b32.xlu0 %v584, 80
      %v3536 = vpop.permute.xlu0 %3535
      %3537 = vrot.lane.b32.xlu0 %v586, 80
      %v3538 = vpop.permute.xlu0 %3537
      %v3541 = vmul.f32 %v3527, %v3536
      %v3542 = vmul.f32 %v3532, %v3538
      %v3543 = vsel %vm501, %v3541, -inf
      %3544 = vmax.xlane.f32.xlu0 %v3543
      %v3545 = vpop.xlane.xlu0 %3544
      %v3546 = vsel %vm501, %v3542, -inf
      %3547 = vmax.xlane.f32.xlu0 %v3546
      %v3548 = vpop.xlane.xlu0 %3547
      %v3549 = vsub.f32 %v3541, %v3545
      %v3550 = vsub.f32 %v3542, %v3548
      %v3551 = vmul.f32 %v3549, 1.442695
      %v3552 = vpow.pop %v3551
      %v3553 = vmul.f32 %v3550, 1.442695
      %v3554 = vpow.pop %v3553
      %v3555 = vsel %vm501, %v3552, 0.0
      %3556 = vadd.xlane.f32.xlu0 %v3555
      %v3557 = vpop.xlane.xlu0 %3556
      %v3558 = vsel %vm501, %v3554, 0.0
      %3559 = vadd.xlane.f32.xlu0 %v3558
      %v3560 = vpop.xlane.xlu0 %3559
      %v3561 = vrcp.pop %v3557
      %v3562 = vrcp.pop %v3560
      %v3563 = vmul.f32 %v3552, %v3561
      %v3564 = vmul.f32 %v3554, %v3562
      %v3565 = vmul.f32 %v3563, %v3536
      %v3566 = vmul.f32 %v3564, %v3538
      %v3568 = vsel %vm501, %v3565, 0
      %v3571 = vsel %vm501, %v3566, 0
      %v3573 = vsel %vm501, %v3449, 0
      %v3575 = vsel %vm501, %v3451, 0
      %3577 = vmatprep.subr.mxu0 0.0
      %3578 = vmatpush1.xpose.msra.mxu0 %v3573
      %3579 = vmatprep.subr.mxu0 0.0
      %3580 = vmatpush1.xpose.msra.mxu0 %v3575
      %3581 = vmatprep.subr.mxu0 0.0
      %3582 = vmatpush1.xpose.msra.mxu0 0.0
      %3583 = vmatprep.subr.mxu0 0.0
      %3584 = vmatpush1.xpose.msra.mxu0 0.0
      %3585 = vmatprep.subr.mxu0 0.0
      %3586 = vmatpush1.xpose.msra.mxu0 0.0
      %3587 = vmatprep.subr.mxu0 0.0
      %3588 = vmatpush1.xpose.msra.mxu0 0.0
      %3589 = vmatprep.subr.mxu0 0.0
      %3590 = vmatpush1.xpose.msra.mxu0 0.0
      %3591 = vmatprep.subr.mxu0 0.0
      %3592 = vmatpush1.xpose.msra.mxu0 0.0
      %3593 = vmatprep.subr.mxu0 0.0
      %3594 = vmatpush1.xpose.msra.mxu0 0.0
      %3595 = vmatprep.subr.mxu0 0.0
      %3596 = vmatpush1.xpose.msra.mxu0 0.0
      %3597 = vmatprep.subr.mxu0 0.0
      %3598 = vmatpush1.xpose.msra.mxu0 0.0
      %3599 = vmatprep.subr.mxu0 0.0
      %3600 = vmatpush1.xpose.msra.mxu0 0.0
      %3601 = vmatprep.subr.mxu0 0.0
      %3602 = vmatpush1.xpose.msra.mxu0 0.0
      %3603 = vmatprep.subr.mxu0 0.0
      %3604 = vmatpush1.xpose.msra.mxu0 0.0
      %3605 = vmatprep.subr.mxu0 0.0
      %3606 = vmatpush1.xpose.msra.mxu0 0.0
      %3607 = vmatprep.subr.mxu0 0.0
      %3608 = vmatpush1.xpose.msra.mxu0 0.0
      %3609 = vmatprep.subr.mxu0 0.0
      %3610 = vmatpush1.xpose.msra.mxu0 0.0
      %3611 = vmatprep.subr.mxu0 0.0
      %3612 = vmatpush1.xpose.msra.mxu0 0.0
      %3613 = vmatprep.subr.mxu0 0.0
      %3614 = vmatpush1.xpose.msra.mxu0 0.0
      %3615 = vmatprep.subr.mxu0 0.0
      %3616 = vmatpush1.xpose.msra.mxu0 0.0
      %3617 = vmatprep.subr.mxu0 0.0
      %3618 = vmatpush1.xpose.msra.mxu0 0.0
      %3619 = vmatprep.subr.mxu0 0.0
      %3620 = vmatpush1.xpose.msra.mxu0 0.0
      %3621 = vmatprep.subr.mxu0 0.0
      %3622 = vmatpush1.xpose.msra.mxu0 0.0
      %3623 = vmatprep.subr.mxu0 0.0
      %3624 = vmatpush1.xpose.msra.mxu0 0.0
      %3625 = vmatprep.subr.mxu0 0.0
      %3626 = vmatpush1.xpose.msra.mxu0 0.0
      %3627 = vmatprep.subr.mxu0 0.0
      %3628 = vmatpush1.xpose.msra.mxu0 0.0
      %3629 = vmatprep.subr.mxu0 0.0
      %3630 = vmatpush1.xpose.msra.mxu0 0.0
      %3631 = vmatprep.subr.mxu0 0.0
      %3632 = vmatpush1.xpose.msra.mxu0 0.0
      %3633 = vmatprep.subr.mxu0 0.0
      %3634 = vmatpush1.xpose.msra.mxu0 0.0
      %3635 = vmatprep.subr.mxu0 0.0
      %3636 = vmatpush1.xpose.msra.mxu0 0.0
      %3637 = vmatprep.subr.mxu0 0.0
      %3638 = vmatpush1.xpose.msra.mxu0 0.0
      %3639 = vmatprep.subr.mxu0 0.0
      %3640 = vmatpush1.xpose.msra.mxu0 0.0
      %3641 = vmatprep.mubr.f32.mxu0 0.0
      %3642 = vmatmul.mubr.f32.gmra.mrb[0].mxu0 %v3568
      %v3643 = vpop.f32.mrb[0].mxu0
      %v3644 = vadd.f32 0.0, %v3643
      %v3645 = vpop.f32.mrb[0].mxu0
      %3646 = vmatprep.mubr.f32.mxu0 0.0
      %3647 = vmatmul.mubr.f32.gmra.mrb[0].mxu0 %v3571
      %v3648 = vpop.f32.mrb[0].mxu0
      %v3649 = vadd.f32 0.0, %v3648
      %v3650 = vpop.f32.mrb[0].mxu0
      %3651 = vdwg.mxu0
      %v3652 = vsel %vm489, %v3644, 0.0
      %v3653 = vsel %vm490, %v3649, 0.0
      %v3654 = vmul.f32 %v3563, %v3444
      %v3655 = vmul.f32 %v3564, %v3444
      %v3656 = vmul.f32 %v3654, %v3536
      %v3657 = vmul.f32 %v3655, %v3538
      %v3659 = vsel %vm501, %v3656, 0
      %v3662 = vsel %vm501, %v3657, 0
      %v3665 = vsel %vm501, %v3239, 0
      %v3668 = vsel %vm501, %v3240, 0
      %3670 = vmatprep.subr.mxu0 0.0
      %3671 = vmatpush1.xpose.msra.mxu0 %v3665
      %3672 = vmatprep.subr.mxu0 0.0
      %3673 = vmatpush1.xpose.msra.mxu0 %v3668
      %3674 = vmatprep.subr.mxu0 0.0
      %3675 = vmatpush1.xpose.msra.mxu0 0.0
      %3676 = vmatprep.subr.mxu0 0.0
      %3677 = vmatpush1.xpose.msra.mxu0 0.0
      %3678 = vmatprep.subr.mxu0 0.0
      %3679 = vmatpush1.xpose.msra.mxu0 0.0
      %3680 = vmatprep.subr.mxu0 0.0
      %3681 = vmatpush1.xpose.msra.mxu0 0.0
      %3682 = vmatprep.subr.mxu0 0.0
      %3683 = vmatpush1.xpose.msra.mxu0 0.0
      %3684 = vmatprep.subr.mxu0 0.0
      %3685 = vmatpush1.xpose.msra.mxu0 0.0
      %3686 = vmatprep.subr.mxu0 0.0
      %3687 = vmatpush1.xpose.msra.mxu0 0.0
      %3688 = vmatprep.subr.mxu0 0.0
      %3689 = vmatpush1.xpose.msra.mxu0 0.0
      %3690 = vmatprep.subr.mxu0 0.0
      %3691 = vmatpush1.xpose.msra.mxu0 0.0
      %3692 = vmatprep.subr.mxu0 0.0
      %3693 = vmatpush1.xpose.msra.mxu0 0.0
      %3694 = vmatprep.subr.mxu0 0.0
      %3695 = vmatpush1.xpose.msra.mxu0 0.0
      %3696 = vmatprep.subr.mxu0 0.0
      %3697 = vmatpush1.xpose.msra.mxu0 0.0
      %3698 = vmatprep.subr.mxu0 0.0
      %3699 = vmatpush1.xpose.msra.mxu0 0.0
      %3700 = vmatprep.subr.mxu0 0.0
      %3701 = vmatpush1.xpose.msra.mxu0 0.0
      %3702 = vmatprep.subr.mxu0 0.0
      %3703 = vmatpush1.xpose.msra.mxu0 0.0
      %3704 = vmatprep.subr.mxu0 0.0
      %3705 = vmatpush1.xpose.msra.mxu0 0.0
      %3706 = vmatprep.subr.mxu0 0.0
      %3707 = vmatpush1.xpose.msra.mxu0 0.0
      %3708 = vmatprep.subr.mxu0 0.0
      %3709 = vmatpush1.xpose.msra.mxu0 0.0
      %3710 = vmatprep.subr.mxu0 0.0
      %3711 = vmatpush1.xpose.msra.mxu0 0.0
      %3712 = vmatprep.subr.mxu0 0.0
      %3713 = vmatpush1.xpose.msra.mxu0 0.0
      %3714 = vmatprep.subr.mxu0 0.0
      %3715 = vmatpush1.xpose.msra.mxu0 0.0
      %3716 = vmatprep.subr.mxu0 0.0
      %3717 = vmatpush1.xpose.msra.mxu0 0.0
      %3718 = vmatprep.subr.mxu0 0.0
      %3719 = vmatpush1.xpose.msra.mxu0 0.0
      %3720 = vmatprep.subr.mxu0 0.0
      %3721 = vmatpush1.xpose.msra.mxu0 0.0
      %3722 = vmatprep.subr.mxu0 0.0
      %3723 = vmatpush1.xpose.msra.mxu0 0.0
      %3724 = vmatprep.subr.mxu0 0.0
      %3725 = vmatpush1.xpose.msra.mxu0 0.0
      %3726 = vmatprep.subr.mxu0 0.0
      %3727 = vmatpush1.xpose.msra.mxu0 0.0
      %3728 = vmatprep.subr.mxu0 0.0
      %3729 = vmatpush1.xpose.msra.mxu0 0.0
      %3730 = vmatprep.subr.mxu0 0.0
      %3731 = vmatpush1.xpose.msra.mxu0 0.0
      %3732 = vmatprep.subr.mxu0 0.0
      %3733 = vmatpush1.xpose.msra.mxu0 0.0
      %3734 = vmatprep.mubr.f32.mxu0 0.0
      %3735 = vmatmul.mubr.f32.gmra.mrb[0].mxu0 %v3659
      %v3736 = vpop.f32.mrb[0].mxu0
      %v3737 = vadd.f32 0.0, %v3736
      %v3738 = vpop.f32.mrb[0].mxu0
      %3739 = vmatprep.mubr.f32.mxu0 0.0
      %3740 = vmatmul.mubr.f32.gmra.mrb[0].mxu0 %v3662
      %v3741 = vpop.f32.mrb[0].mxu0
      %v3742 = vadd.f32 0.0, %v3741
      %v3743 = vpop.f32.mrb[0].mxu0
      %3744 = vdwg.mxu0
      %v3746 = vsel %vm501, %v3652, 0
      %v3749 = vsel %vm501, %v3653, 0
      %3751 = vmatprep.subr.mxu0 0.0
      %3752 = vmatpush1.msra.mxu0 %v3191
      %3753 = vmatprep.subr.mxu0 0.0
      %3754 = vmatpush1.msra.mxu0 %v3192
      %3755 = vmatprep.subr.mxu0 0.0
      %3756 = vmatpush1.msra.mxu0 0.0
      %3757 = vmatprep.subr.mxu0 0.0
      %3758 = vmatpush1.msra.mxu0 0.0
      %3759 = vmatprep.subr.mxu0 0.0
      %3760 = vmatpush1.msra.mxu0 0.0
      %3761 = vmatprep.subr.mxu0 0.0
      %3762 = vmatpush1.msra.mxu0 0.0
      %3763 = vmatprep.subr.mxu0 0.0
      %3764 = vmatpush1.msra.mxu0 0.0
      %3765 = vmatprep.subr.mxu0 0.0
      %3766 = vmatpush1.msra.mxu0 0.0
      %3767 = vmatprep.subr.mxu0 0.0
      %3768 = vmatpush1.msra.mxu0 0.0
      %3769 = vmatprep.subr.mxu0 0.0
      %3770 = vmatpush1.msra.mxu0 0.0
      %3771 = vmatprep.subr.mxu0 0.0
      %3772 = vmatpush1.msra.mxu0 0.0
      %3773 = vmatprep.subr.mxu0 0.0
      %3774 = vmatpush1.msra.mxu0 0.0
      %3775 = vmatprep.subr.mxu0 0.0
      %3776 = vmatpush1.msra.mxu0 0.0
      %3777 = vmatprep.subr.mxu0 0.0
      %3778 = vmatpush1.msra.mxu0 0.0
      %3779 = vmatprep.subr.mxu0 0.0
      %3780 = vmatpush1.msra.mxu0 0.0
      %3781 = vmatprep.subr.mxu0 0.0
      %3782 = vmatpush1.msra.mxu0 0.0
      %3783 = vmatprep.subr.mxu0 0.0
      %3784 = vmatpush1.msra.mxu0 0.0
      %3785 = vmatprep.subr.mxu0 0.0
      %3786 = vmatpush1.msra.mxu0 0.0
      %3787 = vmatprep.subr.mxu0 0.0
      %3788 = vmatpush1.msra.mxu0 0.0
      %3789 = vmatprep.subr.mxu0 0.0
      %3790 = vmatpush1.msra.mxu0 0.0
      %3791 = vmatprep.subr.mxu0 0.0
      %3792 = vmatpush1.msra.mxu0 0.0
      %3793 = vmatprep.subr.mxu0 0.0
      %3794 = vmatpush1.msra.mxu0 0.0
      %3795 = vmatprep.subr.mxu0 0.0
      %3796 = vmatpush1.msra.mxu0 0.0
      %3797 = vmatprep.subr.mxu0 0.0
      %3798 = vmatpush1.msra.mxu0 0.0
      %3799 = vmatprep.subr.mxu0 0.0
      %3800 = vmatpush1.msra.mxu0 0.0
      %3801 = vmatprep.subr.mxu0 0.0
      %3802 = vmatpush1.msra.mxu0 0.0
      %3803 = vmatprep.subr.mxu0 0.0
      %3804 = vmatpush1.msra.mxu0 0.0
      %3805 = vmatprep.subr.mxu0 0.0
      %3806 = vmatpush1.msra.mxu0 0.0
      %3807 = vmatprep.subr.mxu0 0.0
      %3808 = vmatpush1.msra.mxu0 0.0
      %3809 = vmatprep.subr.mxu0 0.0
      %3810 = vmatpush1.msra.mxu0 0.0
      %3811 = vmatprep.subr.mxu0 0.0
      %3812 = vmatpush1.msra.mxu0 0.0
      %3813 = vmatprep.subr.mxu0 0.0
      %3814 = vmatpush1.msra.mxu0 0.0
      %3815 = vmatprep.mubr.f32.mxu0 0.0
      %3816 = vmatmul.mubr.f32.gmra.mrb[0].mxu0 %v3746
      %v3817 = vpop.f32.mrb[0].mxu0
      %v3818 = vadd.f32 %v3737, %v3817
      %v3819 = vpop.f32.mrb[0].mxu0
      %3820 = vmatprep.mubr.f32.mxu0 0.0
      %3821 = vmatmul.mubr.f32.gmra.mrb[0].mxu0 %v3749
      %v3822 = vpop.f32.mrb[0].mxu0
      %v3823 = vadd.f32 %v3742, %v3822
      %v3824 = vpop.f32.mrb[0].mxu0
      %3825 = vdwg.mxu0
      %v3826 = vmul.f32 %v3237, %v3444
      %v3827 = vmul.f32 %v3238, %v3444
      %v3829 = vsel %vm501, %v3265, 0
      %v3832 = vsel %vm501, %v3266, 0
      %3834 = vmatprep.subr.mxu0 0.0
      %3835 = vmatpush1.msra.mxu0 %v3449
      %3836 = vmatprep.subr.mxu0 0.0
      %3837 = vmatpush1.msra.mxu0 %v3451
      %3838 = vmatprep.subr.mxu0 0.0
      %3839 = vmatpush1.msra.mxu0 0.0
      %3840 = vmatprep.subr.mxu0 0.0
      %3841 = vmatpush1.msra.mxu0 0.0
      %3842 = vmatprep.subr.mxu0 0.0
      %3843 = vmatpush1.msra.mxu0 0.0
      %3844 = vmatprep.subr.mxu0 0.0
      %3845 = vmatpush1.msra.mxu0 0.0
      %3846 = vmatprep.subr.mxu0 0.0
      %3847 = vmatpush1.msra.mxu0 0.0
      %3848 = vmatprep.subr.mxu0 0.0
      %3849 = vmatpush1.msra.mxu0 0.0
      %3850 = vmatprep.subr.mxu0 0.0
      %3851 = vmatpush1.msra.mxu0 0.0
      %3852 = vmatprep.subr.mxu0 0.0
      %3853 = vmatpush1.msra.mxu0 0.0
      %3854 = vmatprep.subr.mxu0 0.0
      %3855 = vmatpush1.msra.mxu0 0.0
      %3856 = vmatprep.subr.mxu0 0.0
      %3857 = vmatpush1.msra.mxu0 0.0
      %3858 = vmatprep.subr.mxu0 0.0
      %3859 = vmatpush1.msra.mxu0 0.0
      %3860 = vmatprep.subr.mxu0 0.0
      %3861 = vmatpush1.msra.mxu0 0.0
      %3862 = vmatprep.subr.mxu0 0.0
      %3863 = vmatpush1.msra.mxu0 0.0
      %3864 = vmatprep.subr.mxu0 0.0
      %3865 = vmatpush1.msra.mxu0 0.0
      %3866 = vmatprep.subr.mxu0 0.0
      %3867 = vmatpush1.msra.mxu0 0.0
      %3868 = vmatprep.subr.mxu0 0.0
      %3869 = vmatpush1.msra.mxu0 0.0
      %3870 = vmatprep.subr.mxu0 0.0
      %3871 = vmatpush1.msra.mxu0 0.0
      %3872 = vmatprep.subr.mxu0 0.0
      %3873 = vmatpush1.msra.mxu0 0.0
      %3874 = vmatprep.subr.mxu0 0.0
      %3875 = vmatpush1.msra.mxu0 0.0
      %3876 = vmatprep.subr.mxu0 0.0
      %3877 = vmatpush1.msra.mxu0 0.0
      %3878 = vmatprep.subr.mxu0 0.0
      %3879 = vmatpush1.msra.mxu0 0.0
      %3880 = vmatprep.subr.mxu0 0.0
      %3881 = vmatpush1.msra.mxu0 0.0
      %3882 = vmatprep.subr.mxu0 0.0
      %3883 = vmatpush1.msra.mxu0 0.0
      %3884 = vmatprep.subr.mxu0 0.0
      %3885 = vmatpush1.msra.mxu0 0.0
      %3886 = vmatprep.subr.mxu0 0.0
      %3887 = vmatpush1.msra.mxu0 0.0
      %3888 = vmatprep.subr.mxu0 0.0
      %3889 = vmatpush1.msra.mxu0 0.0
      %3890 = vmatprep.subr.mxu0 0.0
      %3891 = vmatpush1.msra.mxu0 0.0
      %3892 = vmatprep.subr.mxu0 0.0
      %3893 = vmatpush1.msra.mxu0 0.0
      %3894 = vmatprep.subr.mxu0 0.0
      %3895 = vmatpush1.msra.mxu0 0.0
      %3896 = vmatprep.subr.mxu0 0.0
      %3897 = vmatpush1.msra.mxu0 0.0
      %3898 = vmatprep.mubr.f32.mxu0 0.0
      %3899 = vmatmul.mubr.f32.gmra.mrb[0].mxu0 %v3829
      %v3900 = vpop.f32.mrb[0].mxu0
      %v3901 = vadd.f32 0.0, %v3900
      %v3902 = vpop.f32.mrb[0].mxu0
      %3903 = vmatprep.mubr.f32.mxu0 0.0
      %3904 = vmatmul.mubr.f32.gmra.mrb[0].mxu0 %v3832
      %v3905 = vpop.f32.mrb[0].mxu0
      %v3906 = vadd.f32 0.0, %v3905
      %v3907 = vpop.f32.mrb[0].mxu0
      %3908 = vdwg.mxu0
      %v3909 = vadd.f32 %v3826, %v3901
      %v3910 = vadd.f32 %v3827, %v3906
      %3911 = vrot.lane.b32.xlu0 %v1316, 80
      %v3912 = vpop.permute.xlu0 %3911
      %v3914 = vmul.f32 %v3909, %v3912
      %v3915 = vmul.f32 %v3910, %v3912
      %3916 = vst.msk [vmem:[#allocation3 + $0x30] sm:$0xff] %vm501, %v3914
      %3917 = vst.msk [vmem:[#allocation3 + $0x38] sm:$0xff] %vm501, %v3915
      %v3918 = vmul.f32 %v3239, %v3444
      %v3919 = vmul.f32 %v3240, %v3444
      %3920 = vxpose.xlu0.b32.start [1/16] %v3191, 128
      %3921 = vxpose.xlu0.b32.cont [2/16] %v3192, 128
      %3922 = vxpose.xlu0.b32.cont [3/16] 0.0, 128
      %3923 = vxpose.xlu0.b32.cont [4/16] 0.0, 128
      %3924 = vxpose.xlu0.b32.cont [5/16] 0.0, 128
      %3925 = vxpose.xlu0.b32.cont [6/16] 0.0, 128
      %3926 = vxpose.xlu0.b32.cont [7/16] 0.0, 128
      %3927 = vxpose.xlu0.b32.cont [8/16] 0.0, 128
      %3928 = vxpose.xlu0.b32.cont [9/16] 0.0, 128
      %3929 = vxpose.xlu0.b32.cont [10/16] 0.0, 128
      %3930 = vxpose.xlu0.b32.cont [11/16] 0.0, 128
      %3931 = vxpose.xlu0.b32.cont [12/16] 0.0, 128
      %3932 = vxpose.xlu0.b32.cont [13/16] 0.0, 128
      %3933 = vxpose.xlu0.b32.cont [14/16] 0.0, 128
      %3934 = vxpose.xlu0.b32.cont [15/16] 0.0, 128
      %3935 = vxpose.xlu0.b32.end [16/16] 0.0, 128
      %v3936 = vpop.trf.xlu0
      %v3937 = vpop.trf.xlu0
      %v3938 = vpop.trf.xlu0
      %v3939 = vpop.trf.xlu0
      %v3940 = vpop.trf.xlu0
      %v3941 = vpop.trf.xlu0
      %v3942 = vpop.trf.xlu0
      %v3943 = vpop.trf.xlu0
      %v3944 = vpop.trf.xlu0
      %v3945 = vpop.trf.xlu0
      %v3946 = vpop.trf.xlu0
      %v3947 = vpop.trf.xlu0
      %v3948 = vpop.trf.xlu0
      %v3949 = vpop.trf.xlu0
      %v3950 = vpop.trf.xlu0
      %v3951 = vpop.trf.xlu0
      %v3953 = vsel %vm501, %v3936, 0
      %v3956 = vsel %vm501, %v3937, 0
      %3958 = vmatprep.subr.mxu0 0.0
      %3959 = vmatpush1.msra.mxu0 %v3449
      %3960 = vmatprep.subr.mxu0 0.0
      %3961 = vmatpush1.msra.mxu0 %v3451
      %3962 = vmatprep.subr.mxu0 0.0
      %3963 = vmatpush1.msra.mxu0 0.0
      %3964 = vmatprep.subr.mxu0 0.0
      %3965 = vmatpush1.msra.mxu0 0.0
      %3966 = vmatprep.subr.mxu0 0.0
      %3967 = vmatpush1.msra.mxu0 0.0
      %3968 = vmatprep.subr.mxu0 0.0
      %3969 = vmatpush1.msra.mxu0 0.0
      %3970 = vmatprep.subr.mxu0 0.0
      %3971 = vmatpush1.msra.mxu0 0.0
      %3972 = vmatprep.subr.mxu0 0.0
      %3973 = vmatpush1.msra.mxu0 0.0
      %3974 = vmatprep.subr.mxu0 0.0
      %3975 = vmatpush1.msra.mxu0 0.0
      %3976 = vmatprep.subr.mxu0 0.0
      %3977 = vmatpush1.msra.mxu0 0.0
      %3978 = vmatprep.subr.mxu0 0.0
      %3979 = vmatpush1.msra.mxu0 0.0
      %3980 = vmatprep.subr.mxu0 0.0
      %3981 = vmatpush1.msra.mxu0 0.0
      %3982 = vmatprep.subr.mxu0 0.0
      %3983 = vmatpush1.msra.mxu0 0.0
      %3984 = vmatprep.subr.mxu0 0.0
      %3985 = vmatpush1.msra.mxu0 0.0
      %3986 = vmatprep.subr.mxu0 0.0
      %3987 = vmatpush1.msra.mxu0 0.0
      %3988 = vmatprep.subr.mxu0 0.0
      %3989 = vmatpush1.msra.mxu0 0.0
      %3990 = vmatprep.subr.mxu0 0.0
      %3991 = vmatpush1.msra.mxu0 0.0
      %3992 = vmatprep.subr.mxu0 0.0
      %3993 = vmatpush1.msra.mxu0 0.0
      %3994 = vmatprep.subr.mxu0 0.0
      %3995 = vmatpush1.msra.mxu0 0.0
      %3996 = vmatprep.subr.mxu0 0.0
      %3997 = vmatpush1.msra.mxu0 0.0
      %3998 = vmatprep.subr.mxu0 0.0
      %3999 = vmatpush1.msra.mxu0 0.0
      %4000 = vmatprep.subr.mxu0 0.0
      %4001 = vmatpush1.msra.mxu0 0.0
      %4002 = vmatprep.subr.mxu0 0.0
      %4003 = vmatpush1.msra.mxu0 0.0
      %4004 = vmatprep.subr.mxu0 0.0
      %4005 = vmatpush1.msra.mxu0 0.0
      %4006 = vmatprep.subr.mxu0 0.0
      %4007 = vmatpush1.msra.mxu0 0.0
      %4008 = vmatprep.subr.mxu0 0.0
      %4009 = vmatpush1.msra.mxu0 0.0
      %4010 = vmatprep.subr.mxu0 0.0
      %4011 = vmatpush1.msra.mxu0 0.0
      %4012 = vmatprep.subr.mxu0 0.0
      %4013 = vmatpush1.msra.mxu0 0.0
      %4014 = vmatprep.subr.mxu0 0.0
      %4015 = vmatpush1.msra.mxu0 0.0
      %4016 = vmatprep.subr.mxu0 0.0
      %4017 = vmatpush1.msra.mxu0 0.0
      %4018 = vmatprep.subr.mxu0 0.0
      %4019 = vmatpush1.msra.mxu0 0.0
      %4020 = vmatprep.subr.mxu0 0.0
      %4021 = vmatpush1.msra.mxu0 0.0
      %4022 = vmatprep.mubr.f32.mxu0 0.0
      %4023 = vmatmul.mubr.f32.gmra.mrb[0].mxu0 %v3953
      %v4024 = vpop.f32.mrb[0].mxu0
      %v4025 = vadd.f32 0.0, %v4024
      %v4026 = vpop.f32.mrb[0].mxu0
      %4027 = vmatprep.mubr.f32.mxu0 0.0
      %4028 = vmatmul.mubr.f32.gmra.mrb[0].mxu0 %v3956
      %v4029 = vpop.f32.mrb[0].mxu0
      %v4030 = vadd.f32 0.0, %v4029
      %v4031 = vpop.f32.mrb[0].mxu0
      %4032 = vdwg.mxu0
      %v4033 = vadd.f32 %v3918, %v4025
      %v4034 = vadd.f32 %v3919, %v4030
      %v4035 = vmul.f32 %v4033, %v3912
      %v4036 = vmul.f32 %v4034, %v3912
      %4037 = vst.msk [vmem:[#allocation4 + $0x30] sm:$0xff] %vm501, %v4035
      %4038 = vst.msk [vmem:[#allocation4 + $0x38] sm:$0xff] %vm501, %v4036
      %v4039 = vlog2.pop %v580
      %v4040 = vmul.f32 %v4039, 0.6931472
      %v4041 = vadd.f32 %v4040, %v473
      %vm4042 = vcmask 523271
      %4043 = vst.msk [vmem:[#allocation2 - $0x7] sm:$0x80] %vm4042, %v4041
      %4046 = vrot.lane.b32.xlu0 %v2093, 16
      %v4047 = vpop.permute.xlu0 %4046
      %4048 = vrot.lane.b32.xlu0 %v2098, 16
      %v4049 = vpop.permute.xlu0 %4048
      %4054 = vrot.lane.b32.xlu0 %v2962, 32
      %v4055 = vpop.permute.xlu0 %4054
      %4056 = vrot.lane.b32.xlu0 %v2967, 32
      %v4057 = vpop.permute.xlu0 %4056
      %4062 = vrot.lane.b32.xlu0 %v3818, 48
      %v4063 = vpop.permute.xlu0 %4062
      %4064 = vrot.lane.b32.xlu0 %v3823, 48
      %v4065 = vpop.permute.xlu0 %4064
      %v4068 = vsel %vm501, %v1220, %v4047
      %v4069 = vsel %vm501, %v1225, %v4049
      %vm4070 = vcmask 261120
      %v4071 = vsel %vm4070, %v4068, %v4055
      %v4072 = vsel %vm4070, %v4069, %v4057
      %vm4073 = vcmask 392192
      %v4074 = vsel %vm4073, %v4071, %v4063
      %v4075 = vsel %vm4073, %v4072, %v4065
      %v4076 = vpack.c.bf16 %v4075, %v4074
      %v4078 = vunpack.c.l.b16 %v4076
      %v4079 = vunpack.c.h.b16 %v4076
      %v4080 = vpack.c.b16 %v4078, %v4078
      %v4081 = vpack.c.b16 %v4079, %v4079
      %vm4084 = vcmask 519168
      %4085 = vst.msk [vmem:[%s416] sm:$0xf] %vm4084, %v4080
      %4086 = vst.msk [vmem:[%s416 + $0x4] sm:$0xf] %vm4084, %v4081
      %s4087 = smul.u32 2, %s22
      %p4088 = scmp.lt.s32.totalorder %s21, 1
      %s4089 = scalar_select %p4088, %s21, 1
      %p4090 = scmp.lt.s32.totalorder %s4087, 1
      %s4091 = scalar_select %p4090, %s4087, 1
      %s4092 = smul.addr %s4089, 2
      %s4093 = sadd.s32 %s4091, %s4092
      %s4094 = smul.addr %s4093, 4
      %s4095 = scalar_lea.vmem %s6, %s4094
      // Predicated region
      $region49: #{abc_attention_forward.9} parent=43 // pred_check
        %p4096 = pneg %p209
      $region50: #{abc_attention_forward.9} parent=43 // pred_check_branch
        %4098 = sbr.rel (%p4096) target = $region52
      $region51: #{abc_attention_forward.9} parent=43 // pred_region
        %s4099 = smul.u32 2, %s22
      $region52: #{abc_attention_forward.9} parent=43 // pred_fallthru
        _
    $region44: #{abc_attention_forward.9} parent=5 // pred_fallthru
      _
    %p4100 = scmp.le.s32.totalorder 2, %s12
    // Predicated region
    $region53: #{abc_attention_forward.9} parent=5 // pred_check
      %p4101 = pneg %p4100
    $region54: #{abc_attention_forward.9} parent=5 // pred_check_branch
      %4103 = sbr.rel (%p4101) target = $region56
    $region55: #{abc_attention_forward.9} parent=5 // pred_region
      %s4104 = ssub.s32 %s12, 2
      // Predicated region
      $region57: #{abc_attention_forward.9} parent=55 // pred_check
        %p4105 = pneg %p215
      $region58: #{abc_attention_forward.9} parent=55 // pred_check_branch
        %4107 = sbr.rel (%p4105) target = $region60
      $region59: #{abc_attention_forward.9} parent=55 // pred_region
        %s4108 = smul.u32 2, %s24
        %p4109 = scmp.lt.s32.totalorder %s23, 1
        %s4110 = scalar_select %p4109, %s23, 1
        %p4111 = scmp.lt.s32.totalorder %s4108, 1
        %s4112 = scalar_select %p4111, %s4108, 1
        %s4113 = smul.addr %s4110, 2
        %s4114 = sadd.s32 %s4112, %s4113
        %s4115 = smul.addr %s4114, 4
        %s4116 = scalar_lea.vmem %s6, %s4115
      $region60: #{abc_attention_forward.9} parent=55 // pred_fallthru
        _
    $region56: #{abc_attention_forward.9} parent=5 // pred_fallthru
      _
  $region6: #{abc_attention_forward.9} parent=0 // loop_footer
    %s16 = sadd.s32 1, %s12
  $region7: #{abc_attention_forward.9} parent=0 // loop_footer_branch
    %11 = sbr.rel target = $region3
  $region8: #{abc_attention_forward.9} parent=0 // loop_exit
    _

</llo_original>
